<compile_context>
chip_gen: v5e
topology: v5e:2x2
jax: 0.10.0
libtpu: 0.0.40
codegen_flags: <defaults>
</compile_context>

<pallas_src>
import functools
import math

import jax
import jax.numpy as jnp
from jax.experimental import pallas as pl
from jax.experimental.pallas import tpu as pltpu

LN_EPS = 1e-5  # PyTorch nn.LayerNorm default


def _layer_norm(x, gamma, beta, eps=LN_EPS):
    mu = jnp.mean(x, axis=-1, keepdims=True)
    xc = x - mu
    var = jnp.mean(xc * xc, axis=-1, keepdims=True)
    return xc * jax.lax.rsqrt(var + eps) * gamma + beta


def _gelu_tanh(x):
    # tanh-approximate GELU (tanh runs on the EUP).
    c = math.sqrt(2.0 / math.pi)
    return 0.5 * x * (1.0 + jnp.tanh(c * (x + 0.044715 * x * x * x)))


def transformer_block_kernel(
    x_ref,                       # (1, S, E) f32  — one batch element per grid step
    g1_ref, be1_ref,             # LayerNorm1 gamma/beta   (1, E) f32
    wqkv_ref, bqkv_ref,          # fused QKV proj          (E, 3E) bf16 / (1, 3E) f32
    wo_ref, bo_ref,              # attention out proj      (E, E) bf16 / (1, E) f32
    g2_ref, be2_ref,             # LayerNorm2 gamma/beta   (1, E) f32
    w1_ref, b1_ref,              # MLP fc1                 (E, H) bf16 / (1, H) f32
    w2_ref, b2_ref,              # MLP fc2                 (H, E) bf16 / (1, E) f32
    o_ref,                       # (1, S, E) f32
    *, num_heads,
):
    f32, bf16 = jnp.float32, jnp.bfloat16

    x = x_ref[0]                                  # (S, E) f32
    S, E = x.shape
    head_dim = E // num_heads

    # ---- LayerNorm 1 (f32) ----
    xn = _layer_norm(x, g1_ref[...], be1_ref[...])

    # ---- fused QKV projection (bf16 MXU inputs, f32 accumulation) ----
    # 1/sqrt(head_dim) is pre-folded into the Q columns of wqkv/bqkv by the wrapper.
    qkv = jnp.dot(xn.astype(bf16), wqkv_ref[...],
                  preferred_element_type=f32) + bqkv_ref[...]       # (S, 3E)
    q = qkv[:, :E]                                                  # (S, E) scaled
    kT = qkv[:, E:2 * E].T.astype(bf16)                             # one (S,E)->(E,S) transpose
    v = qkv[:, 2 * E:]                                              # (S, E)

    # ---- multi-head self-attention (eval: attention dropout = identity) ----
    wo = wo_ref[...]                                                # (E, E) bf16
    attn_proj = jnp.zeros((S, E), f32)
    for h in range(num_heads):
        sl = slice(h * head_dim, (h + 1) * head_dim)
        qh = q[:, sl].astype(bf16)                                  # (S, Dh)
        # scores = qh @ kT_h ; kT_h is a free sublane slice of the shared K^T
        scores = jnp.dot(qh, kT[sl, :], preferred_element_type=f32)  # (S, S)
        e = jnp.exp(scores - jnp.max(scores, axis=-1, keepdims=True))
        denom = jnp.sum(e, axis=-1, keepdims=True)                  # (S, 1)
        o_h = jnp.dot(e.astype(bf16), v[:, sl].astype(bf16),
                      preferred_element_type=f32)                   # (S, Dh)
        # deferred softmax normalization on the small head output (EUP reciprocal)
        o_h = o_h * pl.reciprocal(denom, approx=True)
        # accumulate the output projection per head; wo[sl, :] is a sublane row-slice
        attn_proj = attn_proj + jnp.dot(o_h.astype(bf16), wo[sl, :],
                                        preferred_element_type=f32)

    # ---- output-projection bias + residual (f32) ----
    y = x + attn_proj + bo_ref[...]

    # ---- LayerNorm 2 + MLP (Linear -> GELU -> Linear), dropout = identity ----
    yn = _layer_norm(y, g2_ref[...], be2_ref[...])
    h1 = jnp.dot(yn.astype(bf16), w1_ref[...],
                 preferred_element_type=f32) + b1_ref[...]          # (S, H)
    h1 = _gelu_tanh(h1)
    h2 = jnp.dot(h1.astype(bf16), w2_ref[...],
                 preferred_element_type=f32) + b2_ref[...]          # (S, E)

    o_ref[0] = (y + h2).astype(o_ref.dtype)


def transformer_block_forward(x, params, *, num_heads):
    """x: [batch, seq, embed] f32 -> [batch, seq, embed] f32 (eval mode)."""
    (g1, be1, wqkv, bqkv, wo, bo, g2, be2, w1, b1, w2, b2) = params
    B, S, E = x.shape
    H_mlp = w1.shape[1]
    assert E % num_heads == 0
    assert E % 128 == 0 and (3 * E) % 128 == 0 and H_mlp % 128 == 0 and S % 8 == 0, (
        "feature dims must be lane-dense (multiples of 128) and seq a multiple of 8")

    # Fold the attention scale 1/sqrt(head_dim) into the Q columns of the fused
    # QKV projection (one-time transform outside the kernel; zero in-kernel cost).
    scale = 1.0 / math.sqrt(E // num_heads)
    col_scale = jnp.concatenate(
        [jnp.full((E,), scale, jnp.float32), jnp.ones((2 * E,), jnp.float32)])
    wqkv_f = (wqkv.astype(jnp.float32) * col_scale[None, :]).astype(wqkv.dtype)
    bqkv_f = (bqkv * col_scale[None, :]).astype(bqkv.dtype)

    # Advisory cost estimate for XLA's scheduler.
    flops = int(2 * B * S * E * 3 * E            # QKV projection
                + 2 * B * S * S * E * 2          # scores + p@v (summed over heads)
                + 2 * B * S * E * E              # output projection
                + 2 * B * S * E * H_mlp * 2)     # MLP fc1 + fc2
    transcendentals = int(B * num_heads * S * S + B * S * H_mlp)
    bytes_accessed = int(2 * x.size * x.dtype.itemsize
                         + sum(p.size * p.dtype.itemsize for p in params))

    kernel = pl.pallas_call(
        functools.partial(transformer_block_kernel, num_heads=num_heads),
        out_shape=jax.ShapeDtypeStruct((B, S, E), x.dtype),
        grid_spec=pltpu.PrefetchScalarGridSpec(
            num_scalar_prefetch=0,
            grid=(B,),
            in_specs=[
                pl.BlockSpec((1, S, E), lambda b: (b, 0, 0)),        # x
                pl.BlockSpec((1, E), lambda b: (0, 0)),              # LN1 gamma
                pl.BlockSpec((1, E), lambda b: (0, 0)),              # LN1 beta
                pl.BlockSpec((E, 3 * E), lambda b: (0, 0)),          # Wqkv
                pl.BlockSpec((1, 3 * E), lambda b: (0, 0)),          # bqkv
                pl.BlockSpec((E, E), lambda b: (0, 0)),              # Wo
                pl.BlockSpec((1, E), lambda b: (0, 0)),              # bo
                pl.BlockSpec((1, E), lambda b: (0, 0)),              # LN2 gamma
                pl.BlockSpec((1, E), lambda b: (0, 0)),              # LN2 beta
                pl.BlockSpec((E, H_mlp), lambda b: (0, 0)),          # W1
                pl.BlockSpec((1, H_mlp), lambda b: (0, 0)),          # b1
                pl.BlockSpec((H_mlp, E), lambda b: (0, 0)),          # W2
                pl.BlockSpec((1, E), lambda b: (0, 0)),              # b2
            ],
            out_specs=pl.BlockSpec((1, S, E), lambda b: (b, 0, 0)),
        ),
        compiler_params=pltpu.CompilerParams(
            dimension_semantics=("parallel",),     # batch steps shard across v7x TCs
            vmem_limit_bytes=32 * 1024 * 1024,
        ),
        cost_estimate=pl.CostEstimate(
            flops=flops, transcendentals=transcendentals,
            bytes_accessed=bytes_accessed),
    )
    return kernel(x, g1, be1, wqkv_f, bqkv_f, wo, bo, g2, be2, w1, b1, w2, b2)


def init_transformer_block_params(key, embed_dim, num_heads, mlp_ratio=4.0,
                                  weight_dtype=jnp.bfloat16):
    """Weights stored transposed vs PyTorch ([in, out]) so the kernel does x @ W.
    Weights kept in bf16 (MXU-native); biases and LayerNorm params in f32."""
    E = embed_dim
    H_mlp = int(embed_dim * mlp_ratio)

    def linear(k, d_in, d_out):
        kw, kb = jax.random.split(k)
        bound = 1.0 / math.sqrt(d_in)
        w = jax.random.uniform(kw, (d_in, d_out), jnp.float32, -bound, bound)
        b = jax.random.uniform(kb, (1, d_out), jnp.float32, -bound, bound)
        return w.astype(weight_dtype), b

    k_qkv, k_o, k_1, k_2 = jax.random.split(key, 4)
    wqkv, bqkv = linear(k_qkv, E, 3 * E)
    wo, bo = linear(k_o, E, E)
    w1, b1 = linear(k_1, E, H_mlp)
    w2, b2 = linear(k_2, H_mlp, E)
    g1 = jnp.ones((1, E), jnp.float32)
    be1 = jnp.zeros((1, E), jnp.float32)
    g2 = jnp.ones((1, E), jnp.float32)
    be2 = jnp.zeros((1, E), jnp.float32)
    return (g1, be1, wqkv, bqkv, wo, bo, g2, be2, w1, b1, w2, b2)


def transformer_block_reference(x, params, *, num_heads):
    """Pure-JAX eval-mode TransformerBlock using the SAME mixed-precision policy
    as the kernel (bf16 matmul inputs, f32 accumulation, f32 elsewhere)."""
    (g1, be1, wqkv, bqkv, wo, bo, g2, be2, w1, b1, w2, b2) = params
    B, S, E = x.shape
    Dh = E // num_heads
    bf16, f32 = jnp.bfloat16, jnp.float32

    def mm(a, w):
        return jnp.einsum('bse,ef->bsf', a.astype(bf16), w.astype(bf16),
                          preferred_element_type=f32)

    xn = _layer_norm(x, g1, be1)
    qkv = mm(xn, wqkv) + bqkv
    q, k, v = qkv[..., :E], qkv[..., E:2 * E], qkv[..., 2 * E:]

    def heads(t):  # (B, S, E) -> (B, H, S, Dh)
        return t.reshape(B, S, num_heads, Dh).transpose(0, 2, 1, 3)

    qh = (heads(q) * (1.0 / math.sqrt(Dh))).astype(bf16)
    kh = heads(k).astype(bf16)
    vh = heads(v).astype(bf16)
    scores = jnp.einsum('bhqd,bhkd->bhqk', qh, kh, preferred_element_type=f32)
    p = jax.nn.softmax(scores, axis=-1)
    o = jnp.einsum('bhqk,bhkd->bhqd', p.astype(bf16), vh, preferred_element_type=f32)
    attn = o.transpose(0, 2, 1, 3).reshape(B, S, E)

    y = x + mm(attn, wo) + bo
    yn = _layer_norm(y, g2, be2)
    h = _gelu_tanh(mm(yn, w1) + b1)
    return y + mm(h, w2) + b2


if __name__ == "__main__":
    embed_dim, num_heads, mlp_ratio = 128, 4, 4.0   # lane-dense dims; hidden = 512
    batch, seq = 2, 256                             # 256-row slab per grid step

    key = jax.random.PRNGKey(0)
    kx, kp = jax.random.split(key)
    x = jax.random.normal(kx, (batch, seq, embed_dim), jnp.float32)
    params = init_transformer_block_params(kp, embed_dim, num_heads, mlp_ratio)

    out = transformer_block_forward(x, params, num_heads=num_heads)
    out = jax.block_until_ready(out)

    ref = transformer_block_reference(x, params, num_heads=num_heads)
    assert out.shape == (batch, seq, embed_dim)
    max_err = float(jnp.max(jnp.abs(out - ref)))
    assert jnp.allclose(out, ref, atol=2e-2, rtol=2e-2), (
        f"mismatch vs reference (max abs err {max_err})")

    print("KERNEL_OK")
</pallas_src>

<mosaic_0001>
module attributes {stable_mosaic.version = 11 : i64} {
  func.func @transformer_block_kernel(%arg0: i32, %arg1: memref<1x256x128xf32, #tpu.memory_space<vmem>>, %arg2: memref<1x128xf32, #tpu.memory_space<vmem>>, %arg3: memref<1x128xf32, #tpu.memory_space<vmem>>, %arg4: memref<128x384xbf16, #tpu.memory_space<vmem>>, %arg5: memref<1x384xf32, #tpu.memory_space<vmem>>, %arg6: memref<128x128xbf16, #tpu.memory_space<vmem>>, %arg7: memref<1x128xf32, #tpu.memory_space<vmem>>, %arg8: memref<1x128xf32, #tpu.memory_space<vmem>>, %arg9: memref<1x128xf32, #tpu.memory_space<vmem>>, %arg10: memref<128x512xbf16, #tpu.memory_space<vmem>>, %arg11: memref<1x512xf32, #tpu.memory_space<vmem>>, %arg12: memref<512x128xbf16, #tpu.memory_space<vmem>>, %arg13: memref<1x128xf32, #tpu.memory_space<vmem>>, %arg14: memref<1x256x128xf32, #tpu.memory_space<vmem>>) attributes {dimension_semantics = [#tpu.dimension_semantics<parallel>], iteration_bounds = array<i64: 2>, scalar_prefetch = 0 : i64, scratch_operands = 0 : i64, tpu.core_type = #tpu.core_type<tc>, window_params = [{transform_indices = @transform_0, window_bounds = array<i64: 1, 256, 128>}, {pipeline_mode = #tpu.pipeline_mode<synchronous>, transform_indices = @transform_1, window_bounds = array<i64: 1, 128>}, {pipeline_mode = #tpu.pipeline_mode<synchronous>, transform_indices = @transform_2, window_bounds = array<i64: 1, 128>}, {pipeline_mode = #tpu.pipeline_mode<synchronous>, transform_indices = @transform_3, window_bounds = array<i64: 128, 384>}, {pipeline_mode = #tpu.pipeline_mode<synchronous>, transform_indices = @transform_4, window_bounds = array<i64: 1, 384>}, {pipeline_mode = #tpu.pipeline_mode<synchronous>, transform_indices = @transform_5, window_bounds = array<i64: 128, 128>}, {pipeline_mode = #tpu.pipeline_mode<synchronous>, transform_indices = @transform_6, window_bounds = array<i64: 1, 128>}, {pipeline_mode = #tpu.pipeline_mode<synchronous>, transform_indices = @transform_7, window_bounds = array<i64: 1, 128>}, {pipeline_mode = #tpu.pipeline_mode<synchronous>, transform_indices = @transform_8, window_bounds = array<i64: 1, 128>}, {pipeline_mode = #tpu.pipeline_mode<synchronous>, transform_indices = @transform_9, window_bounds = array<i64: 128, 512>}, {pipeline_mode = #tpu.pipeline_mode<synchronous>, transform_indices = @transform_10, window_bounds = array<i64: 1, 512>}, {pipeline_mode = #tpu.pipeline_mode<synchronous>, transform_indices = @transform_11, window_bounds = array<i64: 512, 128>}, {pipeline_mode = #tpu.pipeline_mode<synchronous>, transform_indices = @transform_12, window_bounds = array<i64: 1, 128>}, {transform_indices = @transform_13, window_bounds = array<i64: 1, 256, 128>}]} {
    %c0 = arith.constant 0 : index
    %c0_0 = arith.constant 0 : index
    %c0_1 = arith.constant 0 : index
    %0 = vector.load %arg1[%c0, %c0_0, %c0_1] : memref<1x256x128xf32, #tpu.memory_space<vmem>>, vector<1x256x128xf32>
    %1 = vector.shape_cast %0 : vector<1x256x128xf32> to vector<256x128xf32>
    %c0_2 = arith.constant 0 : index
    %c0_3 = arith.constant 0 : index
    %2 = vector.load %arg2[%c0_2, %c0_3] : memref<1x128xf32, #tpu.memory_space<vmem>>, vector<1x128xf32>
    %c0_4 = arith.constant 0 : index
    %c0_5 = arith.constant 0 : index
    %3 = vector.load %arg3[%c0_4, %c0_5] : memref<1x128xf32, #tpu.memory_space<vmem>>, vector<1x128xf32>
    %cst = arith.constant dense<0.000000e+00> : vector<256xf32>
    %4 = vector.multi_reduction <add>, %1, %cst [1] : vector<256x128xf32> to vector<256xf32>
    %5 = vector.shape_cast %4 : vector<256xf32> to vector<256x1xf32>
    %cst_6 = arith.constant 1.280000e+02 : f32
    %6 = vector.broadcast %cst_6 : f32 to vector<256x1xf32>
    %7 = arith.divf %5, %6 : vector<256x1xf32>
    %8 = vector.broadcast %7 : vector<256x1xf32> to vector<256x128xf32>
    %9 = arith.subf %1, %8 : vector<256x128xf32>
    %10 = arith.mulf %9, %9 : vector<256x128xf32>
    %cst_7 = arith.constant dense<0.000000e+00> : vector<256xf32>
    %11 = vector.multi_reduction <add>, %10, %cst_7 [1] : vector<256x128xf32> to vector<256xf32>
    %12 = vector.shape_cast %11 : vector<256xf32> to vector<256x1xf32>
    %cst_8 = arith.constant 1.280000e+02 : f32
    %13 = vector.broadcast %cst_8 : f32 to vector<256x1xf32>
    %14 = arith.divf %12, %13 : vector<256x1xf32>
    %cst_9 = arith.constant 9.99999974E-6 : f32
    %15 = vector.broadcast %cst_9 : f32 to vector<256x1xf32>
    %16 = arith.addf %14, %15 : vector<256x1xf32>
    %17 = math.rsqrt %16 : vector<256x1xf32>
    %18 = vector.broadcast %17 : vector<256x1xf32> to vector<256x128xf32>
    %19 = arith.mulf %9, %18 : vector<256x128xf32>
    %20 = vector.broadcast %2 : vector<1x128xf32> to vector<256x128xf32>
    %21 = arith.mulf %19, %20 : vector<256x128xf32>
    %22 = vector.broadcast %3 : vector<1x128xf32> to vector<256x128xf32>
    %23 = arith.addf %21, %22 : vector<256x128xf32>
    %24 = arith.truncf %23 : vector<256x128xf32> to vector<256x128xbf16>
    %c0_10 = arith.constant 0 : index
    %c0_11 = arith.constant 0 : index
    %25 = vector.load %arg4[%c0_10, %c0_11] : memref<128x384xbf16, #tpu.memory_space<vmem>>, vector<128x384xbf16>
    %cst_12 = arith.constant dense<0.000000e+00> : vector<256x384xf32>
    %26 = tpu.matmul %24, %25, %cst_12 {dimension_numbers = #tpu.dot_dimension_numbers<[1], [0], [0], [1], [0, 0, 1, 1], [], []>} : vector<256x128xbf16>, vector<128x384xbf16>, vector<256x384xf32> -> vector<256x384xf32>
    %c0_13 = arith.constant 0 : index
    %c0_14 = arith.constant 0 : index
    %27 = vector.load %arg5[%c0_13, %c0_14] : memref<1x384xf32, #tpu.memory_space<vmem>>, vector<1x384xf32>
    %28 = vector.broadcast %27 : vector<1x384xf32> to vector<256x384xf32>
    %29 = arith.addf %26, %28 : vector<256x384xf32>
    %30 = vector.extract_strided_slice %29 {offsets = [0, 0], sizes = [256, 128], strides = [1, 1]} : vector<256x384xf32> to vector<256x128xf32>
    %31 = vector.extract_strided_slice %29 {offsets = [0, 128], sizes = [256, 128], strides = [1, 1]} : vector<256x384xf32> to vector<256x128xf32>
    %32 = tpu.transpose %31, [1, 0] : vector<256x128xf32> -> vector<128x256xf32>
    %33 = arith.truncf %32 : vector<128x256xf32> to vector<128x256xbf16>
    %34 = vector.extract_strided_slice %29 {offsets = [0, 256], sizes = [256, 128], strides = [1, 1]} : vector<256x384xf32> to vector<256x128xf32>
    %c0_15 = arith.constant 0 : index
    %c0_16 = arith.constant 0 : index
    %35 = vector.load %arg6[%c0_15, %c0_16] : memref<128x128xbf16, #tpu.memory_space<vmem>>, vector<128x128xbf16>
    %cst_17 = arith.constant 0.000000e+00 : f32
    %36 = vector.broadcast %cst_17 : f32 to vector<256x128xf32>
    %37 = vector.extract_strided_slice %30 {offsets = [0, 0], sizes = [256, 32], strides = [1, 1]} : vector<256x128xf32> to vector<256x32xf32>
    %38 = arith.truncf %37 : vector<256x32xf32> to vector<256x32xbf16>
    %39 = vector.extract_strided_slice %33 {offsets = [0, 0], sizes = [32, 256], strides = [1, 1]} : vector<128x256xbf16> to vector<32x256xbf16>
    %cst_18 = arith.constant dense<0.000000e+00> : vector<256x256xf32>
    %40 = tpu.matmul %38, %39, %cst_18 {dimension_numbers = #tpu.dot_dimension_numbers<[1], [0], [0], [1], [0, 0, 1, 1], [], []>} : vector<256x32xbf16>, vector<32x256xbf16>, vector<256x256xf32> -> vector<256x256xf32>
    %cst_19 = arith.constant dense<0xFF800000> : vector<256xf32>
    %41 = vector.multi_reduction <maximumf>, %40, %cst_19 [1] : vector<256x256xf32> to vector<256xf32>
    %42 = vector.shape_cast %41 : vector<256xf32> to vector<256x1xf32>
    %43 = vector.broadcast %42 : vector<256x1xf32> to vector<256x256xf32>
    %44 = arith.subf %40, %43 : vector<256x256xf32>
    %45 = math.exp %44 : vector<256x256xf32>
    %cst_20 = arith.constant dense<0.000000e+00> : vector<256xf32>
    %46 = vector.multi_reduction <add>, %45, %cst_20 [1] : vector<256x256xf32> to vector<256xf32>
    %47 = vector.shape_cast %46 : vector<256xf32> to vector<256x1xf32>
    %48 = arith.truncf %45 : vector<256x256xf32> to vector<256x256xbf16>
    %49 = vector.extract_strided_slice %34 {offsets = [0, 0], sizes = [256, 32], strides = [1, 1]} : vector<256x128xf32> to vector<256x32xf32>
    %50 = arith.truncf %49 : vector<256x32xf32> to vector<256x32xbf16>
    %cst_21 = arith.constant dense<0.000000e+00> : vector<256x32xf32>
    %51 = tpu.matmul %48, %50, %cst_21 {dimension_numbers = #tpu.dot_dimension_numbers<[1], [0], [0], [1], [0, 0, 1, 1], [], []>} : vector<256x256xbf16>, vector<256x32xbf16>, vector<256x32xf32> -> vector<256x32xf32>
    %52 = tpu.reciprocal %47 {approx = true} : vector<256x1xf32> -> vector<256x1xf32>
    %53 = vector.broadcast %52 : vector<256x1xf32> to vector<256x32xf32>
    %54 = arith.mulf %51, %53 : vector<256x32xf32>
    %55 = arith.truncf %54 : vector<256x32xf32> to vector<256x32xbf16>
    %56 = vector.extract_strided_slice %35 {offsets = [0, 0], sizes = [32, 128], strides = [1, 1]} : vector<128x128xbf16> to vector<32x128xbf16>
    %cst_22 = arith.constant dense<0.000000e+00> : vector<256x128xf32>
    %57 = tpu.matmul %55, %56, %cst_22 {dimension_numbers = #tpu.dot_dimension_numbers<[1], [0], [0], [1], [0, 0, 1, 1], [], []>} : vector<256x32xbf16>, vector<32x128xbf16>, vector<256x128xf32> -> vector<256x128xf32>
    %58 = arith.addf %36, %57 : vector<256x128xf32>
    %59 = vector.extract_strided_slice %30 {offsets = [0, 32], sizes = [256, 32], strides = [1, 1]} : vector<256x128xf32> to vector<256x32xf32>
    %60 = arith.truncf %59 : vector<256x32xf32> to vector<256x32xbf16>
    %61 = vector.extract_strided_slice %33 {offsets = [32, 0], sizes = [32, 256], strides = [1, 1]} : vector<128x256xbf16> to vector<32x256xbf16>
    %cst_23 = arith.constant dense<0.000000e+00> : vector<256x256xf32>
    %62 = tpu.matmul %60, %61, %cst_23 {dimension_numbers = #tpu.dot_dimension_numbers<[1], [0], [0], [1], [0, 0, 1, 1], [], []>} : vector<256x32xbf16>, vector<32x256xbf16>, vector<256x256xf32> -> vector<256x256xf32>
    %cst_24 = arith.constant dense<0xFF800000> : vector<256xf32>
    %63 = vector.multi_reduction <maximumf>, %62, %cst_24 [1] : vector<256x256xf32> to vector<256xf32>
    %64 = vector.shape_cast %63 : vector<256xf32> to vector<256x1xf32>
    %65 = vector.broadcast %64 : vector<256x1xf32> to vector<256x256xf32>
    %66 = arith.subf %62, %65 : vector<256x256xf32>
    %67 = math.exp %66 : vector<256x256xf32>
    %cst_25 = arith.constant dense<0.000000e+00> : vector<256xf32>
    %68 = vector.multi_reduction <add>, %67, %cst_25 [1] : vector<256x256xf32> to vector<256xf32>
    %69 = vector.shape_cast %68 : vector<256xf32> to vector<256x1xf32>
    %70 = arith.truncf %67 : vector<256x256xf32> to vector<256x256xbf16>
    %71 = vector.extract_strided_slice %34 {offsets = [0, 32], sizes = [256, 32], strides = [1, 1]} : vector<256x128xf32> to vector<256x32xf32>
    %72 = arith.truncf %71 : vector<256x32xf32> to vector<256x32xbf16>
    %cst_26 = arith.constant dense<0.000000e+00> : vector<256x32xf32>
    %73 = tpu.matmul %70, %72, %cst_26 {dimension_numbers = #tpu.dot_dimension_numbers<[1], [0], [0], [1], [0, 0, 1, 1], [], []>} : vector<256x256xbf16>, vector<256x32xbf16>, vector<256x32xf32> -> vector<256x32xf32>
    %74 = tpu.reciprocal %69 {approx = true} : vector<256x1xf32> -> vector<256x1xf32>
    %75 = vector.broadcast %74 : vector<256x1xf32> to vector<256x32xf32>
    %76 = arith.mulf %73, %75 : vector<256x32xf32>
    %77 = arith.truncf %76 : vector<256x32xf32> to vector<256x32xbf16>
    %78 = vector.extract_strided_slice %35 {offsets = [32, 0], sizes = [32, 128], strides = [1, 1]} : vector<128x128xbf16> to vector<32x128xbf16>
    %cst_27 = arith.constant dense<0.000000e+00> : vector<256x128xf32>
    %79 = tpu.matmul %77, %78, %cst_27 {dimension_numbers = #tpu.dot_dimension_numbers<[1], [0], [0], [1], [0, 0, 1, 1], [], []>} : vector<256x32xbf16>, vector<32x128xbf16>, vector<256x128xf32> -> vector<256x128xf32>
    %80 = arith.addf %58, %79 : vector<256x128xf32>
    %81 = vector.extract_strided_slice %30 {offsets = [0, 64], sizes = [256, 32], strides = [1, 1]} : vector<256x128xf32> to vector<256x32xf32>
    %82 = arith.truncf %81 : vector<256x32xf32> to vector<256x32xbf16>
    %83 = vector.extract_strided_slice %33 {offsets = [64, 0], sizes = [32, 256], strides = [1, 1]} : vector<128x256xbf16> to vector<32x256xbf16>
    %cst_28 = arith.constant dense<0.000000e+00> : vector<256x256xf32>
    %84 = tpu.matmul %82, %83, %cst_28 {dimension_numbers = #tpu.dot_dimension_numbers<[1], [0], [0], [1], [0, 0, 1, 1], [], []>} : vector<256x32xbf16>, vector<32x256xbf16>, vector<256x256xf32> -> vector<256x256xf32>
    %cst_29 = arith.constant dense<0xFF800000> : vector<256xf32>
    %85 = vector.multi_reduction <maximumf>, %84, %cst_29 [1] : vector<256x256xf32> to vector<256xf32>
    %86 = vector.shape_cast %85 : vector<256xf32> to vector<256x1xf32>
    %87 = vector.broadcast %86 : vector<256x1xf32> to vector<256x256xf32>
    %88 = arith.subf %84, %87 : vector<256x256xf32>
    %89 = math.exp %88 : vector<256x256xf32>
    %cst_30 = arith.constant dense<0.000000e+00> : vector<256xf32>
    %90 = vector.multi_reduction <add>, %89, %cst_30 [1] : vector<256x256xf32> to vector<256xf32>
    %91 = vector.shape_cast %90 : vector<256xf32> to vector<256x1xf32>
    %92 = arith.truncf %89 : vector<256x256xf32> to vector<256x256xbf16>
    %93 = vector.extract_strided_slice %34 {offsets = [0, 64], sizes = [256, 32], strides = [1, 1]} : vector<256x128xf32> to vector<256x32xf32>
    %94 = arith.truncf %93 : vector<256x32xf32> to vector<256x32xbf16>
    %cst_31 = arith.constant dense<0.000000e+00> : vector<256x32xf32>
    %95 = tpu.matmul %92, %94, %cst_31 {dimension_numbers = #tpu.dot_dimension_numbers<[1], [0], [0], [1], [0, 0, 1, 1], [], []>} : vector<256x256xbf16>, vector<256x32xbf16>, vector<256x32xf32> -> vector<256x32xf32>
    %96 = tpu.reciprocal %91 {approx = true} : vector<256x1xf32> -> vector<256x1xf32>
    %97 = vector.broadcast %96 : vector<256x1xf32> to vector<256x32xf32>
    %98 = arith.mulf %95, %97 : vector<256x32xf32>
    %99 = arith.truncf %98 : vector<256x32xf32> to vector<256x32xbf16>
    %100 = vector.extract_strided_slice %35 {offsets = [64, 0], sizes = [32, 128], strides = [1, 1]} : vector<128x128xbf16> to vector<32x128xbf16>
    %cst_32 = arith.constant dense<0.000000e+00> : vector<256x128xf32>
    %101 = tpu.matmul %99, %100, %cst_32 {dimension_numbers = #tpu.dot_dimension_numbers<[1], [0], [0], [1], [0, 0, 1, 1], [], []>} : vector<256x32xbf16>, vector<32x128xbf16>, vector<256x128xf32> -> vector<256x128xf32>
    %102 = arith.addf %80, %101 : vector<256x128xf32>
    %103 = vector.extract_strided_slice %30 {offsets = [0, 96], sizes = [256, 32], strides = [1, 1]} : vector<256x128xf32> to vector<256x32xf32>
    %104 = arith.truncf %103 : vector<256x32xf32> to vector<256x32xbf16>
    %105 = vector.extract_strided_slice %33 {offsets = [96, 0], sizes = [32, 256], strides = [1, 1]} : vector<128x256xbf16> to vector<32x256xbf16>
    %cst_33 = arith.constant dense<0.000000e+00> : vector<256x256xf32>
    %106 = tpu.matmul %104, %105, %cst_33 {dimension_numbers = #tpu.dot_dimension_numbers<[1], [0], [0], [1], [0, 0, 1, 1], [], []>} : vector<256x32xbf16>, vector<32x256xbf16>, vector<256x256xf32> -> vector<256x256xf32>
    %cst_34 = arith.constant dense<0xFF800000> : vector<256xf32>
    %107 = vector.multi_reduction <maximumf>, %106, %cst_34 [1] : vector<256x256xf32> to vector<256xf32>
    %108 = vector.shape_cast %107 : vector<256xf32> to vector<256x1xf32>
    %109 = vector.broadcast %108 : vector<256x1xf32> to vector<256x256xf32>
    %110 = arith.subf %106, %109 : vector<256x256xf32>
    %111 = math.exp %110 : vector<256x256xf32>
    %cst_35 = arith.constant dense<0.000000e+00> : vector<256xf32>
    %112 = vector.multi_reduction <add>, %111, %cst_35 [1] : vector<256x256xf32> to vector<256xf32>
    %113 = vector.shape_cast %112 : vector<256xf32> to vector<256x1xf32>
    %114 = arith.truncf %111 : vector<256x256xf32> to vector<256x256xbf16>
    %115 = vector.extract_strided_slice %34 {offsets = [0, 96], sizes = [256, 32], strides = [1, 1]} : vector<256x128xf32> to vector<256x32xf32>
    %116 = arith.truncf %115 : vector<256x32xf32> to vector<256x32xbf16>
    %cst_36 = arith.constant dense<0.000000e+00> : vector<256x32xf32>
    %117 = tpu.matmul %114, %116, %cst_36 {dimension_numbers = #tpu.dot_dimension_numbers<[1], [0], [0], [1], [0, 0, 1, 1], [], []>} : vector<256x256xbf16>, vector<256x32xbf16>, vector<256x32xf32> -> vector<256x32xf32>
    %118 = tpu.reciprocal %113 {approx = true} : vector<256x1xf32> -> vector<256x1xf32>
    %119 = vector.broadcast %118 : vector<256x1xf32> to vector<256x32xf32>
    %120 = arith.mulf %117, %119 : vector<256x32xf32>
    %121 = arith.truncf %120 : vector<256x32xf32> to vector<256x32xbf16>
    %122 = vector.extract_strided_slice %35 {offsets = [96, 0], sizes = [32, 128], strides = [1, 1]} : vector<128x128xbf16> to vector<32x128xbf16>
    %cst_37 = arith.constant dense<0.000000e+00> : vector<256x128xf32>
    %123 = tpu.matmul %121, %122, %cst_37 {dimension_numbers = #tpu.dot_dimension_numbers<[1], [0], [0], [1], [0, 0, 1, 1], [], []>} : vector<256x32xbf16>, vector<32x128xbf16>, vector<256x128xf32> -> vector<256x128xf32>
    %124 = arith.addf %102, %123 : vector<256x128xf32>
    %125 = arith.addf %1, %124 : vector<256x128xf32>
    %c0_38 = arith.constant 0 : index
    %c0_39 = arith.constant 0 : index
    %126 = vector.load %arg7[%c0_38, %c0_39] : memref<1x128xf32, #tpu.memory_space<vmem>>, vector<1x128xf32>
    %127 = vector.broadcast %126 : vector<1x128xf32> to vector<256x128xf32>
    %128 = arith.addf %125, %127 : vector<256x128xf32>
    %c0_40 = arith.constant 0 : index
    %c0_41 = arith.constant 0 : index
    %129 = vector.load %arg8[%c0_40, %c0_41] : memref<1x128xf32, #tpu.memory_space<vmem>>, vector<1x128xf32>
    %c0_42 = arith.constant 0 : index
    %c0_43 = arith.constant 0 : index
    %130 = vector.load %arg9[%c0_42, %c0_43] : memref<1x128xf32, #tpu.memory_space<vmem>>, vector<1x128xf32>
    %cst_44 = arith.constant dense<0.000000e+00> : vector<256xf32>
    %131 = vector.multi_reduction <add>, %128, %cst_44 [1] : vector<256x128xf32> to vector<256xf32>
    %132 = vector.shape_cast %131 : vector<256xf32> to vector<256x1xf32>
    %cst_45 = arith.constant 1.280000e+02 : f32
    %133 = vector.broadcast %cst_45 : f32 to vector<256x1xf32>
    %134 = arith.divf %132, %133 : vector<256x1xf32>
    %135 = vector.broadcast %134 : vector<256x1xf32> to vector<256x128xf32>
    %136 = arith.subf %128, %135 : vector<256x128xf32>
    %137 = arith.mulf %136, %136 : vector<256x128xf32>
    %cst_46 = arith.constant dense<0.000000e+00> : vector<256xf32>
    %138 = vector.multi_reduction <add>, %137, %cst_46 [1] : vector<256x128xf32> to vector<256xf32>
    %139 = vector.shape_cast %138 : vector<256xf32> to vector<256x1xf32>
    %cst_47 = arith.constant 1.280000e+02 : f32
    %140 = vector.broadcast %cst_47 : f32 to vector<256x1xf32>
    %141 = arith.divf %139, %140 : vector<256x1xf32>
    %cst_48 = arith.constant 9.99999974E-6 : f32
    %142 = vector.broadcast %cst_48 : f32 to vector<256x1xf32>
    %143 = arith.addf %141, %142 : vector<256x1xf32>
    %144 = math.rsqrt %143 : vector<256x1xf32>
    %145 = vector.broadcast %144 : vector<256x1xf32> to vector<256x128xf32>
    %146 = arith.mulf %136, %145 : vector<256x128xf32>
    %147 = vector.broadcast %129 : vector<1x128xf32> to vector<256x128xf32>
    %148 = arith.mulf %146, %147 : vector<256x128xf32>
    %149 = vector.broadcast %130 : vector<1x128xf32> to vector<256x128xf32>
    %150 = arith.addf %148, %149 : vector<256x128xf32>
    %151 = arith.truncf %150 : vector<256x128xf32> to vector<256x128xbf16>
    %c0_49 = arith.constant 0 : index
    %c0_50 = arith.constant 0 : index
    %152 = vector.load %arg10[%c0_49, %c0_50] : memref<128x512xbf16, #tpu.memory_space<vmem>>, vector<128x512xbf16>
    %cst_51 = arith.constant dense<0.000000e+00> : vector<256x512xf32>
    %153 = tpu.matmul %151, %152, %cst_51 {dimension_numbers = #tpu.dot_dimension_numbers<[1], [0], [0], [1], [0, 0, 1, 1], [], []>} : vector<256x128xbf16>, vector<128x512xbf16>, vector<256x512xf32> -> vector<256x512xf32>
    %c0_52 = arith.constant 0 : index
    %c0_53 = arith.constant 0 : index
    %154 = vector.load %arg11[%c0_52, %c0_53] : memref<1x512xf32, #tpu.memory_space<vmem>>, vector<1x512xf32>
    %155 = vector.broadcast %154 : vector<1x512xf32> to vector<256x512xf32>
    %156 = arith.addf %153, %155 : vector<256x512xf32>
    %cst_54 = arith.constant 5.000000e-01 : f32
    %157 = vector.broadcast %cst_54 : f32 to vector<256x512xf32>
    %158 = arith.mulf %157, %156 : vector<256x512xf32>
    %cst_55 = arith.constant 4.471500e-02 : f32
    %159 = vector.broadcast %cst_55 : f32 to vector<256x512xf32>
    %160 = arith.mulf %159, %156 : vector<256x512xf32>
    %161 = arith.mulf %160, %156 : vector<256x512xf32>
    %162 = arith.mulf %161, %156 : vector<256x512xf32>
    %163 = arith.addf %156, %162 : vector<256x512xf32>
    %cst_56 = arith.constant 0.797884583 : f32
    %164 = vector.broadcast %cst_56 : f32 to vector<256x512xf32>
    %165 = arith.mulf %164, %163 : vector<256x512xf32>
    %166 = math.tanh %165 : vector<256x512xf32>
    %cst_57 = arith.constant 1.000000e+00 : f32
    %167 = vector.broadcast %cst_57 : f32 to vector<256x512xf32>
    %168 = arith.addf %167, %166 : vector<256x512xf32>
    %169 = arith.mulf %158, %168 : vector<256x512xf32>
    %170 = arith.truncf %169 : vector<256x512xf32> to vector<256x512xbf16>
    %c0_58 = arith.constant 0 : index
    %c0_59 = arith.constant 0 : index
    %171 = vector.load %arg12[%c0_58, %c0_59] : memref<512x128xbf16, #tpu.memory_space<vmem>>, vector<512x128xbf16>
    %cst_60 = arith.constant dense<0.000000e+00> : vector<256x128xf32>
    %172 = tpu.matmul %170, %171, %cst_60 {dimension_numbers = #tpu.dot_dimension_numbers<[1], [0], [0], [1], [0, 0, 1, 1], [], []>} : vector<256x512xbf16>, vector<512x128xbf16>, vector<256x128xf32> -> vector<256x128xf32>
    %c0_61 = arith.constant 0 : index
    %c0_62 = arith.constant 0 : index
    %173 = vector.load %arg13[%c0_61, %c0_62] : memref<1x128xf32, #tpu.memory_space<vmem>>, vector<1x128xf32>
    %174 = vector.broadcast %173 : vector<1x128xf32> to vector<256x128xf32>
    %175 = arith.addf %172, %174 : vector<256x128xf32>
    %176 = arith.addf %128, %175 : vector<256x128xf32>
    %c0_63 = arith.constant 0 : index
    %c0_64 = arith.constant 0 : index
    %c0_65 = arith.constant 0 : index
    %177 = vector.load %arg14[%c0_63, %c0_64, %c0_65] : memref<1x256x128xf32, #tpu.memory_space<vmem>>, vector<1x256x128xf32>
    %178 = vector.shape_cast %177 : vector<1x256x128xf32> to vector<256x128xf32>
    %179 = vector.shape_cast %176 : vector<256x128xf32> to vector<1x256x128xf32>
    tpu.vector_store %arg14[%c0_63, %c0_64, %c0_65], %179 {strides = array<i32>} : memref<1x256x128xf32, #tpu.memory_space<vmem>>, vector<1x256x128xf32>,
    return
  }
  func.func @transform_0(%arg0: i32) -> (i32, i32, i32) {
    %c0_i32 = arith.constant 0 : i32
    %c0_i32_0 = arith.constant 0 : i32
    %c0_i32_1 = arith.constant 0 : i32
    return %arg0, %c0_i32, %c0_i32_0 : i32, i32, i32
  }
  func.func @transform_1(%arg0: i32) -> (i32, i32) {
    %c0_i32 = arith.constant 0 : i32
    %c0_i32_0 = arith.constant 0 : i32
    %c0_i32_1 = arith.constant 0 : i32
    return %c0_i32, %c0_i32_0 : i32, i32
  }
  func.func @transform_2(%arg0: i32) -> (i32, i32) {
    %c0_i32 = arith.constant 0 : i32
    %c0_i32_0 = arith.constant 0 : i32
    %c0_i32_1 = arith.constant 0 : i32
    return %c0_i32, %c0_i32_0 : i32, i32
  }
  func.func @transform_3(%arg0: i32) -> (i32, i32) {
    %c0_i32 = arith.constant 0 : i32
    %c0_i32_0 = arith.constant 0 : i32
    %c0_i32_1 = arith.constant 0 : i32
    return %c0_i32, %c0_i32_0 : i32, i32
  }
  func.func @transform_4(%arg0: i32) -> (i32, i32) {
    %c0_i32 = arith.constant 0 : i32
    %c0_i32_0 = arith.constant 0 : i32
    %c0_i32_1 = arith.constant 0 : i32
    return %c0_i32, %c0_i32_0 : i32, i32
  }
  func.func @transform_5(%arg0: i32) -> (i32, i32) {
    %c0_i32 = arith.constant 0 : i32
    %c0_i32_0 = arith.constant 0 : i32
    %c0_i32_1 = arith.constant 0 : i32
    return %c0_i32, %c0_i32_0 : i32, i32
  }
  func.func @transform_6(%arg0: i32) -> (i32, i32) {
    %c0_i32 = arith.constant 0 : i32
    %c0_i32_0 = arith.constant 0 : i32
    %c0_i32_1 = arith.constant 0 : i32
    return %c0_i32, %c0_i32_0 : i32, i32
  }
  func.func @transform_7(%arg0: i32) -> (i32, i32) {
    %c0_i32 = arith.constant 0 : i32
    %c0_i32_0 = arith.constant 0 : i32
    %c0_i32_1 = arith.constant 0 : i32
    return %c0_i32, %c0_i32_0 : i32, i32
  }
  func.func @transform_8(%arg0: i32) -> (i32, i32) {
    %c0_i32 = arith.constant 0 : i32
    %c0_i32_0 = arith.constant 0 : i32
    %c0_i32_1 = arith.constant 0 : i32
    return %c0_i32, %c0_i32_0 : i32, i32
  }
  func.func @transform_9(%arg0: i32) -> (i32, i32) {
    %c0_i32 = arith.constant 0 : i32
    %c0_i32_0 = arith.constant 0 : i32
    %c0_i32_1 = arith.constant 0 : i32
    return %c0_i32, %c0_i32_0 : i32, i32
  }
  func.func @transform_10(%arg0: i32) -> (i32, i32) {
    %c0_i32 = arith.constant 0 : i32
    %c0_i32_0 = arith.constant 0 : i32
    %c0_i32_1 = arith.constant 0 : i32
    return %c0_i32, %c0_i32_0 : i32, i32
  }
  func.func @transform_11(%arg0: i32) -> (i32, i32) {
    %c0_i32 = arith.constant 0 : i32
    %c0_i32_0 = arith.constant 0 : i32
    %c0_i32_1 = arith.constant 0 : i32
    return %c0_i32, %c0_i32_0 : i32, i32
  }
  func.func @transform_12(%arg0: i32) -> (i32, i32) {
    %c0_i32 = arith.constant 0 : i32
    %c0_i32_0 = arith.constant 0 : i32
    %c0_i32_1 = arith.constant 0 : i32
    return %c0_i32, %c0_i32_0 : i32, i32
  }
  func.func @transform_13(%arg0: i32) -> (i32, i32, i32) {
    %c0_i32 = arith.constant 0 : i32
    %c0_i32_0 = arith.constant 0 : i32
    %c0_i32_1 = arith.constant 0 : i32
    return %arg0, %c0_i32, %c0_i32_0 : i32, i32, i32
  }
}

</mosaic_0001>

<llo_original>
// kernel: tpu_custom_call.1
$region0: #{tpu_custom_call.1}
  #allocation0 [shape = 'u32[]', space=smem, size = 0x4, offset = 0x4, fixed_abs, tag = 'smem constant byte address 0x4 - core index']
  #allocation1 [shape = 'u32[72,128]{1,0:T(1,128)}', space=vmem, size = 0x9000, scoped, tag = 'internal scratch']
  %s0 = inlined_call_operand.hbm [shape: f32[2,256,128], index: 0, kind: input, shape index: {}]
  %s1 = inlined_call_operand.hbm [shape: f32[1,128], index: 1, kind: input, shape index: {}]
  %s2 = inlined_call_operand.hbm [shape: f32[1,128], index: 2, kind: input, shape index: {}]
  %s3 = inlined_call_operand.hbm [shape: bf16[128,384], index: 3, kind: input, shape index: {}]
  %s4 = inlined_call_operand.vmem [shape: f32[1,384], index: 4, kind: input, shape index: {}]
  %s5 = inlined_call_operand.hbm [shape: bf16[128,128], index: 5, kind: input, shape index: {}]
  %s6 = inlined_call_operand.hbm [shape: f32[1,128], index: 6, kind: input, shape index: {}]
  %s7 = inlined_call_operand.hbm [shape: f32[1,128], index: 7, kind: input, shape index: {}]
  %s8 = inlined_call_operand.hbm [shape: f32[1,128], index: 8, kind: input, shape index: {}]
  %s9 = inlined_call_operand.hbm [shape: bf16[128,512], index: 9, kind: input, shape index: {}]
  %s10 = inlined_call_operand.vmem [shape: f32[1,512], index: 10, kind: input, shape index: {}]
  %s11 = inlined_call_operand.hbm [shape: bf16[512,128], index: 11, kind: input, shape index: {}]
  %s12 = inlined_call_operand.vmem [shape: f32[1,128], index: 12, kind: input, shape index: {}]
  %s13 = inlined_call_operand.hbm [shape: f32[2,256,128], index: 13, kind: output, shape index: {}]
  %s14 = sld [smem:[#allocation0]]
  $region125: #{tpu_custom_call.1} parent=0
    _
  %s16 = ssub.s32 1, %s14
  %s17 = scalar_select 0, %s16, %s14
  $region1: #{tpu_custom_call.1} parent=0
    #allocation2 [shape = 'u8[262144]{0}', space=vmem, size = 0x40000, scoped, tag = 'input window, operand 0']
    #allocation3 [shape = 's32[2]{0}', space=sflag, size = 0x8, scoped, tag = 'scoped memory for tpu_custom_call.1']
    #allocation4 [shape = 's32[2]{0}', space=sflag, size = 0x8, scoped, tag = 'scoped memory for tpu_custom_call.1']
    #allocation5 [shape = 'u8[512]{0}', space=vmem, size = 0x400, scoped, tag = 'input window, operand 1, single buffered']
    #allocation6 [shape = 's32[1]{0}', space=sflag, size = 0x4, scoped, tag = 'scoped memory for tpu_custom_call.1']
    #allocation7 [shape = 'u8[512]{0}', space=vmem, size = 0x400, scoped, tag = 'input window, operand 2, single buffered']
    #allocation8 [shape = 'u8[98304]{0}', space=vmem, size = 0x18000, scoped, tag = 'input window, operand 3, single buffered']
    #allocation9 [shape = 's32[1]{0}', space=sflag, size = 0x4, scoped, tag = 'scoped memory for tpu_custom_call.1']
    #allocation10 [shape = 'u8[32768]{0}', space=vmem, size = 0x8000, scoped, tag = 'input window, operand 5, single buffered']
    #allocation11 [shape = 'u8[512]{0}', space=vmem, size = 0x400, scoped, tag = 'input window, operand 6, single buffered']
    #allocation12 [shape = 's32[1]{0}', space=sflag, size = 0x4, scoped, tag = 'scoped memory for tpu_custom_call.1']
    #allocation13 [shape = 'u8[512]{0}', space=vmem, size = 0x400, scoped, tag = 'input window, operand 7, single buffered']
    #allocation14 [shape = 'u8[512]{0}', space=vmem, size = 0x400, scoped, tag = 'input window, operand 8, single buffered']
    #allocation15 [shape = 's32[1]{0}', space=sflag, size = 0x4, scoped, tag = 'scoped memory for tpu_custom_call.1']
    #allocation16 [shape = 'u8[131072]{0}', space=vmem, size = 0x20000, scoped, tag = 'input window, operand 9, single buffered']
    #allocation17 [shape = 'u8[131072]{0}', space=vmem, size = 0x20000, scoped, tag = 'input window, operand 11, single buffered']
    #allocation18 [shape = 's32[1]{0}', space=sflag, size = 0x4, scoped, tag = 'scoped memory for tpu_custom_call.1']
    #allocation19 [shape = 'u8[262144]{0}', space=vmem, size = 0x40000, scoped, tag = 'output window, operand 0']
    %18 = vsyncpa [#allocation3], 0
    %s19 = scalar_lea.sflag [#allocation3], 1
    %20 = vsyncpa %s19, 0
    %21 = vsyncpa [#allocation6], 0
    %22 = vsyncpa [#allocation9], 0
    %23 = vsyncpa [#allocation12], 0
    %24 = vsyncpa [#allocation15], 0
    %25 = vsyncpa [#allocation18], 0
    %26 = vsyncpa [#allocation4], 0
    %s27 = scalar_lea.sflag [#allocation4], 1
    %28 = vsyncpa %s27, 0
    loop: start=0, step=1, limit=4
    $region2: #{tpu_custom_call.1} parent=1 // loop_pre_header
      _
    $region3: #{tpu_custom_call.1} parent=1 // loop_header
      %s30 = sphi 0, %s34
      %p31 = scmp.ge.s32.totalorder %s30, 4
      %s40 = sphi 0, %s42
      %s43 = sphi 0, %s40
      %s44 = sphi 0, %s43
      %s60 = sphi 0, %s44
      %s64 = sphi 0, %s64
      %s66 = sphi 0, %s64
      %s67 = sphi 0, %s66
      %s81 = sphi 0, %s67
      %s85 = sphi 0, %s85
      %s87 = sphi 0, %s85
      %s88 = sphi 0, %s87
      %s102 = sphi 0, %s88
      %s106 = sphi 0, %s106
      %s108 = sphi 0, %s106
      %s109 = sphi 0, %s108
      %s123 = sphi 0, %s109
      %s127 = sphi 0, %s127
      %s129 = sphi 0, %s127
      %s130 = sphi 0, %s129
      %s144 = sphi 0, %s130
      %s148 = sphi 0, %s148
      %s150 = sphi 0, %s148
      %s151 = sphi 0, %s150
      %s165 = sphi 0, %s151
      %s169 = sphi 0, %s169
      %s171 = sphi 0, %s169
      %s172 = sphi 0, %s171
      %s186 = sphi 0, %s172
      %s190 = sphi 0, %s190
      %s192 = sphi 0, %s190
      %s193 = sphi 0, %s192
      %s207 = sphi 0, %s193
      %s211 = sphi 0, %s211
      %s213 = sphi 0, %s211
      %s214 = sphi 0, %s213
      %s228 = sphi 0, %s214
      %s232 = sphi 0, %s232
      %s234 = sphi 0, %s232
      %s235 = sphi 0, %s234
      %s249 = sphi 0, %s235
      %s253 = sphi 0, %s253
      %s255 = sphi 0, %s253
      %s256 = sphi 0, %s255
      %s270 = sphi 0, %s256
      %s274 = sphi 0, %s274
      %s276 = sphi 0, %s274
      %s277 = sphi 0, %s276
      %s291 = sphi 0, %s277
      %s295 = sphi 0, %s295
      %s297 = sphi 0, %s295
      %s298 = sphi 0, %s297
      %s312 = sphi 0, %s298
      %s318 = sphi 0, %s320
      %s321 = sphi 0, %s318
      %s322 = sphi 0, %s321
      %s338 = sphi 0, %s322
    $region4: #{tpu_custom_call.1} parent=1 // loop_header_branch
      %33 = sbr.rel (%p31) target = $region8
    $region5: #{tpu_custom_call.1} parent=1 // loop_body
      %s35 = ssub.s32 %s30, 1
      %s36 = ssub.s32 %s30, 2
      %s37 = sadd.s32 %s30, 1
      %s38 = ssub.s32 %s30, %s37
      %p39 = scmp.eq.s32.totalorder %s38, 0
      %s41 = sadd.s32 %s40, 1
      %s42 = scalar_select %p39, %s40, %s41
      %p45 = pneg %p39
      %p46 = scmp.eq.s32.totalorder %s30, 1
      %p47 = por %p45, %p46
      %p48 = scmp.ne.s32.totalorder %s40, %s43
      %p49 = scmp.eq.s32.totalorder %s30, 0
      %p50 = por %p48, %p49
      %p51 = scmp.ne.s32.totalorder %s40, %s43
      %p52 = scmp.eq.s32.totalorder %s35, 1
      %p53 = por %p51, %p52
      %p54 = scmp.ne.s32.totalorder %s43, %s44
      %p55 = scmp.eq.s32.totalorder %s35, 0
      %p56 = por %p54, %p55
      %p57 = scmp.ne.s32.totalorder %s43, %s44
      %p58 = scmp.eq.s32.totalorder %s36, 1
      %p59 = por %p57, %p58
      %p61 = scmp.ne.s32.totalorder %s44, %s60
      %p62 = scmp.eq.s32.totalorder %s36, 0
      %p63 = por %p61, %p62
      %s65 = sadd.s32 %s64, 1
      %p68 = scmp.eq.s32.totalorder %s30, 1
      %p69 = scmp.ne.s32.totalorder %s64, %s66
      %p70 = scmp.eq.s32.totalorder %s30, 0
      %p71 = por %p69, %p70
      %p72 = scmp.ne.s32.totalorder %s64, %s66
      %p73 = scmp.eq.s32.totalorder %s35, 1
      %p74 = por %p72, %p73
      %p75 = scmp.ne.s32.totalorder %s66, %s67
      %p76 = scmp.eq.s32.totalorder %s35, 0
      %p77 = por %p75, %p76
      %p78 = scmp.ne.s32.totalorder %s66, %s67
      %p79 = scmp.eq.s32.totalorder %s36, 1
      %p80 = por %p78, %p79
      %p82 = scmp.ne.s32.totalorder %s67, %s81
      %p83 = scmp.eq.s32.totalorder %s36, 0
      %p84 = por %p82, %p83
      %s86 = sadd.s32 %s85, 1
      %p89 = scmp.eq.s32.totalorder %s30, 1
      %p90 = scmp.ne.s32.totalorder %s85, %s87
      %p91 = scmp.eq.s32.totalorder %s30, 0
      %p92 = por %p90, %p91
      %p93 = scmp.ne.s32.totalorder %s85, %s87
      %p94 = scmp.eq.s32.totalorder %s35, 1
      %p95 = por %p93, %p94
      %p96 = scmp.ne.s32.totalorder %s87, %s88
      %p97 = scmp.eq.s32.totalorder %s35, 0
      %p98 = por %p96, %p97
      %p99 = scmp.ne.s32.totalorder %s87, %s88
      %p100 = scmp.eq.s32.totalorder %s36, 1
      %p101 = por %p99, %p100
      %p103 = scmp.ne.s32.totalorder %s88, %s102
      %p104 = scmp.eq.s32.totalorder %s36, 0
      %p105 = por %p103, %p104
      %s107 = sadd.s32 %s106, 1
      %p110 = scmp.eq.s32.totalorder %s30, 1
      %p111 = scmp.ne.s32.totalorder %s106, %s108
      %p112 = scmp.eq.s32.totalorder %s30, 0
      %p113 = por %p111, %p112
      %p114 = scmp.ne.s32.totalorder %s106, %s108
      %p115 = scmp.eq.s32.totalorder %s35, 1
      %p116 = por %p114, %p115
      %p117 = scmp.ne.s32.totalorder %s108, %s109
      %p118 = scmp.eq.s32.totalorder %s35, 0
      %p119 = por %p117, %p118
      %p120 = scmp.ne.s32.totalorder %s108, %s109
      %p121 = scmp.eq.s32.totalorder %s36, 1
      %p122 = por %p120, %p121
      %p124 = scmp.ne.s32.totalorder %s109, %s123
      %p125 = scmp.eq.s32.totalorder %s36, 0
      %p126 = por %p124, %p125
      %s128 = sadd.s32 %s127, 1
      %p131 = scmp.eq.s32.totalorder %s30, 1
      %p132 = scmp.ne.s32.totalorder %s127, %s129
      %p133 = scmp.eq.s32.totalorder %s30, 0
      %p134 = por %p132, %p133
      %p135 = scmp.ne.s32.totalorder %s127, %s129
      %p136 = scmp.eq.s32.totalorder %s35, 1
      %p137 = por %p135, %p136
      %p138 = scmp.ne.s32.totalorder %s129, %s130
      %p139 = scmp.eq.s32.totalorder %s35, 0
      %p140 = por %p138, %p139
      %p141 = scmp.ne.s32.totalorder %s129, %s130
      %p142 = scmp.eq.s32.totalorder %s36, 1
      %p143 = por %p141, %p142
      %p145 = scmp.ne.s32.totalorder %s130, %s144
      %p146 = scmp.eq.s32.totalorder %s36, 0
      %p147 = por %p145, %p146
      %s149 = sadd.s32 %s148, 1
      %p152 = scmp.eq.s32.totalorder %s30, 1
      %p153 = scmp.ne.s32.totalorder %s148, %s150
      %p154 = scmp.eq.s32.totalorder %s30, 0
      %p155 = por %p153, %p154
      %p156 = scmp.ne.s32.totalorder %s148, %s150
      %p157 = scmp.eq.s32.totalorder %s35, 1
      %p158 = por %p156, %p157
      %p159 = scmp.ne.s32.totalorder %s150, %s151
      %p160 = scmp.eq.s32.totalorder %s35, 0
      %p161 = por %p159, %p160
      %p162 = scmp.ne.s32.totalorder %s150, %s151
      %p163 = scmp.eq.s32.totalorder %s36, 1
      %p164 = por %p162, %p163
      %p166 = scmp.ne.s32.totalorder %s151, %s165
      %p167 = scmp.eq.s32.totalorder %s36, 0
      %p168 = por %p166, %p167
      %s170 = sadd.s32 %s169, 1
      %p173 = scmp.eq.s32.totalorder %s30, 1
      %p174 = scmp.ne.s32.totalorder %s169, %s171
      %p175 = scmp.eq.s32.totalorder %s30, 0
      %p176 = por %p174, %p175
      %p177 = scmp.ne.s32.totalorder %s169, %s171
      %p178 = scmp.eq.s32.totalorder %s35, 1
      %p179 = por %p177, %p178
      %p180 = scmp.ne.s32.totalorder %s171, %s172
      %p181 = scmp.eq.s32.totalorder %s35, 0
      %p182 = por %p180, %p181
      %p183 = scmp.ne.s32.totalorder %s171, %s172
      %p184 = scmp.eq.s32.totalorder %s36, 1
      %p185 = por %p183, %p184
      %p187 = scmp.ne.s32.totalorder %s172, %s186
      %p188 = scmp.eq.s32.totalorder %s36, 0
      %p189 = por %p187, %p188
      %s191 = sadd.s32 %s190, 1
      %p194 = scmp.eq.s32.totalorder %s30, 1
      %p195 = scmp.ne.s32.totalorder %s190, %s192
      %p196 = scmp.eq.s32.totalorder %s30, 0
      %p197 = por %p195, %p196
      %p198 = scmp.ne.s32.totalorder %s190, %s192
      %p199 = scmp.eq.s32.totalorder %s35, 1
      %p200 = por %p198, %p199
      %p201 = scmp.ne.s32.totalorder %s192, %s193
      %p202 = scmp.eq.s32.totalorder %s35, 0
      %p203 = por %p201, %p202
      %p204 = scmp.ne.s32.totalorder %s192, %s193
      %p205 = scmp.eq.s32.totalorder %s36, 1
      %p206 = por %p204, %p205
      %p208 = scmp.ne.s32.totalorder %s193, %s207
      %p209 = scmp.eq.s32.totalorder %s36, 0
      %p210 = por %p208, %p209
      %s212 = sadd.s32 %s211, 1
      %p215 = scmp.eq.s32.totalorder %s30, 1
      %p216 = scmp.ne.s32.totalorder %s211, %s213
      %p217 = scmp.eq.s32.totalorder %s30, 0
      %p218 = por %p216, %p217
      %p219 = scmp.ne.s32.totalorder %s211, %s213
      %p220 = scmp.eq.s32.totalorder %s35, 1
      %p221 = por %p219, %p220
      %p222 = scmp.ne.s32.totalorder %s213, %s214
      %p223 = scmp.eq.s32.totalorder %s35, 0
      %p224 = por %p222, %p223
      %p225 = scmp.ne.s32.totalorder %s213, %s214
      %p226 = scmp.eq.s32.totalorder %s36, 1
      %p227 = por %p225, %p226
      %p229 = scmp.ne.s32.totalorder %s214, %s228
      %p230 = scmp.eq.s32.totalorder %s36, 0
      %p231 = por %p229, %p230
      %s233 = sadd.s32 %s232, 1
      %p236 = scmp.eq.s32.totalorder %s30, 1
      %p237 = scmp.ne.s32.totalorder %s232, %s234
      %p238 = scmp.eq.s32.totalorder %s30, 0
      %p239 = por %p237, %p238
      %p240 = scmp.ne.s32.totalorder %s232, %s234
      %p241 = scmp.eq.s32.totalorder %s35, 1
      %p242 = por %p240, %p241
      %p243 = scmp.ne.s32.totalorder %s234, %s235
      %p244 = scmp.eq.s32.totalorder %s35, 0
      %p245 = por %p243, %p244
      %p246 = scmp.ne.s32.totalorder %s234, %s235
      %p247 = scmp.eq.s32.totalorder %s36, 1
      %p248 = por %p246, %p247
      %p250 = scmp.ne.s32.totalorder %s235, %s249
      %p251 = scmp.eq.s32.totalorder %s36, 0
      %p252 = por %p250, %p251
      %s254 = sadd.s32 %s253, 1
      %p257 = scmp.eq.s32.totalorder %s30, 1
      %p258 = scmp.ne.s32.totalorder %s253, %s255
      %p259 = scmp.eq.s32.totalorder %s30, 0
      %p260 = por %p258, %p259
      %p261 = scmp.ne.s32.totalorder %s253, %s255
      %p262 = scmp.eq.s32.totalorder %s35, 1
      %p263 = por %p261, %p262
      %p264 = scmp.ne.s32.totalorder %s255, %s256
      %p265 = scmp.eq.s32.totalorder %s35, 0
      %p266 = por %p264, %p265
      %p267 = scmp.ne.s32.totalorder %s255, %s256
      %p268 = scmp.eq.s32.totalorder %s36, 1
      %p269 = por %p267, %p268
      %p271 = scmp.ne.s32.totalorder %s256, %s270
      %p272 = scmp.eq.s32.totalorder %s36, 0
      %p273 = por %p271, %p272
      %s275 = sadd.s32 %s274, 1
      %p278 = scmp.eq.s32.totalorder %s30, 1
      %p279 = scmp.ne.s32.totalorder %s274, %s276
      %p280 = scmp.eq.s32.totalorder %s30, 0
      %p281 = por %p279, %p280
      %p282 = scmp.ne.s32.totalorder %s274, %s276
      %p283 = scmp.eq.s32.totalorder %s35, 1
      %p284 = por %p282, %p283
      %p285 = scmp.ne.s32.totalorder %s276, %s277
      %p286 = scmp.eq.s32.totalorder %s35, 0
      %p287 = por %p285, %p286
      %p288 = scmp.ne.s32.totalorder %s276, %s277
      %p289 = scmp.eq.s32.totalorder %s36, 1
      %p290 = por %p288, %p289
      %p292 = scmp.ne.s32.totalorder %s277, %s291
      %p293 = scmp.eq.s32.totalorder %s36, 0
      %p294 = por %p292, %p293
      %s296 = sadd.s32 %s295, 1
      %p299 = scmp.eq.s32.totalorder %s30, 1
      %p300 = scmp.ne.s32.totalorder %s295, %s297
      %p301 = scmp.eq.s32.totalorder %s30, 0
      %p302 = por %p300, %p301
      %p303 = scmp.ne.s32.totalorder %s295, %s297
      %p304 = scmp.eq.s32.totalorder %s35, 1
      %p305 = por %p303, %p304
      %p306 = scmp.ne.s32.totalorder %s297, %s298
      %p307 = scmp.eq.s32.totalorder %s35, 0
      %p308 = por %p306, %p307
      %p309 = scmp.ne.s32.totalorder %s297, %s298
      %p310 = scmp.eq.s32.totalorder %s36, 1
      %p311 = por %p309, %p310
      %p313 = scmp.ne.s32.totalorder %s298, %s312
      %p314 = scmp.eq.s32.totalorder %s36, 0
      %p315 = por %p313, %p314
      %s316 = ssub.s32 %s30, %s37
      %p317 = scmp.eq.s32.totalorder %s316, 0
      %s319 = sadd.s32 %s318, 1
      %s320 = scalar_select %p317, %s318, %s319
      %p323 = pneg %p317
      %p324 = scmp.eq.s32.totalorder %s30, 1
      %p325 = por %p323, %p324
      %p326 = scmp.ne.s32.totalorder %s318, %s321
      %p327 = scmp.eq.s32.totalorder %s30, 0
      %p328 = por %p326, %p327
      %p329 = scmp.ne.s32.totalorder %s318, %s321
      %p330 = scmp.eq.s32.totalorder %s35, 1
      %p331 = por %p329, %p330
      %p332 = scmp.ne.s32.totalorder %s321, %s322
      %p333 = scmp.eq.s32.totalorder %s35, 0
      %p334 = por %p332, %p333
      %p335 = scmp.ne.s32.totalorder %s321, %s322
      %p336 = scmp.eq.s32.totalorder %s36, 1
      %p337 = por %p335, %p336
      %p339 = scmp.ne.s32.totalorder %s322, %s338
      %p340 = scmp.eq.s32.totalorder %s36, 0
      %p341 = por %p339, %p340
      %p342 = scmp.le.s32.totalorder 1, %s30
      %p343 = scmp.lt.s32.totalorder %s30, 3
      %p344 = pnand %p342, %p343
      %p345 = pneg %p344
      // Predicated region
      $region9: #{tpu_custom_call.1} parent=5 // pred_check
        _
      $region10: #{tpu_custom_call.1} parent=5 // pred_check_branch
        %347 = sbr.rel (%p344) target = $region12
      $region11: #{tpu_custom_call.1} parent=5 // pred_region
        %s348 = ssub.s32 %s30, 1
        // Predicated region
        $region13: #{tpu_custom_call.1} parent=11 // pred_check
          %p349 = pneg %p77
        $region14: #{tpu_custom_call.1} parent=11 // pred_check_branch
          %351 = sbr.rel (%p349) target = $region16
        $region15: #{tpu_custom_call.1} parent=11 // pred_region
          %353 = vsyncadd [#allocation6], 0
          %s355 = sshll.u32 %s1, 4
          %s356 = int_to_ptr.hbm [resolvable:$true] %s355
          %s357 = sshll.u32 [#allocation5], 4
          %s358 = int_to_ptr.vmem [resolvable:$true] %s357
          %360 = dma.hbm_to_vmem [thread:$0]  %s356, 16, %s358, [#allocation6]
        $region16: #{tpu_custom_call.1} parent=11 // pred_fallthru
          _
        // Predicated region
        $region17: #{tpu_custom_call.1} parent=11 // pred_check
          %p361 = pneg %p98
        $region18: #{tpu_custom_call.1} parent=11 // pred_check_branch
          %363 = sbr.rel (%p361) target = $region20
        $region19: #{tpu_custom_call.1} parent=11 // pred_region
          %365 = vsyncadd [#allocation6], 0
          %s367 = sshll.u32 %s2, 4
          %s368 = int_to_ptr.hbm [resolvable:$true] %s367
          %s369 = sshll.u32 [#allocation7], 4
          %s370 = int_to_ptr.vmem [resolvable:$true] %s369
          %372 = dma.hbm_to_vmem [thread:$0]  %s368, 16, %s370, [#allocation6]
        $region20: #{tpu_custom_call.1} parent=11 // pred_fallthru
          _
        // Predicated region
        $region21: #{tpu_custom_call.1} parent=11 // pred_check
          %p373 = pneg %p119
        $region22: #{tpu_custom_call.1} parent=11 // pred_check_branch
          %375 = sbr.rel (%p373) target = $region24
        $region23: #{tpu_custom_call.1} parent=11 // pred_region
          %377 = vsyncadd [#allocation9], 0
          %s378 = sshll.u32 %s3, 4
          %s379 = int_to_ptr.hbm [resolvable:$true] %s378
          %s380 = sshll.u32 [#allocation8], 4
          %s381 = int_to_ptr.vmem [resolvable:$true] %s380
          %386 = dma.hbm_to_vmem [thread:$0]  %s379, 3072, %s381, [#allocation9], 192, 192, 12
        $region24: #{tpu_custom_call.1} parent=11 // pred_fallthru
          _
        // Predicated region
        $region25: #{tpu_custom_call.1} parent=11 // pred_check
          %p387 = pneg %p140
        $region26: #{tpu_custom_call.1} parent=11 // pred_check_branch
          %389 = sbr.rel (%p387) target = $region28
        $region27: #{tpu_custom_call.1} parent=11 // pred_region
          _
        $region28: #{tpu_custom_call.1} parent=11 // pred_fallthru
          _
        // Predicated region
        $region29: #{tpu_custom_call.1} parent=11 // pred_check
          %p390 = pneg %p161
        $region30: #{tpu_custom_call.1} parent=11 // pred_check_branch
          %392 = sbr.rel (%p390) target = $region32
        $region31: #{tpu_custom_call.1} parent=11 // pred_region
          %394 = vsyncadd [#allocation9], 0
          %s395 = sshll.u32 %s5, 4
          %s396 = int_to_ptr.hbm [resolvable:$true] %s395
          %s397 = sshll.u32 [#allocation10], 4
          %s398 = int_to_ptr.vmem [resolvable:$true] %s397
          %403 = dma.hbm_to_vmem [thread:$0]  %s396, 1024, %s398, [#allocation9], 64, 64, 4
        $region32: #{tpu_custom_call.1} parent=11 // pred_fallthru
          _
        // Predicated region
        $region33: #{tpu_custom_call.1} parent=11 // pred_check
          %p404 = pneg %p182
        $region34: #{tpu_custom_call.1} parent=11 // pred_check_branch
          %406 = sbr.rel (%p404) target = $region36
        $region35: #{tpu_custom_call.1} parent=11 // pred_region
          %408 = vsyncadd [#allocation12], 0
          %s410 = sshll.u32 %s6, 4
          %s411 = int_to_ptr.hbm [resolvable:$true] %s410
          %s412 = sshll.u32 [#allocation11], 4
          %s413 = int_to_ptr.vmem [resolvable:$true] %s412
          %415 = dma.hbm_to_vmem [thread:$0]  %s411, 16, %s413, [#allocation12]
        $region36: #{tpu_custom_call.1} parent=11 // pred_fallthru
          _
        // Predicated region
        $region37: #{tpu_custom_call.1} parent=11 // pred_check
          %p416 = pneg %p203
        $region38: #{tpu_custom_call.1} parent=11 // pred_check_branch
          %418 = sbr.rel (%p416) target = $region40
        $region39: #{tpu_custom_call.1} parent=11 // pred_region
          %420 = vsyncadd [#allocation12], 0
          %s422 = sshll.u32 %s7, 4
          %s423 = int_to_ptr.hbm [resolvable:$true] %s422
          %s424 = sshll.u32 [#allocation13], 4
          %s425 = int_to_ptr.vmem [resolvable:$true] %s424
          %427 = dma.hbm_to_vmem [thread:$0]  %s423, 16, %s425, [#allocation12]
        $region40: #{tpu_custom_call.1} parent=11 // pred_fallthru
          _
        // Predicated region
        $region41: #{tpu_custom_call.1} parent=11 // pred_check
          %p428 = pneg %p224
        $region42: #{tpu_custom_call.1} parent=11 // pred_check_branch
          %430 = sbr.rel (%p428) target = $region44
        $region43: #{tpu_custom_call.1} parent=11 // pred_region
          %432 = vsyncadd [#allocation15], 0
          %s434 = sshll.u32 %s8, 4
          %s435 = int_to_ptr.hbm [resolvable:$true] %s434
          %s436 = sshll.u32 [#allocation14], 4
          %s437 = int_to_ptr.vmem [resolvable:$true] %s436
          %439 = dma.hbm_to_vmem [thread:$0]  %s435, 16, %s437, [#allocation15]
        $region44: #{tpu_custom_call.1} parent=11 // pred_fallthru
          _
        // Predicated region
        $region45: #{tpu_custom_call.1} parent=11 // pred_check
          %p440 = pneg %p245
        $region46: #{tpu_custom_call.1} parent=11 // pred_check_branch
          %442 = sbr.rel (%p440) target = $region48
        $region47: #{tpu_custom_call.1} parent=11 // pred_region
          %444 = vsyncadd [#allocation15], 0
          %s445 = sshll.u32 %s9, 4
          %s446 = int_to_ptr.hbm [resolvable:$true] %s445
          %s447 = sshll.u32 [#allocation16], 4
          %s448 = int_to_ptr.vmem [resolvable:$true] %s447
          %453 = dma.hbm_to_vmem [thread:$0]  %s446, 4096, %s448, [#allocation15], 256, 256, 16
        $region48: #{tpu_custom_call.1} parent=11 // pred_fallthru
          _
        // Predicated region
        $region49: #{tpu_custom_call.1} parent=11 // pred_check
          %p454 = pneg %p266
        $region50: #{tpu_custom_call.1} parent=11 // pred_check_branch
          %456 = sbr.rel (%p454) target = $region52
        $region51: #{tpu_custom_call.1} parent=11 // pred_region
          _
        $region52: #{tpu_custom_call.1} parent=11 // pred_fallthru
          _
        // Predicated region
        $region53: #{tpu_custom_call.1} parent=11 // pred_check
          %p457 = pneg %p287
        $region54: #{tpu_custom_call.1} parent=11 // pred_check_branch
          %459 = sbr.rel (%p457) target = $region56
        $region55: #{tpu_custom_call.1} parent=11 // pred_region
          %461 = vsyncadd [#allocation18], 0
          %s462 = sshll.u32 %s11, 4
          %s463 = int_to_ptr.hbm [resolvable:$true] %s462
          %s464 = sshll.u32 [#allocation17], 4
          %s465 = int_to_ptr.vmem [resolvable:$true] %s464
          %470 = dma.hbm_to_vmem [thread:$0]  %s463, 4096, %s465, [#allocation18], 64, 64, 4
        $region56: #{tpu_custom_call.1} parent=11 // pred_fallthru
          _
        // Predicated region
        $region57: #{tpu_custom_call.1} parent=11 // pred_check
          %p471 = pneg %p308
        $region58: #{tpu_custom_call.1} parent=11 // pred_check_branch
          %473 = sbr.rel (%p471) target = $region60
        $region59: #{tpu_custom_call.1} parent=11 // pred_region
          _
        $region60: #{tpu_custom_call.1} parent=11 // pred_fallthru
          _
      $region12: #{tpu_custom_call.1} parent=5 // pred_fallthru
        _
      %p474 = scmp.lt.s32.totalorder %s30, 2
      // Predicated region
      $region61: #{tpu_custom_call.1} parent=5 // pred_check
        %p475 = pneg %p474
      $region62: #{tpu_custom_call.1} parent=5 // pred_check_branch
        %477 = sbr.rel (%p475) target = $region64
      $region63: #{tpu_custom_call.1} parent=5 // pred_region
        // Predicated region
        $region65: #{tpu_custom_call.1} parent=63 // pred_check
          %p478 = pneg %p50
        $region66: #{tpu_custom_call.1} parent=63 // pred_check_branch
          %480 = sbr.rel (%p478) target = $region68
        $region67: #{tpu_custom_call.1} parent=63 // pred_region
          %s481 = sand.u32 %s40, 1
          %s482 = scalar_lea.sflag [#allocation3], %s481
          %s483 = sand.u32 %s40, 1
          %s484 = smul.addr %s483, 256
          %s485 = scalar_lea.vmem [#allocation2], %s484
          %487 = vsyncadd %s482, 0
          %s488 = smul.addr %s30, 32
          %s489 = smul.addr %s488, 8
          %s490 = scalar_lea.hbm %s0, %s489
          %s491 = sshll.u32 %s490, 4
          %s492 = int_to_ptr.hbm [resolvable:$true] %s491
          %s493 = sshll.u32 %s485, 4
          %s494 = int_to_ptr.vmem [resolvable:$true] %s493
          %499 = dma.hbm_to_vmem [thread:$0]  %s492, 4096, %s494, %s482, 128, 128, 8
        $region68: #{tpu_custom_call.1} parent=63 // pred_fallthru
          _
      $region64: #{tpu_custom_call.1} parent=5 // pred_fallthru
        _
      %p500 = scmp.le.s32.totalorder 1, %s30
      %p501 = scmp.lt.s32.totalorder %s30, 3
      %p502 = pnand %p500, %p501
      %p503 = pneg %p502
      // Predicated region
      $region69: #{tpu_custom_call.1} parent=5 // pred_check
        _
      $region70: #{tpu_custom_call.1} parent=5 // pred_check_branch
        %505 = sbr.rel (%p502) target = $region72
      $region71: #{tpu_custom_call.1} parent=5 // pred_region
        %s506 = ssub.s32 %s30, 1
        %s507 = sand.u32 %s43, 1
        %s508 = scalar_lea.sflag [#allocation3], %s507
        %s509 = sand.u32 %s43, 1
        %s510 = smul.addr %s509, 256
        %s511 = scalar_lea.vmem [#allocation2], %s510
        // Predicated region
        $region73: #{tpu_custom_call.1} parent=71 // pred_check
          %p512 = pneg %p56
        $region74: #{tpu_custom_call.1} parent=71 // pred_check_branch
          %514 = sbr.rel (%p512) target = $region76
        $region75: #{tpu_custom_call.1} parent=71 // pred_region
          %516 = dma.done %s508, 4096
        $region76: #{tpu_custom_call.1} parent=71 // pred_fallthru
          _
        // Predicated region
        $region77: #{tpu_custom_call.1} parent=71 // pred_check
          %p517 = pneg %p77
        $region78: #{tpu_custom_call.1} parent=71 // pred_check_branch
          %519 = sbr.rel (%p517) target = $region80
        $region79: #{tpu_custom_call.1} parent=71 // pred_region
          %521 = dma.done [#allocation6], 16
        $region80: #{tpu_custom_call.1} parent=71 // pred_fallthru
          _
        // Predicated region
        $region81: #{tpu_custom_call.1} parent=71 // pred_check
          %p522 = pneg %p98
        $region82: #{tpu_custom_call.1} parent=71 // pred_check_branch
          %524 = sbr.rel (%p522) target = $region84
        $region83: #{tpu_custom_call.1} parent=71 // pred_region
          %526 = dma.done [#allocation6], 16
        $region84: #{tpu_custom_call.1} parent=71 // pred_fallthru
          _
        // Predicated region
        $region85: #{tpu_custom_call.1} parent=71 // pred_check
          %p527 = pneg %p119
        $region86: #{tpu_custom_call.1} parent=71 // pred_check_branch
          %529 = sbr.rel (%p527) target = $region88
        $region87: #{tpu_custom_call.1} parent=71 // pred_region
          %531 = dma.done [#allocation9], 3072
        $region88: #{tpu_custom_call.1} parent=71 // pred_fallthru
          _
        // Predicated region
        $region89: #{tpu_custom_call.1} parent=71 // pred_check
          %p532 = pneg %p161
        $region90: #{tpu_custom_call.1} parent=71 // pred_check_branch
          %534 = sbr.rel (%p532) target = $region92
        $region91: #{tpu_custom_call.1} parent=71 // pred_region
          %536 = dma.done [#allocation9], 1024
        $region92: #{tpu_custom_call.1} parent=71 // pred_fallthru
          _
        // Predicated region
        $region93: #{tpu_custom_call.1} parent=71 // pred_check
          %p537 = pneg %p182
        $region94: #{tpu_custom_call.1} parent=71 // pred_check_branch
          %539 = sbr.rel (%p537) target = $region96
        $region95: #{tpu_custom_call.1} parent=71 // pred_region
          %541 = dma.done [#allocation12], 16
        $region96: #{tpu_custom_call.1} parent=71 // pred_fallthru
          _
        // Predicated region
        $region97: #{tpu_custom_call.1} parent=71 // pred_check
          %p542 = pneg %p203
        $region98: #{tpu_custom_call.1} parent=71 // pred_check_branch
          %544 = sbr.rel (%p542) target = $region100
        $region99: #{tpu_custom_call.1} parent=71 // pred_region
          %546 = dma.done [#allocation12], 16
        $region100: #{tpu_custom_call.1} parent=71 // pred_fallthru
          _
        // Predicated region
        $region101: #{tpu_custom_call.1} parent=71 // pred_check
          %p547 = pneg %p224
        $region102: #{tpu_custom_call.1} parent=71 // pred_check_branch
          %549 = sbr.rel (%p547) target = $region104
        $region103: #{tpu_custom_call.1} parent=71 // pred_region
          %551 = dma.done [#allocation15], 16
        $region104: #{tpu_custom_call.1} parent=71 // pred_fallthru
          _
        // Predicated region
        $region105: #{tpu_custom_call.1} parent=71 // pred_check
          %p552 = pneg %p245
        $region106: #{tpu_custom_call.1} parent=71 // pred_check_branch
          %554 = sbr.rel (%p552) target = $region108
        $region107: #{tpu_custom_call.1} parent=71 // pred_region
          %556 = dma.done [#allocation15], 4096
        $region108: #{tpu_custom_call.1} parent=71 // pred_fallthru
          _
        // Predicated region
        $region109: #{tpu_custom_call.1} parent=71 // pred_check
          %p557 = pneg %p287
        $region110: #{tpu_custom_call.1} parent=71 // pred_check_branch
          %559 = sbr.rel (%p557) target = $region112
        $region111: #{tpu_custom_call.1} parent=71 // pred_region
          %561 = dma.done [#allocation18], 4096
        $region112: #{tpu_custom_call.1} parent=71 // pred_fallthru
          _
        %s562 = sand.u32 %s43, 1
        %s563 = scalar_lea.sflag [#allocation3], %s562
        %s564 = sand.u32 %s43, 1
        %s565 = smul.addr %s564, 256
        %s566 = scalar_lea.vmem [#allocation2], %s565
        %p567 = pneg %p56
        %p568 = pneg %p53
        %p569 = pneg %p77
        %p570 = pneg %p74
        %p571 = pneg %p98
        %p572 = pneg %p95
        %p573 = pneg %p119
        %p574 = pneg %p116
        %p575 = pneg %p140
        %p576 = pneg %p137
        %p577 = pneg %p161
        %p578 = pneg %p158
        %p579 = pneg %p182
        %p580 = pneg %p179
        %p581 = pneg %p203
        %p582 = pneg %p200
        %p583 = pneg %p224
        %p584 = pneg %p221
        %p585 = pneg %p245
        %p586 = pneg %p242
        %p587 = pneg %p266
        %p588 = pneg %p263
        %p589 = pneg %p287
        %p590 = pneg %p284
        %p591 = pneg %p308
        %p592 = pneg %p305
        %p593 = pneg %p334
        %p594 = pneg %p331
        %s595 = sand.u32 %s321, 1
        %s596 = scalar_lea.sflag [#allocation4], %s595
        %s597 = sand.u32 %s321, 1
        %s598 = smul.addr %s597, 256
        %s599 = scalar_lea.vmem [#allocation19], %s598
        %v601 = vld [vmem:[%s511] sm:$0xff]
        %v602 = vld [vmem:[%s511 + $0x8] sm:$0xff]
        %v603 = vld [vmem:[%s511 + $0x10] sm:$0xff]
        %v604 = vld [vmem:[%s511 + $0x18] sm:$0xff]
        %v605 = vld [vmem:[%s511 + $0x20] sm:$0xff]
        %v606 = vld [vmem:[%s511 + $0x28] sm:$0xff]
        %v607 = vld [vmem:[%s511 + $0x30] sm:$0xff]
        %v608 = vld [vmem:[%s511 + $0x38] sm:$0xff]
        %v609 = vld [vmem:[%s511 + $0x40] sm:$0xff]
        %v610 = vld [vmem:[%s511 + $0x48] sm:$0xff]
        %v611 = vld [vmem:[%s511 + $0x50] sm:$0xff]
        %v612 = vld [vmem:[%s511 + $0x58] sm:$0xff]
        %v613 = vld [vmem:[%s511 + $0x60] sm:$0xff]
        %v614 = vld [vmem:[%s511 + $0x68] sm:$0xff]
        %v615 = vld [vmem:[%s511 + $0x70] sm:$0xff]
        %v616 = vld [vmem:[%s511 + $0x78] sm:$0xff]
        %v617 = vld [vmem:[%s511 + $0x80] sm:$0xff]
        %v618 = vld [vmem:[%s511 + $0x88] sm:$0xff]
        %v619 = vld [vmem:[%s511 + $0x90] sm:$0xff]
        %v620 = vld [vmem:[%s511 + $0x98] sm:$0xff]
        %v621 = vld [vmem:[%s511 + $0xa0] sm:$0xff]
        %v622 = vld [vmem:[%s511 + $0xa8] sm:$0xff]
        %v623 = vld [vmem:[%s511 + $0xb0] sm:$0xff]
        %v624 = vld [vmem:[%s511 + $0xb8] sm:$0xff]
        %v625 = vld [vmem:[%s511 + $0xc0] sm:$0xff]
        %v626 = vld [vmem:[%s511 + $0xc8] sm:$0xff]
        %v627 = vld [vmem:[%s511 + $0xd0] sm:$0xff]
        %v628 = vld [vmem:[%s511 + $0xd8] sm:$0xff]
        %v629 = vld [vmem:[%s511 + $0xe0] sm:$0xff]
        %v630 = vld [vmem:[%s511 + $0xe8] sm:$0xff]
        %v631 = vld [vmem:[%s511 + $0xf0] sm:$0xff]
        %v632 = vld [vmem:[%s511 + $0xf8] sm:$0xff]
        %v633 = vld [vmem:[#allocation5] sm:$0x1]
        %v634 = vld [vmem:[#allocation7] sm:$0x1]
        %635 = vadd.xlane.f32.xlu0 %v601
        %v636 = vpop.xlane.xlu0 %635
        %637 = vadd.xlane.f32.xlu0 %v602
        %v638 = vpop.xlane.xlu0 %637
        %639 = vadd.xlane.f32.xlu0 %v603
        %v640 = vpop.xlane.xlu0 %639
        %641 = vadd.xlane.f32.xlu0 %v604
        %v642 = vpop.xlane.xlu0 %641
        %643 = vadd.xlane.f32.xlu0 %v605
        %v644 = vpop.xlane.xlu0 %643
        %645 = vadd.xlane.f32.xlu0 %v606
        %v646 = vpop.xlane.xlu0 %645
        %647 = vadd.xlane.f32.xlu0 %v607
        %v648 = vpop.xlane.xlu0 %647
        %649 = vadd.xlane.f32.xlu0 %v608
        %v650 = vpop.xlane.xlu0 %649
        %651 = vadd.xlane.f32.xlu0 %v609
        %v652 = vpop.xlane.xlu0 %651
        %653 = vadd.xlane.f32.xlu0 %v610
        %v654 = vpop.xlane.xlu0 %653
        %655 = vadd.xlane.f32.xlu0 %v611
        %v656 = vpop.xlane.xlu0 %655
        %657 = vadd.xlane.f32.xlu0 %v612
        %v658 = vpop.xlane.xlu0 %657
        %659 = vadd.xlane.f32.xlu0 %v613
        %v660 = vpop.xlane.xlu0 %659
        %661 = vadd.xlane.f32.xlu0 %v614
        %v662 = vpop.xlane.xlu0 %661
        %663 = vadd.xlane.f32.xlu0 %v615
        %v664 = vpop.xlane.xlu0 %663
        %665 = vadd.xlane.f32.xlu0 %v616
        %v666 = vpop.xlane.xlu0 %665
        %667 = vadd.xlane.f32.xlu0 %v617
        %v668 = vpop.xlane.xlu0 %667
        %669 = vadd.xlane.f32.xlu0 %v618
        %v670 = vpop.xlane.xlu0 %669
        %671 = vadd.xlane.f32.xlu0 %v619
        %v672 = vpop.xlane.xlu0 %671
        %673 = vadd.xlane.f32.xlu0 %v620
        %v674 = vpop.xlane.xlu0 %673
        %675 = vadd.xlane.f32.xlu0 %v621
        %v676 = vpop.xlane.xlu0 %675
        %677 = vadd.xlane.f32.xlu0 %v622
        %v678 = vpop.xlane.xlu0 %677
        %679 = vadd.xlane.f32.xlu0 %v623
        %v680 = vpop.xlane.xlu0 %679
        %681 = vadd.xlane.f32.xlu0 %v624
        %v682 = vpop.xlane.xlu0 %681
        %683 = vadd.xlane.f32.xlu0 %v625
        %v684 = vpop.xlane.xlu0 %683
        %685 = vadd.xlane.f32.xlu0 %v626
        %v686 = vpop.xlane.xlu0 %685
        %687 = vadd.xlane.f32.xlu0 %v627
        %v688 = vpop.xlane.xlu0 %687
        %689 = vadd.xlane.f32.xlu0 %v628
        %v690 = vpop.xlane.xlu0 %689
        %691 = vadd.xlane.f32.xlu0 %v629
        %v692 = vpop.xlane.xlu0 %691
        %693 = vadd.xlane.f32.xlu0 %v630
        %v694 = vpop.xlane.xlu0 %693
        %695 = vadd.xlane.f32.xlu0 %v631
        %v696 = vpop.xlane.xlu0 %695
        %697 = vadd.xlane.f32.xlu0 %v632
        %v698 = vpop.xlane.xlu0 %697
        %v699 = vrcp.pop 128.0
        %v700 = vmul.f32 128.0, %v699
        %v701 = vsub.f32 1.0, %v700
        %v702 = vmul.f32 %v699, %v701
        %v703 = vadd.f32 %v699, %v702
        %vm704 = vweird.f32 %v699
        %v705 = vsel %vm704, %v699, %v703
        %v706 = vmul.f32 %v636, %v705
        %v707 = vmul.f32 %v638, %v705
        %v708 = vmul.f32 %v640, %v705
        %v709 = vmul.f32 %v642, %v705
        %v710 = vmul.f32 %v644, %v705
        %v711 = vmul.f32 %v646, %v705
        %v712 = vmul.f32 %v648, %v705
        %v713 = vmul.f32 %v650, %v705
        %v714 = vmul.f32 %v652, %v705
        %v715 = vmul.f32 %v654, %v705
        %v716 = vmul.f32 %v656, %v705
        %v717 = vmul.f32 %v658, %v705
        %v718 = vmul.f32 %v660, %v705
        %v719 = vmul.f32 %v662, %v705
        %v720 = vmul.f32 %v664, %v705
        %v721 = vmul.f32 %v666, %v705
        %v722 = vmul.f32 %v668, %v705
        %v723 = vmul.f32 %v670, %v705
        %v724 = vmul.f32 %v672, %v705
        %v725 = vmul.f32 %v674, %v705
        %v726 = vmul.f32 %v676, %v705
        %v727 = vmul.f32 %v678, %v705
        %v728 = vmul.f32 %v680, %v705
        %v729 = vmul.f32 %v682, %v705
        %v730 = vmul.f32 %v684, %v705
        %v731 = vmul.f32 %v686, %v705
        %v732 = vmul.f32 %v688, %v705
        %v733 = vmul.f32 %v690, %v705
        %v734 = vmul.f32 %v692, %v705
        %v735 = vmul.f32 %v694, %v705
        %v736 = vmul.f32 %v696, %v705
        %v737 = vmul.f32 %v698, %v705
        %v738 = vsub.f32 %v601, %v706
        %v739 = vsub.f32 %v602, %v707
        %v740 = vsub.f32 %v603, %v708
        %v741 = vsub.f32 %v604, %v709
        %v742 = vsub.f32 %v605, %v710
        %v743 = vsub.f32 %v606, %v711
        %v744 = vsub.f32 %v607, %v712
        %v745 = vsub.f32 %v608, %v713
        %v746 = vsub.f32 %v609, %v714
        %v747 = vsub.f32 %v610, %v715
        %v748 = vsub.f32 %v611, %v716
        %v749 = vsub.f32 %v612, %v717
        %v750 = vsub.f32 %v613, %v718
        %v751 = vsub.f32 %v614, %v719
        %v752 = vsub.f32 %v615, %v720
        %v753 = vsub.f32 %v616, %v721
        %v754 = vsub.f32 %v617, %v722
        %v755 = vsub.f32 %v618, %v723
        %v756 = vsub.f32 %v619, %v724
        %v757 = vsub.f32 %v620, %v725
        %v758 = vsub.f32 %v621, %v726
        %v759 = vsub.f32 %v622, %v727
        %v760 = vsub.f32 %v623, %v728
        %v761 = vsub.f32 %v624, %v729
        %v762 = vsub.f32 %v625, %v730
        %v763 = vsub.f32 %v626, %v731
        %v764 = vsub.f32 %v627, %v732
        %v765 = vsub.f32 %v628, %v733
        %v766 = vsub.f32 %v629, %v734
        %v767 = vsub.f32 %v630, %v735
        %v768 = vsub.f32 %v631, %v736
        %v769 = vsub.f32 %v632, %v737
        %v770 = vmul.f32 %v738, %v738
        %v771 = vmul.f32 %v739, %v739
        %v772 = vmul.f32 %v740, %v740
        %v773 = vmul.f32 %v741, %v741
        %v774 = vmul.f32 %v742, %v742
        %v775 = vmul.f32 %v743, %v743
        %v776 = vmul.f32 %v744, %v744
        %v777 = vmul.f32 %v745, %v745
        %v778 = vmul.f32 %v746, %v746
        %v779 = vmul.f32 %v747, %v747
        %v780 = vmul.f32 %v748, %v748
        %v781 = vmul.f32 %v749, %v749
        %v782 = vmul.f32 %v750, %v750
        %v783 = vmul.f32 %v751, %v751
        %v784 = vmul.f32 %v752, %v752
        %v785 = vmul.f32 %v753, %v753
        %v786 = vmul.f32 %v754, %v754
        %v787 = vmul.f32 %v755, %v755
        %v788 = vmul.f32 %v756, %v756
        %v789 = vmul.f32 %v757, %v757
        %v790 = vmul.f32 %v758, %v758
        %v791 = vmul.f32 %v759, %v759
        %v792 = vmul.f32 %v760, %v760
        %v793 = vmul.f32 %v761, %v761
        %v794 = vmul.f32 %v762, %v762
        %v795 = vmul.f32 %v763, %v763
        %v796 = vmul.f32 %v764, %v764
        %v797 = vmul.f32 %v765, %v765
        %v798 = vmul.f32 %v766, %v766
        %v799 = vmul.f32 %v767, %v767
        %v800 = vmul.f32 %v768, %v768
        %v801 = vmul.f32 %v769, %v769
        %802 = vadd.xlane.f32.xlu0 %v770
        %v803 = vpop.xlane.xlu0 %802
        %804 = vadd.xlane.f32.xlu0 %v771
        %v805 = vpop.xlane.xlu0 %804
        %806 = vadd.xlane.f32.xlu0 %v772
        %v807 = vpop.xlane.xlu0 %806
        %808 = vadd.xlane.f32.xlu0 %v773
        %v809 = vpop.xlane.xlu0 %808
        %810 = vadd.xlane.f32.xlu0 %v774
        %v811 = vpop.xlane.xlu0 %810
        %812 = vadd.xlane.f32.xlu0 %v775
        %v813 = vpop.xlane.xlu0 %812
        %814 = vadd.xlane.f32.xlu0 %v776
        %v815 = vpop.xlane.xlu0 %814
        %816 = vadd.xlane.f32.xlu0 %v777
        %v817 = vpop.xlane.xlu0 %816
        %818 = vadd.xlane.f32.xlu0 %v778
        %v819 = vpop.xlane.xlu0 %818
        %820 = vadd.xlane.f32.xlu0 %v779
        %v821 = vpop.xlane.xlu0 %820
        %822 = vadd.xlane.f32.xlu0 %v780
        %v823 = vpop.xlane.xlu0 %822
        %824 = vadd.xlane.f32.xlu0 %v781
        %v825 = vpop.xlane.xlu0 %824
        %826 = vadd.xlane.f32.xlu0 %v782
        %v827 = vpop.xlane.xlu0 %826
        %828 = vadd.xlane.f32.xlu0 %v783
        %v829 = vpop.xlane.xlu0 %828
        %830 = vadd.xlane.f32.xlu0 %v784
        %v831 = vpop.xlane.xlu0 %830
        %832 = vadd.xlane.f32.xlu0 %v785
        %v833 = vpop.xlane.xlu0 %832
        %834 = vadd.xlane.f32.xlu0 %v786
        %v835 = vpop.xlane.xlu0 %834
        %836 = vadd.xlane.f32.xlu0 %v787
        %v837 = vpop.xlane.xlu0 %836
        %838 = vadd.xlane.f32.xlu0 %v788
        %v839 = vpop.xlane.xlu0 %838
        %840 = vadd.xlane.f32.xlu0 %v789
        %v841 = vpop.xlane.xlu0 %840
        %842 = vadd.xlane.f32.xlu0 %v790
        %v843 = vpop.xlane.xlu0 %842
        %844 = vadd.xlane.f32.xlu0 %v791
        %v845 = vpop.xlane.xlu0 %844
        %846 = vadd.xlane.f32.xlu0 %v792
        %v847 = vpop.xlane.xlu0 %846
        %848 = vadd.xlane.f32.xlu0 %v793
        %v849 = vpop.xlane.xlu0 %848
        %850 = vadd.xlane.f32.xlu0 %v794
        %v851 = vpop.xlane.xlu0 %850
        %852 = vadd.xlane.f32.xlu0 %v795
        %v853 = vpop.xlane.xlu0 %852
        %854 = vadd.xlane.f32.xlu0 %v796
        %v855 = vpop.xlane.xlu0 %854
        %856 = vadd.xlane.f32.xlu0 %v797
        %v857 = vpop.xlane.xlu0 %856
        %858 = vadd.xlane.f32.xlu0 %v798
        %v859 = vpop.xlane.xlu0 %858
        %860 = vadd.xlane.f32.xlu0 %v799
        %v861 = vpop.xlane.xlu0 %860
        %862 = vadd.xlane.f32.xlu0 %v800
        %v863 = vpop.xlane.xlu0 %862
        %864 = vadd.xlane.f32.xlu0 %v801
        %v865 = vpop.xlane.xlu0 %864
        %v866 = vmul.f32 %v803, %v705
        %v867 = vmul.f32 %v805, %v705
        %v868 = vmul.f32 %v807, %v705
        %v869 = vmul.f32 %v809, %v705
        %v870 = vmul.f32 %v811, %v705
        %v871 = vmul.f32 %v813, %v705
        %v872 = vmul.f32 %v815, %v705
        %v873 = vmul.f32 %v817, %v705
        %v874 = vmul.f32 %v819, %v705
        %v875 = vmul.f32 %v821, %v705
        %v876 = vmul.f32 %v823, %v705
        %v877 = vmul.f32 %v825, %v705
        %v878 = vmul.f32 %v827, %v705
        %v879 = vmul.f32 %v829, %v705
        %v880 = vmul.f32 %v831, %v705
        %v881 = vmul.f32 %v833, %v705
        %v882 = vmul.f32 %v835, %v705
        %v883 = vmul.f32 %v837, %v705
        %v884 = vmul.f32 %v839, %v705
        %v885 = vmul.f32 %v841, %v705
        %v886 = vmul.f32 %v843, %v705
        %v887 = vmul.f32 %v845, %v705
        %v888 = vmul.f32 %v847, %v705
        %v889 = vmul.f32 %v849, %v705
        %v890 = vmul.f32 %v851, %v705
        %v891 = vmul.f32 %v853, %v705
        %v892 = vmul.f32 %v855, %v705
        %v893 = vmul.f32 %v857, %v705
        %v894 = vmul.f32 %v859, %v705
        %v895 = vmul.f32 %v861, %v705
        %v896 = vmul.f32 %v863, %v705
        %v897 = vmul.f32 %v865, %v705
        %v898 = vadd.f32 %v866, 1e-05
        %v899 = vadd.f32 %v867, 1e-05
        %v900 = vadd.f32 %v868, 1e-05
        %v901 = vadd.f32 %v869, 1e-05
        %v902 = vadd.f32 %v870, 1e-05
        %v903 = vadd.f32 %v871, 1e-05
        %v904 = vadd.f32 %v872, 1e-05
        %v905 = vadd.f32 %v873, 1e-05
        %v906 = vadd.f32 %v874, 1e-05
        %v907 = vadd.f32 %v875, 1e-05
        %v908 = vadd.f32 %v876, 1e-05
        %v909 = vadd.f32 %v877, 1e-05
        %v910 = vadd.f32 %v878, 1e-05
        %v911 = vadd.f32 %v879, 1e-05
        %v912 = vadd.f32 %v880, 1e-05
        %v913 = vadd.f32 %v881, 1e-05
        %v914 = vadd.f32 %v882, 1e-05
        %v915 = vadd.f32 %v883, 1e-05
        %v916 = vadd.f32 %v884, 1e-05
        %v917 = vadd.f32 %v885, 1e-05
        %v918 = vadd.f32 %v886, 1e-05
        %v919 = vadd.f32 %v887, 1e-05
        %v920 = vadd.f32 %v888, 1e-05
        %v921 = vadd.f32 %v889, 1e-05
        %v922 = vadd.f32 %v890, 1e-05
        %v923 = vadd.f32 %v891, 1e-05
        %v924 = vadd.f32 %v892, 1e-05
        %v925 = vadd.f32 %v893, 1e-05
        %v926 = vadd.f32 %v894, 1e-05
        %v927 = vadd.f32 %v895, 1e-05
        %v928 = vadd.f32 %v896, 1e-05
        %v929 = vadd.f32 %v897, 1e-05
        %v930 = vrsqrt.pop %v898
        %v931 = vmul.f32 %v930, %v898
        %v932 = vmul.f32 %v931, %v930
        %v933 = vmul.f32 0.5, %v932
        %v934 = vsub.f32 1.5, %v933
        %v935 = vmul.f32 %v930, %v934
        %vm936 = vweird.f32 %v898
        %vm937 = vweird.f32 %v930
        %vm938 = vmor %vm936, %vm937
        %v939 = vsel %vm938, %v930, %v935
        %v940 = vrsqrt.pop %v899
        %v941 = vmul.f32 %v940, %v899
        %v942 = vmul.f32 %v941, %v940
        %v943 = vmul.f32 0.5, %v942
        %v944 = vsub.f32 1.5, %v943
        %v945 = vmul.f32 %v940, %v944
        %vm946 = vweird.f32 %v899
        %vm947 = vweird.f32 %v940
        %vm948 = vmor %vm946, %vm947
        %v949 = vsel %vm948, %v940, %v945
        %v950 = vrsqrt.pop %v900
        %v951 = vmul.f32 %v950, %v900
        %v952 = vmul.f32 %v951, %v950
        %v953 = vmul.f32 0.5, %v952
        %v954 = vsub.f32 1.5, %v953
        %v955 = vmul.f32 %v950, %v954
        %vm956 = vweird.f32 %v900
        %vm957 = vweird.f32 %v950
        %vm958 = vmor %vm956, %vm957
        %v959 = vsel %vm958, %v950, %v955
        %v960 = vrsqrt.pop %v901
        %v961 = vmul.f32 %v960, %v901
        %v962 = vmul.f32 %v961, %v960
        %v963 = vmul.f32 0.5, %v962
        %v964 = vsub.f32 1.5, %v963
        %v965 = vmul.f32 %v960, %v964
        %vm966 = vweird.f32 %v901
        %vm967 = vweird.f32 %v960
        %vm968 = vmor %vm966, %vm967
        %v969 = vsel %vm968, %v960, %v965
        %v970 = vrsqrt.pop %v902
        %v971 = vmul.f32 %v970, %v902
        %v972 = vmul.f32 %v971, %v970
        %v973 = vmul.f32 0.5, %v972
        %v974 = vsub.f32 1.5, %v973
        %v975 = vmul.f32 %v970, %v974
        %vm976 = vweird.f32 %v902
        %vm977 = vweird.f32 %v970
        %vm978 = vmor %vm976, %vm977
        %v979 = vsel %vm978, %v970, %v975
        %v980 = vrsqrt.pop %v903
        %v981 = vmul.f32 %v980, %v903
        %v982 = vmul.f32 %v981, %v980
        %v983 = vmul.f32 0.5, %v982
        %v984 = vsub.f32 1.5, %v983
        %v985 = vmul.f32 %v980, %v984
        %vm986 = vweird.f32 %v903
        %vm987 = vweird.f32 %v980
        %vm988 = vmor %vm986, %vm987
        %v989 = vsel %vm988, %v980, %v985
        %v990 = vrsqrt.pop %v904
        %v991 = vmul.f32 %v990, %v904
        %v992 = vmul.f32 %v991, %v990
        %v993 = vmul.f32 0.5, %v992
        %v994 = vsub.f32 1.5, %v993
        %v995 = vmul.f32 %v990, %v994
        %vm996 = vweird.f32 %v904
        %vm997 = vweird.f32 %v990
        %vm998 = vmor %vm996, %vm997
        %v999 = vsel %vm998, %v990, %v995
        %v1000 = vrsqrt.pop %v905
        %v1001 = vmul.f32 %v1000, %v905
        %v1002 = vmul.f32 %v1001, %v1000
        %v1003 = vmul.f32 0.5, %v1002
        %v1004 = vsub.f32 1.5, %v1003
        %v1005 = vmul.f32 %v1000, %v1004
        %vm1006 = vweird.f32 %v905
        %vm1007 = vweird.f32 %v1000
        %vm1008 = vmor %vm1006, %vm1007
        %v1009 = vsel %vm1008, %v1000, %v1005
        %v1010 = vrsqrt.pop %v906
        %v1011 = vmul.f32 %v1010, %v906
        %v1012 = vmul.f32 %v1011, %v1010
        %v1013 = vmul.f32 0.5, %v1012
        %v1014 = vsub.f32 1.5, %v1013
        %v1015 = vmul.f32 %v1010, %v1014
        %vm1016 = vweird.f32 %v906
        %vm1017 = vweird.f32 %v1010
        %vm1018 = vmor %vm1016, %vm1017
        %v1019 = vsel %vm1018, %v1010, %v1015
        %v1020 = vrsqrt.pop %v907
        %v1021 = vmul.f32 %v1020, %v907
        %v1022 = vmul.f32 %v1021, %v1020
        %v1023 = vmul.f32 0.5, %v1022
        %v1024 = vsub.f32 1.5, %v1023
        %v1025 = vmul.f32 %v1020, %v1024
        %vm1026 = vweird.f32 %v907
        %vm1027 = vweird.f32 %v1020
        %vm1028 = vmor %vm1026, %vm1027
        %v1029 = vsel %vm1028, %v1020, %v1025
        %v1030 = vrsqrt.pop %v908
        %v1031 = vmul.f32 %v1030, %v908
        %v1032 = vmul.f32 %v1031, %v1030
        %v1033 = vmul.f32 0.5, %v1032
        %v1034 = vsub.f32 1.5, %v1033
        %v1035 = vmul.f32 %v1030, %v1034
        %vm1036 = vweird.f32 %v908
        %vm1037 = vweird.f32 %v1030
        %vm1038 = vmor %vm1036, %vm1037
        %v1039 = vsel %vm1038, %v1030, %v1035
        %v1040 = vrsqrt.pop %v909
        %v1041 = vmul.f32 %v1040, %v909
        %v1042 = vmul.f32 %v1041, %v1040
        %v1043 = vmul.f32 0.5, %v1042
        %v1044 = vsub.f32 1.5, %v1043
        %v1045 = vmul.f32 %v1040, %v1044
        %vm1046 = vweird.f32 %v909
        %vm1047 = vweird.f32 %v1040
        %vm1048 = vmor %vm1046, %vm1047
        %v1049 = vsel %vm1048, %v1040, %v1045
        %v1050 = vrsqrt.pop %v910
        %v1051 = vmul.f32 %v1050, %v910
        %v1052 = vmul.f32 %v1051, %v1050
        %v1053 = vmul.f32 0.5, %v1052
        %v1054 = vsub.f32 1.5, %v1053
        %v1055 = vmul.f32 %v1050, %v1054
        %vm1056 = vweird.f32 %v910
        %vm1057 = vweird.f32 %v1050
        %vm1058 = vmor %vm1056, %vm1057
        %v1059 = vsel %vm1058, %v1050, %v1055
        %v1060 = vrsqrt.pop %v911
        %v1061 = vmul.f32 %v1060, %v911
        %v1062 = vmul.f32 %v1061, %v1060
        %v1063 = vmul.f32 0.5, %v1062
        %v1064 = vsub.f32 1.5, %v1063
        %v1065 = vmul.f32 %v1060, %v1064
        %vm1066 = vweird.f32 %v911
        %vm1067 = vweird.f32 %v1060
        %vm1068 = vmor %vm1066, %vm1067
        %v1069 = vsel %vm1068, %v1060, %v1065
        %v1070 = vrsqrt.pop %v912
        %v1071 = vmul.f32 %v1070, %v912
        %v1072 = vmul.f32 %v1071, %v1070
        %v1073 = vmul.f32 0.5, %v1072
        %v1074 = vsub.f32 1.5, %v1073
        %v1075 = vmul.f32 %v1070, %v1074
        %vm1076 = vweird.f32 %v912
        %vm1077 = vweird.f32 %v1070
        %vm1078 = vmor %vm1076, %vm1077
        %v1079 = vsel %vm1078, %v1070, %v1075
        %v1080 = vrsqrt.pop %v913
        %v1081 = vmul.f32 %v1080, %v913
        %v1082 = vmul.f32 %v1081, %v1080
        %v1083 = vmul.f32 0.5, %v1082
        %v1084 = vsub.f32 1.5, %v1083
        %v1085 = vmul.f32 %v1080, %v1084
        %vm1086 = vweird.f32 %v913
        %vm1087 = vweird.f32 %v1080
        %vm1088 = vmor %vm1086, %vm1087
        %v1089 = vsel %vm1088, %v1080, %v1085
        %v1090 = vrsqrt.pop %v914
        %v1091 = vmul.f32 %v1090, %v914
        %v1092 = vmul.f32 %v1091, %v1090
        %v1093 = vmul.f32 0.5, %v1092
        %v1094 = vsub.f32 1.5, %v1093
        %v1095 = vmul.f32 %v1090, %v1094
        %vm1096 = vweird.f32 %v914
        %vm1097 = vweird.f32 %v1090
        %vm1098 = vmor %vm1096, %vm1097
        %v1099 = vsel %vm1098, %v1090, %v1095
        %v1100 = vrsqrt.pop %v915
        %v1101 = vmul.f32 %v1100, %v915
        %v1102 = vmul.f32 %v1101, %v1100
        %v1103 = vmul.f32 0.5, %v1102
        %v1104 = vsub.f32 1.5, %v1103
        %v1105 = vmul.f32 %v1100, %v1104
        %vm1106 = vweird.f32 %v915
        %vm1107 = vweird.f32 %v1100
        %vm1108 = vmor %vm1106, %vm1107
        %v1109 = vsel %vm1108, %v1100, %v1105
        %v1110 = vrsqrt.pop %v916
        %v1111 = vmul.f32 %v1110, %v916
        %v1112 = vmul.f32 %v1111, %v1110
        %v1113 = vmul.f32 0.5, %v1112
        %v1114 = vsub.f32 1.5, %v1113
        %v1115 = vmul.f32 %v1110, %v1114
        %vm1116 = vweird.f32 %v916
        %vm1117 = vweird.f32 %v1110
        %vm1118 = vmor %vm1116, %vm1117
        %v1119 = vsel %vm1118, %v1110, %v1115
        %v1120 = vrsqrt.pop %v917
        %v1121 = vmul.f32 %v1120, %v917
        %v1122 = vmul.f32 %v1121, %v1120
        %v1123 = vmul.f32 0.5, %v1122
        %v1124 = vsub.f32 1.5, %v1123
        %v1125 = vmul.f32 %v1120, %v1124
        %vm1126 = vweird.f32 %v917
        %vm1127 = vweird.f32 %v1120
        %vm1128 = vmor %vm1126, %vm1127
        %v1129 = vsel %vm1128, %v1120, %v1125
        %v1130 = vrsqrt.pop %v918
        %v1131 = vmul.f32 %v1130, %v918
        %v1132 = vmul.f32 %v1131, %v1130
        %v1133 = vmul.f32 0.5, %v1132
        %v1134 = vsub.f32 1.5, %v1133
        %v1135 = vmul.f32 %v1130, %v1134
        %vm1136 = vweird.f32 %v918
        %vm1137 = vweird.f32 %v1130
        %vm1138 = vmor %vm1136, %vm1137
        %v1139 = vsel %vm1138, %v1130, %v1135
        %v1140 = vrsqrt.pop %v919
        %v1141 = vmul.f32 %v1140, %v919
        %v1142 = vmul.f32 %v1141, %v1140
        %v1143 = vmul.f32 0.5, %v1142
        %v1144 = vsub.f32 1.5, %v1143
        %v1145 = vmul.f32 %v1140, %v1144
        %vm1146 = vweird.f32 %v919
        %vm1147 = vweird.f32 %v1140
        %vm1148 = vmor %vm1146, %vm1147
        %v1149 = vsel %vm1148, %v1140, %v1145
        %v1150 = vrsqrt.pop %v920
        %v1151 = vmul.f32 %v1150, %v920
        %v1152 = vmul.f32 %v1151, %v1150
        %v1153 = vmul.f32 0.5, %v1152
        %v1154 = vsub.f32 1.5, %v1153
        %v1155 = vmul.f32 %v1150, %v1154
        %vm1156 = vweird.f32 %v920
        %vm1157 = vweird.f32 %v1150
        %vm1158 = vmor %vm1156, %vm1157
        %v1159 = vsel %vm1158, %v1150, %v1155
        %v1160 = vrsqrt.pop %v921
        %v1161 = vmul.f32 %v1160, %v921
        %v1162 = vmul.f32 %v1161, %v1160
        %v1163 = vmul.f32 0.5, %v1162
        %v1164 = vsub.f32 1.5, %v1163
        %v1165 = vmul.f32 %v1160, %v1164
        %vm1166 = vweird.f32 %v921
        %vm1167 = vweird.f32 %v1160
        %vm1168 = vmor %vm1166, %vm1167
        %v1169 = vsel %vm1168, %v1160, %v1165
        %v1170 = vrsqrt.pop %v922
        %v1171 = vmul.f32 %v1170, %v922
        %v1172 = vmul.f32 %v1171, %v1170
        %v1173 = vmul.f32 0.5, %v1172
        %v1174 = vsub.f32 1.5, %v1173
        %v1175 = vmul.f32 %v1170, %v1174
        %vm1176 = vweird.f32 %v922
        %vm1177 = vweird.f32 %v1170
        %vm1178 = vmor %vm1176, %vm1177
        %v1179 = vsel %vm1178, %v1170, %v1175
        %v1180 = vrsqrt.pop %v923
        %v1181 = vmul.f32 %v1180, %v923
        %v1182 = vmul.f32 %v1181, %v1180
        %v1183 = vmul.f32 0.5, %v1182
        %v1184 = vsub.f32 1.5, %v1183
        %v1185 = vmul.f32 %v1180, %v1184
        %vm1186 = vweird.f32 %v923
        %vm1187 = vweird.f32 %v1180
        %vm1188 = vmor %vm1186, %vm1187
        %v1189 = vsel %vm1188, %v1180, %v1185
        %v1190 = vrsqrt.pop %v924
        %v1191 = vmul.f32 %v1190, %v924
        %v1192 = vmul.f32 %v1191, %v1190
        %v1193 = vmul.f32 0.5, %v1192
        %v1194 = vsub.f32 1.5, %v1193
        %v1195 = vmul.f32 %v1190, %v1194
        %vm1196 = vweird.f32 %v924
        %vm1197 = vweird.f32 %v1190
        %vm1198 = vmor %vm1196, %vm1197
        %v1199 = vsel %vm1198, %v1190, %v1195
        %v1200 = vrsqrt.pop %v925
        %v1201 = vmul.f32 %v1200, %v925
        %v1202 = vmul.f32 %v1201, %v1200
        %v1203 = vmul.f32 0.5, %v1202
        %v1204 = vsub.f32 1.5, %v1203
        %v1205 = vmul.f32 %v1200, %v1204
        %vm1206 = vweird.f32 %v925
        %vm1207 = vweird.f32 %v1200
        %vm1208 = vmor %vm1206, %vm1207
        %v1209 = vsel %vm1208, %v1200, %v1205
        %v1210 = vrsqrt.pop %v926
        %v1211 = vmul.f32 %v1210, %v926
        %v1212 = vmul.f32 %v1211, %v1210
        %v1213 = vmul.f32 0.5, %v1212
        %v1214 = vsub.f32 1.5, %v1213
        %v1215 = vmul.f32 %v1210, %v1214
        %vm1216 = vweird.f32 %v926
        %vm1217 = vweird.f32 %v1210
        %vm1218 = vmor %vm1216, %vm1217
        %v1219 = vsel %vm1218, %v1210, %v1215
        %v1220 = vrsqrt.pop %v927
        %v1221 = vmul.f32 %v1220, %v927
        %v1222 = vmul.f32 %v1221, %v1220
        %v1223 = vmul.f32 0.5, %v1222
        %v1224 = vsub.f32 1.5, %v1223
        %v1225 = vmul.f32 %v1220, %v1224
        %vm1226 = vweird.f32 %v927
        %vm1227 = vweird.f32 %v1220
        %vm1228 = vmor %vm1226, %vm1227
        %v1229 = vsel %vm1228, %v1220, %v1225
        %v1230 = vrsqrt.pop %v928
        %v1231 = vmul.f32 %v1230, %v928
        %v1232 = vmul.f32 %v1231, %v1230
        %v1233 = vmul.f32 0.5, %v1232
        %v1234 = vsub.f32 1.5, %v1233
        %v1235 = vmul.f32 %v1230, %v1234
        %vm1236 = vweird.f32 %v928
        %vm1237 = vweird.f32 %v1230
        %vm1238 = vmor %vm1236, %vm1237
        %v1239 = vsel %vm1238, %v1230, %v1235
        %v1240 = vrsqrt.pop %v929
        %v1241 = vmul.f32 %v1240, %v929
        %v1242 = vmul.f32 %v1241, %v1240
        %v1243 = vmul.f32 0.5, %v1242
        %v1244 = vsub.f32 1.5, %v1243
        %v1245 = vmul.f32 %v1240, %v1244
        %vm1246 = vweird.f32 %v929
        %vm1247 = vweird.f32 %v1240
        %vm1248 = vmor %vm1246, %vm1247
        %v1249 = vsel %vm1248, %v1240, %v1245
        %v1250 = vmul.f32 %v738, %v939
        %v1251 = vmul.f32 %v739, %v949
        %v1252 = vmul.f32 %v740, %v959
        %v1253 = vmul.f32 %v741, %v969
        %v1254 = vmul.f32 %v742, %v979
        %v1255 = vmul.f32 %v743, %v989
        %v1256 = vmul.f32 %v744, %v999
        %v1257 = vmul.f32 %v745, %v1009
        %v1258 = vmul.f32 %v746, %v1019
        %v1259 = vmul.f32 %v747, %v1029
        %v1260 = vmul.f32 %v748, %v1039
        %v1261 = vmul.f32 %v749, %v1049
        %v1262 = vmul.f32 %v750, %v1059
        %v1263 = vmul.f32 %v751, %v1069
        %v1264 = vmul.f32 %v752, %v1079
        %v1265 = vmul.f32 %v753, %v1089
        %v1266 = vmul.f32 %v754, %v1099
        %v1267 = vmul.f32 %v755, %v1109
        %v1268 = vmul.f32 %v756, %v1119
        %v1269 = vmul.f32 %v757, %v1129
        %v1270 = vmul.f32 %v758, %v1139
        %v1271 = vmul.f32 %v759, %v1149
        %v1272 = vmul.f32 %v760, %v1159
        %v1273 = vmul.f32 %v761, %v1169
        %v1274 = vmul.f32 %v762, %v1179
        %v1275 = vmul.f32 %v763, %v1189
        %v1276 = vmul.f32 %v764, %v1199
        %v1277 = vmul.f32 %v765, %v1209
        %v1278 = vmul.f32 %v766, %v1219
        %v1279 = vmul.f32 %v767, %v1229
        %v1280 = vmul.f32 %v768, %v1239
        %v1281 = vmul.f32 %v769, %v1249
        %v1283 = vperm.slane %v633, 0
        %v1285 = vmul.f32 %v1250, %v1283
        %v1286 = vmul.f32 %v1251, %v1283
        %v1287 = vmul.f32 %v1252, %v1283
        %v1288 = vmul.f32 %v1253, %v1283
        %v1289 = vmul.f32 %v1254, %v1283
        %v1290 = vmul.f32 %v1255, %v1283
        %v1291 = vmul.f32 %v1256, %v1283
        %v1292 = vmul.f32 %v1257, %v1283
        %v1293 = vmul.f32 %v1258, %v1283
        %v1294 = vmul.f32 %v1259, %v1283
        %v1295 = vmul.f32 %v1260, %v1283
        %v1296 = vmul.f32 %v1261, %v1283
        %v1297 = vmul.f32 %v1262, %v1283
        %v1298 = vmul.f32 %v1263, %v1283
        %v1299 = vmul.f32 %v1264, %v1283
        %v1300 = vmul.f32 %v1265, %v1283
        %v1301 = vmul.f32 %v1266, %v1283
        %v1302 = vmul.f32 %v1267, %v1283
        %v1303 = vmul.f32 %v1268, %v1283
        %v1304 = vmul.f32 %v1269, %v1283
        %v1305 = vmul.f32 %v1270, %v1283
        %v1306 = vmul.f32 %v1271, %v1283
        %v1307 = vmul.f32 %v1272, %v1283
        %v1308 = vmul.f32 %v1273, %v1283
        %v1309 = vmul.f32 %v1274, %v1283
        %v1310 = vmul.f32 %v1275, %v1283
        %v1311 = vmul.f32 %v1276, %v1283
        %v1312 = vmul.f32 %v1277, %v1283
        %v1313 = vmul.f32 %v1278, %v1283
        %v1314 = vmul.f32 %v1279, %v1283
        %v1315 = vmul.f32 %v1280, %v1283
        %v1316 = vmul.f32 %v1281, %v1283
        %v1318 = vperm.slane %v634, 0
        %v1320 = vadd.f32 %v1285, %v1318
        %v1321 = vadd.f32 %v1286, %v1318
        %v1322 = vadd.f32 %v1287, %v1318
        %v1323 = vadd.f32 %v1288, %v1318
        %v1324 = vadd.f32 %v1289, %v1318
        %v1325 = vadd.f32 %v1290, %v1318
        %v1326 = vadd.f32 %v1291, %v1318
        %v1327 = vadd.f32 %v1292, %v1318
        %v1328 = vadd.f32 %v1293, %v1318
        %v1329 = vadd.f32 %v1294, %v1318
        %v1330 = vadd.f32 %v1295, %v1318
        %v1331 = vadd.f32 %v1296, %v1318
        %v1332 = vadd.f32 %v1297, %v1318
        %v1333 = vadd.f32 %v1298, %v1318
        %v1334 = vadd.f32 %v1299, %v1318
        %v1335 = vadd.f32 %v1300, %v1318
        %v1336 = vadd.f32 %v1301, %v1318
        %v1337 = vadd.f32 %v1302, %v1318
        %v1338 = vadd.f32 %v1303, %v1318
        %v1339 = vadd.f32 %v1304, %v1318
        %v1340 = vadd.f32 %v1305, %v1318
        %v1341 = vadd.f32 %v1306, %v1318
        %v1342 = vadd.f32 %v1307, %v1318
        %v1343 = vadd.f32 %v1308, %v1318
        %v1344 = vadd.f32 %v1309, %v1318
        %v1345 = vadd.f32 %v1310, %v1318
        %v1346 = vadd.f32 %v1311, %v1318
        %v1347 = vadd.f32 %v1312, %v1318
        %v1348 = vadd.f32 %v1313, %v1318
        %v1349 = vadd.f32 %v1314, %v1318
        %v1350 = vadd.f32 %v1315, %v1318
        %v1351 = vadd.f32 %v1316, %v1318
        %v1352 = vpack.c.bf16 %v1321, %v1320
        %v1353 = vpack.c.bf16 %v1323, %v1322
        %v1354 = vpack.c.bf16 %v1325, %v1324
        %v1355 = vpack.c.bf16 %v1327, %v1326
        %v1356 = vpack.c.bf16 %v1329, %v1328
        %v1357 = vpack.c.bf16 %v1331, %v1330
        %v1358 = vpack.c.bf16 %v1333, %v1332
        %v1359 = vpack.c.bf16 %v1335, %v1334
        %v1360 = vpack.c.bf16 %v1337, %v1336
        %v1361 = vpack.c.bf16 %v1339, %v1338
        %v1362 = vpack.c.bf16 %v1341, %v1340
        %v1363 = vpack.c.bf16 %v1343, %v1342
        %v1364 = vpack.c.bf16 %v1345, %v1344
        %v1365 = vpack.c.bf16 %v1347, %v1346
        %v1366 = vpack.c.bf16 %v1349, %v1348
        %v1367 = vpack.c.bf16 %v1351, %v1350
        %v1368 = vld [vmem:[#allocation8] sm:$0xff]
        %v1369 = vld [vmem:[#allocation8 + $0x8] sm:$0xf]
        %v1370 = vld [vmem:[#allocation8 + $0xc] sm:$0xff]
        %v1371 = vld [vmem:[#allocation8 + $0x14] sm:$0xf]
        %v1372 = vld [vmem:[#allocation8 + $0x18] sm:$0xff]
        %v1373 = vld [vmem:[#allocation8 + $0x20] sm:$0xf]
        %v1374 = vld [vmem:[#allocation8 + $0x24] sm:$0xff]
        %v1375 = vld [vmem:[#allocation8 + $0x2c] sm:$0xf]
        %v1376 = vld [vmem:[#allocation8 + $0x30] sm:$0xff]
        %v1377 = vld [vmem:[#allocation8 + $0x38] sm:$0xf]
        %v1378 = vld [vmem:[#allocation8 + $0x3c] sm:$0xff]
        %v1379 = vld [vmem:[#allocation8 + $0x44] sm:$0xf]
        %v1380 = vld [vmem:[#allocation8 + $0x48] sm:$0xff]
        %v1381 = vld [vmem:[#allocation8 + $0x50] sm:$0xf]
        %v1382 = vld [vmem:[#allocation8 + $0x54] sm:$0xff]
        %v1383 = vld [vmem:[#allocation8 + $0x5c] sm:$0xf]
        %v1384 = vld [vmem:[#allocation8 + $0x60] sm:$0xff]
        %v1385 = vld [vmem:[#allocation8 + $0x68] sm:$0xf]
        %v1386 = vld [vmem:[#allocation8 + $0x6c] sm:$0xff]
        %v1387 = vld [vmem:[#allocation8 + $0x74] sm:$0xf]
        %v1388 = vld [vmem:[#allocation8 + $0x78] sm:$0xff]
        %v1389 = vld [vmem:[#allocation8 + $0x80] sm:$0xf]
        %v1390 = vld [vmem:[#allocation8 + $0x84] sm:$0xff]
        %v1391 = vld [vmem:[#allocation8 + $0x8c] sm:$0xf]
        %v1392 = vld [vmem:[#allocation8 + $0x90] sm:$0xff]
        %v1393 = vld [vmem:[#allocation8 + $0x98] sm:$0xf]
        %v1394 = vld [vmem:[#allocation8 + $0x9c] sm:$0xff]
        %v1395 = vld [vmem:[#allocation8 + $0xa4] sm:$0xf]
        %v1396 = vld [vmem:[#allocation8 + $0xa8] sm:$0xff]
        %v1397 = vld [vmem:[#allocation8 + $0xb0] sm:$0xf]
        %v1398 = vld [vmem:[#allocation8 + $0xb4] sm:$0xff]
        %v1399 = vld [vmem:[#allocation8 + $0xbc] sm:$0xf]
        %v1400 = vld [vmem:[%s4] sm:$0x7]
        %v1402 = vperm.slane %v1400, 0
        %v1403 = vperm.slane %v1400, 1
        %v1404 = vperm.slane %v1400, 2
        %v1440 = vunpack.c.l.b16 %v1368
        %v1441 = vunpack.c.h.b16 %v1368
        %v1442 = vunpack.c.l.b16 %v1369
        %v1443 = vunpack.c.l.b16 %v1370
        %v1444 = vunpack.c.h.b16 %v1370
        %v1445 = vunpack.c.l.b16 %v1371
        %v1446 = vunpack.c.l.b16 %v1372
        %v1447 = vunpack.c.h.b16 %v1372
        %v1448 = vunpack.c.l.b16 %v1373
        %v1449 = vunpack.c.l.b16 %v1374
        %v1450 = vunpack.c.h.b16 %v1374
        %v1451 = vunpack.c.l.b16 %v1375
        %v1452 = vunpack.c.l.b16 %v1376
        %v1453 = vunpack.c.h.b16 %v1376
        %v1454 = vunpack.c.l.b16 %v1377
        %v1455 = vunpack.c.l.b16 %v1378
        %v1456 = vunpack.c.h.b16 %v1378
        %v1457 = vunpack.c.l.b16 %v1379
        %v1458 = vunpack.c.l.b16 %v1380
        %v1459 = vunpack.c.h.b16 %v1380
        %v1460 = vunpack.c.l.b16 %v1381
        %v1461 = vunpack.c.l.b16 %v1382
        %v1462 = vunpack.c.h.b16 %v1382
        %v1463 = vunpack.c.l.b16 %v1383
        %v1464 = vunpack.c.l.b16 %v1384
        %v1465 = vunpack.c.h.b16 %v1384
        %v1466 = vunpack.c.l.b16 %v1385
        %v1467 = vunpack.c.l.b16 %v1386
        %v1468 = vunpack.c.h.b16 %v1386
        %v1469 = vunpack.c.l.b16 %v1387
        %v1470 = vunpack.c.l.b16 %v1388
        %v1471 = vunpack.c.h.b16 %v1388
        %v1472 = vunpack.c.l.b16 %v1389
        %v1473 = vunpack.c.l.b16 %v1390
        %v1474 = vunpack.c.h.b16 %v1390
        %v1475 = vunpack.c.l.b16 %v1391
        %v1476 = vunpack.c.l.b16 %v1392
        %v1477 = vunpack.c.h.b16 %v1392
        %v1478 = vunpack.c.l.b16 %v1393
        %v1479 = vunpack.c.l.b16 %v1394
        %v1480 = vunpack.c.h.b16 %v1394
        %v1481 = vunpack.c.l.b16 %v1395
        %v1482 = vunpack.c.l.b16 %v1396
        %v1483 = vunpack.c.h.b16 %v1396
        %v1484 = vunpack.c.l.b16 %v1397
        %v1485 = vunpack.c.l.b16 %v1398
        %v1486 = vunpack.c.h.b16 %v1398
        %v1487 = vunpack.c.l.b16 %v1399
        %v1488 = vpack.c.b16 %v1443, %v1440
        %v1489 = vpack.c.b16 %v1444, %v1441
        %v1490 = vpack.c.b16 %v1445, %v1442
        %v1491 = vpack.c.b16 %v1449, %v1446
        %v1492 = vpack.c.b16 %v1450, %v1447
        %v1493 = vpack.c.b16 %v1451, %v1448
        %v1494 = vpack.c.b16 %v1455, %v1452
        %v1495 = vpack.c.b16 %v1456, %v1453
        %v1496 = vpack.c.b16 %v1457, %v1454
        %v1497 = vpack.c.b16 %v1461, %v1458
        %v1498 = vpack.c.b16 %v1462, %v1459
        %v1499 = vpack.c.b16 %v1463, %v1460
        %v1500 = vpack.c.b16 %v1467, %v1464
        %v1501 = vpack.c.b16 %v1468, %v1465
        %v1502 = vpack.c.b16 %v1469, %v1466
        %v1503 = vpack.c.b16 %v1473, %v1470
        %v1504 = vpack.c.b16 %v1474, %v1471
        %v1505 = vpack.c.b16 %v1475, %v1472
        %v1506 = vpack.c.b16 %v1479, %v1476
        %v1507 = vpack.c.b16 %v1480, %v1477
        %v1508 = vpack.c.b16 %v1481, %v1478
        %v1509 = vpack.c.b16 %v1485, %v1482
        %v1510 = vpack.c.b16 %v1486, %v1483
        %v1511 = vpack.c.b16 %v1487, %v1484
        %1536 = vmatpush.bf16.msra.mxu0 %v1509
        %1537 = vmatpush.bf16.msra.mxu0 %v1506
        %1538 = vmatpush.bf16.msra.mxu0 %v1503
        %1539 = vmatpush.bf16.msra.mxu0 %v1500
        %1540 = vmatpush.bf16.msra.mxu0 %v1497
        %1541 = vmatpush.bf16.msra.mxu0 %v1494
        %1542 = vmatpush.bf16.msra.mxu0 %v1491
        %1543 = vmatpush.bf16.msra.mxu0 %v1488
        %1544 = vmatmul.bf16.gmra.mxu0 %v1352
        %v1545 = vpop.f32.mrf.mxu0
        %v1546 = vadd.f32 %v1402, %v1545
        %v1547 = vpop.f32.mrf.mxu0
        %v1548 = vadd.f32 %v1402, %v1547
        %1549 = vmatmul.bf16.gmra.mxu0 %v1353
        %v1550 = vpop.f32.mrf.mxu0
        %v1551 = vadd.f32 %v1402, %v1550
        %v1552 = vpop.f32.mrf.mxu0
        %v1553 = vadd.f32 %v1402, %v1552
        %1554 = vmatmul.bf16.gmra.mxu0 %v1354
        %v1555 = vpop.f32.mrf.mxu0
        %v1556 = vadd.f32 %v1402, %v1555
        %v1557 = vpop.f32.mrf.mxu0
        %v1558 = vadd.f32 %v1402, %v1557
        %1559 = vmatmul.bf16.gmra.mxu0 %v1355
        %v1560 = vpop.f32.mrf.mxu0
        %v1561 = vadd.f32 %v1402, %v1560
        %v1562 = vpop.f32.mrf.mxu0
        %v1563 = vadd.f32 %v1402, %v1562
        %1564 = vmatmul.bf16.gmra.mxu0 %v1356
        %v1565 = vpop.f32.mrf.mxu0
        %v1566 = vadd.f32 %v1402, %v1565
        %v1567 = vpop.f32.mrf.mxu0
        %v1568 = vadd.f32 %v1402, %v1567
        %1569 = vmatmul.bf16.gmra.mxu0 %v1357
        %v1570 = vpop.f32.mrf.mxu0
        %v1571 = vadd.f32 %v1402, %v1570
        %v1572 = vpop.f32.mrf.mxu0
        %v1573 = vadd.f32 %v1402, %v1572
        %1574 = vmatmul.bf16.gmra.mxu0 %v1358
        %v1575 = vpop.f32.mrf.mxu0
        %v1576 = vadd.f32 %v1402, %v1575
        %v1577 = vpop.f32.mrf.mxu0
        %v1578 = vadd.f32 %v1402, %v1577
        %1579 = vmatmul.bf16.gmra.mxu0 %v1359
        %v1580 = vpop.f32.mrf.mxu0
        %v1581 = vadd.f32 %v1402, %v1580
        %v1582 = vpop.f32.mrf.mxu0
        %v1583 = vadd.f32 %v1402, %v1582
        %1584 = vmatmul.bf16.gmra.mxu0 %v1360
        %v1585 = vpop.f32.mrf.mxu0
        %v1586 = vadd.f32 %v1402, %v1585
        %v1587 = vpop.f32.mrf.mxu0
        %v1588 = vadd.f32 %v1402, %v1587
        %1589 = vmatmul.bf16.gmra.mxu0 %v1361
        %v1590 = vpop.f32.mrf.mxu0
        %v1591 = vadd.f32 %v1402, %v1590
        %v1592 = vpop.f32.mrf.mxu0
        %v1593 = vadd.f32 %v1402, %v1592
        %1594 = vmatmul.bf16.gmra.mxu0 %v1362
        %v1595 = vpop.f32.mrf.mxu0
        %v1596 = vadd.f32 %v1402, %v1595
        %v1597 = vpop.f32.mrf.mxu0
        %v1598 = vadd.f32 %v1402, %v1597
        %1599 = vmatmul.bf16.gmra.mxu0 %v1363
        %v1600 = vpop.f32.mrf.mxu0
        %v1601 = vadd.f32 %v1402, %v1600
        %v1602 = vpop.f32.mrf.mxu0
        %v1603 = vadd.f32 %v1402, %v1602
        %1604 = vmatmul.bf16.gmra.mxu0 %v1364
        %v1605 = vpop.f32.mrf.mxu0
        %v1606 = vadd.f32 %v1402, %v1605
        %v1607 = vpop.f32.mrf.mxu0
        %v1608 = vadd.f32 %v1402, %v1607
        %1609 = vmatmul.bf16.gmra.mxu0 %v1365
        %v1610 = vpop.f32.mrf.mxu0
        %v1611 = vadd.f32 %v1402, %v1610
        %v1612 = vpop.f32.mrf.mxu0
        %v1613 = vadd.f32 %v1402, %v1612
        %1614 = vmatmul.bf16.gmra.mxu0 %v1366
        %v1615 = vpop.f32.mrf.mxu0
        %v1616 = vadd.f32 %v1402, %v1615
        %v1617 = vpop.f32.mrf.mxu0
        %v1618 = vadd.f32 %v1402, %v1617
        %1619 = vmatmul.bf16.gmra.mxu0 %v1367
        %v1620 = vpop.f32.mrf.mxu0
        %v1621 = vadd.f32 %v1402, %v1620
        %v1622 = vpop.f32.mrf.mxu0
        %v1623 = vadd.f32 %v1402, %v1622
        %1624 = vdwg.mxu0
        %1625 = vmatpush.bf16.msra.mxu0 %v1510
        %1626 = vmatpush.bf16.msra.mxu0 %v1507
        %1627 = vmatpush.bf16.msra.mxu0 %v1504
        %1628 = vmatpush.bf16.msra.mxu0 %v1501
        %1629 = vmatpush.bf16.msra.mxu0 %v1498
        %1630 = vmatpush.bf16.msra.mxu0 %v1495
        %1631 = vmatpush.bf16.msra.mxu0 %v1492
        %1632 = vmatpush.bf16.msra.mxu0 %v1489
        %1633 = vmatmul.bf16.gmra.mxu0 %v1352
        %v1634 = vpop.f32.mrf.mxu0
        %v1635 = vadd.f32 %v1403, %v1634
        %v1636 = vpop.f32.mrf.mxu0
        %v1637 = vadd.f32 %v1403, %v1636
        %1638 = vmatmul.bf16.gmra.mxu0 %v1353
        %v1639 = vpop.f32.mrf.mxu0
        %v1640 = vadd.f32 %v1403, %v1639
        %v1641 = vpop.f32.mrf.mxu0
        %v1642 = vadd.f32 %v1403, %v1641
        %1643 = vmatmul.bf16.gmra.mxu0 %v1354
        %v1644 = vpop.f32.mrf.mxu0
        %v1645 = vadd.f32 %v1403, %v1644
        %v1646 = vpop.f32.mrf.mxu0
        %v1647 = vadd.f32 %v1403, %v1646
        %1648 = vmatmul.bf16.gmra.mxu0 %v1355
        %v1649 = vpop.f32.mrf.mxu0
        %v1650 = vadd.f32 %v1403, %v1649
        %v1651 = vpop.f32.mrf.mxu0
        %v1652 = vadd.f32 %v1403, %v1651
        %1653 = vmatmul.bf16.gmra.mxu0 %v1356
        %v1654 = vpop.f32.mrf.mxu0
        %v1655 = vadd.f32 %v1403, %v1654
        %v1656 = vpop.f32.mrf.mxu0
        %v1657 = vadd.f32 %v1403, %v1656
        %1658 = vmatmul.bf16.gmra.mxu0 %v1357
        %v1659 = vpop.f32.mrf.mxu0
        %v1660 = vadd.f32 %v1403, %v1659
        %v1661 = vpop.f32.mrf.mxu0
        %v1662 = vadd.f32 %v1403, %v1661
        %1663 = vmatmul.bf16.gmra.mxu0 %v1358
        %v1664 = vpop.f32.mrf.mxu0
        %v1665 = vadd.f32 %v1403, %v1664
        %v1666 = vpop.f32.mrf.mxu0
        %v1667 = vadd.f32 %v1403, %v1666
        %1668 = vmatmul.bf16.gmra.mxu0 %v1359
        %v1669 = vpop.f32.mrf.mxu0
        %v1670 = vadd.f32 %v1403, %v1669
        %v1671 = vpop.f32.mrf.mxu0
        %v1672 = vadd.f32 %v1403, %v1671
        %1673 = vmatmul.bf16.gmra.mxu0 %v1360
        %v1674 = vpop.f32.mrf.mxu0
        %v1675 = vadd.f32 %v1403, %v1674
        %v1676 = vpop.f32.mrf.mxu0
        %v1677 = vadd.f32 %v1403, %v1676
        %1678 = vmatmul.bf16.gmra.mxu0 %v1361
        %v1679 = vpop.f32.mrf.mxu0
        %v1680 = vadd.f32 %v1403, %v1679
        %v1681 = vpop.f32.mrf.mxu0
        %v1682 = vadd.f32 %v1403, %v1681
        %1683 = vmatmul.bf16.gmra.mxu0 %v1362
        %v1684 = vpop.f32.mrf.mxu0
        %v1685 = vadd.f32 %v1403, %v1684
        %v1686 = vpop.f32.mrf.mxu0
        %v1687 = vadd.f32 %v1403, %v1686
        %1688 = vmatmul.bf16.gmra.mxu0 %v1363
        %v1689 = vpop.f32.mrf.mxu0
        %v1690 = vadd.f32 %v1403, %v1689
        %v1691 = vpop.f32.mrf.mxu0
        %v1692 = vadd.f32 %v1403, %v1691
        %1693 = vmatmul.bf16.gmra.mxu0 %v1364
        %v1694 = vpop.f32.mrf.mxu0
        %v1695 = vadd.f32 %v1403, %v1694
        %v1696 = vpop.f32.mrf.mxu0
        %v1697 = vadd.f32 %v1403, %v1696
        %1698 = vmatmul.bf16.gmra.mxu0 %v1365
        %v1699 = vpop.f32.mrf.mxu0
        %v1700 = vadd.f32 %v1403, %v1699
        %v1701 = vpop.f32.mrf.mxu0
        %v1702 = vadd.f32 %v1403, %v1701
        %1703 = vmatmul.bf16.gmra.mxu0 %v1366
        %v1704 = vpop.f32.mrf.mxu0
        %v1705 = vadd.f32 %v1403, %v1704
        %v1706 = vpop.f32.mrf.mxu0
        %v1707 = vadd.f32 %v1403, %v1706
        %1708 = vmatmul.bf16.gmra.mxu0 %v1367
        %v1709 = vpop.f32.mrf.mxu0
        %v1710 = vadd.f32 %v1403, %v1709
        %v1711 = vpop.f32.mrf.mxu0
        %v1712 = vadd.f32 %v1403, %v1711
        %1713 = vdwg.mxu0
        %1714 = vmatpush.bf16.msra.mxu0 %v1511
        %1715 = vmatpush.bf16.msra.mxu0 %v1508
        %1716 = vmatpush.bf16.msra.mxu0 %v1505
        %1717 = vmatpush.bf16.msra.mxu0 %v1502
        %1718 = vmatpush.bf16.msra.mxu0 %v1499
        %1719 = vmatpush.bf16.msra.mxu0 %v1496
        %1720 = vmatpush.bf16.msra.mxu0 %v1493
        %1721 = vmatpush.bf16.msra.mxu0 %v1490
        %1722 = vmatmul.bf16.gmra.mxu0 %v1352
        %v1723 = vpop.f32.mrf.mxu0
        %v1724 = vadd.f32 %v1404, %v1723
        %v1725 = vpop.f32.mrf.mxu0
        %v1726 = vadd.f32 %v1404, %v1725
        %1727 = vmatmul.bf16.gmra.mxu0 %v1353
        %v1728 = vpop.f32.mrf.mxu0
        %v1729 = vadd.f32 %v1404, %v1728
        %v1730 = vpop.f32.mrf.mxu0
        %v1731 = vadd.f32 %v1404, %v1730
        %1732 = vmatmul.bf16.gmra.mxu0 %v1354
        %v1733 = vpop.f32.mrf.mxu0
        %v1734 = vadd.f32 %v1404, %v1733
        %v1735 = vpop.f32.mrf.mxu0
        %v1736 = vadd.f32 %v1404, %v1735
        %1737 = vmatmul.bf16.gmra.mxu0 %v1355
        %v1738 = vpop.f32.mrf.mxu0
        %v1739 = vadd.f32 %v1404, %v1738
        %v1740 = vpop.f32.mrf.mxu0
        %v1741 = vadd.f32 %v1404, %v1740
        %1742 = vmatmul.bf16.gmra.mxu0 %v1356
        %v1743 = vpop.f32.mrf.mxu0
        %v1744 = vadd.f32 %v1404, %v1743
        %v1745 = vpop.f32.mrf.mxu0
        %v1746 = vadd.f32 %v1404, %v1745
        %1747 = vmatmul.bf16.gmra.mxu0 %v1357
        %v1748 = vpop.f32.mrf.mxu0
        %v1749 = vadd.f32 %v1404, %v1748
        %v1750 = vpop.f32.mrf.mxu0
        %v1751 = vadd.f32 %v1404, %v1750
        %1752 = vmatmul.bf16.gmra.mxu0 %v1358
        %v1753 = vpop.f32.mrf.mxu0
        %v1754 = vadd.f32 %v1404, %v1753
        %v1755 = vpop.f32.mrf.mxu0
        %v1756 = vadd.f32 %v1404, %v1755
        %1757 = vmatmul.bf16.gmra.mxu0 %v1359
        %v1758 = vpop.f32.mrf.mxu0
        %v1759 = vadd.f32 %v1404, %v1758
        %v1760 = vpop.f32.mrf.mxu0
        %v1761 = vadd.f32 %v1404, %v1760
        %1762 = vmatmul.bf16.gmra.mxu0 %v1360
        %v1763 = vpop.f32.mrf.mxu0
        %v1764 = vadd.f32 %v1404, %v1763
        %v1765 = vpop.f32.mrf.mxu0
        %v1766 = vadd.f32 %v1404, %v1765
        %1767 = vmatmul.bf16.gmra.mxu0 %v1361
        %v1768 = vpop.f32.mrf.mxu0
        %v1769 = vadd.f32 %v1404, %v1768
        %v1770 = vpop.f32.mrf.mxu0
        %v1771 = vadd.f32 %v1404, %v1770
        %1772 = vmatmul.bf16.gmra.mxu0 %v1362
        %v1773 = vpop.f32.mrf.mxu0
        %v1774 = vadd.f32 %v1404, %v1773
        %v1775 = vpop.f32.mrf.mxu0
        %v1776 = vadd.f32 %v1404, %v1775
        %1777 = vmatmul.bf16.gmra.mxu0 %v1363
        %v1778 = vpop.f32.mrf.mxu0
        %v1779 = vadd.f32 %v1404, %v1778
        %v1780 = vpop.f32.mrf.mxu0
        %v1781 = vadd.f32 %v1404, %v1780
        %1782 = vmatmul.bf16.gmra.mxu0 %v1364
        %v1783 = vpop.f32.mrf.mxu0
        %v1784 = vadd.f32 %v1404, %v1783
        %v1785 = vpop.f32.mrf.mxu0
        %v1786 = vadd.f32 %v1404, %v1785
        %1787 = vmatmul.bf16.gmra.mxu0 %v1365
        %v1788 = vpop.f32.mrf.mxu0
        %v1789 = vadd.f32 %v1404, %v1788
        %v1790 = vpop.f32.mrf.mxu0
        %v1791 = vadd.f32 %v1404, %v1790
        %1792 = vmatmul.bf16.gmra.mxu0 %v1366
        %v1793 = vpop.f32.mrf.mxu0
        %v1794 = vadd.f32 %v1404, %v1793
        %v1795 = vpop.f32.mrf.mxu0
        %v1796 = vadd.f32 %v1404, %v1795
        %1797 = vmatmul.bf16.gmra.mxu0 %v1367
        %v1798 = vpop.f32.mrf.mxu0
        %v1799 = vadd.f32 %v1404, %v1798
        %v1800 = vpop.f32.mrf.mxu0
        %v1801 = vadd.f32 %v1404, %v1800
        %1802 = vdwg.mxu0
        %1803 = vxpose.xlu0.b32.start [1/16] %v1635, 128
        %1804 = vxpose.xlu0.b32.cont [2/16] %v1637, 128
        %1805 = vxpose.xlu0.b32.cont [3/16] %v1640, 128
        %1806 = vxpose.xlu0.b32.cont [4/16] %v1642, 128
        %1807 = vxpose.xlu0.b32.cont [5/16] %v1645, 128
        %1808 = vxpose.xlu0.b32.cont [6/16] %v1647, 128
        %1809 = vxpose.xlu0.b32.cont [7/16] %v1650, 128
        %1810 = vxpose.xlu0.b32.cont [8/16] %v1652, 128
        %1811 = vxpose.xlu0.b32.cont [9/16] %v1655, 128
        %1812 = vxpose.xlu0.b32.cont [10/16] %v1657, 128
        %1813 = vxpose.xlu0.b32.cont [11/16] %v1660, 128
        %1814 = vxpose.xlu0.b32.cont [12/16] %v1662, 128
        %1815 = vxpose.xlu0.b32.cont [13/16] %v1665, 128
        %1816 = vxpose.xlu0.b32.cont [14/16] %v1667, 128
        %1817 = vxpose.xlu0.b32.cont [15/16] %v1670, 128
        %1818 = vxpose.xlu0.b32.end [16/16] %v1672, 128
        %v1819 = vpop.trf.xlu0
        %v1820 = vpop.trf.xlu0
        %v1821 = vpop.trf.xlu0
        %v1822 = vpop.trf.xlu0
        %v1823 = vpop.trf.xlu0
        %v1824 = vpop.trf.xlu0
        %v1825 = vpop.trf.xlu0
        %v1826 = vpop.trf.xlu0
        %v1827 = vpop.trf.xlu0
        %v1828 = vpop.trf.xlu0
        %v1829 = vpop.trf.xlu0
        %v1830 = vpop.trf.xlu0
        %v1831 = vpop.trf.xlu0
        %v1832 = vpop.trf.xlu0
        %v1833 = vpop.trf.xlu0
        %v1834 = vpop.trf.xlu0
        %1835 = vxpose.xlu0.b32.start [1/16] %v1675, 128
        %1836 = vxpose.xlu0.b32.cont [2/16] %v1677, 128
        %1837 = vxpose.xlu0.b32.cont [3/16] %v1680, 128
        %1838 = vxpose.xlu0.b32.cont [4/16] %v1682, 128
        %1839 = vxpose.xlu0.b32.cont [5/16] %v1685, 128
        %1840 = vxpose.xlu0.b32.cont [6/16] %v1687, 128
        %1841 = vxpose.xlu0.b32.cont [7/16] %v1690, 128
        %1842 = vxpose.xlu0.b32.cont [8/16] %v1692, 128
        %1843 = vxpose.xlu0.b32.cont [9/16] %v1695, 128
        %1844 = vxpose.xlu0.b32.cont [10/16] %v1697, 128
        %1845 = vxpose.xlu0.b32.cont [11/16] %v1700, 128
        %1846 = vxpose.xlu0.b32.cont [12/16] %v1702, 128
        %1847 = vxpose.xlu0.b32.cont [13/16] %v1705, 128
        %1848 = vxpose.xlu0.b32.cont [14/16] %v1707, 128
        %1849 = vxpose.xlu0.b32.cont [15/16] %v1710, 128
        %1850 = vxpose.xlu0.b32.end [16/16] %v1712, 128
        %v1851 = vpop.trf.xlu0
        %v1852 = vpop.trf.xlu0
        %v1853 = vpop.trf.xlu0
        %v1854 = vpop.trf.xlu0
        %v1855 = vpop.trf.xlu0
        %v1856 = vpop.trf.xlu0
        %v1857 = vpop.trf.xlu0
        %v1858 = vpop.trf.xlu0
        %v1859 = vpop.trf.xlu0
        %v1860 = vpop.trf.xlu0
        %v1861 = vpop.trf.xlu0
        %v1862 = vpop.trf.xlu0
        %v1863 = vpop.trf.xlu0
        %v1864 = vpop.trf.xlu0
        %v1865 = vpop.trf.xlu0
        %v1866 = vpop.trf.xlu0
        %v1867 = vpack.c.bf16 %v1851, %v1819
        %v1868 = vpack.c.bf16 %v1852, %v1820
        %v1869 = vpack.c.bf16 %v1853, %v1821
        %v1870 = vpack.c.bf16 %v1854, %v1822
        %v1871 = vpack.c.bf16 %v1855, %v1823
        %v1872 = vpack.c.bf16 %v1856, %v1824
        %v1873 = vpack.c.bf16 %v1857, %v1825
        %v1874 = vpack.c.bf16 %v1858, %v1826
        %v1875 = vpack.c.bf16 %v1859, %v1827
        %v1876 = vpack.c.bf16 %v1860, %v1828
        %v1877 = vpack.c.bf16 %v1861, %v1829
        %v1878 = vpack.c.bf16 %v1862, %v1830
        %v1879 = vpack.c.bf16 %v1863, %v1831
        %v1880 = vpack.c.bf16 %v1864, %v1832
        %v1881 = vpack.c.bf16 %v1865, %v1833
        %v1882 = vpack.c.bf16 %v1866, %v1834
        %v1883 = vld [vmem:[#allocation10] sm:$0xf]
        %v1884 = vld [vmem:[#allocation10 + $0x4] sm:$0xf]
        %v1885 = vld [vmem:[#allocation10 + $0x8] sm:$0xf]
        %v1886 = vld [vmem:[#allocation10 + $0xc] sm:$0xf]
        %v1887 = vld [vmem:[#allocation10 + $0x10] sm:$0xf]
        %v1888 = vld [vmem:[#allocation10 + $0x14] sm:$0xf]
        %v1889 = vld [vmem:[#allocation10 + $0x18] sm:$0xf]
        %v1890 = vld [vmem:[#allocation10 + $0x1c] sm:$0xf]
        %v1891 = vld [vmem:[#allocation10 + $0x20] sm:$0xf]
        %v1892 = vld [vmem:[#allocation10 + $0x24] sm:$0xf]
        %v1893 = vld [vmem:[#allocation10 + $0x28] sm:$0xf]
        %v1894 = vld [vmem:[#allocation10 + $0x2c] sm:$0xf]
        %v1895 = vld [vmem:[#allocation10 + $0x30] sm:$0xf]
        %v1896 = vld [vmem:[#allocation10 + $0x34] sm:$0xf]
        %v1897 = vld [vmem:[#allocation10 + $0x38] sm:$0xf]
        %v1898 = vld [vmem:[#allocation10 + $0x3c] sm:$0xf]
        %v1899 = vpack.c.bf16 %v1548, %v1546
        %v1900 = vpack.c.bf16 %v1553, %v1551
        %v1901 = vpack.c.bf16 %v1558, %v1556
        %v1902 = vpack.c.bf16 %v1563, %v1561
        %v1903 = vpack.c.bf16 %v1568, %v1566
        %v1904 = vpack.c.bf16 %v1573, %v1571
        %v1905 = vpack.c.bf16 %v1578, %v1576
        %v1906 = vpack.c.bf16 %v1583, %v1581
        %v1907 = vpack.c.bf16 %v1588, %v1586
        %v1908 = vpack.c.bf16 %v1593, %v1591
        %v1909 = vpack.c.bf16 %v1598, %v1596
        %v1910 = vpack.c.bf16 %v1603, %v1601
        %v1911 = vpack.c.bf16 %v1608, %v1606
        %v1912 = vpack.c.bf16 %v1613, %v1611
        %v1913 = vpack.c.bf16 %v1618, %v1616
        %v1914 = vpack.c.bf16 %v1623, %v1621
        %v1919 = vunpack.c.l.b16 %v1867
        %v1920 = vunpack.c.h.b16 %v1867
        %v1921 = vunpack.c.l.b16 %v1868
        %v1922 = vunpack.c.h.b16 %v1868
        %v1923 = vunpack.c.l.b16 %v1869
        %v1924 = vunpack.c.h.b16 %v1869
        %v1925 = vunpack.c.l.b16 %v1870
        %v1926 = vunpack.c.h.b16 %v1870
        %v1927 = vpack.c.b16 %v1921, %v1919
        %v1928 = vpack.c.b16 %v1922, %v1920
        %v1929 = vpack.c.b16 %v1925, %v1923
        %v1930 = vpack.c.b16 %v1926, %v1924
        %vm1935 = vcmask 261120
        %v1937 = vsel %vm1935, %v1899, 0
        %v1940 = vsel %vm1935, %v1900, 0
        %v1943 = vsel %vm1935, %v1901, 0
        %v1946 = vsel %vm1935, %v1902, 0
        %v1949 = vsel %vm1935, %v1903, 0
        %v1952 = vsel %vm1935, %v1904, 0
        %v1955 = vsel %vm1935, %v1905, 0
        %v1958 = vsel %vm1935, %v1906, 0
        %v1961 = vsel %vm1935, %v1907, 0
        %v1964 = vsel %vm1935, %v1908, 0
        %v1967 = vsel %vm1935, %v1909, 0
        %v1970 = vsel %vm1935, %v1910, 0
        %v1973 = vsel %vm1935, %v1911, 0
        %v1976 = vsel %vm1935, %v1912, 0
        %v1979 = vsel %vm1935, %v1913, 0
        %v1982 = vsel %vm1935, %v1914, 0
        %1984 = vmatpush.bf16.msra.mxu0 0
        %1985 = vmatpush.bf16.msra.mxu0 0
        %1986 = vmatpush.bf16.msra.mxu0 0
        %1987 = vmatpush.bf16.msra.mxu0 0
        %1988 = vmatpush.bf16.msra.mxu0 0
        %1989 = vmatpush.bf16.msra.mxu0 0
        %1990 = vmatpush.bf16.msra.mxu0 %v1929
        %1991 = vmatpush.bf16.msra.mxu0 %v1927
        %1992 = vmatmul.bf16.gmra.mxu0 %v1937
        %v1993 = vpop.f32.mrf.mxu0
        %v1994 = vadd.f32 0.0, %v1993
        %v1995 = vpop.f32.mrf.mxu0
        %v1996 = vadd.f32 0.0, %v1995
        %1997 = vmatmul.bf16.gmra.mxu0 %v1940
        %v1998 = vpop.f32.mrf.mxu0
        %v1999 = vadd.f32 0.0, %v1998
        %v2000 = vpop.f32.mrf.mxu0
        %v2001 = vadd.f32 0.0, %v2000
        %2002 = vmatmul.bf16.gmra.mxu0 %v1943
        %v2003 = vpop.f32.mrf.mxu0
        %v2004 = vadd.f32 0.0, %v2003
        %v2005 = vpop.f32.mrf.mxu0
        %v2006 = vadd.f32 0.0, %v2005
        %2007 = vmatmul.bf16.gmra.mxu0 %v1946
        %v2008 = vpop.f32.mrf.mxu0
        %v2009 = vadd.f32 0.0, %v2008
        %v2010 = vpop.f32.mrf.mxu0
        %v2011 = vadd.f32 0.0, %v2010
        %2012 = vmatmul.bf16.gmra.mxu0 %v1949
        %v2013 = vpop.f32.mrf.mxu0
        %v2014 = vadd.f32 0.0, %v2013
        %v2015 = vpop.f32.mrf.mxu0
        %v2016 = vadd.f32 0.0, %v2015
        %2017 = vmatmul.bf16.gmra.mxu0 %v1952
        %v2018 = vpop.f32.mrf.mxu0
        %v2019 = vadd.f32 0.0, %v2018
        %v2020 = vpop.f32.mrf.mxu0
        %v2021 = vadd.f32 0.0, %v2020
        %2022 = vmatmul.bf16.gmra.mxu0 %v1955
        %v2023 = vpop.f32.mrf.mxu0
        %v2024 = vadd.f32 0.0, %v2023
        %v2025 = vpop.f32.mrf.mxu0
        %v2026 = vadd.f32 0.0, %v2025
        %2027 = vmatmul.bf16.gmra.mxu0 %v1958
        %v2028 = vpop.f32.mrf.mxu0
        %v2029 = vadd.f32 0.0, %v2028
        %v2030 = vpop.f32.mrf.mxu0
        %v2031 = vadd.f32 0.0, %v2030
        %2032 = vmatmul.bf16.gmra.mxu0 %v1961
        %v2033 = vpop.f32.mrf.mxu0
        %v2034 = vadd.f32 0.0, %v2033
        %v2035 = vpop.f32.mrf.mxu0
        %v2036 = vadd.f32 0.0, %v2035
        %2037 = vmatmul.bf16.gmra.mxu0 %v1964
        %v2038 = vpop.f32.mrf.mxu0
        %v2039 = vadd.f32 0.0, %v2038
        %v2040 = vpop.f32.mrf.mxu0
        %v2041 = vadd.f32 0.0, %v2040
        %2042 = vmatmul.bf16.gmra.mxu0 %v1967
        %v2043 = vpop.f32.mrf.mxu0
        %v2044 = vadd.f32 0.0, %v2043
        %v2045 = vpop.f32.mrf.mxu0
        %v2046 = vadd.f32 0.0, %v2045
        %2047 = vmatmul.bf16.gmra.mxu0 %v1970
        %v2048 = vpop.f32.mrf.mxu0
        %v2049 = vadd.f32 0.0, %v2048
        %v2050 = vpop.f32.mrf.mxu0
        %v2051 = vadd.f32 0.0, %v2050
        %2052 = vmatmul.bf16.gmra.mxu0 %v1973
        %v2053 = vpop.f32.mrf.mxu0
        %v2054 = vadd.f32 0.0, %v2053
        %v2055 = vpop.f32.mrf.mxu0
        %v2056 = vadd.f32 0.0, %v2055
        %2057 = vmatmul.bf16.gmra.mxu0 %v1976
        %v2058 = vpop.f32.mrf.mxu0
        %v2059 = vadd.f32 0.0, %v2058
        %v2060 = vpop.f32.mrf.mxu0
        %v2061 = vadd.f32 0.0, %v2060
        %2062 = vmatmul.bf16.gmra.mxu0 %v1979
        %v2063 = vpop.f32.mrf.mxu0
        %v2064 = vadd.f32 0.0, %v2063
        %v2065 = vpop.f32.mrf.mxu0
        %v2066 = vadd.f32 0.0, %v2065
        %2067 = vmatmul.bf16.gmra.mxu0 %v1982
        %v2068 = vpop.f32.mrf.mxu0
        %v2069 = vadd.f32 0.0, %v2068
        %v2070 = vpop.f32.mrf.mxu0
        %v2071 = vadd.f32 0.0, %v2070
        %2072 = vdwg.mxu0
        %2073 = vmatpush.bf16.msra.mxu0 0
        %2074 = vmatpush.bf16.msra.mxu0 0
        %2075 = vmatpush.bf16.msra.mxu0 0
        %2076 = vmatpush.bf16.msra.mxu0 0
        %2077 = vmatpush.bf16.msra.mxu0 0
        %2078 = vmatpush.bf16.msra.mxu0 0
        %2079 = vmatpush.bf16.msra.mxu0 %v1930
        %2080 = vmatpush.bf16.msra.mxu0 %v1928
        %2081 = vmatmul.bf16.gmra.mxu0 %v1937
        %v2082 = vpop.f32.mrf.mxu0
        %v2083 = vadd.f32 0.0, %v2082
        %v2084 = vpop.f32.mrf.mxu0
        %v2085 = vadd.f32 0.0, %v2084
        %2086 = vmatmul.bf16.gmra.mxu0 %v1940
        %v2087 = vpop.f32.mrf.mxu0
        %v2088 = vadd.f32 0.0, %v2087
        %v2089 = vpop.f32.mrf.mxu0
        %v2090 = vadd.f32 0.0, %v2089
        %2091 = vmatmul.bf16.gmra.mxu0 %v1943
        %v2092 = vpop.f32.mrf.mxu0
        %v2093 = vadd.f32 0.0, %v2092
        %v2094 = vpop.f32.mrf.mxu0
        %v2095 = vadd.f32 0.0, %v2094
        %2096 = vmatmul.bf16.gmra.mxu0 %v1946
        %v2097 = vpop.f32.mrf.mxu0
        %v2098 = vadd.f32 0.0, %v2097
        %v2099 = vpop.f32.mrf.mxu0
        %v2100 = vadd.f32 0.0, %v2099
        %2101 = vmatmul.bf16.gmra.mxu0 %v1949
        %v2102 = vpop.f32.mrf.mxu0
        %v2103 = vadd.f32 0.0, %v2102
        %v2104 = vpop.f32.mrf.mxu0
        %v2105 = vadd.f32 0.0, %v2104
        %2106 = vmatmul.bf16.gmra.mxu0 %v1952
        %v2107 = vpop.f32.mrf.mxu0
        %v2108 = vadd.f32 0.0, %v2107
        %v2109 = vpop.f32.mrf.mxu0
        %v2110 = vadd.f32 0.0, %v2109
        %2111 = vmatmul.bf16.gmra.mxu0 %v1955
        %v2112 = vpop.f32.mrf.mxu0
        %v2113 = vadd.f32 0.0, %v2112
        %v2114 = vpop.f32.mrf.mxu0
        %v2115 = vadd.f32 0.0, %v2114
        %2116 = vmatmul.bf16.gmra.mxu0 %v1958
        %v2117 = vpop.f32.mrf.mxu0
        %v2118 = vadd.f32 0.0, %v2117
        %v2119 = vpop.f32.mrf.mxu0
        %v2120 = vadd.f32 0.0, %v2119
        %2121 = vmatmul.bf16.gmra.mxu0 %v1961
        %v2122 = vpop.f32.mrf.mxu0
        %v2123 = vadd.f32 0.0, %v2122
        %v2124 = vpop.f32.mrf.mxu0
        %v2125 = vadd.f32 0.0, %v2124
        %2126 = vmatmul.bf16.gmra.mxu0 %v1964
        %v2127 = vpop.f32.mrf.mxu0
        %v2128 = vadd.f32 0.0, %v2127
        %v2129 = vpop.f32.mrf.mxu0
        %v2130 = vadd.f32 0.0, %v2129
        %2131 = vmatmul.bf16.gmra.mxu0 %v1967
        %v2132 = vpop.f32.mrf.mxu0
        %v2133 = vadd.f32 0.0, %v2132
        %v2134 = vpop.f32.mrf.mxu0
        %v2135 = vadd.f32 0.0, %v2134
        %2136 = vmatmul.bf16.gmra.mxu0 %v1970
        %v2137 = vpop.f32.mrf.mxu0
        %v2138 = vadd.f32 0.0, %v2137
        %v2139 = vpop.f32.mrf.mxu0
        %v2140 = vadd.f32 0.0, %v2139
        %2141 = vmatmul.bf16.gmra.mxu0 %v1973
        %v2142 = vpop.f32.mrf.mxu0
        %v2143 = vadd.f32 0.0, %v2142
        %v2144 = vpop.f32.mrf.mxu0
        %v2145 = vadd.f32 0.0, %v2144
        %2146 = vmatmul.bf16.gmra.mxu0 %v1976
        %v2147 = vpop.f32.mrf.mxu0
        %v2148 = vadd.f32 0.0, %v2147
        %v2149 = vpop.f32.mrf.mxu0
        %v2150 = vadd.f32 0.0, %v2149
        %2151 = vmatmul.bf16.gmra.mxu0 %v1979
        %v2152 = vpop.f32.mrf.mxu0
        %v2153 = vadd.f32 0.0, %v2152
        %v2154 = vpop.f32.mrf.mxu0
        %v2155 = vadd.f32 0.0, %v2154
        %2156 = vmatmul.bf16.gmra.mxu0 %v1982
        %v2157 = vpop.f32.mrf.mxu0
        %v2158 = vadd.f32 0.0, %v2157
        %v2159 = vpop.f32.mrf.mxu0
        %v2160 = vadd.f32 0.0, %v2159
        %2161 = vdwg.mxu0
        %v2162 = vmax.f32 %v1994, %v2083
        %2163 = vmax.xlane.f32.xlu0 %v2162
        %v2164 = vpop.xlane.xlu0 %2163
        %v2165 = vmax.f32 %v1996, %v2085
        %2166 = vmax.xlane.f32.xlu0 %v2165
        %v2167 = vpop.xlane.xlu0 %2166
        %v2168 = vmax.f32 %v1999, %v2088
        %2169 = vmax.xlane.f32.xlu0 %v2168
        %v2170 = vpop.xlane.xlu0 %2169
        %v2171 = vmax.f32 %v2001, %v2090
        %2172 = vmax.xlane.f32.xlu0 %v2171
        %v2173 = vpop.xlane.xlu0 %2172
        %v2174 = vmax.f32 %v2004, %v2093
        %2175 = vmax.xlane.f32.xlu0 %v2174
        %v2176 = vpop.xlane.xlu0 %2175
        %v2177 = vmax.f32 %v2006, %v2095
        %2178 = vmax.xlane.f32.xlu0 %v2177
        %v2179 = vpop.xlane.xlu0 %2178
        %v2180 = vmax.f32 %v2009, %v2098
        %2181 = vmax.xlane.f32.xlu0 %v2180
        %v2182 = vpop.xlane.xlu0 %2181
        %v2183 = vmax.f32 %v2011, %v2100
        %2184 = vmax.xlane.f32.xlu0 %v2183
        %v2185 = vpop.xlane.xlu0 %2184
        %v2186 = vmax.f32 %v2014, %v2103
        %2187 = vmax.xlane.f32.xlu0 %v2186
        %v2188 = vpop.xlane.xlu0 %2187
        %v2189 = vmax.f32 %v2016, %v2105
        %2190 = vmax.xlane.f32.xlu0 %v2189
        %v2191 = vpop.xlane.xlu0 %2190
        %v2192 = vmax.f32 %v2019, %v2108
        %2193 = vmax.xlane.f32.xlu0 %v2192
        %v2194 = vpop.xlane.xlu0 %2193
        %v2195 = vmax.f32 %v2021, %v2110
        %2196 = vmax.xlane.f32.xlu0 %v2195
        %v2197 = vpop.xlane.xlu0 %2196
        %v2198 = vmax.f32 %v2024, %v2113
        %2199 = vmax.xlane.f32.xlu0 %v2198
        %v2200 = vpop.xlane.xlu0 %2199
        %v2201 = vmax.f32 %v2026, %v2115
        %2202 = vmax.xlane.f32.xlu0 %v2201
        %v2203 = vpop.xlane.xlu0 %2202
        %v2204 = vmax.f32 %v2029, %v2118
        %2205 = vmax.xlane.f32.xlu0 %v2204
        %v2206 = vpop.xlane.xlu0 %2205
        %v2207 = vmax.f32 %v2031, %v2120
        %2208 = vmax.xlane.f32.xlu0 %v2207
        %v2209 = vpop.xlane.xlu0 %2208
        %v2210 = vmax.f32 %v2034, %v2123
        %2211 = vmax.xlane.f32.xlu0 %v2210
        %v2212 = vpop.xlane.xlu0 %2211
        %v2213 = vmax.f32 %v2036, %v2125
        %2214 = vmax.xlane.f32.xlu0 %v2213
        %v2215 = vpop.xlane.xlu0 %2214
        %v2216 = vmax.f32 %v2039, %v2128
        %2217 = vmax.xlane.f32.xlu0 %v2216
        %v2218 = vpop.xlane.xlu0 %2217
        %v2219 = vmax.f32 %v2041, %v2130
        %2220 = vmax.xlane.f32.xlu0 %v2219
        %v2221 = vpop.xlane.xlu0 %2220
        %v2222 = vmax.f32 %v2044, %v2133
        %2223 = vmax.xlane.f32.xlu0 %v2222
        %v2224 = vpop.xlane.xlu0 %2223
        %v2225 = vmax.f32 %v2046, %v2135
        %2226 = vmax.xlane.f32.xlu0 %v2225
        %v2227 = vpop.xlane.xlu0 %2226
        %v2228 = vmax.f32 %v2049, %v2138
        %2229 = vmax.xlane.f32.xlu0 %v2228
        %v2230 = vpop.xlane.xlu0 %2229
        %v2231 = vmax.f32 %v2051, %v2140
        %2232 = vmax.xlane.f32.xlu0 %v2231
        %v2233 = vpop.xlane.xlu0 %2232
        %v2234 = vmax.f32 %v2054, %v2143
        %2235 = vmax.xlane.f32.xlu0 %v2234
        %v2236 = vpop.xlane.xlu0 %2235
        %v2237 = vmax.f32 %v2056, %v2145
        %2238 = vmax.xlane.f32.xlu0 %v2237
        %v2239 = vpop.xlane.xlu0 %2238
        %v2240 = vmax.f32 %v2059, %v2148
        %2241 = vmax.xlane.f32.xlu0 %v2240
        %v2242 = vpop.xlane.xlu0 %2241
        %v2243 = vmax.f32 %v2061, %v2150
        %2244 = vmax.xlane.f32.xlu0 %v2243
        %v2245 = vpop.xlane.xlu0 %2244
        %v2246 = vmax.f32 %v2064, %v2153
        %2247 = vmax.xlane.f32.xlu0 %v2246
        %v2248 = vpop.xlane.xlu0 %2247
        %v2249 = vmax.f32 %v2066, %v2155
        %2250 = vmax.xlane.f32.xlu0 %v2249
        %v2251 = vpop.xlane.xlu0 %2250
        %v2252 = vmax.f32 %v2069, %v2158
        %2253 = vmax.xlane.f32.xlu0 %v2252
        %v2254 = vpop.xlane.xlu0 %2253
        %v2255 = vmax.f32 %v2071, %v2160
        %2256 = vmax.xlane.f32.xlu0 %v2255
        %v2257 = vpop.xlane.xlu0 %2256
        %v2258 = vsub.f32 %v1994, %v2164
        %v2259 = vsub.f32 %v2083, %v2164
        %v2260 = vsub.f32 %v1996, %v2167
        %v2261 = vsub.f32 %v2085, %v2167
        %v2262 = vsub.f32 %v1999, %v2170
        %v2263 = vsub.f32 %v2088, %v2170
        %v2264 = vsub.f32 %v2001, %v2173
        %v2265 = vsub.f32 %v2090, %v2173
        %v2266 = vsub.f32 %v2004, %v2176
        %v2267 = vsub.f32 %v2093, %v2176
        %v2268 = vsub.f32 %v2006, %v2179
        %v2269 = vsub.f32 %v2095, %v2179
        %v2270 = vsub.f32 %v2009, %v2182
        %v2271 = vsub.f32 %v2098, %v2182
        %v2272 = vsub.f32 %v2011, %v2185
        %v2273 = vsub.f32 %v2100, %v2185
        %v2274 = vsub.f32 %v2014, %v2188
        %v2275 = vsub.f32 %v2103, %v2188
        %v2276 = vsub.f32 %v2016, %v2191
        %v2277 = vsub.f32 %v2105, %v2191
        %v2278 = vsub.f32 %v2019, %v2194
        %v2279 = vsub.f32 %v2108, %v2194
        %v2280 = vsub.f32 %v2021, %v2197
        %v2281 = vsub.f32 %v2110, %v2197
        %v2282 = vsub.f32 %v2024, %v2200
        %v2283 = vsub.f32 %v2113, %v2200
        %v2284 = vsub.f32 %v2026, %v2203
        %v2285 = vsub.f32 %v2115, %v2203
        %v2286 = vsub.f32 %v2029, %v2206
        %v2287 = vsub.f32 %v2118, %v2206
        %v2288 = vsub.f32 %v2031, %v2209
        %v2289 = vsub.f32 %v2120, %v2209
        %v2290 = vsub.f32 %v2034, %v2212
        %v2291 = vsub.f32 %v2123, %v2212
        %v2292 = vsub.f32 %v2036, %v2215
        %v2293 = vsub.f32 %v2125, %v2215
        %v2294 = vsub.f32 %v2039, %v2218
        %v2295 = vsub.f32 %v2128, %v2218
        %v2296 = vsub.f32 %v2041, %v2221
        %v2297 = vsub.f32 %v2130, %v2221
        %v2298 = vsub.f32 %v2044, %v2224
        %v2299 = vsub.f32 %v2133, %v2224
        %v2300 = vsub.f32 %v2046, %v2227
        %v2301 = vsub.f32 %v2135, %v2227
        %v2302 = vsub.f32 %v2049, %v2230
        %v2303 = vsub.f32 %v2138, %v2230
        %v2304 = vsub.f32 %v2051, %v2233
        %v2305 = vsub.f32 %v2140, %v2233
        %v2306 = vsub.f32 %v2054, %v2236
        %v2307 = vsub.f32 %v2143, %v2236
        %v2308 = vsub.f32 %v2056, %v2239
        %v2309 = vsub.f32 %v2145, %v2239
        %v2310 = vsub.f32 %v2059, %v2242
        %v2311 = vsub.f32 %v2148, %v2242
        %v2312 = vsub.f32 %v2061, %v2245
        %v2313 = vsub.f32 %v2150, %v2245
        %v2314 = vsub.f32 %v2064, %v2248
        %v2315 = vsub.f32 %v2153, %v2248
        %v2316 = vsub.f32 %v2066, %v2251
        %v2317 = vsub.f32 %v2155, %v2251
        %v2318 = vsub.f32 %v2069, %v2254
        %v2319 = vsub.f32 %v2158, %v2254
        %v2320 = vsub.f32 %v2071, %v2257
        %v2321 = vsub.f32 %v2160, %v2257
        %v2322 = vmul.f32 %v2258, 1.442695
        %v2323 = vpow.pop %v2322
        %v2324 = vmul.f32 %v2259, 1.442695
        %v2325 = vpow.pop %v2324
        %v2326 = vmul.f32 %v2260, 1.442695
        %v2327 = vpow.pop %v2326
        %v2328 = vmul.f32 %v2261, 1.442695
        %v2329 = vpow.pop %v2328
        %v2330 = vmul.f32 %v2262, 1.442695
        %v2331 = vpow.pop %v2330
        %v2332 = vmul.f32 %v2263, 1.442695
        %v2333 = vpow.pop %v2332
        %v2334 = vmul.f32 %v2264, 1.442695
        %v2335 = vpow.pop %v2334
        %v2336 = vmul.f32 %v2265, 1.442695
        %v2337 = vpow.pop %v2336
        %v2338 = vmul.f32 %v2266, 1.442695
        %v2339 = vpow.pop %v2338
        %v2340 = vmul.f32 %v2267, 1.442695
        %v2341 = vpow.pop %v2340
        %v2342 = vmul.f32 %v2268, 1.442695
        %v2343 = vpow.pop %v2342
        %v2344 = vmul.f32 %v2269, 1.442695
        %v2345 = vpow.pop %v2344
        %v2346 = vmul.f32 %v2270, 1.442695
        %v2347 = vpow.pop %v2346
        %v2348 = vmul.f32 %v2271, 1.442695
        %v2349 = vpow.pop %v2348
        %v2350 = vmul.f32 %v2272, 1.442695
        %v2351 = vpow.pop %v2350
        %v2352 = vmul.f32 %v2273, 1.442695
        %v2353 = vpow.pop %v2352
        %v2354 = vmul.f32 %v2274, 1.442695
        %v2355 = vpow.pop %v2354
        %v2356 = vmul.f32 %v2275, 1.442695
        %v2357 = vpow.pop %v2356
        %v2358 = vmul.f32 %v2276, 1.442695
        %v2359 = vpow.pop %v2358
        %v2360 = vmul.f32 %v2277, 1.442695
        %v2361 = vpow.pop %v2360
        %v2362 = vmul.f32 %v2278, 1.442695
        %v2363 = vpow.pop %v2362
        %v2364 = vmul.f32 %v2279, 1.442695
        %v2365 = vpow.pop %v2364
        %v2366 = vmul.f32 %v2280, 1.442695
        %v2367 = vpow.pop %v2366
        %v2368 = vmul.f32 %v2281, 1.442695
        %v2369 = vpow.pop %v2368
        %v2370 = vmul.f32 %v2282, 1.442695
        %v2371 = vpow.pop %v2370
        %v2372 = vmul.f32 %v2283, 1.442695
        %v2373 = vpow.pop %v2372
        %v2374 = vmul.f32 %v2284, 1.442695
        %v2375 = vpow.pop %v2374
        %v2376 = vmul.f32 %v2285, 1.442695
        %v2377 = vpow.pop %v2376
        %v2378 = vmul.f32 %v2286, 1.442695
        %v2379 = vpow.pop %v2378
        %v2380 = vmul.f32 %v2287, 1.442695
        %v2381 = vpow.pop %v2380
        %v2382 = vmul.f32 %v2288, 1.442695
        %v2383 = vpow.pop %v2382
        %v2384 = vmul.f32 %v2289, 1.442695
        %v2385 = vpow.pop %v2384
        %v2386 = vmul.f32 %v2290, 1.442695
        %v2387 = vpow.pop %v2386
        %v2388 = vmul.f32 %v2291, 1.442695
        %v2389 = vpow.pop %v2388
        %v2390 = vmul.f32 %v2292, 1.442695
        %v2391 = vpow.pop %v2390
        %v2392 = vmul.f32 %v2293, 1.442695
        %v2393 = vpow.pop %v2392
        %v2394 = vmul.f32 %v2294, 1.442695
        %v2395 = vpow.pop %v2394
        %v2396 = vmul.f32 %v2295, 1.442695
        %v2397 = vpow.pop %v2396
        %v2398 = vmul.f32 %v2296, 1.442695
        %v2399 = vpow.pop %v2398
        %v2400 = vmul.f32 %v2297, 1.442695
        %v2401 = vpow.pop %v2400
        %v2402 = vmul.f32 %v2298, 1.442695
        %v2403 = vpow.pop %v2402
        %v2404 = vmul.f32 %v2299, 1.442695
        %v2405 = vpow.pop %v2404
        %v2406 = vmul.f32 %v2300, 1.442695
        %v2407 = vpow.pop %v2406
        %v2408 = vmul.f32 %v2301, 1.442695
        %v2409 = vpow.pop %v2408
        %v2410 = vmul.f32 %v2302, 1.442695
        %v2411 = vpow.pop %v2410
        %v2412 = vmul.f32 %v2303, 1.442695
        %v2413 = vpow.pop %v2412
        %v2414 = vmul.f32 %v2304, 1.442695
        %v2415 = vpow.pop %v2414
        %v2416 = vmul.f32 %v2305, 1.442695
        %v2417 = vpow.pop %v2416
        %v2418 = vmul.f32 %v2306, 1.442695
        %v2419 = vpow.pop %v2418
        %v2420 = vmul.f32 %v2307, 1.442695
        %v2421 = vpow.pop %v2420
        %v2422 = vmul.f32 %v2308, 1.442695
        %v2423 = vpow.pop %v2422
        %v2424 = vmul.f32 %v2309, 1.442695
        %v2425 = vpow.pop %v2424
        %v2426 = vmul.f32 %v2310, 1.442695
        %v2427 = vpow.pop %v2426
        %v2428 = vmul.f32 %v2311, 1.442695
        %v2429 = vpow.pop %v2428
        %v2430 = vmul.f32 %v2312, 1.442695
        %v2431 = vpow.pop %v2430
        %v2432 = vmul.f32 %v2313, 1.442695
        %v2433 = vpow.pop %v2432
        %v2434 = vmul.f32 %v2314, 1.442695
        %v2435 = vpow.pop %v2434
        %v2436 = vmul.f32 %v2315, 1.442695
        %v2437 = vpow.pop %v2436
        %v2438 = vmul.f32 %v2316, 1.442695
        %v2439 = vpow.pop %v2438
        %v2440 = vmul.f32 %v2317, 1.442695
        %v2441 = vpow.pop %v2440
        %v2442 = vmul.f32 %v2318, 1.442695
        %v2443 = vpow.pop %v2442
        %v2444 = vmul.f32 %v2319, 1.442695
        %v2445 = vpow.pop %v2444
        %v2446 = vmul.f32 %v2320, 1.442695
        %v2447 = vpow.pop %v2446
        %v2448 = vmul.f32 %v2321, 1.442695
        %v2449 = vpow.pop %v2448
        %v2450 = vadd.f32 %v2323, %v2325
        %2451 = vadd.xlane.f32.xlu0 %v2450
        %v2452 = vpop.xlane.xlu0 %2451
        %v2453 = vadd.f32 %v2327, %v2329
        %2454 = vadd.xlane.f32.xlu0 %v2453
        %v2455 = vpop.xlane.xlu0 %2454
        %v2456 = vadd.f32 %v2331, %v2333
        %2457 = vadd.xlane.f32.xlu0 %v2456
        %v2458 = vpop.xlane.xlu0 %2457
        %v2459 = vadd.f32 %v2335, %v2337
        %2460 = vadd.xlane.f32.xlu0 %v2459
        %v2461 = vpop.xlane.xlu0 %2460
        %v2462 = vadd.f32 %v2339, %v2341
        %2463 = vadd.xlane.f32.xlu0 %v2462
        %v2464 = vpop.xlane.xlu0 %2463
        %v2465 = vadd.f32 %v2343, %v2345
        %2466 = vadd.xlane.f32.xlu0 %v2465
        %v2467 = vpop.xlane.xlu0 %2466
        %v2468 = vadd.f32 %v2347, %v2349
        %2469 = vadd.xlane.f32.xlu0 %v2468
        %v2470 = vpop.xlane.xlu0 %2469
        %v2471 = vadd.f32 %v2351, %v2353
        %2472 = vadd.xlane.f32.xlu0 %v2471
        %v2473 = vpop.xlane.xlu0 %2472
        %v2474 = vadd.f32 %v2355, %v2357
        %2475 = vadd.xlane.f32.xlu0 %v2474
        %v2476 = vpop.xlane.xlu0 %2475
        %v2477 = vadd.f32 %v2359, %v2361
        %2478 = vadd.xlane.f32.xlu0 %v2477
        %v2479 = vpop.xlane.xlu0 %2478
        %v2480 = vadd.f32 %v2363, %v2365
        %2481 = vadd.xlane.f32.xlu0 %v2480
        %v2482 = vpop.xlane.xlu0 %2481
        %v2483 = vadd.f32 %v2367, %v2369
        %2484 = vadd.xlane.f32.xlu0 %v2483
        %v2485 = vpop.xlane.xlu0 %2484
        %v2486 = vadd.f32 %v2371, %v2373
        %2487 = vadd.xlane.f32.xlu0 %v2486
        %v2488 = vpop.xlane.xlu0 %2487
        %v2489 = vadd.f32 %v2375, %v2377
        %2490 = vadd.xlane.f32.xlu0 %v2489
        %v2491 = vpop.xlane.xlu0 %2490
        %v2492 = vadd.f32 %v2379, %v2381
        %2493 = vadd.xlane.f32.xlu0 %v2492
        %v2494 = vpop.xlane.xlu0 %2493
        %v2495 = vadd.f32 %v2383, %v2385
        %2496 = vadd.xlane.f32.xlu0 %v2495
        %v2497 = vpop.xlane.xlu0 %2496
        %v2498 = vadd.f32 %v2387, %v2389
        %2499 = vadd.xlane.f32.xlu0 %v2498
        %v2500 = vpop.xlane.xlu0 %2499
        %v2501 = vadd.f32 %v2391, %v2393
        %2502 = vadd.xlane.f32.xlu0 %v2501
        %v2503 = vpop.xlane.xlu0 %2502
        %v2504 = vadd.f32 %v2395, %v2397
        %2505 = vadd.xlane.f32.xlu0 %v2504
        %v2506 = vpop.xlane.xlu0 %2505
        %v2507 = vadd.f32 %v2399, %v2401
        %2508 = vadd.xlane.f32.xlu0 %v2507
        %v2509 = vpop.xlane.xlu0 %2508
        %v2510 = vadd.f32 %v2403, %v2405
        %2511 = vadd.xlane.f32.xlu0 %v2510
        %v2512 = vpop.xlane.xlu0 %2511
        %v2513 = vadd.f32 %v2407, %v2409
        %2514 = vadd.xlane.f32.xlu0 %v2513
        %v2515 = vpop.xlane.xlu0 %2514
        %v2516 = vadd.f32 %v2411, %v2413
        %2517 = vadd.xlane.f32.xlu0 %v2516
        %v2518 = vpop.xlane.xlu0 %2517
        %v2519 = vadd.f32 %v2415, %v2417
        %2520 = vadd.xlane.f32.xlu0 %v2519
        %v2521 = vpop.xlane.xlu0 %2520
        %v2522 = vadd.f32 %v2419, %v2421
        %2523 = vadd.xlane.f32.xlu0 %v2522
        %v2524 = vpop.xlane.xlu0 %2523
        %v2525 = vadd.f32 %v2423, %v2425
        %2526 = vadd.xlane.f32.xlu0 %v2525
        %v2527 = vpop.xlane.xlu0 %2526
        %v2528 = vadd.f32 %v2427, %v2429
        %2529 = vadd.xlane.f32.xlu0 %v2528
        %v2530 = vpop.xlane.xlu0 %2529
        %v2531 = vadd.f32 %v2431, %v2433
        %2532 = vadd.xlane.f32.xlu0 %v2531
        %v2533 = vpop.xlane.xlu0 %2532
        %v2534 = vadd.f32 %v2435, %v2437
        %2535 = vadd.xlane.f32.xlu0 %v2534
        %v2536 = vpop.xlane.xlu0 %2535
        %v2537 = vadd.f32 %v2439, %v2441
        %2538 = vadd.xlane.f32.xlu0 %v2537
        %v2539 = vpop.xlane.xlu0 %2538
        %v2540 = vadd.f32 %v2443, %v2445
        %2541 = vadd.xlane.f32.xlu0 %v2540
        %v2542 = vpop.xlane.xlu0 %2541
        %v2543 = vadd.f32 %v2447, %v2449
        %2544 = vadd.xlane.f32.xlu0 %v2543
        %v2545 = vpop.xlane.xlu0 %2544
        %v2546 = vpack.c.bf16 %v2327, %v2323
        %v2547 = vpack.c.bf16 %v2329, %v2325
        %v2548 = vpack.c.bf16 %v2335, %v2331
        %v2549 = vpack.c.bf16 %v2337, %v2333
        %v2550 = vpack.c.bf16 %v2343, %v2339
        %v2551 = vpack.c.bf16 %v2345, %v2341
        %v2552 = vpack.c.bf16 %v2351, %v2347
        %v2553 = vpack.c.bf16 %v2353, %v2349
        %v2554 = vpack.c.bf16 %v2359, %v2355
        %v2555 = vpack.c.bf16 %v2361, %v2357
        %v2556 = vpack.c.bf16 %v2367, %v2363
        %v2557 = vpack.c.bf16 %v2369, %v2365
        %v2558 = vpack.c.bf16 %v2375, %v2371
        %v2559 = vpack.c.bf16 %v2377, %v2373
        %v2560 = vpack.c.bf16 %v2383, %v2379
        %v2561 = vpack.c.bf16 %v2385, %v2381
        %v2562 = vpack.c.bf16 %v2391, %v2387
        %v2563 = vpack.c.bf16 %v2393, %v2389
        %v2564 = vpack.c.bf16 %v2399, %v2395
        %v2565 = vpack.c.bf16 %v2401, %v2397
        %v2566 = vpack.c.bf16 %v2407, %v2403
        %v2567 = vpack.c.bf16 %v2409, %v2405
        %v2568 = vpack.c.bf16 %v2415, %v2411
        %v2569 = vpack.c.bf16 %v2417, %v2413
        %v2570 = vpack.c.bf16 %v2423, %v2419
        %v2571 = vpack.c.bf16 %v2425, %v2421
        %v2572 = vpack.c.bf16 %v2431, %v2427
        %v2573 = vpack.c.bf16 %v2433, %v2429
        %v2574 = vpack.c.bf16 %v2439, %v2435
        %v2575 = vpack.c.bf16 %v2441, %v2437
        %v2576 = vpack.c.bf16 %v2447, %v2443
        %v2577 = vpack.c.bf16 %v2449, %v2445
        %v2578 = vpack.c.bf16 %v1726, %v1724
        %v2579 = vpack.c.bf16 %v1731, %v1729
        %v2580 = vpack.c.bf16 %v1736, %v1734
        %v2581 = vpack.c.bf16 %v1741, %v1739
        %v2582 = vpack.c.bf16 %v1746, %v1744
        %v2583 = vpack.c.bf16 %v1751, %v1749
        %v2584 = vpack.c.bf16 %v1756, %v1754
        %v2585 = vpack.c.bf16 %v1761, %v1759
        %v2586 = vpack.c.bf16 %v1766, %v1764
        %v2587 = vpack.c.bf16 %v1771, %v1769
        %v2588 = vpack.c.bf16 %v1776, %v1774
        %v2589 = vpack.c.bf16 %v1781, %v1779
        %v2590 = vpack.c.bf16 %v1786, %v1784
        %v2591 = vpack.c.bf16 %v1791, %v1789
        %v2592 = vpack.c.bf16 %v1796, %v1794
        %v2593 = vpack.c.bf16 %v1801, %v1799
        %2594 = vmatpush.bf16.msra.mxu0 %v2585
        %2595 = vmatpush.bf16.msra.mxu0 %v2584
        %2596 = vmatpush.bf16.msra.mxu0 %v2583
        %2597 = vmatpush.bf16.msra.mxu0 %v2582
        %2598 = vmatpush.bf16.msra.mxu0 %v2581
        %2599 = vmatpush.bf16.msra.mxu0 %v2580
        %2600 = vmatpush.bf16.msra.mxu0 %v2579
        %2601 = vmatpush.bf16.msra.mxu0 %v2578
        %2602 = vmatmul.bf16.gmra.mxu0 %v2546
        %v2603 = vpop.f32.mrf.mxu0
        %v2604 = vadd.f32 0.0, %v2603
        %v2605 = vpop.f32.mrf.mxu0
        %v2606 = vadd.f32 0.0, %v2605
        %2607 = vmatmul.bf16.gmra.mxu0 %v2548
        %v2608 = vpop.f32.mrf.mxu0
        %v2609 = vadd.f32 0.0, %v2608
        %v2610 = vpop.f32.mrf.mxu0
        %v2611 = vadd.f32 0.0, %v2610
        %2612 = vmatmul.bf16.gmra.mxu0 %v2550
        %v2613 = vpop.f32.mrf.mxu0
        %v2614 = vadd.f32 0.0, %v2613
        %v2615 = vpop.f32.mrf.mxu0
        %v2616 = vadd.f32 0.0, %v2615
        %2617 = vmatmul.bf16.gmra.mxu0 %v2552
        %v2618 = vpop.f32.mrf.mxu0
        %v2619 = vadd.f32 0.0, %v2618
        %v2620 = vpop.f32.mrf.mxu0
        %v2621 = vadd.f32 0.0, %v2620
        %2622 = vmatmul.bf16.gmra.mxu0 %v2554
        %v2623 = vpop.f32.mrf.mxu0
        %v2624 = vadd.f32 0.0, %v2623
        %v2625 = vpop.f32.mrf.mxu0
        %v2626 = vadd.f32 0.0, %v2625
        %2627 = vmatmul.bf16.gmra.mxu0 %v2556
        %v2628 = vpop.f32.mrf.mxu0
        %v2629 = vadd.f32 0.0, %v2628
        %v2630 = vpop.f32.mrf.mxu0
        %v2631 = vadd.f32 0.0, %v2630
        %2632 = vmatmul.bf16.gmra.mxu0 %v2558
        %v2633 = vpop.f32.mrf.mxu0
        %v2634 = vadd.f32 0.0, %v2633
        %v2635 = vpop.f32.mrf.mxu0
        %v2636 = vadd.f32 0.0, %v2635
        %2637 = vmatmul.bf16.gmra.mxu0 %v2560
        %v2638 = vpop.f32.mrf.mxu0
        %v2639 = vadd.f32 0.0, %v2638
        %v2640 = vpop.f32.mrf.mxu0
        %v2641 = vadd.f32 0.0, %v2640
        %2642 = vmatmul.bf16.gmra.mxu0 %v2562
        %v2643 = vpop.f32.mrf.mxu0
        %v2644 = vadd.f32 0.0, %v2643
        %v2645 = vpop.f32.mrf.mxu0
        %v2646 = vadd.f32 0.0, %v2645
        %2647 = vmatmul.bf16.gmra.mxu0 %v2564
        %v2648 = vpop.f32.mrf.mxu0
        %v2649 = vadd.f32 0.0, %v2648
        %v2650 = vpop.f32.mrf.mxu0
        %v2651 = vadd.f32 0.0, %v2650
        %2652 = vmatmul.bf16.gmra.mxu0 %v2566
        %v2653 = vpop.f32.mrf.mxu0
        %v2654 = vadd.f32 0.0, %v2653
        %v2655 = vpop.f32.mrf.mxu0
        %v2656 = vadd.f32 0.0, %v2655
        %2657 = vmatmul.bf16.gmra.mxu0 %v2568
        %v2658 = vpop.f32.mrf.mxu0
        %v2659 = vadd.f32 0.0, %v2658
        %v2660 = vpop.f32.mrf.mxu0
        %v2661 = vadd.f32 0.0, %v2660
        %2662 = vmatmul.bf16.gmra.mxu0 %v2570
        %v2663 = vpop.f32.mrf.mxu0
        %v2664 = vadd.f32 0.0, %v2663
        %v2665 = vpop.f32.mrf.mxu0
        %v2666 = vadd.f32 0.0, %v2665
        %2667 = vmatmul.bf16.gmra.mxu0 %v2572
        %v2668 = vpop.f32.mrf.mxu0
        %v2669 = vadd.f32 0.0, %v2668
        %v2670 = vpop.f32.mrf.mxu0
        %v2671 = vadd.f32 0.0, %v2670
        %2672 = vmatmul.bf16.gmra.mxu0 %v2574
        %v2673 = vpop.f32.mrf.mxu0
        %v2674 = vadd.f32 0.0, %v2673
        %v2675 = vpop.f32.mrf.mxu0
        %v2676 = vadd.f32 0.0, %v2675
        %2677 = vmatmul.bf16.gmra.mxu0 %v2576
        %v2678 = vpop.f32.mrf.mxu0
        %v2679 = vadd.f32 0.0, %v2678
        %v2680 = vpop.f32.mrf.mxu0
        %v2681 = vadd.f32 0.0, %v2680
        %2682 = vdwg.mxu0
        %2683 = vmatpush.bf16.msra.mxu0 %v2593
        %2684 = vmatpush.bf16.msra.mxu0 %v2592
        %2685 = vmatpush.bf16.msra.mxu0 %v2591
        %2686 = vmatpush.bf16.msra.mxu0 %v2590
        %2687 = vmatpush.bf16.msra.mxu0 %v2589
        %2688 = vmatpush.bf16.msra.mxu0 %v2588
        %2689 = vmatpush.bf16.msra.mxu0 %v2587
        %2690 = vmatpush.bf16.msra.mxu0 %v2586
        %2691 = vmatmul.bf16.gmra.mxu0 %v2547
        %v2692 = vpop.f32.mrf.mxu0
        %v2693 = vadd.f32 %v2604, %v2692
        %v2694 = vpop.f32.mrf.mxu0
        %v2695 = vadd.f32 %v2606, %v2694
        %2696 = vmatmul.bf16.gmra.mxu0 %v2549
        %v2697 = vpop.f32.mrf.mxu0
        %v2698 = vadd.f32 %v2609, %v2697
        %v2699 = vpop.f32.mrf.mxu0
        %v2700 = vadd.f32 %v2611, %v2699
        %2701 = vmatmul.bf16.gmra.mxu0 %v2551
        %v2702 = vpop.f32.mrf.mxu0
        %v2703 = vadd.f32 %v2614, %v2702
        %v2704 = vpop.f32.mrf.mxu0
        %v2705 = vadd.f32 %v2616, %v2704
        %2706 = vmatmul.bf16.gmra.mxu0 %v2553
        %v2707 = vpop.f32.mrf.mxu0
        %v2708 = vadd.f32 %v2619, %v2707
        %v2709 = vpop.f32.mrf.mxu0
        %v2710 = vadd.f32 %v2621, %v2709
        %2711 = vmatmul.bf16.gmra.mxu0 %v2555
        %v2712 = vpop.f32.mrf.mxu0
        %v2713 = vadd.f32 %v2624, %v2712
        %v2714 = vpop.f32.mrf.mxu0
        %v2715 = vadd.f32 %v2626, %v2714
        %2716 = vmatmul.bf16.gmra.mxu0 %v2557
        %v2717 = vpop.f32.mrf.mxu0
        %v2718 = vadd.f32 %v2629, %v2717
        %v2719 = vpop.f32.mrf.mxu0
        %v2720 = vadd.f32 %v2631, %v2719
        %2721 = vmatmul.bf16.gmra.mxu0 %v2559
        %v2722 = vpop.f32.mrf.mxu0
        %v2723 = vadd.f32 %v2634, %v2722
        %v2724 = vpop.f32.mrf.mxu0
        %v2725 = vadd.f32 %v2636, %v2724
        %2726 = vmatmul.bf16.gmra.mxu0 %v2561
        %v2727 = vpop.f32.mrf.mxu0
        %v2728 = vadd.f32 %v2639, %v2727
        %v2729 = vpop.f32.mrf.mxu0
        %v2730 = vadd.f32 %v2641, %v2729
        %2731 = vmatmul.bf16.gmra.mxu0 %v2563
        %v2732 = vpop.f32.mrf.mxu0
        %v2733 = vadd.f32 %v2644, %v2732
        %v2734 = vpop.f32.mrf.mxu0
        %v2735 = vadd.f32 %v2646, %v2734
        %2736 = vmatmul.bf16.gmra.mxu0 %v2565
        %v2737 = vpop.f32.mrf.mxu0
        %v2738 = vadd.f32 %v2649, %v2737
        %v2739 = vpop.f32.mrf.mxu0
        %v2740 = vadd.f32 %v2651, %v2739
        %2741 = vmatmul.bf16.gmra.mxu0 %v2567
        %v2742 = vpop.f32.mrf.mxu0
        %v2743 = vadd.f32 %v2654, %v2742
        %v2744 = vpop.f32.mrf.mxu0
        %v2745 = vadd.f32 %v2656, %v2744
        %2746 = vmatmul.bf16.gmra.mxu0 %v2569
        %v2747 = vpop.f32.mrf.mxu0
        %v2748 = vadd.f32 %v2659, %v2747
        %v2749 = vpop.f32.mrf.mxu0
        %v2750 = vadd.f32 %v2661, %v2749
        %2751 = vmatmul.bf16.gmra.mxu0 %v2571
        %v2752 = vpop.f32.mrf.mxu0
        %v2753 = vadd.f32 %v2664, %v2752
        %v2754 = vpop.f32.mrf.mxu0
        %v2755 = vadd.f32 %v2666, %v2754
        %2756 = vmatmul.bf16.gmra.mxu0 %v2573
        %v2757 = vpop.f32.mrf.mxu0
        %v2758 = vadd.f32 %v2669, %v2757
        %v2759 = vpop.f32.mrf.mxu0
        %v2760 = vadd.f32 %v2671, %v2759
        %2761 = vmatmul.bf16.gmra.mxu0 %v2575
        %v2762 = vpop.f32.mrf.mxu0
        %v2763 = vadd.f32 %v2674, %v2762
        %v2764 = vpop.f32.mrf.mxu0
        %v2765 = vadd.f32 %v2676, %v2764
        %2766 = vmatmul.bf16.gmra.mxu0 %v2577
        %v2767 = vpop.f32.mrf.mxu0
        %v2768 = vadd.f32 %v2679, %v2767
        %v2769 = vpop.f32.mrf.mxu0
        %v2770 = vadd.f32 %v2681, %v2769
        %2771 = vdwg.mxu0
        %v2772 = vrcp.pop %v2452
        %v2773 = vrcp.pop %v2455
        %v2774 = vrcp.pop %v2458
        %v2775 = vrcp.pop %v2461
        %v2776 = vrcp.pop %v2464
        %v2777 = vrcp.pop %v2467
        %v2778 = vrcp.pop %v2470
        %v2779 = vrcp.pop %v2473
        %v2780 = vrcp.pop %v2476
        %v2781 = vrcp.pop %v2479
        %v2782 = vrcp.pop %v2482
        %v2783 = vrcp.pop %v2485
        %v2784 = vrcp.pop %v2488
        %v2785 = vrcp.pop %v2491
        %v2786 = vrcp.pop %v2494
        %v2787 = vrcp.pop %v2497
        %v2788 = vrcp.pop %v2500
        %v2789 = vrcp.pop %v2503
        %v2790 = vrcp.pop %v2506
        %v2791 = vrcp.pop %v2509
        %v2792 = vrcp.pop %v2512
        %v2793 = vrcp.pop %v2515
        %v2794 = vrcp.pop %v2518
        %v2795 = vrcp.pop %v2521
        %v2796 = vrcp.pop %v2524
        %v2797 = vrcp.pop %v2527
        %v2798 = vrcp.pop %v2530
        %v2799 = vrcp.pop %v2533
        %v2800 = vrcp.pop %v2536
        %v2801 = vrcp.pop %v2539
        %v2802 = vrcp.pop %v2542
        %v2803 = vrcp.pop %v2545
        %v2804 = vmul.f32 %v2693, %v2772
        %v2805 = vmul.f32 %v2695, %v2773
        %v2806 = vmul.f32 %v2698, %v2774
        %v2807 = vmul.f32 %v2700, %v2775
        %v2808 = vmul.f32 %v2703, %v2776
        %v2809 = vmul.f32 %v2705, %v2777
        %v2810 = vmul.f32 %v2708, %v2778
        %v2811 = vmul.f32 %v2710, %v2779
        %v2812 = vmul.f32 %v2713, %v2780
        %v2813 = vmul.f32 %v2715, %v2781
        %v2814 = vmul.f32 %v2718, %v2782
        %v2815 = vmul.f32 %v2720, %v2783
        %v2816 = vmul.f32 %v2723, %v2784
        %v2817 = vmul.f32 %v2725, %v2785
        %v2818 = vmul.f32 %v2728, %v2786
        %v2819 = vmul.f32 %v2730, %v2787
        %v2820 = vmul.f32 %v2733, %v2788
        %v2821 = vmul.f32 %v2735, %v2789
        %v2822 = vmul.f32 %v2738, %v2790
        %v2823 = vmul.f32 %v2740, %v2791
        %v2824 = vmul.f32 %v2743, %v2792
        %v2825 = vmul.f32 %v2745, %v2793
        %v2826 = vmul.f32 %v2748, %v2794
        %v2827 = vmul.f32 %v2750, %v2795
        %v2828 = vmul.f32 %v2753, %v2796
        %v2829 = vmul.f32 %v2755, %v2797
        %v2830 = vmul.f32 %v2758, %v2798
        %v2831 = vmul.f32 %v2760, %v2799
        %v2832 = vmul.f32 %v2763, %v2800
        %v2833 = vmul.f32 %v2765, %v2801
        %v2834 = vmul.f32 %v2768, %v2802
        %v2835 = vmul.f32 %v2770, %v2803
        %v2836 = vpack.c.bf16 %v2805, %v2804
        %v2837 = vpack.c.bf16 %v2807, %v2806
        %v2838 = vpack.c.bf16 %v2809, %v2808
        %v2839 = vpack.c.bf16 %v2811, %v2810
        %v2840 = vpack.c.bf16 %v2813, %v2812
        %v2841 = vpack.c.bf16 %v2815, %v2814
        %v2842 = vpack.c.bf16 %v2817, %v2816
        %v2843 = vpack.c.bf16 %v2819, %v2818
        %v2844 = vpack.c.bf16 %v2821, %v2820
        %v2845 = vpack.c.bf16 %v2823, %v2822
        %v2846 = vpack.c.bf16 %v2825, %v2824
        %v2847 = vpack.c.bf16 %v2827, %v2826
        %v2848 = vpack.c.bf16 %v2829, %v2828
        %v2849 = vpack.c.bf16 %v2831, %v2830
        %v2850 = vpack.c.bf16 %v2833, %v2832
        %v2851 = vpack.c.bf16 %v2835, %v2834
        %2868 = vrot.lane.b32.xlu0 %v1899, 96
        %v2869 = vpop.permute.xlu0 %2868
        %2870 = vrot.lane.b32.xlu0 %v1900, 96
        %v2871 = vpop.permute.xlu0 %2870
        %2872 = vrot.lane.b32.xlu0 %v1901, 96
        %v2873 = vpop.permute.xlu0 %2872
        %2874 = vrot.lane.b32.xlu0 %v1902, 96
        %v2875 = vpop.permute.xlu0 %2874
        %2876 = vrot.lane.b32.xlu0 %v1903, 96
        %v2877 = vpop.permute.xlu0 %2876
        %2878 = vrot.lane.b32.xlu0 %v1904, 96
        %v2879 = vpop.permute.xlu0 %2878
        %2880 = vrot.lane.b32.xlu0 %v1905, 96
        %v2881 = vpop.permute.xlu0 %2880
        %2882 = vrot.lane.b32.xlu0 %v1906, 96
        %v2883 = vpop.permute.xlu0 %2882
        %2884 = vrot.lane.b32.xlu0 %v1907, 96
        %v2885 = vpop.permute.xlu0 %2884
        %2886 = vrot.lane.b32.xlu0 %v1908, 96
        %v2887 = vpop.permute.xlu0 %2886
        %2888 = vrot.lane.b32.xlu0 %v1909, 96
        %v2889 = vpop.permute.xlu0 %2888
        %2890 = vrot.lane.b32.xlu0 %v1910, 96
        %v2891 = vpop.permute.xlu0 %2890
        %2892 = vrot.lane.b32.xlu0 %v1911, 96
        %v2893 = vpop.permute.xlu0 %2892
        %2894 = vrot.lane.b32.xlu0 %v1912, 96
        %v2895 = vpop.permute.xlu0 %2894
        %2896 = vrot.lane.b32.xlu0 %v1913, 96
        %v2897 = vpop.permute.xlu0 %2896
        %2898 = vrot.lane.b32.xlu0 %v1914, 96
        %v2899 = vpop.permute.xlu0 %2898
        %v2904 = vunpack.c.l.b16 %v1871
        %v2905 = vunpack.c.h.b16 %v1871
        %v2906 = vunpack.c.l.b16 %v1872
        %v2907 = vunpack.c.h.b16 %v1872
        %v2908 = vunpack.c.l.b16 %v1873
        %v2909 = vunpack.c.h.b16 %v1873
        %v2910 = vunpack.c.l.b16 %v1874
        %v2911 = vunpack.c.h.b16 %v1874
        %v2912 = vpack.c.b16 %v2906, %v2904
        %v2913 = vpack.c.b16 %v2907, %v2905
        %v2914 = vpack.c.b16 %v2910, %v2908
        %v2915 = vpack.c.b16 %v2911, %v2909
        %v2921 = vsel %vm1935, %v2869, 0
        %v2924 = vsel %vm1935, %v2871, 0
        %v2927 = vsel %vm1935, %v2873, 0
        %v2930 = vsel %vm1935, %v2875, 0
        %v2933 = vsel %vm1935, %v2877, 0
        %v2936 = vsel %vm1935, %v2879, 0
        %v2939 = vsel %vm1935, %v2881, 0
        %v2942 = vsel %vm1935, %v2883, 0
        %v2945 = vsel %vm1935, %v2885, 0
        %v2948 = vsel %vm1935, %v2887, 0
        %v2951 = vsel %vm1935, %v2889, 0
        %v2954 = vsel %vm1935, %v2891, 0
        %v2957 = vsel %vm1935, %v2893, 0
        %v2960 = vsel %vm1935, %v2895, 0
        %v2963 = vsel %vm1935, %v2897, 0
        %v2966 = vsel %vm1935, %v2899, 0
        %2968 = vmatpush.bf16.msra.mxu0 0
        %2969 = vmatpush.bf16.msra.mxu0 0
        %2970 = vmatpush.bf16.msra.mxu0 0
        %2971 = vmatpush.bf16.msra.mxu0 0
        %2972 = vmatpush.bf16.msra.mxu0 0
        %2973 = vmatpush.bf16.msra.mxu0 0
        %2974 = vmatpush.bf16.msra.mxu0 %v2914
        %2975 = vmatpush.bf16.msra.mxu0 %v2912
        %2976 = vmatmul.bf16.gmra.mxu0 %v2921
        %v2977 = vpop.f32.mrf.mxu0
        %v2978 = vadd.f32 0.0, %v2977
        %v2979 = vpop.f32.mrf.mxu0
        %v2980 = vadd.f32 0.0, %v2979
        %2981 = vmatmul.bf16.gmra.mxu0 %v2924
        %v2982 = vpop.f32.mrf.mxu0
        %v2983 = vadd.f32 0.0, %v2982
        %v2984 = vpop.f32.mrf.mxu0
        %v2985 = vadd.f32 0.0, %v2984
        %2986 = vmatmul.bf16.gmra.mxu0 %v2927
        %v2987 = vpop.f32.mrf.mxu0
        %v2988 = vadd.f32 0.0, %v2987
        %v2989 = vpop.f32.mrf.mxu0
        %v2990 = vadd.f32 0.0, %v2989
        %2991 = vmatmul.bf16.gmra.mxu0 %v2930
        %v2992 = vpop.f32.mrf.mxu0
        %v2993 = vadd.f32 0.0, %v2992
        %v2994 = vpop.f32.mrf.mxu0
        %v2995 = vadd.f32 0.0, %v2994
        %2996 = vmatmul.bf16.gmra.mxu0 %v2933
        %v2997 = vpop.f32.mrf.mxu0
        %v2998 = vadd.f32 0.0, %v2997
        %v2999 = vpop.f32.mrf.mxu0
        %v3000 = vadd.f32 0.0, %v2999
        %3001 = vmatmul.bf16.gmra.mxu0 %v2936
        %v3002 = vpop.f32.mrf.mxu0
        %v3003 = vadd.f32 0.0, %v3002
        %v3004 = vpop.f32.mrf.mxu0
        %v3005 = vadd.f32 0.0, %v3004
        %3006 = vmatmul.bf16.gmra.mxu0 %v2939
        %v3007 = vpop.f32.mrf.mxu0
        %v3008 = vadd.f32 0.0, %v3007
        %v3009 = vpop.f32.mrf.mxu0
        %v3010 = vadd.f32 0.0, %v3009
        %3011 = vmatmul.bf16.gmra.mxu0 %v2942
        %v3012 = vpop.f32.mrf.mxu0
        %v3013 = vadd.f32 0.0, %v3012
        %v3014 = vpop.f32.mrf.mxu0
        %v3015 = vadd.f32 0.0, %v3014
        %3016 = vmatmul.bf16.gmra.mxu0 %v2945
        %v3017 = vpop.f32.mrf.mxu0
        %v3018 = vadd.f32 0.0, %v3017
        %v3019 = vpop.f32.mrf.mxu0
        %v3020 = vadd.f32 0.0, %v3019
        %3021 = vmatmul.bf16.gmra.mxu0 %v2948
        %v3022 = vpop.f32.mrf.mxu0
        %v3023 = vadd.f32 0.0, %v3022
        %v3024 = vpop.f32.mrf.mxu0
        %v3025 = vadd.f32 0.0, %v3024
        %3026 = vmatmul.bf16.gmra.mxu0 %v2951
        %v3027 = vpop.f32.mrf.mxu0
        %v3028 = vadd.f32 0.0, %v3027
        %v3029 = vpop.f32.mrf.mxu0
        %v3030 = vadd.f32 0.0, %v3029
        %3031 = vmatmul.bf16.gmra.mxu0 %v2954
        %v3032 = vpop.f32.mrf.mxu0
        %v3033 = vadd.f32 0.0, %v3032
        %v3034 = vpop.f32.mrf.mxu0
        %v3035 = vadd.f32 0.0, %v3034
        %3036 = vmatmul.bf16.gmra.mxu0 %v2957
        %v3037 = vpop.f32.mrf.mxu0
        %v3038 = vadd.f32 0.0, %v3037
        %v3039 = vpop.f32.mrf.mxu0
        %v3040 = vadd.f32 0.0, %v3039
        %3041 = vmatmul.bf16.gmra.mxu0 %v2960
        %v3042 = vpop.f32.mrf.mxu0
        %v3043 = vadd.f32 0.0, %v3042
        %v3044 = vpop.f32.mrf.mxu0
        %v3045 = vadd.f32 0.0, %v3044
        %3046 = vmatmul.bf16.gmra.mxu0 %v2963
        %v3047 = vpop.f32.mrf.mxu0
        %v3048 = vadd.f32 0.0, %v3047
        %v3049 = vpop.f32.mrf.mxu0
        %v3050 = vadd.f32 0.0, %v3049
        %3051 = vmatmul.bf16.gmra.mxu0 %v2966
        %v3052 = vpop.f32.mrf.mxu0
        %v3053 = vadd.f32 0.0, %v3052
        %v3054 = vpop.f32.mrf.mxu0
        %v3055 = vadd.f32 0.0, %v3054
        %3056 = vdwg.mxu0
        %3057 = vmatpush.bf16.msra.mxu0 0
        %3058 = vmatpush.bf16.msra.mxu0 0
        %3059 = vmatpush.bf16.msra.mxu0 0
        %3060 = vmatpush.bf16.msra.mxu0 0
        %3061 = vmatpush.bf16.msra.mxu0 0
        %3062 = vmatpush.bf16.msra.mxu0 0
        %3063 = vmatpush.bf16.msra.mxu0 %v2915
        %3064 = vmatpush.bf16.msra.mxu0 %v2913
        %3065 = vmatmul.bf16.gmra.mxu0 %v2921
        %v3066 = vpop.f32.mrf.mxu0
        %v3067 = vadd.f32 0.0, %v3066
        %v3068 = vpop.f32.mrf.mxu0
        %v3069 = vadd.f32 0.0, %v3068
        %3070 = vmatmul.bf16.gmra.mxu0 %v2924
        %v3071 = vpop.f32.mrf.mxu0
        %v3072 = vadd.f32 0.0, %v3071
        %v3073 = vpop.f32.mrf.mxu0
        %v3074 = vadd.f32 0.0, %v3073
        %3075 = vmatmul.bf16.gmra.mxu0 %v2927
        %v3076 = vpop.f32.mrf.mxu0
        %v3077 = vadd.f32 0.0, %v3076
        %v3078 = vpop.f32.mrf.mxu0
        %v3079 = vadd.f32 0.0, %v3078
        %3080 = vmatmul.bf16.gmra.mxu0 %v2930
        %v3081 = vpop.f32.mrf.mxu0
        %v3082 = vadd.f32 0.0, %v3081
        %v3083 = vpop.f32.mrf.mxu0
        %v3084 = vadd.f32 0.0, %v3083
        %3085 = vmatmul.bf16.gmra.mxu0 %v2933
        %v3086 = vpop.f32.mrf.mxu0
        %v3087 = vadd.f32 0.0, %v3086
        %v3088 = vpop.f32.mrf.mxu0
        %v3089 = vadd.f32 0.0, %v3088
        %3090 = vmatmul.bf16.gmra.mxu0 %v2936
        %v3091 = vpop.f32.mrf.mxu0
        %v3092 = vadd.f32 0.0, %v3091
        %v3093 = vpop.f32.mrf.mxu0
        %v3094 = vadd.f32 0.0, %v3093
        %3095 = vmatmul.bf16.gmra.mxu0 %v2939
        %v3096 = vpop.f32.mrf.mxu0
        %v3097 = vadd.f32 0.0, %v3096
        %v3098 = vpop.f32.mrf.mxu0
        %v3099 = vadd.f32 0.0, %v3098
        %3100 = vmatmul.bf16.gmra.mxu0 %v2942
        %v3101 = vpop.f32.mrf.mxu0
        %v3102 = vadd.f32 0.0, %v3101
        %v3103 = vpop.f32.mrf.mxu0
        %v3104 = vadd.f32 0.0, %v3103
        %3105 = vmatmul.bf16.gmra.mxu0 %v2945
        %v3106 = vpop.f32.mrf.mxu0
        %v3107 = vadd.f32 0.0, %v3106
        %v3108 = vpop.f32.mrf.mxu0
        %v3109 = vadd.f32 0.0, %v3108
        %3110 = vmatmul.bf16.gmra.mxu0 %v2948
        %v3111 = vpop.f32.mrf.mxu0
        %v3112 = vadd.f32 0.0, %v3111
        %v3113 = vpop.f32.mrf.mxu0
        %v3114 = vadd.f32 0.0, %v3113
        %3115 = vmatmul.bf16.gmra.mxu0 %v2951
        %v3116 = vpop.f32.mrf.mxu0
        %v3117 = vadd.f32 0.0, %v3116
        %v3118 = vpop.f32.mrf.mxu0
        %v3119 = vadd.f32 0.0, %v3118
        %3120 = vmatmul.bf16.gmra.mxu0 %v2954
        %v3121 = vpop.f32.mrf.mxu0
        %v3122 = vadd.f32 0.0, %v3121
        %v3123 = vpop.f32.mrf.mxu0
        %v3124 = vadd.f32 0.0, %v3123
        %3125 = vmatmul.bf16.gmra.mxu0 %v2957
        %v3126 = vpop.f32.mrf.mxu0
        %v3127 = vadd.f32 0.0, %v3126
        %v3128 = vpop.f32.mrf.mxu0
        %v3129 = vadd.f32 0.0, %v3128
        %3130 = vmatmul.bf16.gmra.mxu0 %v2960
        %v3131 = vpop.f32.mrf.mxu0
        %v3132 = vadd.f32 0.0, %v3131
        %v3133 = vpop.f32.mrf.mxu0
        %v3134 = vadd.f32 0.0, %v3133
        %3135 = vmatmul.bf16.gmra.mxu0 %v2963
        %v3136 = vpop.f32.mrf.mxu0
        %v3137 = vadd.f32 0.0, %v3136
        %v3138 = vpop.f32.mrf.mxu0
        %v3139 = vadd.f32 0.0, %v3138
        %3140 = vmatmul.bf16.gmra.mxu0 %v2966
        %v3141 = vpop.f32.mrf.mxu0
        %v3142 = vadd.f32 0.0, %v3141
        %v3143 = vpop.f32.mrf.mxu0
        %v3144 = vadd.f32 0.0, %v3143
        %3145 = vdwg.mxu0
        %v3146 = vmax.f32 %v2978, %v3067
        %3147 = vmax.xlane.f32.xlu0 %v3146
        %v3148 = vpop.xlane.xlu0 %3147
        %v3149 = vmax.f32 %v2980, %v3069
        %3150 = vmax.xlane.f32.xlu0 %v3149
        %v3151 = vpop.xlane.xlu0 %3150
        %v3152 = vmax.f32 %v2983, %v3072
        %3153 = vmax.xlane.f32.xlu0 %v3152
        %v3154 = vpop.xlane.xlu0 %3153
        %v3155 = vmax.f32 %v2985, %v3074
        %3156 = vmax.xlane.f32.xlu0 %v3155
        %v3157 = vpop.xlane.xlu0 %3156
        %v3158 = vmax.f32 %v2988, %v3077
        %3159 = vmax.xlane.f32.xlu0 %v3158
        %v3160 = vpop.xlane.xlu0 %3159
        %v3161 = vmax.f32 %v2990, %v3079
        %3162 = vmax.xlane.f32.xlu0 %v3161
        %v3163 = vpop.xlane.xlu0 %3162
        %v3164 = vmax.f32 %v2993, %v3082
        %3165 = vmax.xlane.f32.xlu0 %v3164
        %v3166 = vpop.xlane.xlu0 %3165
        %v3167 = vmax.f32 %v2995, %v3084
        %3168 = vmax.xlane.f32.xlu0 %v3167
        %v3169 = vpop.xlane.xlu0 %3168
        %v3170 = vmax.f32 %v2998, %v3087
        %3171 = vmax.xlane.f32.xlu0 %v3170
        %v3172 = vpop.xlane.xlu0 %3171
        %v3173 = vmax.f32 %v3000, %v3089
        %3174 = vmax.xlane.f32.xlu0 %v3173
        %v3175 = vpop.xlane.xlu0 %3174
        %v3176 = vmax.f32 %v3003, %v3092
        %3177 = vmax.xlane.f32.xlu0 %v3176
        %v3178 = vpop.xlane.xlu0 %3177
        %v3179 = vmax.f32 %v3005, %v3094
        %3180 = vmax.xlane.f32.xlu0 %v3179
        %v3181 = vpop.xlane.xlu0 %3180
        %v3182 = vmax.f32 %v3008, %v3097
        %3183 = vmax.xlane.f32.xlu0 %v3182
        %v3184 = vpop.xlane.xlu0 %3183
        %v3185 = vmax.f32 %v3010, %v3099
        %3186 = vmax.xlane.f32.xlu0 %v3185
        %v3187 = vpop.xlane.xlu0 %3186
        %v3188 = vmax.f32 %v3013, %v3102
        %3189 = vmax.xlane.f32.xlu0 %v3188
        %v3190 = vpop.xlane.xlu0 %3189
        %v3191 = vmax.f32 %v3015, %v3104
        %3192 = vmax.xlane.f32.xlu0 %v3191
        %v3193 = vpop.xlane.xlu0 %3192
        %v3194 = vmax.f32 %v3018, %v3107
        %3195 = vmax.xlane.f32.xlu0 %v3194
        %v3196 = vpop.xlane.xlu0 %3195
        %v3197 = vmax.f32 %v3020, %v3109
        %3198 = vmax.xlane.f32.xlu0 %v3197
        %v3199 = vpop.xlane.xlu0 %3198
        %v3200 = vmax.f32 %v3023, %v3112
        %3201 = vmax.xlane.f32.xlu0 %v3200
        %v3202 = vpop.xlane.xlu0 %3201
        %v3203 = vmax.f32 %v3025, %v3114
        %3204 = vmax.xlane.f32.xlu0 %v3203
        %v3205 = vpop.xlane.xlu0 %3204
        %v3206 = vmax.f32 %v3028, %v3117
        %3207 = vmax.xlane.f32.xlu0 %v3206
        %v3208 = vpop.xlane.xlu0 %3207
        %v3209 = vmax.f32 %v3030, %v3119
        %3210 = vmax.xlane.f32.xlu0 %v3209
        %v3211 = vpop.xlane.xlu0 %3210
        %v3212 = vmax.f32 %v3033, %v3122
        %3213 = vmax.xlane.f32.xlu0 %v3212
        %v3214 = vpop.xlane.xlu0 %3213
        %v3215 = vmax.f32 %v3035, %v3124
        %3216 = vmax.xlane.f32.xlu0 %v3215
        %v3217 = vpop.xlane.xlu0 %3216
        %v3218 = vmax.f32 %v3038, %v3127
        %3219 = vmax.xlane.f32.xlu0 %v3218
        %v3220 = vpop.xlane.xlu0 %3219
        %v3221 = vmax.f32 %v3040, %v3129
        %3222 = vmax.xlane.f32.xlu0 %v3221
        %v3223 = vpop.xlane.xlu0 %3222
        %v3224 = vmax.f32 %v3043, %v3132
        %3225 = vmax.xlane.f32.xlu0 %v3224
        %v3226 = vpop.xlane.xlu0 %3225
        %v3227 = vmax.f32 %v3045, %v3134
        %3228 = vmax.xlane.f32.xlu0 %v3227
        %v3229 = vpop.xlane.xlu0 %3228
        %v3230 = vmax.f32 %v3048, %v3137
        %3231 = vmax.xlane.f32.xlu0 %v3230
        %v3232 = vpop.xlane.xlu0 %3231
        %v3233 = vmax.f32 %v3050, %v3139
        %3234 = vmax.xlane.f32.xlu0 %v3233
        %v3235 = vpop.xlane.xlu0 %3234
        %v3236 = vmax.f32 %v3053, %v3142
        %3237 = vmax.xlane.f32.xlu0 %v3236
        %v3238 = vpop.xlane.xlu0 %3237
        %v3239 = vmax.f32 %v3055, %v3144
        %3240 = vmax.xlane.f32.xlu0 %v3239
        %v3241 = vpop.xlane.xlu0 %3240
        %v3242 = vsub.f32 %v2978, %v3148
        %v3243 = vsub.f32 %v3067, %v3148
        %v3244 = vsub.f32 %v2980, %v3151
        %v3245 = vsub.f32 %v3069, %v3151
        %v3246 = vsub.f32 %v2983, %v3154
        %v3247 = vsub.f32 %v3072, %v3154
        %v3248 = vsub.f32 %v2985, %v3157
        %v3249 = vsub.f32 %v3074, %v3157
        %v3250 = vsub.f32 %v2988, %v3160
        %v3251 = vsub.f32 %v3077, %v3160
        %v3252 = vsub.f32 %v2990, %v3163
        %v3253 = vsub.f32 %v3079, %v3163
        %v3254 = vsub.f32 %v2993, %v3166
        %v3255 = vsub.f32 %v3082, %v3166
        %v3256 = vsub.f32 %v2995, %v3169
        %v3257 = vsub.f32 %v3084, %v3169
        %v3258 = vsub.f32 %v2998, %v3172
        %v3259 = vsub.f32 %v3087, %v3172
        %v3260 = vsub.f32 %v3000, %v3175
        %v3261 = vsub.f32 %v3089, %v3175
        %v3262 = vsub.f32 %v3003, %v3178
        %v3263 = vsub.f32 %v3092, %v3178
        %v3264 = vsub.f32 %v3005, %v3181
        %v3265 = vsub.f32 %v3094, %v3181
        %v3266 = vsub.f32 %v3008, %v3184
        %v3267 = vsub.f32 %v3097, %v3184
        %v3268 = vsub.f32 %v3010, %v3187
        %v3269 = vsub.f32 %v3099, %v3187
        %v3270 = vsub.f32 %v3013, %v3190
        %v3271 = vsub.f32 %v3102, %v3190
        %v3272 = vsub.f32 %v3015, %v3193
        %v3273 = vsub.f32 %v3104, %v3193
        %v3274 = vsub.f32 %v3018, %v3196
        %v3275 = vsub.f32 %v3107, %v3196
        %v3276 = vsub.f32 %v3020, %v3199
        %v3277 = vsub.f32 %v3109, %v3199
        %v3278 = vsub.f32 %v3023, %v3202
        %v3279 = vsub.f32 %v3112, %v3202
        %v3280 = vsub.f32 %v3025, %v3205
        %v3281 = vsub.f32 %v3114, %v3205
        %v3282 = vsub.f32 %v3028, %v3208
        %v3283 = vsub.f32 %v3117, %v3208
        %v3284 = vsub.f32 %v3030, %v3211
        %v3285 = vsub.f32 %v3119, %v3211
        %v3286 = vsub.f32 %v3033, %v3214
        %v3287 = vsub.f32 %v3122, %v3214
        %v3288 = vsub.f32 %v3035, %v3217
        %v3289 = vsub.f32 %v3124, %v3217
        %v3290 = vsub.f32 %v3038, %v3220
        %v3291 = vsub.f32 %v3127, %v3220
        %v3292 = vsub.f32 %v3040, %v3223
        %v3293 = vsub.f32 %v3129, %v3223
        %v3294 = vsub.f32 %v3043, %v3226
        %v3295 = vsub.f32 %v3132, %v3226
        %v3296 = vsub.f32 %v3045, %v3229
        %v3297 = vsub.f32 %v3134, %v3229
        %v3298 = vsub.f32 %v3048, %v3232
        %v3299 = vsub.f32 %v3137, %v3232
        %v3300 = vsub.f32 %v3050, %v3235
        %v3301 = vsub.f32 %v3139, %v3235
        %v3302 = vsub.f32 %v3053, %v3238
        %v3303 = vsub.f32 %v3142, %v3238
        %v3304 = vsub.f32 %v3055, %v3241
        %v3305 = vsub.f32 %v3144, %v3241
        %v3306 = vmul.f32 %v3242, 1.442695
        %v3307 = vpow.pop %v3306
        %v3308 = vmul.f32 %v3243, 1.442695
        %v3309 = vpow.pop %v3308
        %v3310 = vmul.f32 %v3244, 1.442695
        %v3311 = vpow.pop %v3310
        %v3312 = vmul.f32 %v3245, 1.442695
        %v3313 = vpow.pop %v3312
        %v3314 = vmul.f32 %v3246, 1.442695
        %v3315 = vpow.pop %v3314
        %v3316 = vmul.f32 %v3247, 1.442695
        %v3317 = vpow.pop %v3316
        %v3318 = vmul.f32 %v3248, 1.442695
        %v3319 = vpow.pop %v3318
        %v3320 = vmul.f32 %v3249, 1.442695
        %v3321 = vpow.pop %v3320
        %v3322 = vmul.f32 %v3250, 1.442695
        %v3323 = vpow.pop %v3322
        %v3324 = vmul.f32 %v3251, 1.442695
        %v3325 = vpow.pop %v3324
        %v3326 = vmul.f32 %v3252, 1.442695
        %v3327 = vpow.pop %v3326
        %v3328 = vmul.f32 %v3253, 1.442695
        %v3329 = vpow.pop %v3328
        %v3330 = vmul.f32 %v3254, 1.442695
        %v3331 = vpow.pop %v3330
        %v3332 = vmul.f32 %v3255, 1.442695
        %v3333 = vpow.pop %v3332
        %v3334 = vmul.f32 %v3256, 1.442695
        %v3335 = vpow.pop %v3334
        %v3336 = vmul.f32 %v3257, 1.442695
        %v3337 = vpow.pop %v3336
        %v3338 = vmul.f32 %v3258, 1.442695
        %v3339 = vpow.pop %v3338
        %v3340 = vmul.f32 %v3259, 1.442695
        %v3341 = vpow.pop %v3340
        %v3342 = vmul.f32 %v3260, 1.442695
        %v3343 = vpow.pop %v3342
        %v3344 = vmul.f32 %v3261, 1.442695
        %v3345 = vpow.pop %v3344
        %v3346 = vmul.f32 %v3262, 1.442695
        %v3347 = vpow.pop %v3346
        %v3348 = vmul.f32 %v3263, 1.442695
        %v3349 = vpow.pop %v3348
        %v3350 = vmul.f32 %v3264, 1.442695
        %v3351 = vpow.pop %v3350
        %v3352 = vmul.f32 %v3265, 1.442695
        %v3353 = vpow.pop %v3352
        %v3354 = vmul.f32 %v3266, 1.442695
        %v3355 = vpow.pop %v3354
        %v3356 = vmul.f32 %v3267, 1.442695
        %v3357 = vpow.pop %v3356
        %v3358 = vmul.f32 %v3268, 1.442695
        %v3359 = vpow.pop %v3358
        %v3360 = vmul.f32 %v3269, 1.442695
        %v3361 = vpow.pop %v3360
        %v3362 = vmul.f32 %v3270, 1.442695
        %v3363 = vpow.pop %v3362
        %v3364 = vmul.f32 %v3271, 1.442695
        %v3365 = vpow.pop %v3364
        %v3366 = vmul.f32 %v3272, 1.442695
        %v3367 = vpow.pop %v3366
        %v3368 = vmul.f32 %v3273, 1.442695
        %v3369 = vpow.pop %v3368
        %v3370 = vmul.f32 %v3274, 1.442695
        %v3371 = vpow.pop %v3370
        %v3372 = vmul.f32 %v3275, 1.442695
        %v3373 = vpow.pop %v3372
        %v3374 = vmul.f32 %v3276, 1.442695
        %v3375 = vpow.pop %v3374
        %v3376 = vmul.f32 %v3277, 1.442695
        %v3377 = vpow.pop %v3376
        %v3378 = vmul.f32 %v3278, 1.442695
        %v3379 = vpow.pop %v3378
        %v3380 = vmul.f32 %v3279, 1.442695
        %v3381 = vpow.pop %v3380
        %v3382 = vmul.f32 %v3280, 1.442695
        %v3383 = vpow.pop %v3382
        %v3384 = vmul.f32 %v3281, 1.442695
        %v3385 = vpow.pop %v3384
        %v3386 = vmul.f32 %v3282, 1.442695
        %v3387 = vpow.pop %v3386
        %v3388 = vmul.f32 %v3283, 1.442695
        %v3389 = vpow.pop %v3388
        %v3390 = vmul.f32 %v3284, 1.442695
        %v3391 = vpow.pop %v3390
        %v3392 = vmul.f32 %v3285, 1.442695
        %v3393 = vpow.pop %v3392
        %v3394 = vmul.f32 %v3286, 1.442695
        %v3395 = vpow.pop %v3394
        %v3396 = vmul.f32 %v3287, 1.442695
        %v3397 = vpow.pop %v3396
        %v3398 = vmul.f32 %v3288, 1.442695
        %v3399 = vpow.pop %v3398
        %v3400 = vmul.f32 %v3289, 1.442695
        %v3401 = vpow.pop %v3400
        %v3402 = vmul.f32 %v3290, 1.442695
        %v3403 = vpow.pop %v3402
        %v3404 = vmul.f32 %v3291, 1.442695
        %v3405 = vpow.pop %v3404
        %v3406 = vmul.f32 %v3292, 1.442695
        %v3407 = vpow.pop %v3406
        %v3408 = vmul.f32 %v3293, 1.442695
        %v3409 = vpow.pop %v3408
        %v3410 = vmul.f32 %v3294, 1.442695
        %v3411 = vpow.pop %v3410
        %v3412 = vmul.f32 %v3295, 1.442695
        %v3413 = vpow.pop %v3412
        %v3414 = vmul.f32 %v3296, 1.442695
        %v3415 = vpow.pop %v3414
        %v3416 = vmul.f32 %v3297, 1.442695
        %v3417 = vpow.pop %v3416
        %v3418 = vmul.f32 %v3298, 1.442695
        %v3419 = vpow.pop %v3418
        %v3420 = vmul.f32 %v3299, 1.442695
        %v3421 = vpow.pop %v3420
        %v3422 = vmul.f32 %v3300, 1.442695
        %v3423 = vpow.pop %v3422
        %v3424 = vmul.f32 %v3301, 1.442695
        %v3425 = vpow.pop %v3424
        %v3426 = vmul.f32 %v3302, 1.442695
        %v3427 = vpow.pop %v3426
        %v3428 = vmul.f32 %v3303, 1.442695
        %v3429 = vpow.pop %v3428
        %v3430 = vmul.f32 %v3304, 1.442695
        %v3431 = vpow.pop %v3430
        %v3432 = vmul.f32 %v3305, 1.442695
        %v3433 = vpow.pop %v3432
        %v3434 = vadd.f32 %v3307, %v3309
        %3435 = vadd.xlane.f32.xlu0 %v3434
        %v3436 = vpop.xlane.xlu0 %3435
        %v3437 = vadd.f32 %v3311, %v3313
        %3438 = vadd.xlane.f32.xlu0 %v3437
        %v3439 = vpop.xlane.xlu0 %3438
        %v3440 = vadd.f32 %v3315, %v3317
        %3441 = vadd.xlane.f32.xlu0 %v3440
        %v3442 = vpop.xlane.xlu0 %3441
        %v3443 = vadd.f32 %v3319, %v3321
        %3444 = vadd.xlane.f32.xlu0 %v3443
        %v3445 = vpop.xlane.xlu0 %3444
        %v3446 = vadd.f32 %v3323, %v3325
        %3447 = vadd.xlane.f32.xlu0 %v3446
        %v3448 = vpop.xlane.xlu0 %3447
        %v3449 = vadd.f32 %v3327, %v3329
        %3450 = vadd.xlane.f32.xlu0 %v3449
        %v3451 = vpop.xlane.xlu0 %3450
        %v3452 = vadd.f32 %v3331, %v3333
        %3453 = vadd.xlane.f32.xlu0 %v3452
        %v3454 = vpop.xlane.xlu0 %3453
        %v3455 = vadd.f32 %v3335, %v3337
        %3456 = vadd.xlane.f32.xlu0 %v3455
        %v3457 = vpop.xlane.xlu0 %3456
        %v3458 = vadd.f32 %v3339, %v3341
        %3459 = vadd.xlane.f32.xlu0 %v3458
        %v3460 = vpop.xlane.xlu0 %3459
        %v3461 = vadd.f32 %v3343, %v3345
        %3462 = vadd.xlane.f32.xlu0 %v3461
        %v3463 = vpop.xlane.xlu0 %3462
        %v3464 = vadd.f32 %v3347, %v3349
        %3465 = vadd.xlane.f32.xlu0 %v3464
        %v3466 = vpop.xlane.xlu0 %3465
        %v3467 = vadd.f32 %v3351, %v3353
        %3468 = vadd.xlane.f32.xlu0 %v3467
        %v3469 = vpop.xlane.xlu0 %3468
        %v3470 = vadd.f32 %v3355, %v3357
        %3471 = vadd.xlane.f32.xlu0 %v3470
        %v3472 = vpop.xlane.xlu0 %3471
        %v3473 = vadd.f32 %v3359, %v3361
        %3474 = vadd.xlane.f32.xlu0 %v3473
        %v3475 = vpop.xlane.xlu0 %3474
        %v3476 = vadd.f32 %v3363, %v3365
        %3477 = vadd.xlane.f32.xlu0 %v3476
        %v3478 = vpop.xlane.xlu0 %3477
        %v3479 = vadd.f32 %v3367, %v3369
        %3480 = vadd.xlane.f32.xlu0 %v3479
        %v3481 = vpop.xlane.xlu0 %3480
        %v3482 = vadd.f32 %v3371, %v3373
        %3483 = vadd.xlane.f32.xlu0 %v3482
        %v3484 = vpop.xlane.xlu0 %3483
        %v3485 = vadd.f32 %v3375, %v3377
        %3486 = vadd.xlane.f32.xlu0 %v3485
        %v3487 = vpop.xlane.xlu0 %3486
        %v3488 = vadd.f32 %v3379, %v3381
        %3489 = vadd.xlane.f32.xlu0 %v3488
        %v3490 = vpop.xlane.xlu0 %3489
        %v3491 = vadd.f32 %v3383, %v3385
        %3492 = vadd.xlane.f32.xlu0 %v3491
        %v3493 = vpop.xlane.xlu0 %3492
        %v3494 = vadd.f32 %v3387, %v3389
        %3495 = vadd.xlane.f32.xlu0 %v3494
        %v3496 = vpop.xlane.xlu0 %3495
        %v3497 = vadd.f32 %v3391, %v3393
        %3498 = vadd.xlane.f32.xlu0 %v3497
        %v3499 = vpop.xlane.xlu0 %3498
        %v3500 = vadd.f32 %v3395, %v3397
        %3501 = vadd.xlane.f32.xlu0 %v3500
        %v3502 = vpop.xlane.xlu0 %3501
        %v3503 = vadd.f32 %v3399, %v3401
        %3504 = vadd.xlane.f32.xlu0 %v3503
        %v3505 = vpop.xlane.xlu0 %3504
        %v3506 = vadd.f32 %v3403, %v3405
        %3507 = vadd.xlane.f32.xlu0 %v3506
        %v3508 = vpop.xlane.xlu0 %3507
        %v3509 = vadd.f32 %v3407, %v3409
        %3510 = vadd.xlane.f32.xlu0 %v3509
        %v3511 = vpop.xlane.xlu0 %3510
        %v3512 = vadd.f32 %v3411, %v3413
        %3513 = vadd.xlane.f32.xlu0 %v3512
        %v3514 = vpop.xlane.xlu0 %3513
        %v3515 = vadd.f32 %v3415, %v3417
        %3516 = vadd.xlane.f32.xlu0 %v3515
        %v3517 = vpop.xlane.xlu0 %3516
        %v3518 = vadd.f32 %v3419, %v3421
        %3519 = vadd.xlane.f32.xlu0 %v3518
        %v3520 = vpop.xlane.xlu0 %3519
        %v3521 = vadd.f32 %v3423, %v3425
        %3522 = vadd.xlane.f32.xlu0 %v3521
        %v3523 = vpop.xlane.xlu0 %3522
        %v3524 = vadd.f32 %v3427, %v3429
        %3525 = vadd.xlane.f32.xlu0 %v3524
        %v3526 = vpop.xlane.xlu0 %3525
        %v3527 = vadd.f32 %v3431, %v3433
        %3528 = vadd.xlane.f32.xlu0 %v3527
        %v3529 = vpop.xlane.xlu0 %3528
        %v3530 = vpack.c.bf16 %v3311, %v3307
        %v3531 = vpack.c.bf16 %v3313, %v3309
        %v3532 = vpack.c.bf16 %v3319, %v3315
        %v3533 = vpack.c.bf16 %v3321, %v3317
        %v3534 = vpack.c.bf16 %v3327, %v3323
        %v3535 = vpack.c.bf16 %v3329, %v3325
        %v3536 = vpack.c.bf16 %v3335, %v3331
        %v3537 = vpack.c.bf16 %v3337, %v3333
        %v3538 = vpack.c.bf16 %v3343, %v3339
        %v3539 = vpack.c.bf16 %v3345, %v3341
        %v3540 = vpack.c.bf16 %v3351, %v3347
        %v3541 = vpack.c.bf16 %v3353, %v3349
        %v3542 = vpack.c.bf16 %v3359, %v3355
        %v3543 = vpack.c.bf16 %v3361, %v3357
        %v3544 = vpack.c.bf16 %v3367, %v3363
        %v3545 = vpack.c.bf16 %v3369, %v3365
        %v3546 = vpack.c.bf16 %v3375, %v3371
        %v3547 = vpack.c.bf16 %v3377, %v3373
        %v3548 = vpack.c.bf16 %v3383, %v3379
        %v3549 = vpack.c.bf16 %v3385, %v3381
        %v3550 = vpack.c.bf16 %v3391, %v3387
        %v3551 = vpack.c.bf16 %v3393, %v3389
        %v3552 = vpack.c.bf16 %v3399, %v3395
        %v3553 = vpack.c.bf16 %v3401, %v3397
        %v3554 = vpack.c.bf16 %v3407, %v3403
        %v3555 = vpack.c.bf16 %v3409, %v3405
        %v3556 = vpack.c.bf16 %v3415, %v3411
        %v3557 = vpack.c.bf16 %v3417, %v3413
        %v3558 = vpack.c.bf16 %v3423, %v3419
        %v3559 = vpack.c.bf16 %v3425, %v3421
        %v3560 = vpack.c.bf16 %v3431, %v3427
        %v3561 = vpack.c.bf16 %v3433, %v3429
        %3578 = vrot.lane.b32.xlu0 %v2578, 96
        %v3579 = vpop.permute.xlu0 %3578
        %3580 = vrot.lane.b32.xlu0 %v2579, 96
        %v3581 = vpop.permute.xlu0 %3580
        %3582 = vrot.lane.b32.xlu0 %v2580, 96
        %v3583 = vpop.permute.xlu0 %3582
        %3584 = vrot.lane.b32.xlu0 %v2581, 96
        %v3585 = vpop.permute.xlu0 %3584
        %3586 = vrot.lane.b32.xlu0 %v2582, 96
        %v3587 = vpop.permute.xlu0 %3586
        %3588 = vrot.lane.b32.xlu0 %v2583, 96
        %v3589 = vpop.permute.xlu0 %3588
        %3590 = vrot.lane.b32.xlu0 %v2584, 96
        %v3591 = vpop.permute.xlu0 %3590
        %3592 = vrot.lane.b32.xlu0 %v2585, 96
        %v3593 = vpop.permute.xlu0 %3592
        %3594 = vrot.lane.b32.xlu0 %v2586, 96
        %v3595 = vpop.permute.xlu0 %3594
        %3596 = vrot.lane.b32.xlu0 %v2587, 96
        %v3597 = vpop.permute.xlu0 %3596
        %3598 = vrot.lane.b32.xlu0 %v2588, 96
        %v3599 = vpop.permute.xlu0 %3598
        %3600 = vrot.lane.b32.xlu0 %v2589, 96
        %v3601 = vpop.permute.xlu0 %3600
        %3602 = vrot.lane.b32.xlu0 %v2590, 96
        %v3603 = vpop.permute.xlu0 %3602
        %3604 = vrot.lane.b32.xlu0 %v2591, 96
        %v3605 = vpop.permute.xlu0 %3604
        %3606 = vrot.lane.b32.xlu0 %v2592, 96
        %v3607 = vpop.permute.xlu0 %3606
        %3608 = vrot.lane.b32.xlu0 %v2593, 96
        %v3609 = vpop.permute.xlu0 %3608
        %3626 = vmatpush.bf16.msra.mxu0 %v3593
        %3627 = vmatpush.bf16.msra.mxu0 %v3591
        %3628 = vmatpush.bf16.msra.mxu0 %v3589
        %3629 = vmatpush.bf16.msra.mxu0 %v3587
        %3630 = vmatpush.bf16.msra.mxu0 %v3585
        %3631 = vmatpush.bf16.msra.mxu0 %v3583
        %3632 = vmatpush.bf16.msra.mxu0 %v3581
        %3633 = vmatpush.bf16.msra.mxu0 %v3579
        %3634 = vmatmul.bf16.gmra.mxu0 %v3530
        %v3635 = vpop.f32.mrf.mxu0
        %v3636 = vadd.f32 0.0, %v3635
        %v3637 = vpop.f32.mrf.mxu0
        %v3638 = vadd.f32 0.0, %v3637
        %3639 = vmatmul.bf16.gmra.mxu0 %v3532
        %v3640 = vpop.f32.mrf.mxu0
        %v3641 = vadd.f32 0.0, %v3640
        %v3642 = vpop.f32.mrf.mxu0
        %v3643 = vadd.f32 0.0, %v3642
        %3644 = vmatmul.bf16.gmra.mxu0 %v3534
        %v3645 = vpop.f32.mrf.mxu0
        %v3646 = vadd.f32 0.0, %v3645
        %v3647 = vpop.f32.mrf.mxu0
        %v3648 = vadd.f32 0.0, %v3647
        %3649 = vmatmul.bf16.gmra.mxu0 %v3536
        %v3650 = vpop.f32.mrf.mxu0
        %v3651 = vadd.f32 0.0, %v3650
        %v3652 = vpop.f32.mrf.mxu0
        %v3653 = vadd.f32 0.0, %v3652
        %3654 = vmatmul.bf16.gmra.mxu0 %v3538
        %v3655 = vpop.f32.mrf.mxu0
        %v3656 = vadd.f32 0.0, %v3655
        %v3657 = vpop.f32.mrf.mxu0
        %v3658 = vadd.f32 0.0, %v3657
        %3659 = vmatmul.bf16.gmra.mxu0 %v3540
        %v3660 = vpop.f32.mrf.mxu0
        %v3661 = vadd.f32 0.0, %v3660
        %v3662 = vpop.f32.mrf.mxu0
        %v3663 = vadd.f32 0.0, %v3662
        %3664 = vmatmul.bf16.gmra.mxu0 %v3542
        %v3665 = vpop.f32.mrf.mxu0
        %v3666 = vadd.f32 0.0, %v3665
        %v3667 = vpop.f32.mrf.mxu0
        %v3668 = vadd.f32 0.0, %v3667
        %3669 = vmatmul.bf16.gmra.mxu0 %v3544
        %v3670 = vpop.f32.mrf.mxu0
        %v3671 = vadd.f32 0.0, %v3670
        %v3672 = vpop.f32.mrf.mxu0
        %v3673 = vadd.f32 0.0, %v3672
        %3674 = vmatmul.bf16.gmra.mxu0 %v3546
        %v3675 = vpop.f32.mrf.mxu0
        %v3676 = vadd.f32 0.0, %v3675
        %v3677 = vpop.f32.mrf.mxu0
        %v3678 = vadd.f32 0.0, %v3677
        %3679 = vmatmul.bf16.gmra.mxu0 %v3548
        %v3680 = vpop.f32.mrf.mxu0
        %v3681 = vadd.f32 0.0, %v3680
        %v3682 = vpop.f32.mrf.mxu0
        %v3683 = vadd.f32 0.0, %v3682
        %3684 = vmatmul.bf16.gmra.mxu0 %v3550
        %v3685 = vpop.f32.mrf.mxu0
        %v3686 = vadd.f32 0.0, %v3685
        %v3687 = vpop.f32.mrf.mxu0
        %v3688 = vadd.f32 0.0, %v3687
        %3689 = vmatmul.bf16.gmra.mxu0 %v3552
        %v3690 = vpop.f32.mrf.mxu0
        %v3691 = vadd.f32 0.0, %v3690
        %v3692 = vpop.f32.mrf.mxu0
        %v3693 = vadd.f32 0.0, %v3692
        %3694 = vmatmul.bf16.gmra.mxu0 %v3554
        %v3695 = vpop.f32.mrf.mxu0
        %v3696 = vadd.f32 0.0, %v3695
        %v3697 = vpop.f32.mrf.mxu0
        %v3698 = vadd.f32 0.0, %v3697
        %3699 = vmatmul.bf16.gmra.mxu0 %v3556
        %v3700 = vpop.f32.mrf.mxu0
        %v3701 = vadd.f32 0.0, %v3700
        %v3702 = vpop.f32.mrf.mxu0
        %v3703 = vadd.f32 0.0, %v3702
        %3704 = vmatmul.bf16.gmra.mxu0 %v3558
        %v3705 = vpop.f32.mrf.mxu0
        %v3706 = vadd.f32 0.0, %v3705
        %v3707 = vpop.f32.mrf.mxu0
        %v3708 = vadd.f32 0.0, %v3707
        %3709 = vmatmul.bf16.gmra.mxu0 %v3560
        %v3710 = vpop.f32.mrf.mxu0
        %v3711 = vadd.f32 0.0, %v3710
        %v3712 = vpop.f32.mrf.mxu0
        %v3713 = vadd.f32 0.0, %v3712
        %3714 = vdwg.mxu0
        %3715 = vmatpush.bf16.msra.mxu0 %v3609
        %3716 = vmatpush.bf16.msra.mxu0 %v3607
        %3717 = vmatpush.bf16.msra.mxu0 %v3605
        %3718 = vmatpush.bf16.msra.mxu0 %v3603
        %3719 = vmatpush.bf16.msra.mxu0 %v3601
        %3720 = vmatpush.bf16.msra.mxu0 %v3599
        %3721 = vmatpush.bf16.msra.mxu0 %v3597
        %3722 = vmatpush.bf16.msra.mxu0 %v3595
        %3723 = vmatmul.bf16.gmra.mxu0 %v3531
        %v3724 = vpop.f32.mrf.mxu0
        %v3725 = vadd.f32 %v3636, %v3724
        %v3726 = vpop.f32.mrf.mxu0
        %v3727 = vadd.f32 %v3638, %v3726
        %3728 = vmatmul.bf16.gmra.mxu0 %v3533
        %v3729 = vpop.f32.mrf.mxu0
        %v3730 = vadd.f32 %v3641, %v3729
        %v3731 = vpop.f32.mrf.mxu0
        %v3732 = vadd.f32 %v3643, %v3731
        %3733 = vmatmul.bf16.gmra.mxu0 %v3535
        %v3734 = vpop.f32.mrf.mxu0
        %v3735 = vadd.f32 %v3646, %v3734
        %v3736 = vpop.f32.mrf.mxu0
        %v3737 = vadd.f32 %v3648, %v3736
        %3738 = vmatmul.bf16.gmra.mxu0 %v3537
        %v3739 = vpop.f32.mrf.mxu0
        %v3740 = vadd.f32 %v3651, %v3739
        %v3741 = vpop.f32.mrf.mxu0
        %v3742 = vadd.f32 %v3653, %v3741
        %3743 = vmatmul.bf16.gmra.mxu0 %v3539
        %v3744 = vpop.f32.mrf.mxu0
        %v3745 = vadd.f32 %v3656, %v3744
        %v3746 = vpop.f32.mrf.mxu0
        %v3747 = vadd.f32 %v3658, %v3746
        %3748 = vmatmul.bf16.gmra.mxu0 %v3541
        %v3749 = vpop.f32.mrf.mxu0
        %v3750 = vadd.f32 %v3661, %v3749
        %v3751 = vpop.f32.mrf.mxu0
        %v3752 = vadd.f32 %v3663, %v3751
        %3753 = vmatmul.bf16.gmra.mxu0 %v3543
        %v3754 = vpop.f32.mrf.mxu0
        %v3755 = vadd.f32 %v3666, %v3754
        %v3756 = vpop.f32.mrf.mxu0
        %v3757 = vadd.f32 %v3668, %v3756
        %3758 = vmatmul.bf16.gmra.mxu0 %v3545
        %v3759 = vpop.f32.mrf.mxu0
        %v3760 = vadd.f32 %v3671, %v3759
        %v3761 = vpop.f32.mrf.mxu0
        %v3762 = vadd.f32 %v3673, %v3761
        %3763 = vmatmul.bf16.gmra.mxu0 %v3547
        %v3764 = vpop.f32.mrf.mxu0
        %v3765 = vadd.f32 %v3676, %v3764
        %v3766 = vpop.f32.mrf.mxu0
        %v3767 = vadd.f32 %v3678, %v3766
        %3768 = vmatmul.bf16.gmra.mxu0 %v3549
        %v3769 = vpop.f32.mrf.mxu0
        %v3770 = vadd.f32 %v3681, %v3769
        %v3771 = vpop.f32.mrf.mxu0
        %v3772 = vadd.f32 %v3683, %v3771
        %3773 = vmatmul.bf16.gmra.mxu0 %v3551
        %v3774 = vpop.f32.mrf.mxu0
        %v3775 = vadd.f32 %v3686, %v3774
        %v3776 = vpop.f32.mrf.mxu0
        %v3777 = vadd.f32 %v3688, %v3776
        %3778 = vmatmul.bf16.gmra.mxu0 %v3553
        %v3779 = vpop.f32.mrf.mxu0
        %v3780 = vadd.f32 %v3691, %v3779
        %v3781 = vpop.f32.mrf.mxu0
        %v3782 = vadd.f32 %v3693, %v3781
        %3783 = vmatmul.bf16.gmra.mxu0 %v3555
        %v3784 = vpop.f32.mrf.mxu0
        %v3785 = vadd.f32 %v3696, %v3784
        %v3786 = vpop.f32.mrf.mxu0
        %v3787 = vadd.f32 %v3698, %v3786
        %3788 = vmatmul.bf16.gmra.mxu0 %v3557
        %v3789 = vpop.f32.mrf.mxu0
        %v3790 = vadd.f32 %v3701, %v3789
        %v3791 = vpop.f32.mrf.mxu0
        %v3792 = vadd.f32 %v3703, %v3791
        %3793 = vmatmul.bf16.gmra.mxu0 %v3559
        %v3794 = vpop.f32.mrf.mxu0
        %v3795 = vadd.f32 %v3706, %v3794
        %v3796 = vpop.f32.mrf.mxu0
        %v3797 = vadd.f32 %v3708, %v3796
        %3798 = vmatmul.bf16.gmra.mxu0 %v3561
        %v3799 = vpop.f32.mrf.mxu0
        %v3800 = vadd.f32 %v3711, %v3799
        %v3801 = vpop.f32.mrf.mxu0
        %v3802 = vadd.f32 %v3713, %v3801
        %3803 = vdwg.mxu0
        %v3804 = vrcp.pop %v3436
        %v3805 = vrcp.pop %v3439
        %v3806 = vrcp.pop %v3442
        %v3807 = vrcp.pop %v3445
        %v3808 = vrcp.pop %v3448
        %v3809 = vrcp.pop %v3451
        %v3810 = vrcp.pop %v3454
        %v3811 = vrcp.pop %v3457
        %v3812 = vrcp.pop %v3460
        %v3813 = vrcp.pop %v3463
        %v3814 = vrcp.pop %v3466
        %v3815 = vrcp.pop %v3469
        %v3816 = vrcp.pop %v3472
        %v3817 = vrcp.pop %v3475
        %v3818 = vrcp.pop %v3478
        %v3819 = vrcp.pop %v3481
        %v3820 = vrcp.pop %v3484
        %v3821 = vrcp.pop %v3487
        %v3822 = vrcp.pop %v3490
        %v3823 = vrcp.pop %v3493
        %v3824 = vrcp.pop %v3496
        %v3825 = vrcp.pop %v3499
        %v3826 = vrcp.pop %v3502
        %v3827 = vrcp.pop %v3505
        %v3828 = vrcp.pop %v3508
        %v3829 = vrcp.pop %v3511
        %v3830 = vrcp.pop %v3514
        %v3831 = vrcp.pop %v3517
        %v3832 = vrcp.pop %v3520
        %v3833 = vrcp.pop %v3523
        %v3834 = vrcp.pop %v3526
        %v3835 = vrcp.pop %v3529
        %v3836 = vmul.f32 %v3725, %v3804
        %v3837 = vmul.f32 %v3727, %v3805
        %v3838 = vmul.f32 %v3730, %v3806
        %v3839 = vmul.f32 %v3732, %v3807
        %v3840 = vmul.f32 %v3735, %v3808
        %v3841 = vmul.f32 %v3737, %v3809
        %v3842 = vmul.f32 %v3740, %v3810
        %v3843 = vmul.f32 %v3742, %v3811
        %v3844 = vmul.f32 %v3745, %v3812
        %v3845 = vmul.f32 %v3747, %v3813
        %v3846 = vmul.f32 %v3750, %v3814
        %v3847 = vmul.f32 %v3752, %v3815
        %v3848 = vmul.f32 %v3755, %v3816
        %v3849 = vmul.f32 %v3757, %v3817
        %v3850 = vmul.f32 %v3760, %v3818
        %v3851 = vmul.f32 %v3762, %v3819
        %v3852 = vmul.f32 %v3765, %v3820
        %v3853 = vmul.f32 %v3767, %v3821
        %v3854 = vmul.f32 %v3770, %v3822
        %v3855 = vmul.f32 %v3772, %v3823
        %v3856 = vmul.f32 %v3775, %v3824
        %v3857 = vmul.f32 %v3777, %v3825
        %v3858 = vmul.f32 %v3780, %v3826
        %v3859 = vmul.f32 %v3782, %v3827
        %v3860 = vmul.f32 %v3785, %v3828
        %v3861 = vmul.f32 %v3787, %v3829
        %v3862 = vmul.f32 %v3790, %v3830
        %v3863 = vmul.f32 %v3792, %v3831
        %v3864 = vmul.f32 %v3795, %v3832
        %v3865 = vmul.f32 %v3797, %v3833
        %v3866 = vmul.f32 %v3800, %v3834
        %v3867 = vmul.f32 %v3802, %v3835
        %v3868 = vpack.c.bf16 %v3837, %v3836
        %v3869 = vpack.c.bf16 %v3839, %v3838
        %v3870 = vpack.c.bf16 %v3841, %v3840
        %v3871 = vpack.c.bf16 %v3843, %v3842
        %v3872 = vpack.c.bf16 %v3845, %v3844
        %v3873 = vpack.c.bf16 %v3847, %v3846
        %v3874 = vpack.c.bf16 %v3849, %v3848
        %v3875 = vpack.c.bf16 %v3851, %v3850
        %v3876 = vpack.c.bf16 %v3853, %v3852
        %v3877 = vpack.c.bf16 %v3855, %v3854
        %v3878 = vpack.c.bf16 %v3857, %v3856
        %v3879 = vpack.c.bf16 %v3859, %v3858
        %v3880 = vpack.c.bf16 %v3861, %v3860
        %v3881 = vpack.c.bf16 %v3863, %v3862
        %v3882 = vpack.c.bf16 %v3865, %v3864
        %v3883 = vpack.c.bf16 %v3867, %v3866
        %v3888 = vunpack.c.l.b16 %v1887
        %v3889 = vunpack.c.l.b16 %v1888
        %v3890 = vunpack.c.l.b16 %v1889
        %v3891 = vunpack.c.l.b16 %v1890
        %v3892 = vpack.c.b16 %v3889, %v3888
        %v3893 = vpack.c.b16 %v3891, %v3890
        %v3897 = vsel %vm1935, %v3868, 0
        %v3900 = vsel %vm1935, %v3869, 0
        %v3903 = vsel %vm1935, %v3870, 0
        %v3906 = vsel %vm1935, %v3871, 0
        %v3909 = vsel %vm1935, %v3872, 0
        %v3912 = vsel %vm1935, %v3873, 0
        %v3915 = vsel %vm1935, %v3874, 0
        %v3918 = vsel %vm1935, %v3875, 0
        %v3921 = vsel %vm1935, %v3876, 0
        %v3924 = vsel %vm1935, %v3877, 0
        %v3927 = vsel %vm1935, %v3878, 0
        %v3930 = vsel %vm1935, %v3879, 0
        %v3933 = vsel %vm1935, %v3880, 0
        %v3936 = vsel %vm1935, %v3881, 0
        %v3939 = vsel %vm1935, %v3882, 0
        %v3942 = vsel %vm1935, %v3883, 0
        %3944 = vmatpush.bf16.msra.mxu0 0
        %3945 = vmatpush.bf16.msra.mxu0 0
        %3946 = vmatpush.bf16.msra.mxu0 0
        %3947 = vmatpush.bf16.msra.mxu0 0
        %3948 = vmatpush.bf16.msra.mxu0 0
        %3949 = vmatpush.bf16.msra.mxu0 0
        %3950 = vmatpush.bf16.msra.mxu0 %v3893
        %3951 = vmatpush.bf16.msra.mxu0 %v3892
        %3952 = vmatmul.bf16.gmra.mxu0 %v3897
        %v3953 = vpop.f32.mrf.mxu0
        %v3954 = vadd.f32 0.0, %v3953
        %v3955 = vpop.f32.mrf.mxu0
        %v3956 = vadd.f32 0.0, %v3955
        %3957 = vmatmul.bf16.gmra.mxu0 %v3900
        %v3958 = vpop.f32.mrf.mxu0
        %v3959 = vadd.f32 0.0, %v3958
        %v3960 = vpop.f32.mrf.mxu0
        %v3961 = vadd.f32 0.0, %v3960
        %3962 = vmatmul.bf16.gmra.mxu0 %v3903
        %v3963 = vpop.f32.mrf.mxu0
        %v3964 = vadd.f32 0.0, %v3963
        %v3965 = vpop.f32.mrf.mxu0
        %v3966 = vadd.f32 0.0, %v3965
        %3967 = vmatmul.bf16.gmra.mxu0 %v3906
        %v3968 = vpop.f32.mrf.mxu0
        %v3969 = vadd.f32 0.0, %v3968
        %v3970 = vpop.f32.mrf.mxu0
        %v3971 = vadd.f32 0.0, %v3970
        %3972 = vmatmul.bf16.gmra.mxu0 %v3909
        %v3973 = vpop.f32.mrf.mxu0
        %v3974 = vadd.f32 0.0, %v3973
        %v3975 = vpop.f32.mrf.mxu0
        %v3976 = vadd.f32 0.0, %v3975
        %3977 = vmatmul.bf16.gmra.mxu0 %v3912
        %v3978 = vpop.f32.mrf.mxu0
        %v3979 = vadd.f32 0.0, %v3978
        %v3980 = vpop.f32.mrf.mxu0
        %v3981 = vadd.f32 0.0, %v3980
        %3982 = vmatmul.bf16.gmra.mxu0 %v3915
        %v3983 = vpop.f32.mrf.mxu0
        %v3984 = vadd.f32 0.0, %v3983
        %v3985 = vpop.f32.mrf.mxu0
        %v3986 = vadd.f32 0.0, %v3985
        %3987 = vmatmul.bf16.gmra.mxu0 %v3918
        %v3988 = vpop.f32.mrf.mxu0
        %v3989 = vadd.f32 0.0, %v3988
        %v3990 = vpop.f32.mrf.mxu0
        %v3991 = vadd.f32 0.0, %v3990
        %3992 = vmatmul.bf16.gmra.mxu0 %v3921
        %v3993 = vpop.f32.mrf.mxu0
        %v3994 = vadd.f32 0.0, %v3993
        %v3995 = vpop.f32.mrf.mxu0
        %v3996 = vadd.f32 0.0, %v3995
        %3997 = vmatmul.bf16.gmra.mxu0 %v3924
        %v3998 = vpop.f32.mrf.mxu0
        %v3999 = vadd.f32 0.0, %v3998
        %v4000 = vpop.f32.mrf.mxu0
        %v4001 = vadd.f32 0.0, %v4000
        %4002 = vmatmul.bf16.gmra.mxu0 %v3927
        %v4003 = vpop.f32.mrf.mxu0
        %v4004 = vadd.f32 0.0, %v4003
        %v4005 = vpop.f32.mrf.mxu0
        %v4006 = vadd.f32 0.0, %v4005
        %4007 = vmatmul.bf16.gmra.mxu0 %v3930
        %v4008 = vpop.f32.mrf.mxu0
        %v4009 = vadd.f32 0.0, %v4008
        %v4010 = vpop.f32.mrf.mxu0
        %v4011 = vadd.f32 0.0, %v4010
        %4012 = vmatmul.bf16.gmra.mxu0 %v3933
        %v4013 = vpop.f32.mrf.mxu0
        %v4014 = vadd.f32 0.0, %v4013
        %v4015 = vpop.f32.mrf.mxu0
        %v4016 = vadd.f32 0.0, %v4015
        %4017 = vmatmul.bf16.gmra.mxu0 %v3936
        %v4018 = vpop.f32.mrf.mxu0
        %v4019 = vadd.f32 0.0, %v4018
        %v4020 = vpop.f32.mrf.mxu0
        %v4021 = vadd.f32 0.0, %v4020
        %4022 = vmatmul.bf16.gmra.mxu0 %v3939
        %v4023 = vpop.f32.mrf.mxu0
        %v4024 = vadd.f32 0.0, %v4023
        %v4025 = vpop.f32.mrf.mxu0
        %v4026 = vadd.f32 0.0, %v4025
        %4027 = vmatmul.bf16.gmra.mxu0 %v3942
        %v4028 = vpop.f32.mrf.mxu0
        %v4029 = vadd.f32 0.0, %v4028
        %v4030 = vpop.f32.mrf.mxu0
        %v4031 = vadd.f32 0.0, %v4030
        %4032 = vdwg.mxu0
        %v4037 = vunpack.c.l.b16 %v1883
        %v4038 = vunpack.c.l.b16 %v1884
        %v4039 = vunpack.c.l.b16 %v1885
        %v4040 = vunpack.c.l.b16 %v1886
        %v4041 = vpack.c.b16 %v4038, %v4037
        %v4042 = vpack.c.b16 %v4040, %v4039
        %v4046 = vsel %vm1935, %v2836, 0
        %v4049 = vsel %vm1935, %v2837, 0
        %v4052 = vsel %vm1935, %v2838, 0
        %v4055 = vsel %vm1935, %v2839, 0
        %v4058 = vsel %vm1935, %v2840, 0
        %v4061 = vsel %vm1935, %v2841, 0
        %v4064 = vsel %vm1935, %v2842, 0
        %v4067 = vsel %vm1935, %v2843, 0
        %v4070 = vsel %vm1935, %v2844, 0
        %v4073 = vsel %vm1935, %v2845, 0
        %v4076 = vsel %vm1935, %v2846, 0
        %v4079 = vsel %vm1935, %v2847, 0
        %v4082 = vsel %vm1935, %v2848, 0
        %v4085 = vsel %vm1935, %v2849, 0
        %v4088 = vsel %vm1935, %v2850, 0
        %v4091 = vsel %vm1935, %v2851, 0
        %4093 = vmatpush.bf16.msra.mxu0 0
        %4094 = vmatpush.bf16.msra.mxu0 0
        %4095 = vmatpush.bf16.msra.mxu0 0
        %4096 = vmatpush.bf16.msra.mxu0 0
        %4097 = vmatpush.bf16.msra.mxu0 0
        %4098 = vmatpush.bf16.msra.mxu0 0
        %4099 = vmatpush.bf16.msra.mxu0 %v4042
        %4100 = vmatpush.bf16.msra.mxu0 %v4041
        %4101 = vmatmul.bf16.gmra.mxu0 %v4046
        %v4102 = vpop.f32.mrf.mxu0
        %v4103 = vadd.f32 %v3954, %v4102
        %v4104 = vpop.f32.mrf.mxu0
        %v4105 = vadd.f32 %v3956, %v4104
        %4106 = vmatmul.bf16.gmra.mxu0 %v4049
        %v4107 = vpop.f32.mrf.mxu0
        %v4108 = vadd.f32 %v3959, %v4107
        %v4109 = vpop.f32.mrf.mxu0
        %v4110 = vadd.f32 %v3961, %v4109
        %4111 = vmatmul.bf16.gmra.mxu0 %v4052
        %v4112 = vpop.f32.mrf.mxu0
        %v4113 = vadd.f32 %v3964, %v4112
        %v4114 = vpop.f32.mrf.mxu0
        %v4115 = vadd.f32 %v3966, %v4114
        %4116 = vmatmul.bf16.gmra.mxu0 %v4055
        %v4117 = vpop.f32.mrf.mxu0
        %v4118 = vadd.f32 %v3969, %v4117
        %v4119 = vpop.f32.mrf.mxu0
        %v4120 = vadd.f32 %v3971, %v4119
        %4121 = vmatmul.bf16.gmra.mxu0 %v4058
        %v4122 = vpop.f32.mrf.mxu0
        %v4123 = vadd.f32 %v3974, %v4122
        %v4124 = vpop.f32.mrf.mxu0
        %v4125 = vadd.f32 %v3976, %v4124
        %4126 = vmatmul.bf16.gmra.mxu0 %v4061
        %v4127 = vpop.f32.mrf.mxu0
        %v4128 = vadd.f32 %v3979, %v4127
        %v4129 = vpop.f32.mrf.mxu0
        %v4130 = vadd.f32 %v3981, %v4129
        %4131 = vmatmul.bf16.gmra.mxu0 %v4064
        %v4132 = vpop.f32.mrf.mxu0
        %v4133 = vadd.f32 %v3984, %v4132
        %v4134 = vpop.f32.mrf.mxu0
        %v4135 = vadd.f32 %v3986, %v4134
        %4136 = vmatmul.bf16.gmra.mxu0 %v4067
        %v4137 = vpop.f32.mrf.mxu0
        %v4138 = vadd.f32 %v3989, %v4137
        %v4139 = vpop.f32.mrf.mxu0
        %v4140 = vadd.f32 %v3991, %v4139
        %4141 = vmatmul.bf16.gmra.mxu0 %v4070
        %v4142 = vpop.f32.mrf.mxu0
        %v4143 = vadd.f32 %v3994, %v4142
        %v4144 = vpop.f32.mrf.mxu0
        %v4145 = vadd.f32 %v3996, %v4144
        %4146 = vmatmul.bf16.gmra.mxu0 %v4073
        %v4147 = vpop.f32.mrf.mxu0
        %v4148 = vadd.f32 %v3999, %v4147
        %v4149 = vpop.f32.mrf.mxu0
        %v4150 = vadd.f32 %v4001, %v4149
        %4151 = vmatmul.bf16.gmra.mxu0 %v4076
        %v4152 = vpop.f32.mrf.mxu0
        %v4153 = vadd.f32 %v4004, %v4152
        %v4154 = vpop.f32.mrf.mxu0
        %v4155 = vadd.f32 %v4006, %v4154
        %4156 = vmatmul.bf16.gmra.mxu0 %v4079
        %v4157 = vpop.f32.mrf.mxu0
        %v4158 = vadd.f32 %v4009, %v4157
        %v4159 = vpop.f32.mrf.mxu0
        %v4160 = vadd.f32 %v4011, %v4159
        %4161 = vmatmul.bf16.gmra.mxu0 %v4082
        %v4162 = vpop.f32.mrf.mxu0
        %v4163 = vadd.f32 %v4014, %v4162
        %v4164 = vpop.f32.mrf.mxu0
        %v4165 = vadd.f32 %v4016, %v4164
        %4166 = vmatmul.bf16.gmra.mxu0 %v4085
        %v4167 = vpop.f32.mrf.mxu0
        %v4168 = vadd.f32 %v4019, %v4167
        %v4169 = vpop.f32.mrf.mxu0
        %v4170 = vadd.f32 %v4021, %v4169
        %4171 = vmatmul.bf16.gmra.mxu0 %v4088
        %v4172 = vpop.f32.mrf.mxu0
        %v4173 = vadd.f32 %v4024, %v4172
        %v4174 = vpop.f32.mrf.mxu0
        %v4175 = vadd.f32 %v4026, %v4174
        %4176 = vmatmul.bf16.gmra.mxu0 %v4091
        %v4177 = vpop.f32.mrf.mxu0
        %v4178 = vadd.f32 %v4029, %v4177
        %v4179 = vpop.f32.mrf.mxu0
        %v4180 = vadd.f32 %v4031, %v4179
        %4181 = vdwg.mxu0
        %4182 = vrot.lane.b32.xlu0 %v1899, 64
        %v4183 = vpop.permute.xlu0 %4182
        %4184 = vrot.lane.b32.xlu0 %v1900, 64
        %v4185 = vpop.permute.xlu0 %4184
        %4186 = vrot.lane.b32.xlu0 %v1901, 64
        %v4187 = vpop.permute.xlu0 %4186
        %4188 = vrot.lane.b32.xlu0 %v1902, 64
        %v4189 = vpop.permute.xlu0 %4188
        %4190 = vrot.lane.b32.xlu0 %v1903, 64
        %v4191 = vpop.permute.xlu0 %4190
        %4192 = vrot.lane.b32.xlu0 %v1904, 64
        %v4193 = vpop.permute.xlu0 %4192
        %4194 = vrot.lane.b32.xlu0 %v1905, 64
        %v4195 = vpop.permute.xlu0 %4194
        %4196 = vrot.lane.b32.xlu0 %v1906, 64
        %v4197 = vpop.permute.xlu0 %4196
        %4198 = vrot.lane.b32.xlu0 %v1907, 64
        %v4199 = vpop.permute.xlu0 %4198
        %4200 = vrot.lane.b32.xlu0 %v1908, 64
        %v4201 = vpop.permute.xlu0 %4200
        %4202 = vrot.lane.b32.xlu0 %v1909, 64
        %v4203 = vpop.permute.xlu0 %4202
        %4204 = vrot.lane.b32.xlu0 %v1910, 64
        %v4205 = vpop.permute.xlu0 %4204
        %4206 = vrot.lane.b32.xlu0 %v1911, 64
        %v4207 = vpop.permute.xlu0 %4206
        %4208 = vrot.lane.b32.xlu0 %v1912, 64
        %v4209 = vpop.permute.xlu0 %4208
        %4210 = vrot.lane.b32.xlu0 %v1913, 64
        %v4211 = vpop.permute.xlu0 %4210
        %4212 = vrot.lane.b32.xlu0 %v1914, 64
        %v4213 = vpop.permute.xlu0 %4212
        %v4218 = vunpack.c.l.b16 %v1875
        %v4219 = vunpack.c.h.b16 %v1875
        %v4220 = vunpack.c.l.b16 %v1876
        %v4221 = vunpack.c.h.b16 %v1876
        %v4222 = vunpack.c.l.b16 %v1877
        %v4223 = vunpack.c.h.b16 %v1877
        %v4224 = vunpack.c.l.b16 %v1878
        %v4225 = vunpack.c.h.b16 %v1878
        %v4226 = vpack.c.b16 %v4220, %v4218
        %v4227 = vpack.c.b16 %v4221, %v4219
        %v4228 = vpack.c.b16 %v4224, %v4222
        %v4229 = vpack.c.b16 %v4225, %v4223
        %v4235 = vsel %vm1935, %v4183, 0
        %v4238 = vsel %vm1935, %v4185, 0
        %v4241 = vsel %vm1935, %v4187, 0
        %v4244 = vsel %vm1935, %v4189, 0
        %v4247 = vsel %vm1935, %v4191, 0
        %v4250 = vsel %vm1935, %v4193, 0
        %v4253 = vsel %vm1935, %v4195, 0
        %v4256 = vsel %vm1935, %v4197, 0
        %v4259 = vsel %vm1935, %v4199, 0
        %v4262 = vsel %vm1935, %v4201, 0
        %v4265 = vsel %vm1935, %v4203, 0
        %v4268 = vsel %vm1935, %v4205, 0
        %v4271 = vsel %vm1935, %v4207, 0
        %v4274 = vsel %vm1935, %v4209, 0
        %v4277 = vsel %vm1935, %v4211, 0
        %v4280 = vsel %vm1935, %v4213, 0
        %4282 = vmatpush.bf16.msra.mxu0 0
        %4283 = vmatpush.bf16.msra.mxu0 0
        %4284 = vmatpush.bf16.msra.mxu0 0
        %4285 = vmatpush.bf16.msra.mxu0 0
        %4286 = vmatpush.bf16.msra.mxu0 0
        %4287 = vmatpush.bf16.msra.mxu0 0
        %4288 = vmatpush.bf16.msra.mxu0 %v4228
        %4289 = vmatpush.bf16.msra.mxu0 %v4226
        %4290 = vmatmul.bf16.gmra.mxu0 %v4235
        %v4291 = vpop.f32.mrf.mxu0
        %v4292 = vadd.f32 0.0, %v4291
        %v4293 = vpop.f32.mrf.mxu0
        %v4294 = vadd.f32 0.0, %v4293
        %4295 = vmatmul.bf16.gmra.mxu0 %v4238
        %v4296 = vpop.f32.mrf.mxu0
        %v4297 = vadd.f32 0.0, %v4296
        %v4298 = vpop.f32.mrf.mxu0
        %v4299 = vadd.f32 0.0, %v4298
        %4300 = vmatmul.bf16.gmra.mxu0 %v4241
        %v4301 = vpop.f32.mrf.mxu0
        %v4302 = vadd.f32 0.0, %v4301
        %v4303 = vpop.f32.mrf.mxu0
        %v4304 = vadd.f32 0.0, %v4303
        %4305 = vmatmul.bf16.gmra.mxu0 %v4244
        %v4306 = vpop.f32.mrf.mxu0
        %v4307 = vadd.f32 0.0, %v4306
        %v4308 = vpop.f32.mrf.mxu0
        %v4309 = vadd.f32 0.0, %v4308
        %4310 = vmatmul.bf16.gmra.mxu0 %v4247
        %v4311 = vpop.f32.mrf.mxu0
        %v4312 = vadd.f32 0.0, %v4311
        %v4313 = vpop.f32.mrf.mxu0
        %v4314 = vadd.f32 0.0, %v4313
        %4315 = vmatmul.bf16.gmra.mxu0 %v4250
        %v4316 = vpop.f32.mrf.mxu0
        %v4317 = vadd.f32 0.0, %v4316
        %v4318 = vpop.f32.mrf.mxu0
        %v4319 = vadd.f32 0.0, %v4318
        %4320 = vmatmul.bf16.gmra.mxu0 %v4253
        %v4321 = vpop.f32.mrf.mxu0
        %v4322 = vadd.f32 0.0, %v4321
        %v4323 = vpop.f32.mrf.mxu0
        %v4324 = vadd.f32 0.0, %v4323
        %4325 = vmatmul.bf16.gmra.mxu0 %v4256
        %v4326 = vpop.f32.mrf.mxu0
        %v4327 = vadd.f32 0.0, %v4326
        %v4328 = vpop.f32.mrf.mxu0
        %v4329 = vadd.f32 0.0, %v4328
        %4330 = vmatmul.bf16.gmra.mxu0 %v4259
        %v4331 = vpop.f32.mrf.mxu0
        %v4332 = vadd.f32 0.0, %v4331
        %v4333 = vpop.f32.mrf.mxu0
        %v4334 = vadd.f32 0.0, %v4333
        %4335 = vmatmul.bf16.gmra.mxu0 %v4262
        %v4336 = vpop.f32.mrf.mxu0
        %v4337 = vadd.f32 0.0, %v4336
        %v4338 = vpop.f32.mrf.mxu0
        %v4339 = vadd.f32 0.0, %v4338
        %4340 = vmatmul.bf16.gmra.mxu0 %v4265
        %v4341 = vpop.f32.mrf.mxu0
        %v4342 = vadd.f32 0.0, %v4341
        %v4343 = vpop.f32.mrf.mxu0
        %v4344 = vadd.f32 0.0, %v4343
        %4345 = vmatmul.bf16.gmra.mxu0 %v4268
        %v4346 = vpop.f32.mrf.mxu0
        %v4347 = vadd.f32 0.0, %v4346
        %v4348 = vpop.f32.mrf.mxu0
        %v4349 = vadd.f32 0.0, %v4348
        %4350 = vmatmul.bf16.gmra.mxu0 %v4271
        %v4351 = vpop.f32.mrf.mxu0
        %v4352 = vadd.f32 0.0, %v4351
        %v4353 = vpop.f32.mrf.mxu0
        %v4354 = vadd.f32 0.0, %v4353
        %4355 = vmatmul.bf16.gmra.mxu0 %v4274
        %v4356 = vpop.f32.mrf.mxu0
        %v4357 = vadd.f32 0.0, %v4356
        %v4358 = vpop.f32.mrf.mxu0
        %v4359 = vadd.f32 0.0, %v4358
        %4360 = vmatmul.bf16.gmra.mxu0 %v4277
        %v4361 = vpop.f32.mrf.mxu0
        %v4362 = vadd.f32 0.0, %v4361
        %v4363 = vpop.f32.mrf.mxu0
        %v4364 = vadd.f32 0.0, %v4363
        %4365 = vmatmul.bf16.gmra.mxu0 %v4280
        %v4366 = vpop.f32.mrf.mxu0
        %v4367 = vadd.f32 0.0, %v4366
        %v4368 = vpop.f32.mrf.mxu0
        %v4369 = vadd.f32 0.0, %v4368
        %4370 = vdwg.mxu0
        %4371 = vmatpush.bf16.msra.mxu0 0
        %4372 = vmatpush.bf16.msra.mxu0 0
        %4373 = vmatpush.bf16.msra.mxu0 0
        %4374 = vmatpush.bf16.msra.mxu0 0
        %4375 = vmatpush.bf16.msra.mxu0 0
        %4376 = vmatpush.bf16.msra.mxu0 0
        %4377 = vmatpush.bf16.msra.mxu0 %v4229
        %4378 = vmatpush.bf16.msra.mxu0 %v4227
        %4379 = vmatmul.bf16.gmra.mxu0 %v4235
        %v4380 = vpop.f32.mrf.mxu0
        %v4381 = vadd.f32 0.0, %v4380
        %v4382 = vpop.f32.mrf.mxu0
        %v4383 = vadd.f32 0.0, %v4382
        %4384 = vmatmul.bf16.gmra.mxu0 %v4238
        %v4385 = vpop.f32.mrf.mxu0
        %v4386 = vadd.f32 0.0, %v4385
        %v4387 = vpop.f32.mrf.mxu0
        %v4388 = vadd.f32 0.0, %v4387
        %4389 = vmatmul.bf16.gmra.mxu0 %v4241
        %v4390 = vpop.f32.mrf.mxu0
        %v4391 = vadd.f32 0.0, %v4390
        %v4392 = vpop.f32.mrf.mxu0
        %v4393 = vadd.f32 0.0, %v4392
        %4394 = vmatmul.bf16.gmra.mxu0 %v4244
        %v4395 = vpop.f32.mrf.mxu0
        %v4396 = vadd.f32 0.0, %v4395
        %v4397 = vpop.f32.mrf.mxu0
        %v4398 = vadd.f32 0.0, %v4397
        %4399 = vmatmul.bf16.gmra.mxu0 %v4247
        %v4400 = vpop.f32.mrf.mxu0
        %v4401 = vadd.f32 0.0, %v4400
        %v4402 = vpop.f32.mrf.mxu0
        %v4403 = vadd.f32 0.0, %v4402
        %4404 = vmatmul.bf16.gmra.mxu0 %v4250
        %v4405 = vpop.f32.mrf.mxu0
        %v4406 = vadd.f32 0.0, %v4405
        %v4407 = vpop.f32.mrf.mxu0
        %v4408 = vadd.f32 0.0, %v4407
        %4409 = vmatmul.bf16.gmra.mxu0 %v4253
        %v4410 = vpop.f32.mrf.mxu0
        %v4411 = vadd.f32 0.0, %v4410
        %v4412 = vpop.f32.mrf.mxu0
        %v4413 = vadd.f32 0.0, %v4412
        %4414 = vmatmul.bf16.gmra.mxu0 %v4256
        %v4415 = vpop.f32.mrf.mxu0
        %v4416 = vadd.f32 0.0, %v4415
        %v4417 = vpop.f32.mrf.mxu0
        %v4418 = vadd.f32 0.0, %v4417
        %4419 = vmatmul.bf16.gmra.mxu0 %v4259
        %v4420 = vpop.f32.mrf.mxu0
        %v4421 = vadd.f32 0.0, %v4420
        %v4422 = vpop.f32.mrf.mxu0
        %v4423 = vadd.f32 0.0, %v4422
        %4424 = vmatmul.bf16.gmra.mxu0 %v4262
        %v4425 = vpop.f32.mrf.mxu0
        %v4426 = vadd.f32 0.0, %v4425
        %v4427 = vpop.f32.mrf.mxu0
        %v4428 = vadd.f32 0.0, %v4427
        %4429 = vmatmul.bf16.gmra.mxu0 %v4265
        %v4430 = vpop.f32.mrf.mxu0
        %v4431 = vadd.f32 0.0, %v4430
        %v4432 = vpop.f32.mrf.mxu0
        %v4433 = vadd.f32 0.0, %v4432
        %4434 = vmatmul.bf16.gmra.mxu0 %v4268
        %v4435 = vpop.f32.mrf.mxu0
        %v4436 = vadd.f32 0.0, %v4435
        %v4437 = vpop.f32.mrf.mxu0
        %v4438 = vadd.f32 0.0, %v4437
        %4439 = vmatmul.bf16.gmra.mxu0 %v4271
        %v4440 = vpop.f32.mrf.mxu0
        %v4441 = vadd.f32 0.0, %v4440
        %v4442 = vpop.f32.mrf.mxu0
        %v4443 = vadd.f32 0.0, %v4442
        %4444 = vmatmul.bf16.gmra.mxu0 %v4274
        %v4445 = vpop.f32.mrf.mxu0
        %v4446 = vadd.f32 0.0, %v4445
        %v4447 = vpop.f32.mrf.mxu0
        %v4448 = vadd.f32 0.0, %v4447
        %4449 = vmatmul.bf16.gmra.mxu0 %v4277
        %v4450 = vpop.f32.mrf.mxu0
        %v4451 = vadd.f32 0.0, %v4450
        %v4452 = vpop.f32.mrf.mxu0
        %v4453 = vadd.f32 0.0, %v4452
        %4454 = vmatmul.bf16.gmra.mxu0 %v4280
        %v4455 = vpop.f32.mrf.mxu0
        %v4456 = vadd.f32 0.0, %v4455
        %v4457 = vpop.f32.mrf.mxu0
        %v4458 = vadd.f32 0.0, %v4457
        %4459 = vdwg.mxu0
        %v4460 = vmax.f32 %v4292, %v4381
        %4461 = vmax.xlane.f32.xlu0 %v4460
        %v4462 = vpop.xlane.xlu0 %4461
        %v4463 = vmax.f32 %v4294, %v4383
        %4464 = vmax.xlane.f32.xlu0 %v4463
        %v4465 = vpop.xlane.xlu0 %4464
        %v4466 = vmax.f32 %v4297, %v4386
        %4467 = vmax.xlane.f32.xlu0 %v4466
        %v4468 = vpop.xlane.xlu0 %4467
        %v4469 = vmax.f32 %v4299, %v4388
        %4470 = vmax.xlane.f32.xlu0 %v4469
        %v4471 = vpop.xlane.xlu0 %4470
        %v4472 = vmax.f32 %v4302, %v4391
        %4473 = vmax.xlane.f32.xlu0 %v4472
        %v4474 = vpop.xlane.xlu0 %4473
        %v4475 = vmax.f32 %v4304, %v4393
        %4476 = vmax.xlane.f32.xlu0 %v4475
        %v4477 = vpop.xlane.xlu0 %4476
        %v4478 = vmax.f32 %v4307, %v4396
        %4479 = vmax.xlane.f32.xlu0 %v4478
        %v4480 = vpop.xlane.xlu0 %4479
        %v4481 = vmax.f32 %v4309, %v4398
        %4482 = vmax.xlane.f32.xlu0 %v4481
        %v4483 = vpop.xlane.xlu0 %4482
        %v4484 = vmax.f32 %v4312, %v4401
        %4485 = vmax.xlane.f32.xlu0 %v4484
        %v4486 = vpop.xlane.xlu0 %4485
        %v4487 = vmax.f32 %v4314, %v4403
        %4488 = vmax.xlane.f32.xlu0 %v4487
        %v4489 = vpop.xlane.xlu0 %4488
        %v4490 = vmax.f32 %v4317, %v4406
        %4491 = vmax.xlane.f32.xlu0 %v4490
        %v4492 = vpop.xlane.xlu0 %4491
        %v4493 = vmax.f32 %v4319, %v4408
        %4494 = vmax.xlane.f32.xlu0 %v4493
        %v4495 = vpop.xlane.xlu0 %4494
        %v4496 = vmax.f32 %v4322, %v4411
        %4497 = vmax.xlane.f32.xlu0 %v4496
        %v4498 = vpop.xlane.xlu0 %4497
        %v4499 = vmax.f32 %v4324, %v4413
        %4500 = vmax.xlane.f32.xlu0 %v4499
        %v4501 = vpop.xlane.xlu0 %4500
        %v4502 = vmax.f32 %v4327, %v4416
        %4503 = vmax.xlane.f32.xlu0 %v4502
        %v4504 = vpop.xlane.xlu0 %4503
        %v4505 = vmax.f32 %v4329, %v4418
        %4506 = vmax.xlane.f32.xlu0 %v4505
        %v4507 = vpop.xlane.xlu0 %4506
        %v4508 = vmax.f32 %v4332, %v4421
        %4509 = vmax.xlane.f32.xlu0 %v4508
        %v4510 = vpop.xlane.xlu0 %4509
        %v4511 = vmax.f32 %v4334, %v4423
        %4512 = vmax.xlane.f32.xlu0 %v4511
        %v4513 = vpop.xlane.xlu0 %4512
        %v4514 = vmax.f32 %v4337, %v4426
        %4515 = vmax.xlane.f32.xlu0 %v4514
        %v4516 = vpop.xlane.xlu0 %4515
        %v4517 = vmax.f32 %v4339, %v4428
        %4518 = vmax.xlane.f32.xlu0 %v4517
        %v4519 = vpop.xlane.xlu0 %4518
        %v4520 = vmax.f32 %v4342, %v4431
        %4521 = vmax.xlane.f32.xlu0 %v4520
        %v4522 = vpop.xlane.xlu0 %4521
        %v4523 = vmax.f32 %v4344, %v4433
        %4524 = vmax.xlane.f32.xlu0 %v4523
        %v4525 = vpop.xlane.xlu0 %4524
        %v4526 = vmax.f32 %v4347, %v4436
        %4527 = vmax.xlane.f32.xlu0 %v4526
        %v4528 = vpop.xlane.xlu0 %4527
        %v4529 = vmax.f32 %v4349, %v4438
        %4530 = vmax.xlane.f32.xlu0 %v4529
        %v4531 = vpop.xlane.xlu0 %4530
        %v4532 = vmax.f32 %v4352, %v4441
        %4533 = vmax.xlane.f32.xlu0 %v4532
        %v4534 = vpop.xlane.xlu0 %4533
        %v4535 = vmax.f32 %v4354, %v4443
        %4536 = vmax.xlane.f32.xlu0 %v4535
        %v4537 = vpop.xlane.xlu0 %4536
        %v4538 = vmax.f32 %v4357, %v4446
        %4539 = vmax.xlane.f32.xlu0 %v4538
        %v4540 = vpop.xlane.xlu0 %4539
        %v4541 = vmax.f32 %v4359, %v4448
        %4542 = vmax.xlane.f32.xlu0 %v4541
        %v4543 = vpop.xlane.xlu0 %4542
        %v4544 = vmax.f32 %v4362, %v4451
        %4545 = vmax.xlane.f32.xlu0 %v4544
        %v4546 = vpop.xlane.xlu0 %4545
        %v4547 = vmax.f32 %v4364, %v4453
        %4548 = vmax.xlane.f32.xlu0 %v4547
        %v4549 = vpop.xlane.xlu0 %4548
        %v4550 = vmax.f32 %v4367, %v4456
        %4551 = vmax.xlane.f32.xlu0 %v4550
        %v4552 = vpop.xlane.xlu0 %4551
        %v4553 = vmax.f32 %v4369, %v4458
        %4554 = vmax.xlane.f32.xlu0 %v4553
        %v4555 = vpop.xlane.xlu0 %4554
        %v4556 = vsub.f32 %v4292, %v4462
        %v4557 = vsub.f32 %v4381, %v4462
        %v4558 = vsub.f32 %v4294, %v4465
        %v4559 = vsub.f32 %v4383, %v4465
        %v4560 = vsub.f32 %v4297, %v4468
        %v4561 = vsub.f32 %v4386, %v4468
        %v4562 = vsub.f32 %v4299, %v4471
        %v4563 = vsub.f32 %v4388, %v4471
        %v4564 = vsub.f32 %v4302, %v4474
        %v4565 = vsub.f32 %v4391, %v4474
        %v4566 = vsub.f32 %v4304, %v4477
        %v4567 = vsub.f32 %v4393, %v4477
        %v4568 = vsub.f32 %v4307, %v4480
        %v4569 = vsub.f32 %v4396, %v4480
        %v4570 = vsub.f32 %v4309, %v4483
        %v4571 = vsub.f32 %v4398, %v4483
        %v4572 = vsub.f32 %v4312, %v4486
        %v4573 = vsub.f32 %v4401, %v4486
        %v4574 = vsub.f32 %v4314, %v4489
        %v4575 = vsub.f32 %v4403, %v4489
        %v4576 = vsub.f32 %v4317, %v4492
        %v4577 = vsub.f32 %v4406, %v4492
        %v4578 = vsub.f32 %v4319, %v4495
        %v4579 = vsub.f32 %v4408, %v4495
        %v4580 = vsub.f32 %v4322, %v4498
        %v4581 = vsub.f32 %v4411, %v4498
        %v4582 = vsub.f32 %v4324, %v4501
        %v4583 = vsub.f32 %v4413, %v4501
        %v4584 = vsub.f32 %v4327, %v4504
        %v4585 = vsub.f32 %v4416, %v4504
        %v4586 = vsub.f32 %v4329, %v4507
        %v4587 = vsub.f32 %v4418, %v4507
        %v4588 = vsub.f32 %v4332, %v4510
        %v4589 = vsub.f32 %v4421, %v4510
        %v4590 = vsub.f32 %v4334, %v4513
        %v4591 = vsub.f32 %v4423, %v4513
        %v4592 = vsub.f32 %v4337, %v4516
        %v4593 = vsub.f32 %v4426, %v4516
        %v4594 = vsub.f32 %v4339, %v4519
        %v4595 = vsub.f32 %v4428, %v4519
        %v4596 = vsub.f32 %v4342, %v4522
        %v4597 = vsub.f32 %v4431, %v4522
        %v4598 = vsub.f32 %v4344, %v4525
        %v4599 = vsub.f32 %v4433, %v4525
        %v4600 = vsub.f32 %v4347, %v4528
        %v4601 = vsub.f32 %v4436, %v4528
        %v4602 = vsub.f32 %v4349, %v4531
        %v4603 = vsub.f32 %v4438, %v4531
        %v4604 = vsub.f32 %v4352, %v4534
        %v4605 = vsub.f32 %v4441, %v4534
        %v4606 = vsub.f32 %v4354, %v4537
        %v4607 = vsub.f32 %v4443, %v4537
        %v4608 = vsub.f32 %v4357, %v4540
        %v4609 = vsub.f32 %v4446, %v4540
        %v4610 = vsub.f32 %v4359, %v4543
        %v4611 = vsub.f32 %v4448, %v4543
        %v4612 = vsub.f32 %v4362, %v4546
        %v4613 = vsub.f32 %v4451, %v4546
        %v4614 = vsub.f32 %v4364, %v4549
        %v4615 = vsub.f32 %v4453, %v4549
        %v4616 = vsub.f32 %v4367, %v4552
        %v4617 = vsub.f32 %v4456, %v4552
        %v4618 = vsub.f32 %v4369, %v4555
        %v4619 = vsub.f32 %v4458, %v4555
        %v4620 = vmul.f32 %v4556, 1.442695
        %v4621 = vpow.pop %v4620
        %v4622 = vmul.f32 %v4557, 1.442695
        %v4623 = vpow.pop %v4622
        %v4624 = vmul.f32 %v4558, 1.442695
        %v4625 = vpow.pop %v4624
        %v4626 = vmul.f32 %v4559, 1.442695
        %v4627 = vpow.pop %v4626
        %v4628 = vmul.f32 %v4560, 1.442695
        %v4629 = vpow.pop %v4628
        %v4630 = vmul.f32 %v4561, 1.442695
        %v4631 = vpow.pop %v4630
        %v4632 = vmul.f32 %v4562, 1.442695
        %v4633 = vpow.pop %v4632
        %v4634 = vmul.f32 %v4563, 1.442695
        %v4635 = vpow.pop %v4634
        %v4636 = vmul.f32 %v4564, 1.442695
        %v4637 = vpow.pop %v4636
        %v4638 = vmul.f32 %v4565, 1.442695
        %v4639 = vpow.pop %v4638
        %v4640 = vmul.f32 %v4566, 1.442695
        %v4641 = vpow.pop %v4640
        %v4642 = vmul.f32 %v4567, 1.442695
        %v4643 = vpow.pop %v4642
        %v4644 = vmul.f32 %v4568, 1.442695
        %v4645 = vpow.pop %v4644
        %v4646 = vmul.f32 %v4569, 1.442695
        %v4647 = vpow.pop %v4646
        %v4648 = vmul.f32 %v4570, 1.442695
        %v4649 = vpow.pop %v4648
        %v4650 = vmul.f32 %v4571, 1.442695
        %v4651 = vpow.pop %v4650
        %v4652 = vmul.f32 %v4572, 1.442695
        %v4653 = vpow.pop %v4652
        %v4654 = vmul.f32 %v4573, 1.442695
        %v4655 = vpow.pop %v4654
        %v4656 = vmul.f32 %v4574, 1.442695
        %v4657 = vpow.pop %v4656
        %v4658 = vmul.f32 %v4575, 1.442695
        %v4659 = vpow.pop %v4658
        %v4660 = vmul.f32 %v4576, 1.442695
        %v4661 = vpow.pop %v4660
        %v4662 = vmul.f32 %v4577, 1.442695
        %v4663 = vpow.pop %v4662
        %v4664 = vmul.f32 %v4578, 1.442695
        %v4665 = vpow.pop %v4664
        %v4666 = vmul.f32 %v4579, 1.442695
        %v4667 = vpow.pop %v4666
        %v4668 = vmul.f32 %v4580, 1.442695
        %v4669 = vpow.pop %v4668
        %v4670 = vmul.f32 %v4581, 1.442695
        %v4671 = vpow.pop %v4670
        %v4672 = vmul.f32 %v4582, 1.442695
        %v4673 = vpow.pop %v4672
        %v4674 = vmul.f32 %v4583, 1.442695
        %v4675 = vpow.pop %v4674
        %v4676 = vmul.f32 %v4584, 1.442695
        %v4677 = vpow.pop %v4676
        %v4678 = vmul.f32 %v4585, 1.442695
        %v4679 = vpow.pop %v4678
        %v4680 = vmul.f32 %v4586, 1.442695
        %v4681 = vpow.pop %v4680
        %v4682 = vmul.f32 %v4587, 1.442695
        %v4683 = vpow.pop %v4682
        %v4684 = vmul.f32 %v4588, 1.442695
        %v4685 = vpow.pop %v4684
        %v4686 = vmul.f32 %v4589, 1.442695
        %v4687 = vpow.pop %v4686
        %v4688 = vmul.f32 %v4590, 1.442695
        %v4689 = vpow.pop %v4688
        %v4690 = vmul.f32 %v4591, 1.442695
        %v4691 = vpow.pop %v4690
        %v4692 = vmul.f32 %v4592, 1.442695
        %v4693 = vpow.pop %v4692
        %v4694 = vmul.f32 %v4593, 1.442695
        %v4695 = vpow.pop %v4694
        %v4696 = vmul.f32 %v4594, 1.442695
        %v4697 = vpow.pop %v4696
        %v4698 = vmul.f32 %v4595, 1.442695
        %v4699 = vpow.pop %v4698
        %v4700 = vmul.f32 %v4596, 1.442695
        %v4701 = vpow.pop %v4700
        %v4702 = vmul.f32 %v4597, 1.442695
        %v4703 = vpow.pop %v4702
        %v4704 = vmul.f32 %v4598, 1.442695
        %v4705 = vpow.pop %v4704
        %v4706 = vmul.f32 %v4599, 1.442695
        %v4707 = vpow.pop %v4706
        %v4708 = vmul.f32 %v4600, 1.442695
        %v4709 = vpow.pop %v4708
        %v4710 = vmul.f32 %v4601, 1.442695
        %v4711 = vpow.pop %v4710
        %v4712 = vmul.f32 %v4602, 1.442695
        %v4713 = vpow.pop %v4712
        %v4714 = vmul.f32 %v4603, 1.442695
        %v4715 = vpow.pop %v4714
        %v4716 = vmul.f32 %v4604, 1.442695
        %v4717 = vpow.pop %v4716
        %v4718 = vmul.f32 %v4605, 1.442695
        %v4719 = vpow.pop %v4718
        %v4720 = vmul.f32 %v4606, 1.442695
        %v4721 = vpow.pop %v4720
        %v4722 = vmul.f32 %v4607, 1.442695
        %v4723 = vpow.pop %v4722
        %v4724 = vmul.f32 %v4608, 1.442695
        %v4725 = vpow.pop %v4724
        %v4726 = vmul.f32 %v4609, 1.442695
        %v4727 = vpow.pop %v4726
        %v4728 = vmul.f32 %v4610, 1.442695
        %v4729 = vpow.pop %v4728
        %v4730 = vmul.f32 %v4611, 1.442695
        %v4731 = vpow.pop %v4730
        %v4732 = vmul.f32 %v4612, 1.442695
        %v4733 = vpow.pop %v4732
        %v4734 = vmul.f32 %v4613, 1.442695
        %v4735 = vpow.pop %v4734
        %v4736 = vmul.f32 %v4614, 1.442695
        %v4737 = vpow.pop %v4736
        %v4738 = vmul.f32 %v4615, 1.442695
        %v4739 = vpow.pop %v4738
        %v4740 = vmul.f32 %v4616, 1.442695
        %v4741 = vpow.pop %v4740
        %v4742 = vmul.f32 %v4617, 1.442695
        %v4743 = vpow.pop %v4742
        %v4744 = vmul.f32 %v4618, 1.442695
        %v4745 = vpow.pop %v4744
        %v4746 = vmul.f32 %v4619, 1.442695
        %v4747 = vpow.pop %v4746
        %v4748 = vadd.f32 %v4621, %v4623
        %4749 = vadd.xlane.f32.xlu0 %v4748
        %v4750 = vpop.xlane.xlu0 %4749
        %v4751 = vadd.f32 %v4625, %v4627
        %4752 = vadd.xlane.f32.xlu0 %v4751
        %v4753 = vpop.xlane.xlu0 %4752
        %v4754 = vadd.f32 %v4629, %v4631
        %4755 = vadd.xlane.f32.xlu0 %v4754
        %v4756 = vpop.xlane.xlu0 %4755
        %v4757 = vadd.f32 %v4633, %v4635
        %4758 = vadd.xlane.f32.xlu0 %v4757
        %v4759 = vpop.xlane.xlu0 %4758
        %v4760 = vadd.f32 %v4637, %v4639
        %4761 = vadd.xlane.f32.xlu0 %v4760
        %v4762 = vpop.xlane.xlu0 %4761
        %v4763 = vadd.f32 %v4641, %v4643
        %4764 = vadd.xlane.f32.xlu0 %v4763
        %v4765 = vpop.xlane.xlu0 %4764
        %v4766 = vadd.f32 %v4645, %v4647
        %4767 = vadd.xlane.f32.xlu0 %v4766
        %v4768 = vpop.xlane.xlu0 %4767
        %v4769 = vadd.f32 %v4649, %v4651
        %4770 = vadd.xlane.f32.xlu0 %v4769
        %v4771 = vpop.xlane.xlu0 %4770
        %v4772 = vadd.f32 %v4653, %v4655
        %4773 = vadd.xlane.f32.xlu0 %v4772
        %v4774 = vpop.xlane.xlu0 %4773
        %v4775 = vadd.f32 %v4657, %v4659
        %4776 = vadd.xlane.f32.xlu0 %v4775
        %v4777 = vpop.xlane.xlu0 %4776
        %v4778 = vadd.f32 %v4661, %v4663
        %4779 = vadd.xlane.f32.xlu0 %v4778
        %v4780 = vpop.xlane.xlu0 %4779
        %v4781 = vadd.f32 %v4665, %v4667
        %4782 = vadd.xlane.f32.xlu0 %v4781
        %v4783 = vpop.xlane.xlu0 %4782
        %v4784 = vadd.f32 %v4669, %v4671
        %4785 = vadd.xlane.f32.xlu0 %v4784
        %v4786 = vpop.xlane.xlu0 %4785
        %v4787 = vadd.f32 %v4673, %v4675
        %4788 = vadd.xlane.f32.xlu0 %v4787
        %v4789 = vpop.xlane.xlu0 %4788
        %v4790 = vadd.f32 %v4677, %v4679
        %4791 = vadd.xlane.f32.xlu0 %v4790
        %v4792 = vpop.xlane.xlu0 %4791
        %v4793 = vadd.f32 %v4681, %v4683
        %4794 = vadd.xlane.f32.xlu0 %v4793
        %v4795 = vpop.xlane.xlu0 %4794
        %v4796 = vadd.f32 %v4685, %v4687
        %4797 = vadd.xlane.f32.xlu0 %v4796
        %v4798 = vpop.xlane.xlu0 %4797
        %v4799 = vadd.f32 %v4689, %v4691
        %4800 = vadd.xlane.f32.xlu0 %v4799
        %v4801 = vpop.xlane.xlu0 %4800
        %v4802 = vadd.f32 %v4693, %v4695
        %4803 = vadd.xlane.f32.xlu0 %v4802
        %v4804 = vpop.xlane.xlu0 %4803
        %v4805 = vadd.f32 %v4697, %v4699
        %4806 = vadd.xlane.f32.xlu0 %v4805
        %v4807 = vpop.xlane.xlu0 %4806
        %v4808 = vadd.f32 %v4701, %v4703
        %4809 = vadd.xlane.f32.xlu0 %v4808
        %v4810 = vpop.xlane.xlu0 %4809
        %v4811 = vadd.f32 %v4705, %v4707
        %4812 = vadd.xlane.f32.xlu0 %v4811
        %v4813 = vpop.xlane.xlu0 %4812
        %v4814 = vadd.f32 %v4709, %v4711
        %4815 = vadd.xlane.f32.xlu0 %v4814
        %v4816 = vpop.xlane.xlu0 %4815
        %v4817 = vadd.f32 %v4713, %v4715
        %4818 = vadd.xlane.f32.xlu0 %v4817
        %v4819 = vpop.xlane.xlu0 %4818
        %v4820 = vadd.f32 %v4717, %v4719
        %4821 = vadd.xlane.f32.xlu0 %v4820
        %v4822 = vpop.xlane.xlu0 %4821
        %v4823 = vadd.f32 %v4721, %v4723
        %4824 = vadd.xlane.f32.xlu0 %v4823
        %v4825 = vpop.xlane.xlu0 %4824
        %v4826 = vadd.f32 %v4725, %v4727
        %4827 = vadd.xlane.f32.xlu0 %v4826
        %v4828 = vpop.xlane.xlu0 %4827
        %v4829 = vadd.f32 %v4729, %v4731
        %4830 = vadd.xlane.f32.xlu0 %v4829
        %v4831 = vpop.xlane.xlu0 %4830
        %v4832 = vadd.f32 %v4733, %v4735
        %4833 = vadd.xlane.f32.xlu0 %v4832
        %v4834 = vpop.xlane.xlu0 %4833
        %v4835 = vadd.f32 %v4737, %v4739
        %4836 = vadd.xlane.f32.xlu0 %v4835
        %v4837 = vpop.xlane.xlu0 %4836
        %v4838 = vadd.f32 %v4741, %v4743
        %4839 = vadd.xlane.f32.xlu0 %v4838
        %v4840 = vpop.xlane.xlu0 %4839
        %v4841 = vadd.f32 %v4745, %v4747
        %4842 = vadd.xlane.f32.xlu0 %v4841
        %v4843 = vpop.xlane.xlu0 %4842
        %v4844 = vpack.c.bf16 %v4625, %v4621
        %v4845 = vpack.c.bf16 %v4627, %v4623
        %v4846 = vpack.c.bf16 %v4633, %v4629
        %v4847 = vpack.c.bf16 %v4635, %v4631
        %v4848 = vpack.c.bf16 %v4641, %v4637
        %v4849 = vpack.c.bf16 %v4643, %v4639
        %v4850 = vpack.c.bf16 %v4649, %v4645
        %v4851 = vpack.c.bf16 %v4651, %v4647
        %v4852 = vpack.c.bf16 %v4657, %v4653
        %v4853 = vpack.c.bf16 %v4659, %v4655
        %v4854 = vpack.c.bf16 %v4665, %v4661
        %v4855 = vpack.c.bf16 %v4667, %v4663
        %v4856 = vpack.c.bf16 %v4673, %v4669
        %v4857 = vpack.c.bf16 %v4675, %v4671
        %v4858 = vpack.c.bf16 %v4681, %v4677
        %v4859 = vpack.c.bf16 %v4683, %v4679
        %v4860 = vpack.c.bf16 %v4689, %v4685
        %v4861 = vpack.c.bf16 %v4691, %v4687
        %v4862 = vpack.c.bf16 %v4697, %v4693
        %v4863 = vpack.c.bf16 %v4699, %v4695
        %v4864 = vpack.c.bf16 %v4705, %v4701
        %v4865 = vpack.c.bf16 %v4707, %v4703
        %v4866 = vpack.c.bf16 %v4713, %v4709
        %v4867 = vpack.c.bf16 %v4715, %v4711
        %v4868 = vpack.c.bf16 %v4721, %v4717
        %v4869 = vpack.c.bf16 %v4723, %v4719
        %v4870 = vpack.c.bf16 %v4729, %v4725
        %v4871 = vpack.c.bf16 %v4731, %v4727
        %v4872 = vpack.c.bf16 %v4737, %v4733
        %v4873 = vpack.c.bf16 %v4739, %v4735
        %v4874 = vpack.c.bf16 %v4745, %v4741
        %v4875 = vpack.c.bf16 %v4747, %v4743
        %4876 = vrot.lane.b32.xlu0 %v2578, 64
        %v4877 = vpop.permute.xlu0 %4876
        %4878 = vrot.lane.b32.xlu0 %v2579, 64
        %v4879 = vpop.permute.xlu0 %4878
        %4880 = vrot.lane.b32.xlu0 %v2580, 64
        %v4881 = vpop.permute.xlu0 %4880
        %4882 = vrot.lane.b32.xlu0 %v2581, 64
        %v4883 = vpop.permute.xlu0 %4882
        %4884 = vrot.lane.b32.xlu0 %v2582, 64
        %v4885 = vpop.permute.xlu0 %4884
        %4886 = vrot.lane.b32.xlu0 %v2583, 64
        %v4887 = vpop.permute.xlu0 %4886
        %4888 = vrot.lane.b32.xlu0 %v2584, 64
        %v4889 = vpop.permute.xlu0 %4888
        %4890 = vrot.lane.b32.xlu0 %v2585, 64
        %v4891 = vpop.permute.xlu0 %4890
        %4892 = vrot.lane.b32.xlu0 %v2586, 64
        %v4893 = vpop.permute.xlu0 %4892
        %4894 = vrot.lane.b32.xlu0 %v2587, 64
        %v4895 = vpop.permute.xlu0 %4894
        %4896 = vrot.lane.b32.xlu0 %v2588, 64
        %v4897 = vpop.permute.xlu0 %4896
        %4898 = vrot.lane.b32.xlu0 %v2589, 64
        %v4899 = vpop.permute.xlu0 %4898
        %4900 = vrot.lane.b32.xlu0 %v2590, 64
        %v4901 = vpop.permute.xlu0 %4900
        %4902 = vrot.lane.b32.xlu0 %v2591, 64
        %v4903 = vpop.permute.xlu0 %4902
        %4904 = vrot.lane.b32.xlu0 %v2592, 64
        %v4905 = vpop.permute.xlu0 %4904
        %4906 = vrot.lane.b32.xlu0 %v2593, 64
        %v4907 = vpop.permute.xlu0 %4906
        %4924 = vmatpush.bf16.msra.mxu0 %v4891
        %4925 = vmatpush.bf16.msra.mxu0 %v4889
        %4926 = vmatpush.bf16.msra.mxu0 %v4887
        %4927 = vmatpush.bf16.msra.mxu0 %v4885
        %4928 = vmatpush.bf16.msra.mxu0 %v4883
        %4929 = vmatpush.bf16.msra.mxu0 %v4881
        %4930 = vmatpush.bf16.msra.mxu0 %v4879
        %4931 = vmatpush.bf16.msra.mxu0 %v4877
        %4932 = vmatmul.bf16.gmra.mxu0 %v4844
        %v4933 = vpop.f32.mrf.mxu0
        %v4934 = vadd.f32 0.0, %v4933
        %v4935 = vpop.f32.mrf.mxu0
        %v4936 = vadd.f32 0.0, %v4935
        %4937 = vmatmul.bf16.gmra.mxu0 %v4846
        %v4938 = vpop.f32.mrf.mxu0
        %v4939 = vadd.f32 0.0, %v4938
        %v4940 = vpop.f32.mrf.mxu0
        %v4941 = vadd.f32 0.0, %v4940
        %4942 = vmatmul.bf16.gmra.mxu0 %v4848
        %v4943 = vpop.f32.mrf.mxu0
        %v4944 = vadd.f32 0.0, %v4943
        %v4945 = vpop.f32.mrf.mxu0
        %v4946 = vadd.f32 0.0, %v4945
        %4947 = vmatmul.bf16.gmra.mxu0 %v4850
        %v4948 = vpop.f32.mrf.mxu0
        %v4949 = vadd.f32 0.0, %v4948
        %v4950 = vpop.f32.mrf.mxu0
        %v4951 = vadd.f32 0.0, %v4950
        %4952 = vmatmul.bf16.gmra.mxu0 %v4852
        %v4953 = vpop.f32.mrf.mxu0
        %v4954 = vadd.f32 0.0, %v4953
        %v4955 = vpop.f32.mrf.mxu0
        %v4956 = vadd.f32 0.0, %v4955
        %4957 = vmatmul.bf16.gmra.mxu0 %v4854
        %v4958 = vpop.f32.mrf.mxu0
        %v4959 = vadd.f32 0.0, %v4958
        %v4960 = vpop.f32.mrf.mxu0
        %v4961 = vadd.f32 0.0, %v4960
        %4962 = vmatmul.bf16.gmra.mxu0 %v4856
        %v4963 = vpop.f32.mrf.mxu0
        %v4964 = vadd.f32 0.0, %v4963
        %v4965 = vpop.f32.mrf.mxu0
        %v4966 = vadd.f32 0.0, %v4965
        %4967 = vmatmul.bf16.gmra.mxu0 %v4858
        %v4968 = vpop.f32.mrf.mxu0
        %v4969 = vadd.f32 0.0, %v4968
        %v4970 = vpop.f32.mrf.mxu0
        %v4971 = vadd.f32 0.0, %v4970
        %4972 = vmatmul.bf16.gmra.mxu0 %v4860
        %v4973 = vpop.f32.mrf.mxu0
        %v4974 = vadd.f32 0.0, %v4973
        %v4975 = vpop.f32.mrf.mxu0
        %v4976 = vadd.f32 0.0, %v4975
        %4977 = vmatmul.bf16.gmra.mxu0 %v4862
        %v4978 = vpop.f32.mrf.mxu0
        %v4979 = vadd.f32 0.0, %v4978
        %v4980 = vpop.f32.mrf.mxu0
        %v4981 = vadd.f32 0.0, %v4980
        %4982 = vmatmul.bf16.gmra.mxu0 %v4864
        %v4983 = vpop.f32.mrf.mxu0
        %v4984 = vadd.f32 0.0, %v4983
        %v4985 = vpop.f32.mrf.mxu0
        %v4986 = vadd.f32 0.0, %v4985
        %4987 = vmatmul.bf16.gmra.mxu0 %v4866
        %v4988 = vpop.f32.mrf.mxu0
        %v4989 = vadd.f32 0.0, %v4988
        %v4990 = vpop.f32.mrf.mxu0
        %v4991 = vadd.f32 0.0, %v4990
        %4992 = vmatmul.bf16.gmra.mxu0 %v4868
        %v4993 = vpop.f32.mrf.mxu0
        %v4994 = vadd.f32 0.0, %v4993
        %v4995 = vpop.f32.mrf.mxu0
        %v4996 = vadd.f32 0.0, %v4995
        %4997 = vmatmul.bf16.gmra.mxu0 %v4870
        %v4998 = vpop.f32.mrf.mxu0
        %v4999 = vadd.f32 0.0, %v4998
        %v5000 = vpop.f32.mrf.mxu0
        %v5001 = vadd.f32 0.0, %v5000
        %5002 = vmatmul.bf16.gmra.mxu0 %v4872
        %v5003 = vpop.f32.mrf.mxu0
        %v5004 = vadd.f32 0.0, %v5003
        %v5005 = vpop.f32.mrf.mxu0
        %v5006 = vadd.f32 0.0, %v5005
        %5007 = vmatmul.bf16.gmra.mxu0 %v4874
        %v5008 = vpop.f32.mrf.mxu0
        %v5009 = vadd.f32 0.0, %v5008
        %v5010 = vpop.f32.mrf.mxu0
        %v5011 = vadd.f32 0.0, %v5010
        %5012 = vdwg.mxu0
        %5013 = vmatpush.bf16.msra.mxu0 %v4907
        %5014 = vmatpush.bf16.msra.mxu0 %v4905
        %5015 = vmatpush.bf16.msra.mxu0 %v4903
        %5016 = vmatpush.bf16.msra.mxu0 %v4901
        %5017 = vmatpush.bf16.msra.mxu0 %v4899
        %5018 = vmatpush.bf16.msra.mxu0 %v4897
        %5019 = vmatpush.bf16.msra.mxu0 %v4895
        %5020 = vmatpush.bf16.msra.mxu0 %v4893
        %5021 = vmatmul.bf16.gmra.mxu0 %v4845
        %v5022 = vpop.f32.mrf.mxu0
        %v5023 = vadd.f32 %v4934, %v5022
        %v5024 = vpop.f32.mrf.mxu0
        %v5025 = vadd.f32 %v4936, %v5024
        %5026 = vmatmul.bf16.gmra.mxu0 %v4847
        %v5027 = vpop.f32.mrf.mxu0
        %v5028 = vadd.f32 %v4939, %v5027
        %v5029 = vpop.f32.mrf.mxu0
        %v5030 = vadd.f32 %v4941, %v5029
        %5031 = vmatmul.bf16.gmra.mxu0 %v4849
        %v5032 = vpop.f32.mrf.mxu0
        %v5033 = vadd.f32 %v4944, %v5032
        %v5034 = vpop.f32.mrf.mxu0
        %v5035 = vadd.f32 %v4946, %v5034
        %5036 = vmatmul.bf16.gmra.mxu0 %v4851
        %v5037 = vpop.f32.mrf.mxu0
        %v5038 = vadd.f32 %v4949, %v5037
        %v5039 = vpop.f32.mrf.mxu0
        %v5040 = vadd.f32 %v4951, %v5039
        %5041 = vmatmul.bf16.gmra.mxu0 %v4853
        %v5042 = vpop.f32.mrf.mxu0
        %v5043 = vadd.f32 %v4954, %v5042
        %v5044 = vpop.f32.mrf.mxu0
        %v5045 = vadd.f32 %v4956, %v5044
        %5046 = vmatmul.bf16.gmra.mxu0 %v4855
        %v5047 = vpop.f32.mrf.mxu0
        %v5048 = vadd.f32 %v4959, %v5047
        %v5049 = vpop.f32.mrf.mxu0
        %v5050 = vadd.f32 %v4961, %v5049
        %5051 = vmatmul.bf16.gmra.mxu0 %v4857
        %v5052 = vpop.f32.mrf.mxu0
        %v5053 = vadd.f32 %v4964, %v5052
        %v5054 = vpop.f32.mrf.mxu0
        %v5055 = vadd.f32 %v4966, %v5054
        %5056 = vmatmul.bf16.gmra.mxu0 %v4859
        %v5057 = vpop.f32.mrf.mxu0
        %v5058 = vadd.f32 %v4969, %v5057
        %v5059 = vpop.f32.mrf.mxu0
        %v5060 = vadd.f32 %v4971, %v5059
        %5061 = vmatmul.bf16.gmra.mxu0 %v4861
        %v5062 = vpop.f32.mrf.mxu0
        %v5063 = vadd.f32 %v4974, %v5062
        %v5064 = vpop.f32.mrf.mxu0
        %v5065 = vadd.f32 %v4976, %v5064
        %5066 = vmatmul.bf16.gmra.mxu0 %v4863
        %v5067 = vpop.f32.mrf.mxu0
        %v5068 = vadd.f32 %v4979, %v5067
        %v5069 = vpop.f32.mrf.mxu0
        %v5070 = vadd.f32 %v4981, %v5069
        %5071 = vmatmul.bf16.gmra.mxu0 %v4865
        %v5072 = vpop.f32.mrf.mxu0
        %v5073 = vadd.f32 %v4984, %v5072
        %v5074 = vpop.f32.mrf.mxu0
        %v5075 = vadd.f32 %v4986, %v5074
        %5076 = vmatmul.bf16.gmra.mxu0 %v4867
        %v5077 = vpop.f32.mrf.mxu0
        %v5078 = vadd.f32 %v4989, %v5077
        %v5079 = vpop.f32.mrf.mxu0
        %v5080 = vadd.f32 %v4991, %v5079
        %5081 = vmatmul.bf16.gmra.mxu0 %v4869
        %v5082 = vpop.f32.mrf.mxu0
        %v5083 = vadd.f32 %v4994, %v5082
        %v5084 = vpop.f32.mrf.mxu0
        %v5085 = vadd.f32 %v4996, %v5084
        %5086 = vmatmul.bf16.gmra.mxu0 %v4871
        %v5087 = vpop.f32.mrf.mxu0
        %v5088 = vadd.f32 %v4999, %v5087
        %v5089 = vpop.f32.mrf.mxu0
        %v5090 = vadd.f32 %v5001, %v5089
        %5091 = vmatmul.bf16.gmra.mxu0 %v4873
        %v5092 = vpop.f32.mrf.mxu0
        %v5093 = vadd.f32 %v5004, %v5092
        %v5094 = vpop.f32.mrf.mxu0
        %v5095 = vadd.f32 %v5006, %v5094
        %5096 = vmatmul.bf16.gmra.mxu0 %v4875
        %v5097 = vpop.f32.mrf.mxu0
        %v5098 = vadd.f32 %v5009, %v5097
        %v5099 = vpop.f32.mrf.mxu0
        %v5100 = vadd.f32 %v5011, %v5099
        %5101 = vdwg.mxu0
        %v5102 = vrcp.pop %v4750
        %v5103 = vrcp.pop %v4753
        %v5104 = vrcp.pop %v4756
        %v5105 = vrcp.pop %v4759
        %v5106 = vrcp.pop %v4762
        %v5107 = vrcp.pop %v4765
        %v5108 = vrcp.pop %v4768
        %v5109 = vrcp.pop %v4771
        %v5110 = vrcp.pop %v4774
        %v5111 = vrcp.pop %v4777
        %v5112 = vrcp.pop %v4780
        %v5113 = vrcp.pop %v4783
        %v5114 = vrcp.pop %v4786
        %v5115 = vrcp.pop %v4789
        %v5116 = vrcp.pop %v4792
        %v5117 = vrcp.pop %v4795
        %v5118 = vrcp.pop %v4798
        %v5119 = vrcp.pop %v4801
        %v5120 = vrcp.pop %v4804
        %v5121 = vrcp.pop %v4807
        %v5122 = vrcp.pop %v4810
        %v5123 = vrcp.pop %v4813
        %v5124 = vrcp.pop %v4816
        %v5125 = vrcp.pop %v4819
        %v5126 = vrcp.pop %v4822
        %v5127 = vrcp.pop %v4825
        %v5128 = vrcp.pop %v4828
        %v5129 = vrcp.pop %v4831
        %v5130 = vrcp.pop %v4834
        %v5131 = vrcp.pop %v4837
        %v5132 = vrcp.pop %v4840
        %v5133 = vrcp.pop %v4843
        %v5134 = vmul.f32 %v5023, %v5102
        %v5135 = vmul.f32 %v5025, %v5103
        %v5136 = vmul.f32 %v5028, %v5104
        %v5137 = vmul.f32 %v5030, %v5105
        %v5138 = vmul.f32 %v5033, %v5106
        %v5139 = vmul.f32 %v5035, %v5107
        %v5140 = vmul.f32 %v5038, %v5108
        %v5141 = vmul.f32 %v5040, %v5109
        %v5142 = vmul.f32 %v5043, %v5110
        %v5143 = vmul.f32 %v5045, %v5111
        %v5144 = vmul.f32 %v5048, %v5112
        %v5145 = vmul.f32 %v5050, %v5113
        %v5146 = vmul.f32 %v5053, %v5114
        %v5147 = vmul.f32 %v5055, %v5115
        %v5148 = vmul.f32 %v5058, %v5116
        %v5149 = vmul.f32 %v5060, %v5117
        %v5150 = vmul.f32 %v5063, %v5118
        %v5151 = vmul.f32 %v5065, %v5119
        %v5152 = vmul.f32 %v5068, %v5120
        %v5153 = vmul.f32 %v5070, %v5121
        %v5154 = vmul.f32 %v5073, %v5122
        %v5155 = vmul.f32 %v5075, %v5123
        %v5156 = vmul.f32 %v5078, %v5124
        %v5157 = vmul.f32 %v5080, %v5125
        %v5158 = vmul.f32 %v5083, %v5126
        %v5159 = vmul.f32 %v5085, %v5127
        %v5160 = vmul.f32 %v5088, %v5128
        %v5161 = vmul.f32 %v5090, %v5129
        %v5162 = vmul.f32 %v5093, %v5130
        %v5163 = vmul.f32 %v5095, %v5131
        %v5164 = vmul.f32 %v5098, %v5132
        %v5165 = vmul.f32 %v5100, %v5133
        %v5166 = vpack.c.bf16 %v5135, %v5134
        %v5167 = vpack.c.bf16 %v5137, %v5136
        %v5168 = vpack.c.bf16 %v5139, %v5138
        %v5169 = vpack.c.bf16 %v5141, %v5140
        %v5170 = vpack.c.bf16 %v5143, %v5142
        %v5171 = vpack.c.bf16 %v5145, %v5144
        %v5172 = vpack.c.bf16 %v5147, %v5146
        %v5173 = vpack.c.bf16 %v5149, %v5148
        %v5174 = vpack.c.bf16 %v5151, %v5150
        %v5175 = vpack.c.bf16 %v5153, %v5152
        %v5176 = vpack.c.bf16 %v5155, %v5154
        %v5177 = vpack.c.bf16 %v5157, %v5156
        %v5178 = vpack.c.bf16 %v5159, %v5158
        %v5179 = vpack.c.bf16 %v5161, %v5160
        %v5180 = vpack.c.bf16 %v5163, %v5162
        %v5181 = vpack.c.bf16 %v5165, %v5164
        %v5186 = vunpack.c.l.b16 %v1891
        %v5187 = vunpack.c.l.b16 %v1892
        %v5188 = vunpack.c.l.b16 %v1893
        %v5189 = vunpack.c.l.b16 %v1894
        %v5190 = vpack.c.b16 %v5187, %v5186
        %v5191 = vpack.c.b16 %v5189, %v5188
        %v5195 = vsel %vm1935, %v5166, 0
        %v5198 = vsel %vm1935, %v5167, 0
        %v5201 = vsel %vm1935, %v5168, 0
        %v5204 = vsel %vm1935, %v5169, 0
        %v5207 = vsel %vm1935, %v5170, 0
        %v5210 = vsel %vm1935, %v5171, 0
        %v5213 = vsel %vm1935, %v5172, 0
        %v5216 = vsel %vm1935, %v5173, 0
        %v5219 = vsel %vm1935, %v5174, 0
        %v5222 = vsel %vm1935, %v5175, 0
        %v5225 = vsel %vm1935, %v5176, 0
        %v5228 = vsel %vm1935, %v5177, 0
        %v5231 = vsel %vm1935, %v5178, 0
        %v5234 = vsel %vm1935, %v5179, 0
        %v5237 = vsel %vm1935, %v5180, 0
        %v5240 = vsel %vm1935, %v5181, 0
        %5242 = vmatpush.bf16.msra.mxu0 0
        %5243 = vmatpush.bf16.msra.mxu0 0
        %5244 = vmatpush.bf16.msra.mxu0 0
        %5245 = vmatpush.bf16.msra.mxu0 0
        %5246 = vmatpush.bf16.msra.mxu0 0
        %5247 = vmatpush.bf16.msra.mxu0 0
        %5248 = vmatpush.bf16.msra.mxu0 %v5191
        %5249 = vmatpush.bf16.msra.mxu0 %v5190
        %5250 = vmatmul.bf16.gmra.mxu0 %v5195
        %v5251 = vpop.f32.mrf.mxu0
        %v5252 = vadd.f32 0.0, %v5251
        %v5253 = vpop.f32.mrf.mxu0
        %v5254 = vadd.f32 0.0, %v5253
        %5255 = vmatmul.bf16.gmra.mxu0 %v5198
        %v5256 = vpop.f32.mrf.mxu0
        %v5257 = vadd.f32 0.0, %v5256
        %v5258 = vpop.f32.mrf.mxu0
        %v5259 = vadd.f32 0.0, %v5258
        %5260 = vmatmul.bf16.gmra.mxu0 %v5201
        %v5261 = vpop.f32.mrf.mxu0
        %v5262 = vadd.f32 0.0, %v5261
        %v5263 = vpop.f32.mrf.mxu0
        %v5264 = vadd.f32 0.0, %v5263
        %5265 = vmatmul.bf16.gmra.mxu0 %v5204
        %v5266 = vpop.f32.mrf.mxu0
        %v5267 = vadd.f32 0.0, %v5266
        %v5268 = vpop.f32.mrf.mxu0
        %v5269 = vadd.f32 0.0, %v5268
        %5270 = vmatmul.bf16.gmra.mxu0 %v5207
        %v5271 = vpop.f32.mrf.mxu0
        %v5272 = vadd.f32 0.0, %v5271
        %v5273 = vpop.f32.mrf.mxu0
        %v5274 = vadd.f32 0.0, %v5273
        %5275 = vmatmul.bf16.gmra.mxu0 %v5210
        %v5276 = vpop.f32.mrf.mxu0
        %v5277 = vadd.f32 0.0, %v5276
        %v5278 = vpop.f32.mrf.mxu0
        %v5279 = vadd.f32 0.0, %v5278
        %5280 = vmatmul.bf16.gmra.mxu0 %v5213
        %v5281 = vpop.f32.mrf.mxu0
        %v5282 = vadd.f32 0.0, %v5281
        %v5283 = vpop.f32.mrf.mxu0
        %v5284 = vadd.f32 0.0, %v5283
        %5285 = vmatmul.bf16.gmra.mxu0 %v5216
        %v5286 = vpop.f32.mrf.mxu0
        %v5287 = vadd.f32 0.0, %v5286
        %v5288 = vpop.f32.mrf.mxu0
        %v5289 = vadd.f32 0.0, %v5288
        %5290 = vmatmul.bf16.gmra.mxu0 %v5219
        %v5291 = vpop.f32.mrf.mxu0
        %v5292 = vadd.f32 0.0, %v5291
        %v5293 = vpop.f32.mrf.mxu0
        %v5294 = vadd.f32 0.0, %v5293
        %5295 = vmatmul.bf16.gmra.mxu0 %v5222
        %v5296 = vpop.f32.mrf.mxu0
        %v5297 = vadd.f32 0.0, %v5296
        %v5298 = vpop.f32.mrf.mxu0
        %v5299 = vadd.f32 0.0, %v5298
        %5300 = vmatmul.bf16.gmra.mxu0 %v5225
        %v5301 = vpop.f32.mrf.mxu0
        %v5302 = vadd.f32 0.0, %v5301
        %v5303 = vpop.f32.mrf.mxu0
        %v5304 = vadd.f32 0.0, %v5303
        %5305 = vmatmul.bf16.gmra.mxu0 %v5228
        %v5306 = vpop.f32.mrf.mxu0
        %v5307 = vadd.f32 0.0, %v5306
        %v5308 = vpop.f32.mrf.mxu0
        %v5309 = vadd.f32 0.0, %v5308
        %5310 = vmatmul.bf16.gmra.mxu0 %v5231
        %v5311 = vpop.f32.mrf.mxu0
        %v5312 = vadd.f32 0.0, %v5311
        %v5313 = vpop.f32.mrf.mxu0
        %v5314 = vadd.f32 0.0, %v5313
        %5315 = vmatmul.bf16.gmra.mxu0 %v5234
        %v5316 = vpop.f32.mrf.mxu0
        %v5317 = vadd.f32 0.0, %v5316
        %v5318 = vpop.f32.mrf.mxu0
        %v5319 = vadd.f32 0.0, %v5318
        %5320 = vmatmul.bf16.gmra.mxu0 %v5237
        %v5321 = vpop.f32.mrf.mxu0
        %v5322 = vadd.f32 0.0, %v5321
        %v5323 = vpop.f32.mrf.mxu0
        %v5324 = vadd.f32 0.0, %v5323
        %5325 = vmatmul.bf16.gmra.mxu0 %v5240
        %v5326 = vpop.f32.mrf.mxu0
        %v5327 = vadd.f32 0.0, %v5326
        %v5328 = vpop.f32.mrf.mxu0
        %v5329 = vadd.f32 0.0, %v5328
        %5330 = vdwg.mxu0
        %v5331 = vadd.f32 %v4103, %v5252
        %v5332 = vadd.f32 %v4105, %v5254
        %v5333 = vadd.f32 %v4108, %v5257
        %v5334 = vadd.f32 %v4110, %v5259
        %v5335 = vadd.f32 %v4113, %v5262
        %v5336 = vadd.f32 %v4115, %v5264
        %v5337 = vadd.f32 %v4118, %v5267
        %v5338 = vadd.f32 %v4120, %v5269
        %v5339 = vadd.f32 %v4123, %v5272
        %v5340 = vadd.f32 %v4125, %v5274
        %v5341 = vadd.f32 %v4128, %v5277
        %v5342 = vadd.f32 %v4130, %v5279
        %v5343 = vadd.f32 %v4133, %v5282
        %v5344 = vadd.f32 %v4135, %v5284
        %v5345 = vadd.f32 %v4138, %v5287
        %v5346 = vadd.f32 %v4140, %v5289
        %v5347 = vadd.f32 %v4143, %v5292
        %v5348 = vadd.f32 %v4145, %v5294
        %v5349 = vadd.f32 %v4148, %v5297
        %v5350 = vadd.f32 %v4150, %v5299
        %v5351 = vadd.f32 %v4153, %v5302
        %v5352 = vadd.f32 %v4155, %v5304
        %v5353 = vadd.f32 %v4158, %v5307
        %v5354 = vadd.f32 %v4160, %v5309
        %v5355 = vadd.f32 %v4163, %v5312
        %v5356 = vadd.f32 %v4165, %v5314
        %v5357 = vadd.f32 %v4168, %v5317
        %v5358 = vadd.f32 %v4170, %v5319
        %v5359 = vadd.f32 %v4173, %v5322
        %v5360 = vadd.f32 %v4175, %v5324
        %v5361 = vadd.f32 %v4178, %v5327
        %v5362 = vadd.f32 %v4180, %v5329
        %5363 = vrot.lane.b32.xlu0 %v1899, 32
        %v5364 = vpop.permute.xlu0 %5363
        %5365 = vrot.lane.b32.xlu0 %v1900, 32
        %v5366 = vpop.permute.xlu0 %5365
        %5367 = vrot.lane.b32.xlu0 %v1901, 32
        %v5368 = vpop.permute.xlu0 %5367
        %5369 = vrot.lane.b32.xlu0 %v1902, 32
        %v5370 = vpop.permute.xlu0 %5369
        %5371 = vrot.lane.b32.xlu0 %v1903, 32
        %v5372 = vpop.permute.xlu0 %5371
        %5373 = vrot.lane.b32.xlu0 %v1904, 32
        %v5374 = vpop.permute.xlu0 %5373
        %5375 = vrot.lane.b32.xlu0 %v1905, 32
        %v5376 = vpop.permute.xlu0 %5375
        %5377 = vrot.lane.b32.xlu0 %v1906, 32
        %v5378 = vpop.permute.xlu0 %5377
        %5379 = vrot.lane.b32.xlu0 %v1907, 32
        %v5380 = vpop.permute.xlu0 %5379
        %5381 = vrot.lane.b32.xlu0 %v1908, 32
        %v5382 = vpop.permute.xlu0 %5381
        %5383 = vrot.lane.b32.xlu0 %v1909, 32
        %v5384 = vpop.permute.xlu0 %5383
        %5385 = vrot.lane.b32.xlu0 %v1910, 32
        %v5386 = vpop.permute.xlu0 %5385
        %5387 = vrot.lane.b32.xlu0 %v1911, 32
        %v5388 = vpop.permute.xlu0 %5387
        %5389 = vrot.lane.b32.xlu0 %v1912, 32
        %v5390 = vpop.permute.xlu0 %5389
        %5391 = vrot.lane.b32.xlu0 %v1913, 32
        %v5392 = vpop.permute.xlu0 %5391
        %5393 = vrot.lane.b32.xlu0 %v1914, 32
        %v5394 = vpop.permute.xlu0 %5393
        %v5399 = vunpack.c.l.b16 %v1879
        %v5400 = vunpack.c.h.b16 %v1879
        %v5401 = vunpack.c.l.b16 %v1880
        %v5402 = vunpack.c.h.b16 %v1880
        %v5403 = vunpack.c.l.b16 %v1881
        %v5404 = vunpack.c.h.b16 %v1881
        %v5405 = vunpack.c.l.b16 %v1882
        %v5406 = vunpack.c.h.b16 %v1882
        %v5407 = vpack.c.b16 %v5401, %v5399
        %v5408 = vpack.c.b16 %v5402, %v5400
        %v5409 = vpack.c.b16 %v5405, %v5403
        %v5410 = vpack.c.b16 %v5406, %v5404
        %v5416 = vsel %vm1935, %v5364, 0
        %v5419 = vsel %vm1935, %v5366, 0
        %v5422 = vsel %vm1935, %v5368, 0
        %v5425 = vsel %vm1935, %v5370, 0
        %v5428 = vsel %vm1935, %v5372, 0
        %v5431 = vsel %vm1935, %v5374, 0
        %v5434 = vsel %vm1935, %v5376, 0
        %v5437 = vsel %vm1935, %v5378, 0
        %v5440 = vsel %vm1935, %v5380, 0
        %v5443 = vsel %vm1935, %v5382, 0
        %v5446 = vsel %vm1935, %v5384, 0
        %v5449 = vsel %vm1935, %v5386, 0
        %v5452 = vsel %vm1935, %v5388, 0
        %v5455 = vsel %vm1935, %v5390, 0
        %v5458 = vsel %vm1935, %v5392, 0
        %v5461 = vsel %vm1935, %v5394, 0
        %5463 = vmatpush.bf16.msra.mxu0 0
        %5464 = vmatpush.bf16.msra.mxu0 0
        %5465 = vmatpush.bf16.msra.mxu0 0
        %5466 = vmatpush.bf16.msra.mxu0 0
        %5467 = vmatpush.bf16.msra.mxu0 0
        %5468 = vmatpush.bf16.msra.mxu0 0
        %5469 = vmatpush.bf16.msra.mxu0 %v5409
        %5470 = vmatpush.bf16.msra.mxu0 %v5407
        %5471 = vmatmul.bf16.gmra.mxu0 %v5416
        %v5472 = vpop.f32.mrf.mxu0
        %v5473 = vadd.f32 0.0, %v5472
        %v5474 = vpop.f32.mrf.mxu0
        %v5475 = vadd.f32 0.0, %v5474
        %5476 = vmatmul.bf16.gmra.mxu0 %v5419
        %v5477 = vpop.f32.mrf.mxu0
        %v5478 = vadd.f32 0.0, %v5477
        %v5479 = vpop.f32.mrf.mxu0
        %v5480 = vadd.f32 0.0, %v5479
        %5481 = vmatmul.bf16.gmra.mxu0 %v5422
        %v5482 = vpop.f32.mrf.mxu0
        %v5483 = vadd.f32 0.0, %v5482
        %v5484 = vpop.f32.mrf.mxu0
        %v5485 = vadd.f32 0.0, %v5484
        %5486 = vmatmul.bf16.gmra.mxu0 %v5425
        %v5487 = vpop.f32.mrf.mxu0
        %v5488 = vadd.f32 0.0, %v5487
        %v5489 = vpop.f32.mrf.mxu0
        %v5490 = vadd.f32 0.0, %v5489
        %5491 = vmatmul.bf16.gmra.mxu0 %v5428
        %v5492 = vpop.f32.mrf.mxu0
        %v5493 = vadd.f32 0.0, %v5492
        %v5494 = vpop.f32.mrf.mxu0
        %v5495 = vadd.f32 0.0, %v5494
        %5496 = vmatmul.bf16.gmra.mxu0 %v5431
        %v5497 = vpop.f32.mrf.mxu0
        %v5498 = vadd.f32 0.0, %v5497
        %v5499 = vpop.f32.mrf.mxu0
        %v5500 = vadd.f32 0.0, %v5499
        %5501 = vmatmul.bf16.gmra.mxu0 %v5434
        %v5502 = vpop.f32.mrf.mxu0
        %v5503 = vadd.f32 0.0, %v5502
        %v5504 = vpop.f32.mrf.mxu0
        %v5505 = vadd.f32 0.0, %v5504
        %5506 = vmatmul.bf16.gmra.mxu0 %v5437
        %v5507 = vpop.f32.mrf.mxu0
        %v5508 = vadd.f32 0.0, %v5507
        %v5509 = vpop.f32.mrf.mxu0
        %v5510 = vadd.f32 0.0, %v5509
        %5511 = vmatmul.bf16.gmra.mxu0 %v5440
        %v5512 = vpop.f32.mrf.mxu0
        %v5513 = vadd.f32 0.0, %v5512
        %v5514 = vpop.f32.mrf.mxu0
        %v5515 = vadd.f32 0.0, %v5514
        %5516 = vmatmul.bf16.gmra.mxu0 %v5443
        %v5517 = vpop.f32.mrf.mxu0
        %v5518 = vadd.f32 0.0, %v5517
        %v5519 = vpop.f32.mrf.mxu0
        %v5520 = vadd.f32 0.0, %v5519
        %5521 = vmatmul.bf16.gmra.mxu0 %v5446
        %v5522 = vpop.f32.mrf.mxu0
        %v5523 = vadd.f32 0.0, %v5522
        %v5524 = vpop.f32.mrf.mxu0
        %v5525 = vadd.f32 0.0, %v5524
        %5526 = vmatmul.bf16.gmra.mxu0 %v5449
        %v5527 = vpop.f32.mrf.mxu0
        %v5528 = vadd.f32 0.0, %v5527
        %v5529 = vpop.f32.mrf.mxu0
        %v5530 = vadd.f32 0.0, %v5529
        %5531 = vmatmul.bf16.gmra.mxu0 %v5452
        %v5532 = vpop.f32.mrf.mxu0
        %v5533 = vadd.f32 0.0, %v5532
        %v5534 = vpop.f32.mrf.mxu0
        %v5535 = vadd.f32 0.0, %v5534
        %5536 = vmatmul.bf16.gmra.mxu0 %v5455
        %v5537 = vpop.f32.mrf.mxu0
        %v5538 = vadd.f32 0.0, %v5537
        %v5539 = vpop.f32.mrf.mxu0
        %v5540 = vadd.f32 0.0, %v5539
        %5541 = vmatmul.bf16.gmra.mxu0 %v5458
        %v5542 = vpop.f32.mrf.mxu0
        %v5543 = vadd.f32 0.0, %v5542
        %v5544 = vpop.f32.mrf.mxu0
        %v5545 = vadd.f32 0.0, %v5544
        %5546 = vmatmul.bf16.gmra.mxu0 %v5461
        %v5547 = vpop.f32.mrf.mxu0
        %v5548 = vadd.f32 0.0, %v5547
        %v5549 = vpop.f32.mrf.mxu0
        %v5550 = vadd.f32 0.0, %v5549
        %5551 = vdwg.mxu0
        %5552 = vmatpush.bf16.msra.mxu0 0
        %5553 = vmatpush.bf16.msra.mxu0 0
        %5554 = vmatpush.bf16.msra.mxu0 0
        %5555 = vmatpush.bf16.msra.mxu0 0
        %5556 = vmatpush.bf16.msra.mxu0 0
        %5557 = vmatpush.bf16.msra.mxu0 0
        %5558 = vmatpush.bf16.msra.mxu0 %v5410
        %5559 = vmatpush.bf16.msra.mxu0 %v5408
        %5560 = vmatmul.bf16.gmra.mxu0 %v5416
        %v5561 = vpop.f32.mrf.mxu0
        %v5562 = vadd.f32 0.0, %v5561
        %v5563 = vpop.f32.mrf.mxu0
        %v5564 = vadd.f32 0.0, %v5563
        %5565 = vmatmul.bf16.gmra.mxu0 %v5419
        %v5566 = vpop.f32.mrf.mxu0
        %v5567 = vadd.f32 0.0, %v5566
        %v5568 = vpop.f32.mrf.mxu0
        %v5569 = vadd.f32 0.0, %v5568
        %5570 = vmatmul.bf16.gmra.mxu0 %v5422
        %v5571 = vpop.f32.mrf.mxu0
        %v5572 = vadd.f32 0.0, %v5571
        %v5573 = vpop.f32.mrf.mxu0
        %v5574 = vadd.f32 0.0, %v5573
        %5575 = vmatmul.bf16.gmra.mxu0 %v5425
        %v5576 = vpop.f32.mrf.mxu0
        %v5577 = vadd.f32 0.0, %v5576
        %v5578 = vpop.f32.mrf.mxu0
        %v5579 = vadd.f32 0.0, %v5578
        %5580 = vmatmul.bf16.gmra.mxu0 %v5428
        %v5581 = vpop.f32.mrf.mxu0
        %v5582 = vadd.f32 0.0, %v5581
        %v5583 = vpop.f32.mrf.mxu0
        %v5584 = vadd.f32 0.0, %v5583
        %5585 = vmatmul.bf16.gmra.mxu0 %v5431
        %v5586 = vpop.f32.mrf.mxu0
        %v5587 = vadd.f32 0.0, %v5586
        %v5588 = vpop.f32.mrf.mxu0
        %v5589 = vadd.f32 0.0, %v5588
        %5590 = vmatmul.bf16.gmra.mxu0 %v5434
        %v5591 = vpop.f32.mrf.mxu0
        %v5592 = vadd.f32 0.0, %v5591
        %v5593 = vpop.f32.mrf.mxu0
        %v5594 = vadd.f32 0.0, %v5593
        %5595 = vmatmul.bf16.gmra.mxu0 %v5437
        %v5596 = vpop.f32.mrf.mxu0
        %v5597 = vadd.f32 0.0, %v5596
        %v5598 = vpop.f32.mrf.mxu0
        %v5599 = vadd.f32 0.0, %v5598
        %5600 = vmatmul.bf16.gmra.mxu0 %v5440
        %v5601 = vpop.f32.mrf.mxu0
        %v5602 = vadd.f32 0.0, %v5601
        %v5603 = vpop.f32.mrf.mxu0
        %v5604 = vadd.f32 0.0, %v5603
        %5605 = vmatmul.bf16.gmra.mxu0 %v5443
        %v5606 = vpop.f32.mrf.mxu0
        %v5607 = vadd.f32 0.0, %v5606
        %v5608 = vpop.f32.mrf.mxu0
        %v5609 = vadd.f32 0.0, %v5608
        %5610 = vmatmul.bf16.gmra.mxu0 %v5446
        %v5611 = vpop.f32.mrf.mxu0
        %v5612 = vadd.f32 0.0, %v5611
        %v5613 = vpop.f32.mrf.mxu0
        %v5614 = vadd.f32 0.0, %v5613
        %5615 = vmatmul.bf16.gmra.mxu0 %v5449
        %v5616 = vpop.f32.mrf.mxu0
        %v5617 = vadd.f32 0.0, %v5616
        %v5618 = vpop.f32.mrf.mxu0
        %v5619 = vadd.f32 0.0, %v5618
        %5620 = vmatmul.bf16.gmra.mxu0 %v5452
        %v5621 = vpop.f32.mrf.mxu0
        %v5622 = vadd.f32 0.0, %v5621
        %v5623 = vpop.f32.mrf.mxu0
        %v5624 = vadd.f32 0.0, %v5623
        %5625 = vmatmul.bf16.gmra.mxu0 %v5455
        %v5626 = vpop.f32.mrf.mxu0
        %v5627 = vadd.f32 0.0, %v5626
        %v5628 = vpop.f32.mrf.mxu0
        %v5629 = vadd.f32 0.0, %v5628
        %5630 = vmatmul.bf16.gmra.mxu0 %v5458
        %v5631 = vpop.f32.mrf.mxu0
        %v5632 = vadd.f32 0.0, %v5631
        %v5633 = vpop.f32.mrf.mxu0
        %v5634 = vadd.f32 0.0, %v5633
        %5635 = vmatmul.bf16.gmra.mxu0 %v5461
        %v5636 = vpop.f32.mrf.mxu0
        %v5637 = vadd.f32 0.0, %v5636
        %v5638 = vpop.f32.mrf.mxu0
        %v5639 = vadd.f32 0.0, %v5638
        %5640 = vdwg.mxu0
        %v5641 = vmax.f32 %v5473, %v5562
        %5642 = vmax.xlane.f32.xlu0 %v5641
        %v5643 = vpop.xlane.xlu0 %5642
        %v5644 = vmax.f32 %v5475, %v5564
        %5645 = vmax.xlane.f32.xlu0 %v5644
        %v5646 = vpop.xlane.xlu0 %5645
        %v5647 = vmax.f32 %v5478, %v5567
        %5648 = vmax.xlane.f32.xlu0 %v5647
        %v5649 = vpop.xlane.xlu0 %5648
        %v5650 = vmax.f32 %v5480, %v5569
        %5651 = vmax.xlane.f32.xlu0 %v5650
        %v5652 = vpop.xlane.xlu0 %5651
        %v5653 = vmax.f32 %v5483, %v5572
        %5654 = vmax.xlane.f32.xlu0 %v5653
        %v5655 = vpop.xlane.xlu0 %5654
        %v5656 = vmax.f32 %v5485, %v5574
        %5657 = vmax.xlane.f32.xlu0 %v5656
        %v5658 = vpop.xlane.xlu0 %5657
        %v5659 = vmax.f32 %v5488, %v5577
        %5660 = vmax.xlane.f32.xlu0 %v5659
        %v5661 = vpop.xlane.xlu0 %5660
        %v5662 = vmax.f32 %v5490, %v5579
        %5663 = vmax.xlane.f32.xlu0 %v5662
        %v5664 = vpop.xlane.xlu0 %5663
        %v5665 = vmax.f32 %v5493, %v5582
        %5666 = vmax.xlane.f32.xlu0 %v5665
        %v5667 = vpop.xlane.xlu0 %5666
        %v5668 = vmax.f32 %v5495, %v5584
        %5669 = vmax.xlane.f32.xlu0 %v5668
        %v5670 = vpop.xlane.xlu0 %5669
        %v5671 = vmax.f32 %v5498, %v5587
        %5672 = vmax.xlane.f32.xlu0 %v5671
        %v5673 = vpop.xlane.xlu0 %5672
        %v5674 = vmax.f32 %v5500, %v5589
        %5675 = vmax.xlane.f32.xlu0 %v5674
        %v5676 = vpop.xlane.xlu0 %5675
        %v5677 = vmax.f32 %v5503, %v5592
        %5678 = vmax.xlane.f32.xlu0 %v5677
        %v5679 = vpop.xlane.xlu0 %5678
        %v5680 = vmax.f32 %v5505, %v5594
        %5681 = vmax.xlane.f32.xlu0 %v5680
        %v5682 = vpop.xlane.xlu0 %5681
        %v5683 = vmax.f32 %v5508, %v5597
        %5684 = vmax.xlane.f32.xlu0 %v5683
        %v5685 = vpop.xlane.xlu0 %5684
        %v5686 = vmax.f32 %v5510, %v5599
        %5687 = vmax.xlane.f32.xlu0 %v5686
        %v5688 = vpop.xlane.xlu0 %5687
        %v5689 = vmax.f32 %v5513, %v5602
        %5690 = vmax.xlane.f32.xlu0 %v5689
        %v5691 = vpop.xlane.xlu0 %5690
        %v5692 = vmax.f32 %v5515, %v5604
        %5693 = vmax.xlane.f32.xlu0 %v5692
        %v5694 = vpop.xlane.xlu0 %5693
        %v5695 = vmax.f32 %v5518, %v5607
        %5696 = vmax.xlane.f32.xlu0 %v5695
        %v5697 = vpop.xlane.xlu0 %5696
        %v5698 = vmax.f32 %v5520, %v5609
        %5699 = vmax.xlane.f32.xlu0 %v5698
        %v5700 = vpop.xlane.xlu0 %5699
        %v5701 = vmax.f32 %v5523, %v5612
        %5702 = vmax.xlane.f32.xlu0 %v5701
        %v5703 = vpop.xlane.xlu0 %5702
        %v5704 = vmax.f32 %v5525, %v5614
        %5705 = vmax.xlane.f32.xlu0 %v5704
        %v5706 = vpop.xlane.xlu0 %5705
        %v5707 = vmax.f32 %v5528, %v5617
        %5708 = vmax.xlane.f32.xlu0 %v5707
        %v5709 = vpop.xlane.xlu0 %5708
        %v5710 = vmax.f32 %v5530, %v5619
        %5711 = vmax.xlane.f32.xlu0 %v5710
        %v5712 = vpop.xlane.xlu0 %5711
        %v5713 = vmax.f32 %v5533, %v5622
        %5714 = vmax.xlane.f32.xlu0 %v5713
        %v5715 = vpop.xlane.xlu0 %5714
        %v5716 = vmax.f32 %v5535, %v5624
        %5717 = vmax.xlane.f32.xlu0 %v5716
        %v5718 = vpop.xlane.xlu0 %5717
        %v5719 = vmax.f32 %v5538, %v5627
        %5720 = vmax.xlane.f32.xlu0 %v5719
        %v5721 = vpop.xlane.xlu0 %5720
        %v5722 = vmax.f32 %v5540, %v5629
        %5723 = vmax.xlane.f32.xlu0 %v5722
        %v5724 = vpop.xlane.xlu0 %5723
        %v5725 = vmax.f32 %v5543, %v5632
        %5726 = vmax.xlane.f32.xlu0 %v5725
        %v5727 = vpop.xlane.xlu0 %5726
        %v5728 = vmax.f32 %v5545, %v5634
        %5729 = vmax.xlane.f32.xlu0 %v5728
        %v5730 = vpop.xlane.xlu0 %5729
        %v5731 = vmax.f32 %v5548, %v5637
        %5732 = vmax.xlane.f32.xlu0 %v5731
        %v5733 = vpop.xlane.xlu0 %5732
        %v5734 = vmax.f32 %v5550, %v5639
        %5735 = vmax.xlane.f32.xlu0 %v5734
        %v5736 = vpop.xlane.xlu0 %5735
        %v5737 = vsub.f32 %v5473, %v5643
        %v5738 = vsub.f32 %v5562, %v5643
        %v5739 = vsub.f32 %v5475, %v5646
        %v5740 = vsub.f32 %v5564, %v5646
        %v5741 = vsub.f32 %v5478, %v5649
        %v5742 = vsub.f32 %v5567, %v5649
        %v5743 = vsub.f32 %v5480, %v5652
        %v5744 = vsub.f32 %v5569, %v5652
        %v5745 = vsub.f32 %v5483, %v5655
        %v5746 = vsub.f32 %v5572, %v5655
        %v5747 = vsub.f32 %v5485, %v5658
        %v5748 = vsub.f32 %v5574, %v5658
        %v5749 = vsub.f32 %v5488, %v5661
        %v5750 = vsub.f32 %v5577, %v5661
        %v5751 = vsub.f32 %v5490, %v5664
        %v5752 = vsub.f32 %v5579, %v5664
        %v5753 = vsub.f32 %v5493, %v5667
        %v5754 = vsub.f32 %v5582, %v5667
        %v5755 = vsub.f32 %v5495, %v5670
        %v5756 = vsub.f32 %v5584, %v5670
        %v5757 = vsub.f32 %v5498, %v5673
        %v5758 = vsub.f32 %v5587, %v5673
        %v5759 = vsub.f32 %v5500, %v5676
        %v5760 = vsub.f32 %v5589, %v5676
        %v5761 = vsub.f32 %v5503, %v5679
        %v5762 = vsub.f32 %v5592, %v5679
        %v5763 = vsub.f32 %v5505, %v5682
        %v5764 = vsub.f32 %v5594, %v5682
        %v5765 = vsub.f32 %v5508, %v5685
        %v5766 = vsub.f32 %v5597, %v5685
        %v5767 = vsub.f32 %v5510, %v5688
        %v5768 = vsub.f32 %v5599, %v5688
        %v5769 = vsub.f32 %v5513, %v5691
        %v5770 = vsub.f32 %v5602, %v5691
        %v5771 = vsub.f32 %v5515, %v5694
        %v5772 = vsub.f32 %v5604, %v5694
        %v5773 = vsub.f32 %v5518, %v5697
        %v5774 = vsub.f32 %v5607, %v5697
        %v5775 = vsub.f32 %v5520, %v5700
        %v5776 = vsub.f32 %v5609, %v5700
        %v5777 = vsub.f32 %v5523, %v5703
        %v5778 = vsub.f32 %v5612, %v5703
        %v5779 = vsub.f32 %v5525, %v5706
        %v5780 = vsub.f32 %v5614, %v5706
        %v5781 = vsub.f32 %v5528, %v5709
        %v5782 = vsub.f32 %v5617, %v5709
        %v5783 = vsub.f32 %v5530, %v5712
        %v5784 = vsub.f32 %v5619, %v5712
        %v5785 = vsub.f32 %v5533, %v5715
        %v5786 = vsub.f32 %v5622, %v5715
        %v5787 = vsub.f32 %v5535, %v5718
        %v5788 = vsub.f32 %v5624, %v5718
        %v5789 = vsub.f32 %v5538, %v5721
        %v5790 = vsub.f32 %v5627, %v5721
        %v5791 = vsub.f32 %v5540, %v5724
        %v5792 = vsub.f32 %v5629, %v5724
        %v5793 = vsub.f32 %v5543, %v5727
        %v5794 = vsub.f32 %v5632, %v5727
        %v5795 = vsub.f32 %v5545, %v5730
        %v5796 = vsub.f32 %v5634, %v5730
        %v5797 = vsub.f32 %v5548, %v5733
        %v5798 = vsub.f32 %v5637, %v5733
        %v5799 = vsub.f32 %v5550, %v5736
        %v5800 = vsub.f32 %v5639, %v5736
        %v5801 = vmul.f32 %v5737, 1.442695
        %v5802 = vpow.pop %v5801
        %v5803 = vmul.f32 %v5738, 1.442695
        %v5804 = vpow.pop %v5803
        %v5805 = vmul.f32 %v5739, 1.442695
        %v5806 = vpow.pop %v5805
        %v5807 = vmul.f32 %v5740, 1.442695
        %v5808 = vpow.pop %v5807
        %v5809 = vmul.f32 %v5741, 1.442695
        %v5810 = vpow.pop %v5809
        %v5811 = vmul.f32 %v5742, 1.442695
        %v5812 = vpow.pop %v5811
        %v5813 = vmul.f32 %v5743, 1.442695
        %v5814 = vpow.pop %v5813
        %v5815 = vmul.f32 %v5744, 1.442695
        %v5816 = vpow.pop %v5815
        %v5817 = vmul.f32 %v5745, 1.442695
        %v5818 = vpow.pop %v5817
        %v5819 = vmul.f32 %v5746, 1.442695
        %v5820 = vpow.pop %v5819
        %v5821 = vmul.f32 %v5747, 1.442695
        %v5822 = vpow.pop %v5821
        %v5823 = vmul.f32 %v5748, 1.442695
        %v5824 = vpow.pop %v5823
        %v5825 = vmul.f32 %v5749, 1.442695
        %v5826 = vpow.pop %v5825
        %v5827 = vmul.f32 %v5750, 1.442695
        %v5828 = vpow.pop %v5827
        %v5829 = vmul.f32 %v5751, 1.442695
        %v5830 = vpow.pop %v5829
        %v5831 = vmul.f32 %v5752, 1.442695
        %v5832 = vpow.pop %v5831
        %v5833 = vmul.f32 %v5753, 1.442695
        %v5834 = vpow.pop %v5833
        %v5835 = vmul.f32 %v5754, 1.442695
        %v5836 = vpow.pop %v5835
        %v5837 = vmul.f32 %v5755, 1.442695
        %v5838 = vpow.pop %v5837
        %v5839 = vmul.f32 %v5756, 1.442695
        %v5840 = vpow.pop %v5839
        %v5841 = vmul.f32 %v5757, 1.442695
        %v5842 = vpow.pop %v5841
        %v5843 = vmul.f32 %v5758, 1.442695
        %v5844 = vpow.pop %v5843
        %v5845 = vmul.f32 %v5759, 1.442695
        %v5846 = vpow.pop %v5845
        %v5847 = vmul.f32 %v5760, 1.442695
        %v5848 = vpow.pop %v5847
        %v5849 = vmul.f32 %v5761, 1.442695
        %v5850 = vpow.pop %v5849
        %v5851 = vmul.f32 %v5762, 1.442695
        %v5852 = vpow.pop %v5851
        %v5853 = vmul.f32 %v5763, 1.442695
        %v5854 = vpow.pop %v5853
        %v5855 = vmul.f32 %v5764, 1.442695
        %v5856 = vpow.pop %v5855
        %v5857 = vmul.f32 %v5765, 1.442695
        %v5858 = vpow.pop %v5857
        %v5859 = vmul.f32 %v5766, 1.442695
        %v5860 = vpow.pop %v5859
        %v5861 = vmul.f32 %v5767, 1.442695
        %v5862 = vpow.pop %v5861
        %v5863 = vmul.f32 %v5768, 1.442695
        %v5864 = vpow.pop %v5863
        %v5865 = vmul.f32 %v5769, 1.442695
        %v5866 = vpow.pop %v5865
        %v5867 = vmul.f32 %v5770, 1.442695
        %v5868 = vpow.pop %v5867
        %v5869 = vmul.f32 %v5771, 1.442695
        %v5870 = vpow.pop %v5869
        %v5871 = vmul.f32 %v5772, 1.442695
        %v5872 = vpow.pop %v5871
        %v5873 = vmul.f32 %v5773, 1.442695
        %v5874 = vpow.pop %v5873
        %v5875 = vmul.f32 %v5774, 1.442695
        %v5876 = vpow.pop %v5875
        %v5877 = vmul.f32 %v5775, 1.442695
        %v5878 = vpow.pop %v5877
        %v5879 = vmul.f32 %v5776, 1.442695
        %v5880 = vpow.pop %v5879
        %v5881 = vmul.f32 %v5777, 1.442695
        %v5882 = vpow.pop %v5881
        %v5883 = vmul.f32 %v5778, 1.442695
        %v5884 = vpow.pop %v5883
        %v5885 = vmul.f32 %v5779, 1.442695
        %v5886 = vpow.pop %v5885
        %v5887 = vmul.f32 %v5780, 1.442695
        %v5888 = vpow.pop %v5887
        %v5889 = vmul.f32 %v5781, 1.442695
        %v5890 = vpow.pop %v5889
        %v5891 = vmul.f32 %v5782, 1.442695
        %v5892 = vpow.pop %v5891
        %v5893 = vmul.f32 %v5783, 1.442695
        %v5894 = vpow.pop %v5893
        %v5895 = vmul.f32 %v5784, 1.442695
        %v5896 = vpow.pop %v5895
        %v5897 = vmul.f32 %v5785, 1.442695
        %v5898 = vpow.pop %v5897
        %v5899 = vmul.f32 %v5786, 1.442695
        %v5900 = vpow.pop %v5899
        %v5901 = vmul.f32 %v5787, 1.442695
        %v5902 = vpow.pop %v5901
        %v5903 = vmul.f32 %v5788, 1.442695
        %v5904 = vpow.pop %v5903
        %v5905 = vmul.f32 %v5789, 1.442695
        %v5906 = vpow.pop %v5905
        %v5907 = vmul.f32 %v5790, 1.442695
        %v5908 = vpow.pop %v5907
        %v5909 = vmul.f32 %v5791, 1.442695
        %v5910 = vpow.pop %v5909
        %v5911 = vmul.f32 %v5792, 1.442695
        %v5912 = vpow.pop %v5911
        %v5913 = vmul.f32 %v5793, 1.442695
        %v5914 = vpow.pop %v5913
        %v5915 = vmul.f32 %v5794, 1.442695
        %v5916 = vpow.pop %v5915
        %v5917 = vmul.f32 %v5795, 1.442695
        %v5918 = vpow.pop %v5917
        %v5919 = vmul.f32 %v5796, 1.442695
        %v5920 = vpow.pop %v5919
        %v5921 = vmul.f32 %v5797, 1.442695
        %v5922 = vpow.pop %v5921
        %v5923 = vmul.f32 %v5798, 1.442695
        %v5924 = vpow.pop %v5923
        %v5925 = vmul.f32 %v5799, 1.442695
        %v5926 = vpow.pop %v5925
        %v5927 = vmul.f32 %v5800, 1.442695
        %v5928 = vpow.pop %v5927
        %v5929 = vadd.f32 %v5802, %v5804
        %5930 = vadd.xlane.f32.xlu0 %v5929
        %v5931 = vpop.xlane.xlu0 %5930
        %v5932 = vadd.f32 %v5806, %v5808
        %5933 = vadd.xlane.f32.xlu0 %v5932
        %v5934 = vpop.xlane.xlu0 %5933
        %v5935 = vadd.f32 %v5810, %v5812
        %5936 = vadd.xlane.f32.xlu0 %v5935
        %v5937 = vpop.xlane.xlu0 %5936
        %v5938 = vadd.f32 %v5814, %v5816
        %5939 = vadd.xlane.f32.xlu0 %v5938
        %v5940 = vpop.xlane.xlu0 %5939
        %v5941 = vadd.f32 %v5818, %v5820
        %5942 = vadd.xlane.f32.xlu0 %v5941
        %v5943 = vpop.xlane.xlu0 %5942
        %v5944 = vadd.f32 %v5822, %v5824
        %5945 = vadd.xlane.f32.xlu0 %v5944
        %v5946 = vpop.xlane.xlu0 %5945
        %v5947 = vadd.f32 %v5826, %v5828
        %5948 = vadd.xlane.f32.xlu0 %v5947
        %v5949 = vpop.xlane.xlu0 %5948
        %v5950 = vadd.f32 %v5830, %v5832
        %5951 = vadd.xlane.f32.xlu0 %v5950
        %v5952 = vpop.xlane.xlu0 %5951
        %v5953 = vadd.f32 %v5834, %v5836
        %5954 = vadd.xlane.f32.xlu0 %v5953
        %v5955 = vpop.xlane.xlu0 %5954
        %v5956 = vadd.f32 %v5838, %v5840
        %5957 = vadd.xlane.f32.xlu0 %v5956
        %v5958 = vpop.xlane.xlu0 %5957
        %v5959 = vadd.f32 %v5842, %v5844
        %5960 = vadd.xlane.f32.xlu0 %v5959
        %v5961 = vpop.xlane.xlu0 %5960
        %v5962 = vadd.f32 %v5846, %v5848
        %5963 = vadd.xlane.f32.xlu0 %v5962
        %v5964 = vpop.xlane.xlu0 %5963
        %v5965 = vadd.f32 %v5850, %v5852
        %5966 = vadd.xlane.f32.xlu0 %v5965
        %v5967 = vpop.xlane.xlu0 %5966
        %v5968 = vadd.f32 %v5854, %v5856
        %5969 = vadd.xlane.f32.xlu0 %v5968
        %v5970 = vpop.xlane.xlu0 %5969
        %v5971 = vadd.f32 %v5858, %v5860
        %5972 = vadd.xlane.f32.xlu0 %v5971
        %v5973 = vpop.xlane.xlu0 %5972
        %v5974 = vadd.f32 %v5862, %v5864
        %5975 = vadd.xlane.f32.xlu0 %v5974
        %v5976 = vpop.xlane.xlu0 %5975
        %v5977 = vadd.f32 %v5866, %v5868
        %5978 = vadd.xlane.f32.xlu0 %v5977
        %v5979 = vpop.xlane.xlu0 %5978
        %v5980 = vadd.f32 %v5870, %v5872
        %5981 = vadd.xlane.f32.xlu0 %v5980
        %v5982 = vpop.xlane.xlu0 %5981
        %v5983 = vadd.f32 %v5874, %v5876
        %5984 = vadd.xlane.f32.xlu0 %v5983
        %v5985 = vpop.xlane.xlu0 %5984
        %v5986 = vadd.f32 %v5878, %v5880
        %5987 = vadd.xlane.f32.xlu0 %v5986
        %v5988 = vpop.xlane.xlu0 %5987
        %v5989 = vadd.f32 %v5882, %v5884
        %5990 = vadd.xlane.f32.xlu0 %v5989
        %v5991 = vpop.xlane.xlu0 %5990
        %v5992 = vadd.f32 %v5886, %v5888
        %5993 = vadd.xlane.f32.xlu0 %v5992
        %v5994 = vpop.xlane.xlu0 %5993
        %v5995 = vadd.f32 %v5890, %v5892
        %5996 = vadd.xlane.f32.xlu0 %v5995
        %v5997 = vpop.xlane.xlu0 %5996
        %v5998 = vadd.f32 %v5894, %v5896
        %5999 = vadd.xlane.f32.xlu0 %v5998
        %v6000 = vpop.xlane.xlu0 %5999
        %v6001 = vadd.f32 %v5898, %v5900
        %6002 = vadd.xlane.f32.xlu0 %v6001
        %v6003 = vpop.xlane.xlu0 %6002
        %v6004 = vadd.f32 %v5902, %v5904
        %6005 = vadd.xlane.f32.xlu0 %v6004
        %v6006 = vpop.xlane.xlu0 %6005
        %v6007 = vadd.f32 %v5906, %v5908
        %6008 = vadd.xlane.f32.xlu0 %v6007
        %v6009 = vpop.xlane.xlu0 %6008
        %v6010 = vadd.f32 %v5910, %v5912
        %6011 = vadd.xlane.f32.xlu0 %v6010
        %v6012 = vpop.xlane.xlu0 %6011
        %v6013 = vadd.f32 %v5914, %v5916
        %6014 = vadd.xlane.f32.xlu0 %v6013
        %v6015 = vpop.xlane.xlu0 %6014
        %v6016 = vadd.f32 %v5918, %v5920
        %6017 = vadd.xlane.f32.xlu0 %v6016
        %v6018 = vpop.xlane.xlu0 %6017
        %v6019 = vadd.f32 %v5922, %v5924
        %6020 = vadd.xlane.f32.xlu0 %v6019
        %v6021 = vpop.xlane.xlu0 %6020
        %v6022 = vadd.f32 %v5926, %v5928
        %6023 = vadd.xlane.f32.xlu0 %v6022
        %v6024 = vpop.xlane.xlu0 %6023
        %v6025 = vpack.c.bf16 %v5806, %v5802
        %v6026 = vpack.c.bf16 %v5808, %v5804
        %v6027 = vpack.c.bf16 %v5814, %v5810
        %v6028 = vpack.c.bf16 %v5816, %v5812
        %v6029 = vpack.c.bf16 %v5822, %v5818
        %v6030 = vpack.c.bf16 %v5824, %v5820
        %v6031 = vpack.c.bf16 %v5830, %v5826
        %v6032 = vpack.c.bf16 %v5832, %v5828
        %v6033 = vpack.c.bf16 %v5838, %v5834
        %v6034 = vpack.c.bf16 %v5840, %v5836
        %v6035 = vpack.c.bf16 %v5846, %v5842
        %v6036 = vpack.c.bf16 %v5848, %v5844
        %v6037 = vpack.c.bf16 %v5854, %v5850
        %v6038 = vpack.c.bf16 %v5856, %v5852
        %v6039 = vpack.c.bf16 %v5862, %v5858
        %v6040 = vpack.c.bf16 %v5864, %v5860
        %v6041 = vpack.c.bf16 %v5870, %v5866
        %v6042 = vpack.c.bf16 %v5872, %v5868
        %v6043 = vpack.c.bf16 %v5878, %v5874
        %v6044 = vpack.c.bf16 %v5880, %v5876
        %v6045 = vpack.c.bf16 %v5886, %v5882
        %v6046 = vpack.c.bf16 %v5888, %v5884
        %v6047 = vpack.c.bf16 %v5894, %v5890
        %v6048 = vpack.c.bf16 %v5896, %v5892
        %v6049 = vpack.c.bf16 %v5902, %v5898
        %v6050 = vpack.c.bf16 %v5904, %v5900
        %v6051 = vpack.c.bf16 %v5910, %v5906
        %v6052 = vpack.c.bf16 %v5912, %v5908
        %v6053 = vpack.c.bf16 %v5918, %v5914
        %v6054 = vpack.c.bf16 %v5920, %v5916
        %v6055 = vpack.c.bf16 %v5926, %v5922
        %v6056 = vpack.c.bf16 %v5928, %v5924
        %6057 = vrot.lane.b32.xlu0 %v2578, 32
        %v6058 = vpop.permute.xlu0 %6057
        %6059 = vrot.lane.b32.xlu0 %v2579, 32
        %v6060 = vpop.permute.xlu0 %6059
        %6061 = vrot.lane.b32.xlu0 %v2580, 32
        %v6062 = vpop.permute.xlu0 %6061
        %6063 = vrot.lane.b32.xlu0 %v2581, 32
        %v6064 = vpop.permute.xlu0 %6063
        %6065 = vrot.lane.b32.xlu0 %v2582, 32
        %v6066 = vpop.permute.xlu0 %6065
        %6067 = vrot.lane.b32.xlu0 %v2583, 32
        %v6068 = vpop.permute.xlu0 %6067
        %6069 = vrot.lane.b32.xlu0 %v2584, 32
        %v6070 = vpop.permute.xlu0 %6069
        %6071 = vrot.lane.b32.xlu0 %v2585, 32
        %v6072 = vpop.permute.xlu0 %6071
        %6073 = vrot.lane.b32.xlu0 %v2586, 32
        %v6074 = vpop.permute.xlu0 %6073
        %6075 = vrot.lane.b32.xlu0 %v2587, 32
        %v6076 = vpop.permute.xlu0 %6075
        %6077 = vrot.lane.b32.xlu0 %v2588, 32
        %v6078 = vpop.permute.xlu0 %6077
        %6079 = vrot.lane.b32.xlu0 %v2589, 32
        %v6080 = vpop.permute.xlu0 %6079
        %6081 = vrot.lane.b32.xlu0 %v2590, 32
        %v6082 = vpop.permute.xlu0 %6081
        %6083 = vrot.lane.b32.xlu0 %v2591, 32
        %v6084 = vpop.permute.xlu0 %6083
        %6085 = vrot.lane.b32.xlu0 %v2592, 32
        %v6086 = vpop.permute.xlu0 %6085
        %6087 = vrot.lane.b32.xlu0 %v2593, 32
        %v6088 = vpop.permute.xlu0 %6087
        %6105 = vmatpush.bf16.msra.mxu0 %v6072
        %6106 = vmatpush.bf16.msra.mxu0 %v6070
        %6107 = vmatpush.bf16.msra.mxu0 %v6068
        %6108 = vmatpush.bf16.msra.mxu0 %v6066
        %6109 = vmatpush.bf16.msra.mxu0 %v6064
        %6110 = vmatpush.bf16.msra.mxu0 %v6062
        %6111 = vmatpush.bf16.msra.mxu0 %v6060
        %6112 = vmatpush.bf16.msra.mxu0 %v6058
        %6113 = vmatmul.bf16.gmra.mxu0 %v6025
        %v6114 = vpop.f32.mrf.mxu0
        %v6115 = vadd.f32 0.0, %v6114
        %v6116 = vpop.f32.mrf.mxu0
        %v6117 = vadd.f32 0.0, %v6116
        %6118 = vmatmul.bf16.gmra.mxu0 %v6027
        %v6119 = vpop.f32.mrf.mxu0
        %v6120 = vadd.f32 0.0, %v6119
        %v6121 = vpop.f32.mrf.mxu0
        %v6122 = vadd.f32 0.0, %v6121
        %6123 = vmatmul.bf16.gmra.mxu0 %v6029
        %v6124 = vpop.f32.mrf.mxu0
        %v6125 = vadd.f32 0.0, %v6124
        %v6126 = vpop.f32.mrf.mxu0
        %v6127 = vadd.f32 0.0, %v6126
        %6128 = vmatmul.bf16.gmra.mxu0 %v6031
        %v6129 = vpop.f32.mrf.mxu0
        %v6130 = vadd.f32 0.0, %v6129
        %v6131 = vpop.f32.mrf.mxu0
        %v6132 = vadd.f32 0.0, %v6131
        %6133 = vmatmul.bf16.gmra.mxu0 %v6033
        %v6134 = vpop.f32.mrf.mxu0
        %v6135 = vadd.f32 0.0, %v6134
        %v6136 = vpop.f32.mrf.mxu0
        %v6137 = vadd.f32 0.0, %v6136
        %6138 = vmatmul.bf16.gmra.mxu0 %v6035
        %v6139 = vpop.f32.mrf.mxu0
        %v6140 = vadd.f32 0.0, %v6139
        %v6141 = vpop.f32.mrf.mxu0
        %v6142 = vadd.f32 0.0, %v6141
        %6143 = vmatmul.bf16.gmra.mxu0 %v6037
        %v6144 = vpop.f32.mrf.mxu0
        %v6145 = vadd.f32 0.0, %v6144
        %v6146 = vpop.f32.mrf.mxu0
        %v6147 = vadd.f32 0.0, %v6146
        %6148 = vmatmul.bf16.gmra.mxu0 %v6039
        %v6149 = vpop.f32.mrf.mxu0
        %v6150 = vadd.f32 0.0, %v6149
        %v6151 = vpop.f32.mrf.mxu0
        %v6152 = vadd.f32 0.0, %v6151
        %6153 = vmatmul.bf16.gmra.mxu0 %v6041
        %v6154 = vpop.f32.mrf.mxu0
        %v6155 = vadd.f32 0.0, %v6154
        %v6156 = vpop.f32.mrf.mxu0
        %v6157 = vadd.f32 0.0, %v6156
        %6158 = vmatmul.bf16.gmra.mxu0 %v6043
        %v6159 = vpop.f32.mrf.mxu0
        %v6160 = vadd.f32 0.0, %v6159
        %v6161 = vpop.f32.mrf.mxu0
        %v6162 = vadd.f32 0.0, %v6161
        %6163 = vmatmul.bf16.gmra.mxu0 %v6045
        %v6164 = vpop.f32.mrf.mxu0
        %v6165 = vadd.f32 0.0, %v6164
        %v6166 = vpop.f32.mrf.mxu0
        %v6167 = vadd.f32 0.0, %v6166
        %6168 = vmatmul.bf16.gmra.mxu0 %v6047
        %v6169 = vpop.f32.mrf.mxu0
        %v6170 = vadd.f32 0.0, %v6169
        %v6171 = vpop.f32.mrf.mxu0
        %v6172 = vadd.f32 0.0, %v6171
        %6173 = vmatmul.bf16.gmra.mxu0 %v6049
        %v6174 = vpop.f32.mrf.mxu0
        %v6175 = vadd.f32 0.0, %v6174
        %v6176 = vpop.f32.mrf.mxu0
        %v6177 = vadd.f32 0.0, %v6176
        %6178 = vmatmul.bf16.gmra.mxu0 %v6051
        %v6179 = vpop.f32.mrf.mxu0
        %v6180 = vadd.f32 0.0, %v6179
        %v6181 = vpop.f32.mrf.mxu0
        %v6182 = vadd.f32 0.0, %v6181
        %6183 = vmatmul.bf16.gmra.mxu0 %v6053
        %v6184 = vpop.f32.mrf.mxu0
        %v6185 = vadd.f32 0.0, %v6184
        %v6186 = vpop.f32.mrf.mxu0
        %v6187 = vadd.f32 0.0, %v6186
        %6188 = vmatmul.bf16.gmra.mxu0 %v6055
        %v6189 = vpop.f32.mrf.mxu0
        %v6190 = vadd.f32 0.0, %v6189
        %v6191 = vpop.f32.mrf.mxu0
        %v6192 = vadd.f32 0.0, %v6191
        %6193 = vdwg.mxu0
        %6194 = vmatpush.bf16.msra.mxu0 %v6088
        %6195 = vmatpush.bf16.msra.mxu0 %v6086
        %6196 = vmatpush.bf16.msra.mxu0 %v6084
        %6197 = vmatpush.bf16.msra.mxu0 %v6082
        %6198 = vmatpush.bf16.msra.mxu0 %v6080
        %6199 = vmatpush.bf16.msra.mxu0 %v6078
        %6200 = vmatpush.bf16.msra.mxu0 %v6076
        %6201 = vmatpush.bf16.msra.mxu0 %v6074
        %6202 = vmatmul.bf16.gmra.mxu0 %v6026
        %v6203 = vpop.f32.mrf.mxu0
        %v6204 = vadd.f32 %v6115, %v6203
        %v6205 = vpop.f32.mrf.mxu0
        %v6206 = vadd.f32 %v6117, %v6205
        %6207 = vmatmul.bf16.gmra.mxu0 %v6028
        %v6208 = vpop.f32.mrf.mxu0
        %v6209 = vadd.f32 %v6120, %v6208
        %v6210 = vpop.f32.mrf.mxu0
        %v6211 = vadd.f32 %v6122, %v6210
        %6212 = vmatmul.bf16.gmra.mxu0 %v6030
        %v6213 = vpop.f32.mrf.mxu0
        %v6214 = vadd.f32 %v6125, %v6213
        %v6215 = vpop.f32.mrf.mxu0
        %v6216 = vadd.f32 %v6127, %v6215
        %6217 = vmatmul.bf16.gmra.mxu0 %v6032
        %v6218 = vpop.f32.mrf.mxu0
        %v6219 = vadd.f32 %v6130, %v6218
        %v6220 = vpop.f32.mrf.mxu0
        %v6221 = vadd.f32 %v6132, %v6220
        %6222 = vmatmul.bf16.gmra.mxu0 %v6034
        %v6223 = vpop.f32.mrf.mxu0
        %v6224 = vadd.f32 %v6135, %v6223
        %v6225 = vpop.f32.mrf.mxu0
        %v6226 = vadd.f32 %v6137, %v6225
        %6227 = vmatmul.bf16.gmra.mxu0 %v6036
        %v6228 = vpop.f32.mrf.mxu0
        %v6229 = vadd.f32 %v6140, %v6228
        %v6230 = vpop.f32.mrf.mxu0
        %v6231 = vadd.f32 %v6142, %v6230
        %6232 = vmatmul.bf16.gmra.mxu0 %v6038
        %v6233 = vpop.f32.mrf.mxu0
        %v6234 = vadd.f32 %v6145, %v6233
        %v6235 = vpop.f32.mrf.mxu0
        %v6236 = vadd.f32 %v6147, %v6235
        %6237 = vmatmul.bf16.gmra.mxu0 %v6040
        %v6238 = vpop.f32.mrf.mxu0
        %v6239 = vadd.f32 %v6150, %v6238
        %v6240 = vpop.f32.mrf.mxu0
        %v6241 = vadd.f32 %v6152, %v6240
        %6242 = vmatmul.bf16.gmra.mxu0 %v6042
        %v6243 = vpop.f32.mrf.mxu0
        %v6244 = vadd.f32 %v6155, %v6243
        %v6245 = vpop.f32.mrf.mxu0
        %v6246 = vadd.f32 %v6157, %v6245
        %6247 = vmatmul.bf16.gmra.mxu0 %v6044
        %v6248 = vpop.f32.mrf.mxu0
        %v6249 = vadd.f32 %v6160, %v6248
        %v6250 = vpop.f32.mrf.mxu0
        %v6251 = vadd.f32 %v6162, %v6250
        %6252 = vmatmul.bf16.gmra.mxu0 %v6046
        %v6253 = vpop.f32.mrf.mxu0
        %v6254 = vadd.f32 %v6165, %v6253
        %v6255 = vpop.f32.mrf.mxu0
        %v6256 = vadd.f32 %v6167, %v6255
        %6257 = vmatmul.bf16.gmra.mxu0 %v6048
        %v6258 = vpop.f32.mrf.mxu0
        %v6259 = vadd.f32 %v6170, %v6258
        %v6260 = vpop.f32.mrf.mxu0
        %v6261 = vadd.f32 %v6172, %v6260
        %6262 = vmatmul.bf16.gmra.mxu0 %v6050
        %v6263 = vpop.f32.mrf.mxu0
        %v6264 = vadd.f32 %v6175, %v6263
        %v6265 = vpop.f32.mrf.mxu0
        %v6266 = vadd.f32 %v6177, %v6265
        %6267 = vmatmul.bf16.gmra.mxu0 %v6052
        %v6268 = vpop.f32.mrf.mxu0
        %v6269 = vadd.f32 %v6180, %v6268
        %v6270 = vpop.f32.mrf.mxu0
        %v6271 = vadd.f32 %v6182, %v6270
        %6272 = vmatmul.bf16.gmra.mxu0 %v6054
        %v6273 = vpop.f32.mrf.mxu0
        %v6274 = vadd.f32 %v6185, %v6273
        %v6275 = vpop.f32.mrf.mxu0
        %v6276 = vadd.f32 %v6187, %v6275
        %6277 = vmatmul.bf16.gmra.mxu0 %v6056
        %v6278 = vpop.f32.mrf.mxu0
        %v6279 = vadd.f32 %v6190, %v6278
        %v6280 = vpop.f32.mrf.mxu0
        %v6281 = vadd.f32 %v6192, %v6280
        %6282 = vdwg.mxu0
        %v6283 = vrcp.pop %v5931
        %v6284 = vrcp.pop %v5934
        %v6285 = vrcp.pop %v5937
        %v6286 = vrcp.pop %v5940
        %v6287 = vrcp.pop %v5943
        %v6288 = vrcp.pop %v5946
        %v6289 = vrcp.pop %v5949
        %v6290 = vrcp.pop %v5952
        %v6291 = vrcp.pop %v5955
        %v6292 = vrcp.pop %v5958
        %v6293 = vrcp.pop %v5961
        %v6294 = vrcp.pop %v5964
        %v6295 = vrcp.pop %v5967
        %v6296 = vrcp.pop %v5970
        %v6297 = vrcp.pop %v5973
        %v6298 = vrcp.pop %v5976
        %v6299 = vrcp.pop %v5979
        %v6300 = vrcp.pop %v5982
        %v6301 = vrcp.pop %v5985
        %v6302 = vrcp.pop %v5988
        %v6303 = vrcp.pop %v5991
        %v6304 = vrcp.pop %v5994
        %v6305 = vrcp.pop %v5997
        %v6306 = vrcp.pop %v6000
        %v6307 = vrcp.pop %v6003
        %v6308 = vrcp.pop %v6006
        %v6309 = vrcp.pop %v6009
        %v6310 = vrcp.pop %v6012
        %v6311 = vrcp.pop %v6015
        %v6312 = vrcp.pop %v6018
        %v6313 = vrcp.pop %v6021
        %v6314 = vrcp.pop %v6024
        %v6315 = vmul.f32 %v6204, %v6283
        %v6316 = vmul.f32 %v6206, %v6284
        %v6317 = vmul.f32 %v6209, %v6285
        %v6318 = vmul.f32 %v6211, %v6286
        %v6319 = vmul.f32 %v6214, %v6287
        %v6320 = vmul.f32 %v6216, %v6288
        %v6321 = vmul.f32 %v6219, %v6289
        %v6322 = vmul.f32 %v6221, %v6290
        %v6323 = vmul.f32 %v6224, %v6291
        %v6324 = vmul.f32 %v6226, %v6292
        %v6325 = vmul.f32 %v6229, %v6293
        %v6326 = vmul.f32 %v6231, %v6294
        %v6327 = vmul.f32 %v6234, %v6295
        %v6328 = vmul.f32 %v6236, %v6296
        %v6329 = vmul.f32 %v6239, %v6297
        %v6330 = vmul.f32 %v6241, %v6298
        %v6331 = vmul.f32 %v6244, %v6299
        %v6332 = vmul.f32 %v6246, %v6300
        %v6333 = vmul.f32 %v6249, %v6301
        %v6334 = vmul.f32 %v6251, %v6302
        %v6335 = vmul.f32 %v6254, %v6303
        %v6336 = vmul.f32 %v6256, %v6304
        %v6337 = vmul.f32 %v6259, %v6305
        %v6338 = vmul.f32 %v6261, %v6306
        %v6339 = vmul.f32 %v6264, %v6307
        %v6340 = vmul.f32 %v6266, %v6308
        %v6341 = vmul.f32 %v6269, %v6309
        %v6342 = vmul.f32 %v6271, %v6310
        %v6343 = vmul.f32 %v6274, %v6311
        %v6344 = vmul.f32 %v6276, %v6312
        %v6345 = vmul.f32 %v6279, %v6313
        %v6346 = vmul.f32 %v6281, %v6314
        %v6347 = vpack.c.bf16 %v6316, %v6315
        %v6348 = vpack.c.bf16 %v6318, %v6317
        %v6349 = vpack.c.bf16 %v6320, %v6319
        %v6350 = vpack.c.bf16 %v6322, %v6321
        %v6351 = vpack.c.bf16 %v6324, %v6323
        %v6352 = vpack.c.bf16 %v6326, %v6325
        %v6353 = vpack.c.bf16 %v6328, %v6327
        %v6354 = vpack.c.bf16 %v6330, %v6329
        %v6355 = vpack.c.bf16 %v6332, %v6331
        %v6356 = vpack.c.bf16 %v6334, %v6333
        %v6357 = vpack.c.bf16 %v6336, %v6335
        %v6358 = vpack.c.bf16 %v6338, %v6337
        %v6359 = vpack.c.bf16 %v6340, %v6339
        %v6360 = vpack.c.bf16 %v6342, %v6341
        %v6361 = vpack.c.bf16 %v6344, %v6343
        %v6362 = vpack.c.bf16 %v6346, %v6345
        %v6367 = vunpack.c.l.b16 %v1895
        %v6368 = vunpack.c.l.b16 %v1896
        %v6369 = vunpack.c.l.b16 %v1897
        %v6370 = vunpack.c.l.b16 %v1898
        %v6371 = vpack.c.b16 %v6368, %v6367
        %v6372 = vpack.c.b16 %v6370, %v6369
        %v6376 = vsel %vm1935, %v6347, 0
        %v6379 = vsel %vm1935, %v6348, 0
        %v6382 = vsel %vm1935, %v6349, 0
        %v6385 = vsel %vm1935, %v6350, 0
        %v6388 = vsel %vm1935, %v6351, 0
        %v6391 = vsel %vm1935, %v6352, 0
        %v6394 = vsel %vm1935, %v6353, 0
        %v6397 = vsel %vm1935, %v6354, 0
        %v6400 = vsel %vm1935, %v6355, 0
        %v6403 = vsel %vm1935, %v6356, 0
        %v6406 = vsel %vm1935, %v6357, 0
        %v6409 = vsel %vm1935, %v6358, 0
        %v6412 = vsel %vm1935, %v6359, 0
        %v6415 = vsel %vm1935, %v6360, 0
        %v6418 = vsel %vm1935, %v6361, 0
        %v6421 = vsel %vm1935, %v6362, 0
        %6423 = vmatpush.bf16.msra.mxu0 0
        %6424 = vmatpush.bf16.msra.mxu0 0
        %6425 = vmatpush.bf16.msra.mxu0 0
        %6426 = vmatpush.bf16.msra.mxu0 0
        %6427 = vmatpush.bf16.msra.mxu0 0
        %6428 = vmatpush.bf16.msra.mxu0 0
        %6429 = vmatpush.bf16.msra.mxu0 %v6372
        %6430 = vmatpush.bf16.msra.mxu0 %v6371
        %6431 = vmatmul.bf16.gmra.mxu0 %v6376
        %v6432 = vpop.f32.mrf.mxu0
        %v6433 = vadd.f32 0.0, %v6432
        %v6434 = vpop.f32.mrf.mxu0
        %v6435 = vadd.f32 0.0, %v6434
        %6436 = vmatmul.bf16.gmra.mxu0 %v6379
        %v6437 = vpop.f32.mrf.mxu0
        %v6438 = vadd.f32 0.0, %v6437
        %v6439 = vpop.f32.mrf.mxu0
        %v6440 = vadd.f32 0.0, %v6439
        %6441 = vmatmul.bf16.gmra.mxu0 %v6382
        %v6442 = vpop.f32.mrf.mxu0
        %v6443 = vadd.f32 0.0, %v6442
        %v6444 = vpop.f32.mrf.mxu0
        %v6445 = vadd.f32 0.0, %v6444
        %6446 = vmatmul.bf16.gmra.mxu0 %v6385
        %v6447 = vpop.f32.mrf.mxu0
        %v6448 = vadd.f32 0.0, %v6447
        %v6449 = vpop.f32.mrf.mxu0
        %v6450 = vadd.f32 0.0, %v6449
        %6451 = vmatmul.bf16.gmra.mxu0 %v6388
        %v6452 = vpop.f32.mrf.mxu0
        %v6453 = vadd.f32 0.0, %v6452
        %v6454 = vpop.f32.mrf.mxu0
        %v6455 = vadd.f32 0.0, %v6454
        %6456 = vmatmul.bf16.gmra.mxu0 %v6391
        %v6457 = vpop.f32.mrf.mxu0
        %v6458 = vadd.f32 0.0, %v6457
        %v6459 = vpop.f32.mrf.mxu0
        %v6460 = vadd.f32 0.0, %v6459
        %6461 = vmatmul.bf16.gmra.mxu0 %v6394
        %v6462 = vpop.f32.mrf.mxu0
        %v6463 = vadd.f32 0.0, %v6462
        %v6464 = vpop.f32.mrf.mxu0
        %v6465 = vadd.f32 0.0, %v6464
        %6466 = vmatmul.bf16.gmra.mxu0 %v6397
        %v6467 = vpop.f32.mrf.mxu0
        %v6468 = vadd.f32 0.0, %v6467
        %v6469 = vpop.f32.mrf.mxu0
        %v6470 = vadd.f32 0.0, %v6469
        %6471 = vmatmul.bf16.gmra.mxu0 %v6400
        %v6472 = vpop.f32.mrf.mxu0
        %v6473 = vadd.f32 0.0, %v6472
        %v6474 = vpop.f32.mrf.mxu0
        %v6475 = vadd.f32 0.0, %v6474
        %6476 = vmatmul.bf16.gmra.mxu0 %v6403
        %v6477 = vpop.f32.mrf.mxu0
        %v6478 = vadd.f32 0.0, %v6477
        %v6479 = vpop.f32.mrf.mxu0
        %v6480 = vadd.f32 0.0, %v6479
        %6481 = vmatmul.bf16.gmra.mxu0 %v6406
        %v6482 = vpop.f32.mrf.mxu0
        %v6483 = vadd.f32 0.0, %v6482
        %v6484 = vpop.f32.mrf.mxu0
        %v6485 = vadd.f32 0.0, %v6484
        %6486 = vmatmul.bf16.gmra.mxu0 %v6409
        %v6487 = vpop.f32.mrf.mxu0
        %v6488 = vadd.f32 0.0, %v6487
        %v6489 = vpop.f32.mrf.mxu0
        %v6490 = vadd.f32 0.0, %v6489
        %6491 = vmatmul.bf16.gmra.mxu0 %v6412
        %v6492 = vpop.f32.mrf.mxu0
        %v6493 = vadd.f32 0.0, %v6492
        %v6494 = vpop.f32.mrf.mxu0
        %v6495 = vadd.f32 0.0, %v6494
        %6496 = vmatmul.bf16.gmra.mxu0 %v6415
        %v6497 = vpop.f32.mrf.mxu0
        %v6498 = vadd.f32 0.0, %v6497
        %v6499 = vpop.f32.mrf.mxu0
        %v6500 = vadd.f32 0.0, %v6499
        %6501 = vmatmul.bf16.gmra.mxu0 %v6418
        %v6502 = vpop.f32.mrf.mxu0
        %v6503 = vadd.f32 0.0, %v6502
        %v6504 = vpop.f32.mrf.mxu0
        %v6505 = vadd.f32 0.0, %v6504
        %6506 = vmatmul.bf16.gmra.mxu0 %v6421
        %v6507 = vpop.f32.mrf.mxu0
        %v6508 = vadd.f32 0.0, %v6507
        %v6509 = vpop.f32.mrf.mxu0
        %v6510 = vadd.f32 0.0, %v6509
        %6511 = vdwg.mxu0
        %v6512 = vadd.f32 %v5331, %v6433
        %v6513 = vadd.f32 %v5332, %v6435
        %v6514 = vadd.f32 %v5333, %v6438
        %v6515 = vadd.f32 %v5334, %v6440
        %v6516 = vadd.f32 %v5335, %v6443
        %v6517 = vadd.f32 %v5336, %v6445
        %v6518 = vadd.f32 %v5337, %v6448
        %v6519 = vadd.f32 %v5338, %v6450
        %v6520 = vadd.f32 %v5339, %v6453
        %v6521 = vadd.f32 %v5340, %v6455
        %v6522 = vadd.f32 %v5341, %v6458
        %v6523 = vadd.f32 %v5342, %v6460
        %v6524 = vadd.f32 %v5343, %v6463
        %v6525 = vadd.f32 %v5344, %v6465
        %v6526 = vadd.f32 %v5345, %v6468
        %v6527 = vadd.f32 %v5346, %v6470
        %v6528 = vadd.f32 %v5347, %v6473
        %v6529 = vadd.f32 %v5348, %v6475
        %v6530 = vadd.f32 %v5349, %v6478
        %v6531 = vadd.f32 %v5350, %v6480
        %v6532 = vadd.f32 %v5351, %v6483
        %v6533 = vadd.f32 %v5352, %v6485
        %v6534 = vadd.f32 %v5353, %v6488
        %v6535 = vadd.f32 %v5354, %v6490
        %v6536 = vadd.f32 %v5355, %v6493
        %v6537 = vadd.f32 %v5356, %v6495
        %v6538 = vadd.f32 %v5357, %v6498
        %v6539 = vadd.f32 %v5358, %v6500
        %v6540 = vadd.f32 %v5359, %v6503
        %v6541 = vadd.f32 %v5360, %v6505
        %v6542 = vadd.f32 %v5361, %v6508
        %v6543 = vadd.f32 %v5362, %v6510
        %v6544 = vadd.f32 %v601, %v6512
        %v6545 = vadd.f32 %v602, %v6513
        %v6546 = vadd.f32 %v603, %v6514
        %v6547 = vadd.f32 %v604, %v6515
        %v6548 = vadd.f32 %v605, %v6516
        %v6549 = vadd.f32 %v606, %v6517
        %v6550 = vadd.f32 %v607, %v6518
        %v6551 = vadd.f32 %v608, %v6519
        %v6552 = vadd.f32 %v609, %v6520
        %v6553 = vadd.f32 %v610, %v6521
        %v6554 = vadd.f32 %v611, %v6522
        %v6555 = vadd.f32 %v612, %v6523
        %v6556 = vadd.f32 %v613, %v6524
        %v6557 = vadd.f32 %v614, %v6525
        %v6558 = vadd.f32 %v615, %v6526
        %v6559 = vadd.f32 %v616, %v6527
        %v6560 = vadd.f32 %v617, %v6528
        %v6561 = vadd.f32 %v618, %v6529
        %v6562 = vadd.f32 %v619, %v6530
        %v6563 = vadd.f32 %v620, %v6531
        %v6564 = vadd.f32 %v621, %v6532
        %v6565 = vadd.f32 %v622, %v6533
        %v6566 = vadd.f32 %v623, %v6534
        %v6567 = vadd.f32 %v624, %v6535
        %v6568 = vadd.f32 %v625, %v6536
        %v6569 = vadd.f32 %v626, %v6537
        %v6570 = vadd.f32 %v627, %v6538
        %v6571 = vadd.f32 %v628, %v6539
        %v6572 = vadd.f32 %v629, %v6540
        %v6573 = vadd.f32 %v630, %v6541
        %v6574 = vadd.f32 %v631, %v6542
        %v6575 = vadd.f32 %v632, %v6543
        %v6576 = vld [vmem:[#allocation11] sm:$0x1]
        %v6578 = vperm.slane %v6576, 0
        %v6580 = vadd.f32 %v6544, %v6578
        %v6581 = vadd.f32 %v6545, %v6578
        %v6582 = vadd.f32 %v6546, %v6578
        %v6583 = vadd.f32 %v6547, %v6578
        %v6584 = vadd.f32 %v6548, %v6578
        %v6585 = vadd.f32 %v6549, %v6578
        %v6586 = vadd.f32 %v6550, %v6578
        %v6587 = vadd.f32 %v6551, %v6578
        %v6588 = vadd.f32 %v6552, %v6578
        %v6589 = vadd.f32 %v6553, %v6578
        %v6590 = vadd.f32 %v6554, %v6578
        %v6591 = vadd.f32 %v6555, %v6578
        %v6592 = vadd.f32 %v6556, %v6578
        %v6593 = vadd.f32 %v6557, %v6578
        %v6594 = vadd.f32 %v6558, %v6578
        %v6595 = vadd.f32 %v6559, %v6578
        %v6596 = vadd.f32 %v6560, %v6578
        %v6597 = vadd.f32 %v6561, %v6578
        %v6598 = vadd.f32 %v6562, %v6578
        %v6599 = vadd.f32 %v6563, %v6578
        %v6600 = vadd.f32 %v6564, %v6578
        %v6601 = vadd.f32 %v6565, %v6578
        %v6602 = vadd.f32 %v6566, %v6578
        %v6603 = vadd.f32 %v6567, %v6578
        %v6604 = vadd.f32 %v6568, %v6578
        %v6605 = vadd.f32 %v6569, %v6578
        %v6606 = vadd.f32 %v6570, %v6578
        %v6607 = vadd.f32 %v6571, %v6578
        %v6608 = vadd.f32 %v6572, %v6578
        %v6609 = vadd.f32 %v6573, %v6578
        %v6610 = vadd.f32 %v6574, %v6578
        %v6611 = vadd.f32 %v6575, %v6578
        %v6612 = vld [vmem:[#allocation13] sm:$0x1]
        %v6613 = vld [vmem:[#allocation14] sm:$0x1]
        %6614 = vadd.xlane.f32.xlu0 %v6580
        %v6615 = vpop.xlane.xlu0 %6614
        %6616 = vadd.xlane.f32.xlu0 %v6581
        %v6617 = vpop.xlane.xlu0 %6616
        %6618 = vadd.xlane.f32.xlu0 %v6582
        %v6619 = vpop.xlane.xlu0 %6618
        %6620 = vadd.xlane.f32.xlu0 %v6583
        %v6621 = vpop.xlane.xlu0 %6620
        %6622 = vadd.xlane.f32.xlu0 %v6584
        %v6623 = vpop.xlane.xlu0 %6622
        %6624 = vadd.xlane.f32.xlu0 %v6585
        %v6625 = vpop.xlane.xlu0 %6624
        %6626 = vadd.xlane.f32.xlu0 %v6586
        %v6627 = vpop.xlane.xlu0 %6626
        %6628 = vadd.xlane.f32.xlu0 %v6587
        %v6629 = vpop.xlane.xlu0 %6628
        %6630 = vadd.xlane.f32.xlu0 %v6588
        %v6631 = vpop.xlane.xlu0 %6630
        %6632 = vadd.xlane.f32.xlu0 %v6589
        %v6633 = vpop.xlane.xlu0 %6632
        %6634 = vadd.xlane.f32.xlu0 %v6590
        %v6635 = vpop.xlane.xlu0 %6634
        %6636 = vadd.xlane.f32.xlu0 %v6591
        %v6637 = vpop.xlane.xlu0 %6636
        %6638 = vadd.xlane.f32.xlu0 %v6592
        %v6639 = vpop.xlane.xlu0 %6638
        %6640 = vadd.xlane.f32.xlu0 %v6593
        %v6641 = vpop.xlane.xlu0 %6640
        %6642 = vadd.xlane.f32.xlu0 %v6594
        %v6643 = vpop.xlane.xlu0 %6642
        %6644 = vadd.xlane.f32.xlu0 %v6595
        %v6645 = vpop.xlane.xlu0 %6644
        %6646 = vadd.xlane.f32.xlu0 %v6596
        %v6647 = vpop.xlane.xlu0 %6646
        %6648 = vadd.xlane.f32.xlu0 %v6597
        %v6649 = vpop.xlane.xlu0 %6648
        %6650 = vadd.xlane.f32.xlu0 %v6598
        %v6651 = vpop.xlane.xlu0 %6650
        %6652 = vadd.xlane.f32.xlu0 %v6599
        %v6653 = vpop.xlane.xlu0 %6652
        %6654 = vadd.xlane.f32.xlu0 %v6600
        %v6655 = vpop.xlane.xlu0 %6654
        %6656 = vadd.xlane.f32.xlu0 %v6601
        %v6657 = vpop.xlane.xlu0 %6656
        %6658 = vadd.xlane.f32.xlu0 %v6602
        %v6659 = vpop.xlane.xlu0 %6658
        %6660 = vadd.xlane.f32.xlu0 %v6603
        %v6661 = vpop.xlane.xlu0 %6660
        %6662 = vadd.xlane.f32.xlu0 %v6604
        %v6663 = vpop.xlane.xlu0 %6662
        %6664 = vadd.xlane.f32.xlu0 %v6605
        %v6665 = vpop.xlane.xlu0 %6664
        %6666 = vadd.xlane.f32.xlu0 %v6606
        %v6667 = vpop.xlane.xlu0 %6666
        %6668 = vadd.xlane.f32.xlu0 %v6607
        %v6669 = vpop.xlane.xlu0 %6668
        %6670 = vadd.xlane.f32.xlu0 %v6608
        %v6671 = vpop.xlane.xlu0 %6670
        %6672 = vadd.xlane.f32.xlu0 %v6609
        %v6673 = vpop.xlane.xlu0 %6672
        %6674 = vadd.xlane.f32.xlu0 %v6610
        %v6675 = vpop.xlane.xlu0 %6674
        %6676 = vadd.xlane.f32.xlu0 %v6611
        %v6677 = vpop.xlane.xlu0 %6676
        %v6678 = vmul.f32 %v6615, %v705
        %v6679 = vmul.f32 %v6617, %v705
        %v6680 = vmul.f32 %v6619, %v705
        %v6681 = vmul.f32 %v6621, %v705
        %v6682 = vmul.f32 %v6623, %v705
        %v6683 = vmul.f32 %v6625, %v705
        %v6684 = vmul.f32 %v6627, %v705
        %v6685 = vmul.f32 %v6629, %v705
        %v6686 = vmul.f32 %v6631, %v705
        %v6687 = vmul.f32 %v6633, %v705
        %v6688 = vmul.f32 %v6635, %v705
        %v6689 = vmul.f32 %v6637, %v705
        %v6690 = vmul.f32 %v6639, %v705
        %v6691 = vmul.f32 %v6641, %v705
        %v6692 = vmul.f32 %v6643, %v705
        %v6693 = vmul.f32 %v6645, %v705
        %v6694 = vmul.f32 %v6647, %v705
        %v6695 = vmul.f32 %v6649, %v705
        %v6696 = vmul.f32 %v6651, %v705
        %v6697 = vmul.f32 %v6653, %v705
        %v6698 = vmul.f32 %v6655, %v705
        %v6699 = vmul.f32 %v6657, %v705
        %v6700 = vmul.f32 %v6659, %v705
        %v6701 = vmul.f32 %v6661, %v705
        %v6702 = vmul.f32 %v6663, %v705
        %v6703 = vmul.f32 %v6665, %v705
        %v6704 = vmul.f32 %v6667, %v705
        %v6705 = vmul.f32 %v6669, %v705
        %v6706 = vmul.f32 %v6671, %v705
        %v6707 = vmul.f32 %v6673, %v705
        %v6708 = vmul.f32 %v6675, %v705
        %v6709 = vmul.f32 %v6677, %v705
        %v6710 = vsub.f32 %v6580, %v6678
        %v6711 = vsub.f32 %v6581, %v6679
        %v6712 = vsub.f32 %v6582, %v6680
        %v6713 = vsub.f32 %v6583, %v6681
        %v6714 = vsub.f32 %v6584, %v6682
        %v6715 = vsub.f32 %v6585, %v6683
        %v6716 = vsub.f32 %v6586, %v6684
        %v6717 = vsub.f32 %v6587, %v6685
        %v6718 = vsub.f32 %v6588, %v6686
        %v6719 = vsub.f32 %v6589, %v6687
        %v6720 = vsub.f32 %v6590, %v6688
        %v6721 = vsub.f32 %v6591, %v6689
        %v6722 = vsub.f32 %v6592, %v6690
        %v6723 = vsub.f32 %v6593, %v6691
        %v6724 = vsub.f32 %v6594, %v6692
        %v6725 = vsub.f32 %v6595, %v6693
        %v6726 = vsub.f32 %v6596, %v6694
        %v6727 = vsub.f32 %v6597, %v6695
        %v6728 = vsub.f32 %v6598, %v6696
        %v6729 = vsub.f32 %v6599, %v6697
        %v6730 = vsub.f32 %v6600, %v6698
        %v6731 = vsub.f32 %v6601, %v6699
        %v6732 = vsub.f32 %v6602, %v6700
        %v6733 = vsub.f32 %v6603, %v6701
        %v6734 = vsub.f32 %v6604, %v6702
        %v6735 = vsub.f32 %v6605, %v6703
        %v6736 = vsub.f32 %v6606, %v6704
        %v6737 = vsub.f32 %v6607, %v6705
        %v6738 = vsub.f32 %v6608, %v6706
        %v6739 = vsub.f32 %v6609, %v6707
        %v6740 = vsub.f32 %v6610, %v6708
        %v6741 = vsub.f32 %v6611, %v6709
        %v6742 = vmul.f32 %v6710, %v6710
        %v6743 = vmul.f32 %v6711, %v6711
        %v6744 = vmul.f32 %v6712, %v6712
        %v6745 = vmul.f32 %v6713, %v6713
        %v6746 = vmul.f32 %v6714, %v6714
        %v6747 = vmul.f32 %v6715, %v6715
        %v6748 = vmul.f32 %v6716, %v6716
        %v6749 = vmul.f32 %v6717, %v6717
        %v6750 = vmul.f32 %v6718, %v6718
        %v6751 = vmul.f32 %v6719, %v6719
        %v6752 = vmul.f32 %v6720, %v6720
        %v6753 = vmul.f32 %v6721, %v6721
        %v6754 = vmul.f32 %v6722, %v6722
        %v6755 = vmul.f32 %v6723, %v6723
        %v6756 = vmul.f32 %v6724, %v6724
        %v6757 = vmul.f32 %v6725, %v6725
        %v6758 = vmul.f32 %v6726, %v6726
        %v6759 = vmul.f32 %v6727, %v6727
        %v6760 = vmul.f32 %v6728, %v6728
        %v6761 = vmul.f32 %v6729, %v6729
        %v6762 = vmul.f32 %v6730, %v6730
        %v6763 = vmul.f32 %v6731, %v6731
        %v6764 = vmul.f32 %v6732, %v6732
        %v6765 = vmul.f32 %v6733, %v6733
        %v6766 = vmul.f32 %v6734, %v6734
        %v6767 = vmul.f32 %v6735, %v6735
        %v6768 = vmul.f32 %v6736, %v6736
        %v6769 = vmul.f32 %v6737, %v6737
        %v6770 = vmul.f32 %v6738, %v6738
        %v6771 = vmul.f32 %v6739, %v6739
        %v6772 = vmul.f32 %v6740, %v6740
        %v6773 = vmul.f32 %v6741, %v6741
        %6774 = vadd.xlane.f32.xlu0 %v6742
        %v6775 = vpop.xlane.xlu0 %6774
        %6776 = vadd.xlane.f32.xlu0 %v6743
        %v6777 = vpop.xlane.xlu0 %6776
        %6778 = vadd.xlane.f32.xlu0 %v6744
        %v6779 = vpop.xlane.xlu0 %6778
        %6780 = vadd.xlane.f32.xlu0 %v6745
        %v6781 = vpop.xlane.xlu0 %6780
        %6782 = vadd.xlane.f32.xlu0 %v6746
        %v6783 = vpop.xlane.xlu0 %6782
        %6784 = vadd.xlane.f32.xlu0 %v6747
        %v6785 = vpop.xlane.xlu0 %6784
        %6786 = vadd.xlane.f32.xlu0 %v6748
        %v6787 = vpop.xlane.xlu0 %6786
        %6788 = vadd.xlane.f32.xlu0 %v6749
        %v6789 = vpop.xlane.xlu0 %6788
        %6790 = vadd.xlane.f32.xlu0 %v6750
        %v6791 = vpop.xlane.xlu0 %6790
        %6792 = vadd.xlane.f32.xlu0 %v6751
        %v6793 = vpop.xlane.xlu0 %6792
        %6794 = vadd.xlane.f32.xlu0 %v6752
        %v6795 = vpop.xlane.xlu0 %6794
        %6796 = vadd.xlane.f32.xlu0 %v6753
        %v6797 = vpop.xlane.xlu0 %6796
        %6798 = vadd.xlane.f32.xlu0 %v6754
        %v6799 = vpop.xlane.xlu0 %6798
        %6800 = vadd.xlane.f32.xlu0 %v6755
        %v6801 = vpop.xlane.xlu0 %6800
        %6802 = vadd.xlane.f32.xlu0 %v6756
        %v6803 = vpop.xlane.xlu0 %6802
        %6804 = vadd.xlane.f32.xlu0 %v6757
        %v6805 = vpop.xlane.xlu0 %6804
        %6806 = vadd.xlane.f32.xlu0 %v6758
        %v6807 = vpop.xlane.xlu0 %6806
        %6808 = vadd.xlane.f32.xlu0 %v6759
        %v6809 = vpop.xlane.xlu0 %6808
        %6810 = vadd.xlane.f32.xlu0 %v6760
        %v6811 = vpop.xlane.xlu0 %6810
        %6812 = vadd.xlane.f32.xlu0 %v6761
        %v6813 = vpop.xlane.xlu0 %6812
        %6814 = vadd.xlane.f32.xlu0 %v6762
        %v6815 = vpop.xlane.xlu0 %6814
        %6816 = vadd.xlane.f32.xlu0 %v6763
        %v6817 = vpop.xlane.xlu0 %6816
        %6818 = vadd.xlane.f32.xlu0 %v6764
        %v6819 = vpop.xlane.xlu0 %6818
        %6820 = vadd.xlane.f32.xlu0 %v6765
        %v6821 = vpop.xlane.xlu0 %6820
        %6822 = vadd.xlane.f32.xlu0 %v6766
        %v6823 = vpop.xlane.xlu0 %6822
        %6824 = vadd.xlane.f32.xlu0 %v6767
        %v6825 = vpop.xlane.xlu0 %6824
        %6826 = vadd.xlane.f32.xlu0 %v6768
        %v6827 = vpop.xlane.xlu0 %6826
        %6828 = vadd.xlane.f32.xlu0 %v6769
        %v6829 = vpop.xlane.xlu0 %6828
        %6830 = vadd.xlane.f32.xlu0 %v6770
        %v6831 = vpop.xlane.xlu0 %6830
        %6832 = vadd.xlane.f32.xlu0 %v6771
        %v6833 = vpop.xlane.xlu0 %6832
        %6834 = vadd.xlane.f32.xlu0 %v6772
        %v6835 = vpop.xlane.xlu0 %6834
        %6836 = vadd.xlane.f32.xlu0 %v6773
        %v6837 = vpop.xlane.xlu0 %6836
        %v6838 = vmul.f32 %v6775, %v705
        %v6839 = vmul.f32 %v6777, %v705
        %v6840 = vmul.f32 %v6779, %v705
        %v6841 = vmul.f32 %v6781, %v705
        %v6842 = vmul.f32 %v6783, %v705
        %v6843 = vmul.f32 %v6785, %v705
        %v6844 = vmul.f32 %v6787, %v705
        %v6845 = vmul.f32 %v6789, %v705
        %v6846 = vmul.f32 %v6791, %v705
        %v6847 = vmul.f32 %v6793, %v705
        %v6848 = vmul.f32 %v6795, %v705
        %v6849 = vmul.f32 %v6797, %v705
        %v6850 = vmul.f32 %v6799, %v705
        %v6851 = vmul.f32 %v6801, %v705
        %v6852 = vmul.f32 %v6803, %v705
        %v6853 = vmul.f32 %v6805, %v705
        %v6854 = vmul.f32 %v6807, %v705
        %v6855 = vmul.f32 %v6809, %v705
        %v6856 = vmul.f32 %v6811, %v705
        %v6857 = vmul.f32 %v6813, %v705
        %v6858 = vmul.f32 %v6815, %v705
        %v6859 = vmul.f32 %v6817, %v705
        %v6860 = vmul.f32 %v6819, %v705
        %v6861 = vmul.f32 %v6821, %v705
        %v6862 = vmul.f32 %v6823, %v705
        %v6863 = vmul.f32 %v6825, %v705
        %v6864 = vmul.f32 %v6827, %v705
        %v6865 = vmul.f32 %v6829, %v705
        %v6866 = vmul.f32 %v6831, %v705
        %v6867 = vmul.f32 %v6833, %v705
        %v6868 = vmul.f32 %v6835, %v705
        %v6869 = vmul.f32 %v6837, %v705
        %v6870 = vadd.f32 %v6838, 1e-05
        %v6871 = vadd.f32 %v6839, 1e-05
        %v6872 = vadd.f32 %v6840, 1e-05
        %v6873 = vadd.f32 %v6841, 1e-05
        %v6874 = vadd.f32 %v6842, 1e-05
        %v6875 = vadd.f32 %v6843, 1e-05
        %v6876 = vadd.f32 %v6844, 1e-05
        %v6877 = vadd.f32 %v6845, 1e-05
        %v6878 = vadd.f32 %v6846, 1e-05
        %v6879 = vadd.f32 %v6847, 1e-05
        %v6880 = vadd.f32 %v6848, 1e-05
        %v6881 = vadd.f32 %v6849, 1e-05
        %v6882 = vadd.f32 %v6850, 1e-05
        %v6883 = vadd.f32 %v6851, 1e-05
        %v6884 = vadd.f32 %v6852, 1e-05
        %v6885 = vadd.f32 %v6853, 1e-05
        %v6886 = vadd.f32 %v6854, 1e-05
        %v6887 = vadd.f32 %v6855, 1e-05
        %v6888 = vadd.f32 %v6856, 1e-05
        %v6889 = vadd.f32 %v6857, 1e-05
        %v6890 = vadd.f32 %v6858, 1e-05
        %v6891 = vadd.f32 %v6859, 1e-05
        %v6892 = vadd.f32 %v6860, 1e-05
        %v6893 = vadd.f32 %v6861, 1e-05
        %v6894 = vadd.f32 %v6862, 1e-05
        %v6895 = vadd.f32 %v6863, 1e-05
        %v6896 = vadd.f32 %v6864, 1e-05
        %v6897 = vadd.f32 %v6865, 1e-05
        %v6898 = vadd.f32 %v6866, 1e-05
        %v6899 = vadd.f32 %v6867, 1e-05
        %v6900 = vadd.f32 %v6868, 1e-05
        %v6901 = vadd.f32 %v6869, 1e-05
        %v6902 = vrsqrt.pop %v6870
        %v6903 = vmul.f32 %v6902, %v6870
        %v6904 = vmul.f32 %v6903, %v6902
        %v6905 = vmul.f32 0.5, %v6904
        %v6906 = vsub.f32 1.5, %v6905
        %v6907 = vmul.f32 %v6902, %v6906
        %vm6908 = vweird.f32 %v6870
        %vm6909 = vweird.f32 %v6902
        %vm6910 = vmor %vm6908, %vm6909
        %v6911 = vsel %vm6910, %v6902, %v6907
        %v6912 = vrsqrt.pop %v6871
        %v6913 = vmul.f32 %v6912, %v6871
        %v6914 = vmul.f32 %v6913, %v6912
        %v6915 = vmul.f32 0.5, %v6914
        %v6916 = vsub.f32 1.5, %v6915
        %v6917 = vmul.f32 %v6912, %v6916
        %vm6918 = vweird.f32 %v6871
        %vm6919 = vweird.f32 %v6912
        %vm6920 = vmor %vm6918, %vm6919
        %v6921 = vsel %vm6920, %v6912, %v6917
        %v6922 = vrsqrt.pop %v6872
        %v6923 = vmul.f32 %v6922, %v6872
        %v6924 = vmul.f32 %v6923, %v6922
        %v6925 = vmul.f32 0.5, %v6924
        %v6926 = vsub.f32 1.5, %v6925
        %v6927 = vmul.f32 %v6922, %v6926
        %vm6928 = vweird.f32 %v6872
        %vm6929 = vweird.f32 %v6922
        %vm6930 = vmor %vm6928, %vm6929
        %v6931 = vsel %vm6930, %v6922, %v6927
        %v6932 = vrsqrt.pop %v6873
        %v6933 = vmul.f32 %v6932, %v6873
        %v6934 = vmul.f32 %v6933, %v6932
        %v6935 = vmul.f32 0.5, %v6934
        %v6936 = vsub.f32 1.5, %v6935
        %v6937 = vmul.f32 %v6932, %v6936
        %vm6938 = vweird.f32 %v6873
        %vm6939 = vweird.f32 %v6932
        %vm6940 = vmor %vm6938, %vm6939
        %v6941 = vsel %vm6940, %v6932, %v6937
        %v6942 = vrsqrt.pop %v6874
        %v6943 = vmul.f32 %v6942, %v6874
        %v6944 = vmul.f32 %v6943, %v6942
        %v6945 = vmul.f32 0.5, %v6944
        %v6946 = vsub.f32 1.5, %v6945
        %v6947 = vmul.f32 %v6942, %v6946
        %vm6948 = vweird.f32 %v6874
        %vm6949 = vweird.f32 %v6942
        %vm6950 = vmor %vm6948, %vm6949
        %v6951 = vsel %vm6950, %v6942, %v6947
        %v6952 = vrsqrt.pop %v6875
        %v6953 = vmul.f32 %v6952, %v6875
        %v6954 = vmul.f32 %v6953, %v6952
        %v6955 = vmul.f32 0.5, %v6954
        %v6956 = vsub.f32 1.5, %v6955
        %v6957 = vmul.f32 %v6952, %v6956
        %vm6958 = vweird.f32 %v6875
        %vm6959 = vweird.f32 %v6952
        %vm6960 = vmor %vm6958, %vm6959
        %v6961 = vsel %vm6960, %v6952, %v6957
        %v6962 = vrsqrt.pop %v6876
        %v6963 = vmul.f32 %v6962, %v6876
        %v6964 = vmul.f32 %v6963, %v6962
        %v6965 = vmul.f32 0.5, %v6964
        %v6966 = vsub.f32 1.5, %v6965
        %v6967 = vmul.f32 %v6962, %v6966
        %vm6968 = vweird.f32 %v6876
        %vm6969 = vweird.f32 %v6962
        %vm6970 = vmor %vm6968, %vm6969
        %v6971 = vsel %vm6970, %v6962, %v6967
        %v6972 = vrsqrt.pop %v6877
        %v6973 = vmul.f32 %v6972, %v6877
        %v6974 = vmul.f32 %v6973, %v6972
        %v6975 = vmul.f32 0.5, %v6974
        %v6976 = vsub.f32 1.5, %v6975
        %v6977 = vmul.f32 %v6972, %v6976
        %vm6978 = vweird.f32 %v6877
        %vm6979 = vweird.f32 %v6972
        %vm6980 = vmor %vm6978, %vm6979
        %v6981 = vsel %vm6980, %v6972, %v6977
        %v6982 = vrsqrt.pop %v6878
        %v6983 = vmul.f32 %v6982, %v6878
        %v6984 = vmul.f32 %v6983, %v6982
        %v6985 = vmul.f32 0.5, %v6984
        %v6986 = vsub.f32 1.5, %v6985
        %v6987 = vmul.f32 %v6982, %v6986
        %vm6988 = vweird.f32 %v6878
        %vm6989 = vweird.f32 %v6982
        %vm6990 = vmor %vm6988, %vm6989
        %v6991 = vsel %vm6990, %v6982, %v6987
        %v6992 = vrsqrt.pop %v6879
        %v6993 = vmul.f32 %v6992, %v6879
        %v6994 = vmul.f32 %v6993, %v6992
        %v6995 = vmul.f32 0.5, %v6994
        %v6996 = vsub.f32 1.5, %v6995
        %v6997 = vmul.f32 %v6992, %v6996
        %vm6998 = vweird.f32 %v6879
        %vm6999 = vweird.f32 %v6992
        %vm7000 = vmor %vm6998, %vm6999
        %v7001 = vsel %vm7000, %v6992, %v6997
        %v7002 = vrsqrt.pop %v6880
        %v7003 = vmul.f32 %v7002, %v6880
        %v7004 = vmul.f32 %v7003, %v7002
        %v7005 = vmul.f32 0.5, %v7004
        %v7006 = vsub.f32 1.5, %v7005
        %v7007 = vmul.f32 %v7002, %v7006
        %vm7008 = vweird.f32 %v6880
        %vm7009 = vweird.f32 %v7002
        %vm7010 = vmor %vm7008, %vm7009
        %v7011 = vsel %vm7010, %v7002, %v7007
        %v7012 = vrsqrt.pop %v6881
        %v7013 = vmul.f32 %v7012, %v6881
        %v7014 = vmul.f32 %v7013, %v7012
        %v7015 = vmul.f32 0.5, %v7014
        %v7016 = vsub.f32 1.5, %v7015
        %v7017 = vmul.f32 %v7012, %v7016
        %vm7018 = vweird.f32 %v6881
        %vm7019 = vweird.f32 %v7012
        %vm7020 = vmor %vm7018, %vm7019
        %v7021 = vsel %vm7020, %v7012, %v7017
        %v7022 = vrsqrt.pop %v6882
        %v7023 = vmul.f32 %v7022, %v6882
        %v7024 = vmul.f32 %v7023, %v7022
        %v7025 = vmul.f32 0.5, %v7024
        %v7026 = vsub.f32 1.5, %v7025
        %v7027 = vmul.f32 %v7022, %v7026
        %vm7028 = vweird.f32 %v6882
        %vm7029 = vweird.f32 %v7022
        %vm7030 = vmor %vm7028, %vm7029
        %v7031 = vsel %vm7030, %v7022, %v7027
        %v7032 = vrsqrt.pop %v6883
        %v7033 = vmul.f32 %v7032, %v6883
        %v7034 = vmul.f32 %v7033, %v7032
        %v7035 = vmul.f32 0.5, %v7034
        %v7036 = vsub.f32 1.5, %v7035
        %v7037 = vmul.f32 %v7032, %v7036
        %vm7038 = vweird.f32 %v6883
        %vm7039 = vweird.f32 %v7032
        %vm7040 = vmor %vm7038, %vm7039
        %v7041 = vsel %vm7040, %v7032, %v7037
        %v7042 = vrsqrt.pop %v6884
        %v7043 = vmul.f32 %v7042, %v6884
        %v7044 = vmul.f32 %v7043, %v7042
        %v7045 = vmul.f32 0.5, %v7044
        %v7046 = vsub.f32 1.5, %v7045
        %v7047 = vmul.f32 %v7042, %v7046
        %vm7048 = vweird.f32 %v6884
        %vm7049 = vweird.f32 %v7042
        %vm7050 = vmor %vm7048, %vm7049
        %v7051 = vsel %vm7050, %v7042, %v7047
        %v7052 = vrsqrt.pop %v6885
        %v7053 = vmul.f32 %v7052, %v6885
        %v7054 = vmul.f32 %v7053, %v7052
        %v7055 = vmul.f32 0.5, %v7054
        %v7056 = vsub.f32 1.5, %v7055
        %v7057 = vmul.f32 %v7052, %v7056
        %vm7058 = vweird.f32 %v6885
        %vm7059 = vweird.f32 %v7052
        %vm7060 = vmor %vm7058, %vm7059
        %v7061 = vsel %vm7060, %v7052, %v7057
        %v7062 = vrsqrt.pop %v6886
        %v7063 = vmul.f32 %v7062, %v6886
        %v7064 = vmul.f32 %v7063, %v7062
        %v7065 = vmul.f32 0.5, %v7064
        %v7066 = vsub.f32 1.5, %v7065
        %v7067 = vmul.f32 %v7062, %v7066
        %vm7068 = vweird.f32 %v6886
        %vm7069 = vweird.f32 %v7062
        %vm7070 = vmor %vm7068, %vm7069
        %v7071 = vsel %vm7070, %v7062, %v7067
        %v7072 = vrsqrt.pop %v6887
        %v7073 = vmul.f32 %v7072, %v6887
        %v7074 = vmul.f32 %v7073, %v7072
        %v7075 = vmul.f32 0.5, %v7074
        %v7076 = vsub.f32 1.5, %v7075
        %v7077 = vmul.f32 %v7072, %v7076
        %vm7078 = vweird.f32 %v6887
        %vm7079 = vweird.f32 %v7072
        %vm7080 = vmor %vm7078, %vm7079
        %v7081 = vsel %vm7080, %v7072, %v7077
        %v7082 = vrsqrt.pop %v6888
        %v7083 = vmul.f32 %v7082, %v6888
        %v7084 = vmul.f32 %v7083, %v7082
        %v7085 = vmul.f32 0.5, %v7084
        %v7086 = vsub.f32 1.5, %v7085
        %v7087 = vmul.f32 %v7082, %v7086
        %vm7088 = vweird.f32 %v6888
        %vm7089 = vweird.f32 %v7082
        %vm7090 = vmor %vm7088, %vm7089
        %v7091 = vsel %vm7090, %v7082, %v7087
        %v7092 = vrsqrt.pop %v6889
        %v7093 = vmul.f32 %v7092, %v6889
        %v7094 = vmul.f32 %v7093, %v7092
        %v7095 = vmul.f32 0.5, %v7094
        %v7096 = vsub.f32 1.5, %v7095
        %v7097 = vmul.f32 %v7092, %v7096
        %vm7098 = vweird.f32 %v6889
        %vm7099 = vweird.f32 %v7092
        %vm7100 = vmor %vm7098, %vm7099
        %v7101 = vsel %vm7100, %v7092, %v7097
        %v7102 = vrsqrt.pop %v6890
        %v7103 = vmul.f32 %v7102, %v6890
        %v7104 = vmul.f32 %v7103, %v7102
        %v7105 = vmul.f32 0.5, %v7104
        %v7106 = vsub.f32 1.5, %v7105
        %v7107 = vmul.f32 %v7102, %v7106
        %vm7108 = vweird.f32 %v6890
        %vm7109 = vweird.f32 %v7102
        %vm7110 = vmor %vm7108, %vm7109
        %v7111 = vsel %vm7110, %v7102, %v7107
        %v7112 = vrsqrt.pop %v6891
        %v7113 = vmul.f32 %v7112, %v6891
        %v7114 = vmul.f32 %v7113, %v7112
        %v7115 = vmul.f32 0.5, %v7114
        %v7116 = vsub.f32 1.5, %v7115
        %v7117 = vmul.f32 %v7112, %v7116
        %vm7118 = vweird.f32 %v6891
        %vm7119 = vweird.f32 %v7112
        %vm7120 = vmor %vm7118, %vm7119
        %v7121 = vsel %vm7120, %v7112, %v7117
        %v7122 = vrsqrt.pop %v6892
        %v7123 = vmul.f32 %v7122, %v6892
        %v7124 = vmul.f32 %v7123, %v7122
        %v7125 = vmul.f32 0.5, %v7124
        %v7126 = vsub.f32 1.5, %v7125
        %v7127 = vmul.f32 %v7122, %v7126
        %vm7128 = vweird.f32 %v6892
        %vm7129 = vweird.f32 %v7122
        %vm7130 = vmor %vm7128, %vm7129
        %v7131 = vsel %vm7130, %v7122, %v7127
        %v7132 = vrsqrt.pop %v6893
        %v7133 = vmul.f32 %v7132, %v6893
        %v7134 = vmul.f32 %v7133, %v7132
        %v7135 = vmul.f32 0.5, %v7134
        %v7136 = vsub.f32 1.5, %v7135
        %v7137 = vmul.f32 %v7132, %v7136
        %vm7138 = vweird.f32 %v6893
        %vm7139 = vweird.f32 %v7132
        %vm7140 = vmor %vm7138, %vm7139
        %v7141 = vsel %vm7140, %v7132, %v7137
        %v7142 = vrsqrt.pop %v6894
        %v7143 = vmul.f32 %v7142, %v6894
        %v7144 = vmul.f32 %v7143, %v7142
        %v7145 = vmul.f32 0.5, %v7144
        %v7146 = vsub.f32 1.5, %v7145
        %v7147 = vmul.f32 %v7142, %v7146
        %vm7148 = vweird.f32 %v6894
        %vm7149 = vweird.f32 %v7142
        %vm7150 = vmor %vm7148, %vm7149
        %v7151 = vsel %vm7150, %v7142, %v7147
        %v7152 = vrsqrt.pop %v6895
        %v7153 = vmul.f32 %v7152, %v6895
        %v7154 = vmul.f32 %v7153, %v7152
        %v7155 = vmul.f32 0.5, %v7154
        %v7156 = vsub.f32 1.5, %v7155
        %v7157 = vmul.f32 %v7152, %v7156
        %vm7158 = vweird.f32 %v6895
        %vm7159 = vweird.f32 %v7152
        %vm7160 = vmor %vm7158, %vm7159
        %v7161 = vsel %vm7160, %v7152, %v7157
        %v7162 = vrsqrt.pop %v6896
        %v7163 = vmul.f32 %v7162, %v6896
        %v7164 = vmul.f32 %v7163, %v7162
        %v7165 = vmul.f32 0.5, %v7164
        %v7166 = vsub.f32 1.5, %v7165
        %v7167 = vmul.f32 %v7162, %v7166
        %vm7168 = vweird.f32 %v6896
        %vm7169 = vweird.f32 %v7162
        %vm7170 = vmor %vm7168, %vm7169
        %v7171 = vsel %vm7170, %v7162, %v7167
        %v7172 = vrsqrt.pop %v6897
        %v7173 = vmul.f32 %v7172, %v6897
        %v7174 = vmul.f32 %v7173, %v7172
        %v7175 = vmul.f32 0.5, %v7174
        %v7176 = vsub.f32 1.5, %v7175
        %v7177 = vmul.f32 %v7172, %v7176
        %vm7178 = vweird.f32 %v6897
        %vm7179 = vweird.f32 %v7172
        %vm7180 = vmor %vm7178, %vm7179
        %v7181 = vsel %vm7180, %v7172, %v7177
        %v7182 = vrsqrt.pop %v6898
        %v7183 = vmul.f32 %v7182, %v6898
        %v7184 = vmul.f32 %v7183, %v7182
        %v7185 = vmul.f32 0.5, %v7184
        %v7186 = vsub.f32 1.5, %v7185
        %v7187 = vmul.f32 %v7182, %v7186
        %vm7188 = vweird.f32 %v6898
        %vm7189 = vweird.f32 %v7182
        %vm7190 = vmor %vm7188, %vm7189
        %v7191 = vsel %vm7190, %v7182, %v7187
        %v7192 = vrsqrt.pop %v6899
        %v7193 = vmul.f32 %v7192, %v6899
        %v7194 = vmul.f32 %v7193, %v7192
        %v7195 = vmul.f32 0.5, %v7194
        %v7196 = vsub.f32 1.5, %v7195
        %v7197 = vmul.f32 %v7192, %v7196
        %vm7198 = vweird.f32 %v6899
        %vm7199 = vweird.f32 %v7192
        %vm7200 = vmor %vm7198, %vm7199
        %v7201 = vsel %vm7200, %v7192, %v7197
        %v7202 = vrsqrt.pop %v6900
        %v7203 = vmul.f32 %v7202, %v6900
        %v7204 = vmul.f32 %v7203, %v7202
        %v7205 = vmul.f32 0.5, %v7204
        %v7206 = vsub.f32 1.5, %v7205
        %v7207 = vmul.f32 %v7202, %v7206
        %vm7208 = vweird.f32 %v6900
        %vm7209 = vweird.f32 %v7202
        %vm7210 = vmor %vm7208, %vm7209
        %v7211 = vsel %vm7210, %v7202, %v7207
        %v7212 = vrsqrt.pop %v6901
        %v7213 = vmul.f32 %v7212, %v6901
        %v7214 = vmul.f32 %v7213, %v7212
        %v7215 = vmul.f32 0.5, %v7214
        %v7216 = vsub.f32 1.5, %v7215
        %v7217 = vmul.f32 %v7212, %v7216
        %vm7218 = vweird.f32 %v6901
        %vm7219 = vweird.f32 %v7212
        %vm7220 = vmor %vm7218, %vm7219
        %v7221 = vsel %vm7220, %v7212, %v7217
        %v7222 = vmul.f32 %v6710, %v6911
        %v7223 = vmul.f32 %v6711, %v6921
        %v7224 = vmul.f32 %v6712, %v6931
        %v7225 = vmul.f32 %v6713, %v6941
        %v7226 = vmul.f32 %v6714, %v6951
        %v7227 = vmul.f32 %v6715, %v6961
        %v7228 = vmul.f32 %v6716, %v6971
        %v7229 = vmul.f32 %v6717, %v6981
        %v7230 = vmul.f32 %v6718, %v6991
        %v7231 = vmul.f32 %v6719, %v7001
        %v7232 = vmul.f32 %v6720, %v7011
        %v7233 = vmul.f32 %v6721, %v7021
        %v7234 = vmul.f32 %v6722, %v7031
        %v7235 = vmul.f32 %v6723, %v7041
        %v7236 = vmul.f32 %v6724, %v7051
        %v7237 = vmul.f32 %v6725, %v7061
        %v7238 = vmul.f32 %v6726, %v7071
        %v7239 = vmul.f32 %v6727, %v7081
        %v7240 = vmul.f32 %v6728, %v7091
        %v7241 = vmul.f32 %v6729, %v7101
        %v7242 = vmul.f32 %v6730, %v7111
        %v7243 = vmul.f32 %v6731, %v7121
        %v7244 = vmul.f32 %v6732, %v7131
        %v7245 = vmul.f32 %v6733, %v7141
        %v7246 = vmul.f32 %v6734, %v7151
        %v7247 = vmul.f32 %v6735, %v7161
        %v7248 = vmul.f32 %v6736, %v7171
        %v7249 = vmul.f32 %v6737, %v7181
        %v7250 = vmul.f32 %v6738, %v7191
        %v7251 = vmul.f32 %v6739, %v7201
        %v7252 = vmul.f32 %v6740, %v7211
        %v7253 = vmul.f32 %v6741, %v7221
        %v7255 = vperm.slane %v6612, 0
        %v7257 = vmul.f32 %v7222, %v7255
        %v7258 = vmul.f32 %v7223, %v7255
        %v7259 = vmul.f32 %v7224, %v7255
        %v7260 = vmul.f32 %v7225, %v7255
        %v7261 = vmul.f32 %v7226, %v7255
        %v7262 = vmul.f32 %v7227, %v7255
        %v7263 = vmul.f32 %v7228, %v7255
        %v7264 = vmul.f32 %v7229, %v7255
        %v7265 = vmul.f32 %v7230, %v7255
        %v7266 = vmul.f32 %v7231, %v7255
        %v7267 = vmul.f32 %v7232, %v7255
        %v7268 = vmul.f32 %v7233, %v7255
        %v7269 = vmul.f32 %v7234, %v7255
        %v7270 = vmul.f32 %v7235, %v7255
        %v7271 = vmul.f32 %v7236, %v7255
        %v7272 = vmul.f32 %v7237, %v7255
        %v7273 = vmul.f32 %v7238, %v7255
        %v7274 = vmul.f32 %v7239, %v7255
        %v7275 = vmul.f32 %v7240, %v7255
        %v7276 = vmul.f32 %v7241, %v7255
        %v7277 = vmul.f32 %v7242, %v7255
        %v7278 = vmul.f32 %v7243, %v7255
        %v7279 = vmul.f32 %v7244, %v7255
        %v7280 = vmul.f32 %v7245, %v7255
        %v7281 = vmul.f32 %v7246, %v7255
        %v7282 = vmul.f32 %v7247, %v7255
        %v7283 = vmul.f32 %v7248, %v7255
        %v7284 = vmul.f32 %v7249, %v7255
        %v7285 = vmul.f32 %v7250, %v7255
        %v7286 = vmul.f32 %v7251, %v7255
        %v7287 = vmul.f32 %v7252, %v7255
        %v7288 = vmul.f32 %v7253, %v7255
        %v7290 = vperm.slane %v6613, 0
        %v7292 = vadd.f32 %v7257, %v7290
        %v7293 = vadd.f32 %v7258, %v7290
        %v7294 = vadd.f32 %v7259, %v7290
        %v7295 = vadd.f32 %v7260, %v7290
        %v7296 = vadd.f32 %v7261, %v7290
        %v7297 = vadd.f32 %v7262, %v7290
        %v7298 = vadd.f32 %v7263, %v7290
        %v7299 = vadd.f32 %v7264, %v7290
        %v7300 = vadd.f32 %v7265, %v7290
        %v7301 = vadd.f32 %v7266, %v7290
        %v7302 = vadd.f32 %v7267, %v7290
        %v7303 = vadd.f32 %v7268, %v7290
        %v7304 = vadd.f32 %v7269, %v7290
        %v7305 = vadd.f32 %v7270, %v7290
        %v7306 = vadd.f32 %v7271, %v7290
        %v7307 = vadd.f32 %v7272, %v7290
        %v7308 = vadd.f32 %v7273, %v7290
        %v7309 = vadd.f32 %v7274, %v7290
        %v7310 = vadd.f32 %v7275, %v7290
        %v7311 = vadd.f32 %v7276, %v7290
        %v7312 = vadd.f32 %v7277, %v7290
        %v7313 = vadd.f32 %v7278, %v7290
        %v7314 = vadd.f32 %v7279, %v7290
        %v7315 = vadd.f32 %v7280, %v7290
        %v7316 = vadd.f32 %v7281, %v7290
        %v7317 = vadd.f32 %v7282, %v7290
        %v7318 = vadd.f32 %v7283, %v7290
        %v7319 = vadd.f32 %v7284, %v7290
        %v7320 = vadd.f32 %v7285, %v7290
        %v7321 = vadd.f32 %v7286, %v7290
        %v7322 = vadd.f32 %v7287, %v7290
        %v7323 = vadd.f32 %v7288, %v7290
        %v7324 = vpack.c.bf16 %v7293, %v7292
        %v7325 = vpack.c.bf16 %v7295, %v7294
        %v7326 = vpack.c.bf16 %v7297, %v7296
        %v7327 = vpack.c.bf16 %v7299, %v7298
        %v7328 = vpack.c.bf16 %v7301, %v7300
        %v7329 = vpack.c.bf16 %v7303, %v7302
        %v7330 = vpack.c.bf16 %v7305, %v7304
        %v7331 = vpack.c.bf16 %v7307, %v7306
        %v7332 = vpack.c.bf16 %v7309, %v7308
        %v7333 = vpack.c.bf16 %v7311, %v7310
        %v7334 = vpack.c.bf16 %v7313, %v7312
        %v7335 = vpack.c.bf16 %v7315, %v7314
        %v7336 = vpack.c.bf16 %v7317, %v7316
        %v7337 = vpack.c.bf16 %v7319, %v7318
        %v7338 = vpack.c.bf16 %v7321, %v7320
        %v7339 = vpack.c.bf16 %v7323, %v7322
        %v7340 = vld [vmem:[#allocation16] sm:$0xff]
        %v7341 = vld [vmem:[#allocation16 + $0x8] sm:$0xff]
        %v7342 = vld [vmem:[#allocation16 + $0x10] sm:$0xff]
        %v7343 = vld [vmem:[#allocation16 + $0x18] sm:$0xff]
        %v7344 = vld [vmem:[#allocation16 + $0x20] sm:$0xff]
        %v7345 = vld [vmem:[#allocation16 + $0x28] sm:$0xff]
        %v7346 = vld [vmem:[#allocation16 + $0x30] sm:$0xff]
        %v7347 = vld [vmem:[#allocation16 + $0x38] sm:$0xff]
        %v7348 = vld [vmem:[#allocation16 + $0x40] sm:$0xff]
        %v7349 = vld [vmem:[#allocation16 + $0x48] sm:$0xff]
        %v7350 = vld [vmem:[#allocation16 + $0x50] sm:$0xff]
        %v7351 = vld [vmem:[#allocation16 + $0x58] sm:$0xff]
        %v7352 = vld [vmem:[#allocation16 + $0x60] sm:$0xff]
        %v7353 = vld [vmem:[#allocation16 + $0x68] sm:$0xff]
        %v7354 = vld [vmem:[#allocation16 + $0x70] sm:$0xff]
        %v7355 = vld [vmem:[#allocation16 + $0x78] sm:$0xff]
        %v7356 = vld [vmem:[#allocation16 + $0x80] sm:$0xff]
        %v7357 = vld [vmem:[#allocation16 + $0x88] sm:$0xff]
        %v7358 = vld [vmem:[#allocation16 + $0x90] sm:$0xff]
        %v7359 = vld [vmem:[#allocation16 + $0x98] sm:$0xff]
        %v7360 = vld [vmem:[#allocation16 + $0xa0] sm:$0xff]
        %v7361 = vld [vmem:[#allocation16 + $0xa8] sm:$0xff]
        %v7362 = vld [vmem:[#allocation16 + $0xb0] sm:$0xff]
        %v7363 = vld [vmem:[#allocation16 + $0xb8] sm:$0xff]
        %v7364 = vld [vmem:[#allocation16 + $0xc0] sm:$0xff]
        %v7365 = vld [vmem:[#allocation16 + $0xc8] sm:$0xff]
        %v7366 = vld [vmem:[#allocation16 + $0xd0] sm:$0xff]
        %v7367 = vld [vmem:[#allocation16 + $0xd8] sm:$0xff]
        %v7368 = vld [vmem:[#allocation16 + $0xe0] sm:$0xff]
        %v7369 = vld [vmem:[#allocation16 + $0xe8] sm:$0xff]
        %v7370 = vld [vmem:[#allocation16 + $0xf0] sm:$0xff]
        %v7371 = vld [vmem:[#allocation16 + $0xf8] sm:$0xff]
        %v7372 = vld [vmem:[%s10] sm:$0xf]
        %v7374 = vperm.slane %v7372, 0
        %v7375 = vperm.slane %v7372, 1
        %v7376 = vperm.slane %v7372, 2
        %v7377 = vperm.slane %v7372, 3
        %v7414 = vunpack.c.l.b16 %v7340
        %v7415 = vunpack.c.h.b16 %v7340
        %v7416 = vunpack.c.l.b16 %v7341
        %v7417 = vunpack.c.h.b16 %v7341
        %v7418 = vunpack.c.l.b16 %v7342
        %v7419 = vunpack.c.h.b16 %v7342
        %v7420 = vunpack.c.l.b16 %v7343
        %v7421 = vunpack.c.h.b16 %v7343
        %v7422 = vunpack.c.l.b16 %v7344
        %v7423 = vunpack.c.h.b16 %v7344
        %v7424 = vunpack.c.l.b16 %v7345
        %v7425 = vunpack.c.h.b16 %v7345
        %v7426 = vunpack.c.l.b16 %v7346
        %v7427 = vunpack.c.h.b16 %v7346
        %v7428 = vunpack.c.l.b16 %v7347
        %v7429 = vunpack.c.h.b16 %v7347
        %v7430 = vunpack.c.l.b16 %v7348
        %v7431 = vunpack.c.h.b16 %v7348
        %v7432 = vunpack.c.l.b16 %v7349
        %v7433 = vunpack.c.h.b16 %v7349
        %v7434 = vunpack.c.l.b16 %v7350
        %v7435 = vunpack.c.h.b16 %v7350
        %v7436 = vunpack.c.l.b16 %v7351
        %v7437 = vunpack.c.h.b16 %v7351
        %v7438 = vunpack.c.l.b16 %v7352
        %v7439 = vunpack.c.h.b16 %v7352
        %v7440 = vunpack.c.l.b16 %v7353
        %v7441 = vunpack.c.h.b16 %v7353
        %v7442 = vunpack.c.l.b16 %v7354
        %v7443 = vunpack.c.h.b16 %v7354
        %v7444 = vunpack.c.l.b16 %v7355
        %v7445 = vunpack.c.h.b16 %v7355
        %v7446 = vunpack.c.l.b16 %v7356
        %v7447 = vunpack.c.h.b16 %v7356
        %v7448 = vunpack.c.l.b16 %v7357
        %v7449 = vunpack.c.h.b16 %v7357
        %v7450 = vunpack.c.l.b16 %v7358
        %v7451 = vunpack.c.h.b16 %v7358
        %v7452 = vunpack.c.l.b16 %v7359
        %v7453 = vunpack.c.h.b16 %v7359
        %v7454 = vunpack.c.l.b16 %v7360
        %v7455 = vunpack.c.h.b16 %v7360
        %v7456 = vunpack.c.l.b16 %v7361
        %v7457 = vunpack.c.h.b16 %v7361
        %v7458 = vunpack.c.l.b16 %v7362
        %v7459 = vunpack.c.h.b16 %v7362
        %v7460 = vunpack.c.l.b16 %v7363
        %v7461 = vunpack.c.h.b16 %v7363
        %v7462 = vunpack.c.l.b16 %v7364
        %v7463 = vunpack.c.h.b16 %v7364
        %v7464 = vunpack.c.l.b16 %v7365
        %v7465 = vunpack.c.h.b16 %v7365
        %v7466 = vunpack.c.l.b16 %v7366
        %v7467 = vunpack.c.h.b16 %v7366
        %v7468 = vunpack.c.l.b16 %v7367
        %v7469 = vunpack.c.h.b16 %v7367
        %v7470 = vunpack.c.l.b16 %v7368
        %v7471 = vunpack.c.h.b16 %v7368
        %v7472 = vunpack.c.l.b16 %v7369
        %v7473 = vunpack.c.h.b16 %v7369
        %v7474 = vunpack.c.l.b16 %v7370
        %v7475 = vunpack.c.h.b16 %v7370
        %v7476 = vunpack.c.l.b16 %v7371
        %v7477 = vunpack.c.h.b16 %v7371
        %v7478 = vpack.c.b16 %v7418, %v7414
        %v7479 = vpack.c.b16 %v7419, %v7415
        %v7480 = vpack.c.b16 %v7420, %v7416
        %v7481 = vpack.c.b16 %v7421, %v7417
        %v7482 = vpack.c.b16 %v7426, %v7422
        %v7483 = vpack.c.b16 %v7427, %v7423
        %v7484 = vpack.c.b16 %v7428, %v7424
        %v7485 = vpack.c.b16 %v7429, %v7425
        %v7486 = vpack.c.b16 %v7434, %v7430
        %v7487 = vpack.c.b16 %v7435, %v7431
        %v7488 = vpack.c.b16 %v7436, %v7432
        %v7489 = vpack.c.b16 %v7437, %v7433
        %v7490 = vpack.c.b16 %v7442, %v7438
        %v7491 = vpack.c.b16 %v7443, %v7439
        %v7492 = vpack.c.b16 %v7444, %v7440
        %v7493 = vpack.c.b16 %v7445, %v7441
        %v7494 = vpack.c.b16 %v7450, %v7446
        %v7495 = vpack.c.b16 %v7451, %v7447
        %v7496 = vpack.c.b16 %v7452, %v7448
        %v7497 = vpack.c.b16 %v7453, %v7449
        %v7498 = vpack.c.b16 %v7458, %v7454
        %v7499 = vpack.c.b16 %v7459, %v7455
        %v7500 = vpack.c.b16 %v7460, %v7456
        %v7501 = vpack.c.b16 %v7461, %v7457
        %v7502 = vpack.c.b16 %v7466, %v7462
        %v7503 = vpack.c.b16 %v7467, %v7463
        %v7504 = vpack.c.b16 %v7468, %v7464
        %v7505 = vpack.c.b16 %v7469, %v7465
        %v7506 = vpack.c.b16 %v7474, %v7470
        %v7507 = vpack.c.b16 %v7475, %v7471
        %v7508 = vpack.c.b16 %v7476, %v7472
        %v7509 = vpack.c.b16 %v7477, %v7473
        %7542 = vmatpush.bf16.msra.mxu0 %v7506
        %7543 = vmatpush.bf16.msra.mxu0 %v7502
        %7544 = vmatpush.bf16.msra.mxu0 %v7498
        %7545 = vmatpush.bf16.msra.mxu0 %v7494
        %7546 = vmatpush.bf16.msra.mxu0 %v7490
        %7547 = vmatpush.bf16.msra.mxu0 %v7486
        %7548 = vmatpush.bf16.msra.mxu0 %v7482
        %7549 = vmatpush.bf16.msra.mxu0 %v7478
        %7550 = vmatmul.bf16.gmra.mxu0 %v7324
        %v7551 = vpop.f32.mrf.mxu0
        %v7552 = vadd.f32 %v7374, %v7551
        %v7553 = vpop.f32.mrf.mxu0
        %v7554 = vadd.f32 %v7374, %v7553
        %7555 = vmatmul.bf16.gmra.mxu0 %v7325
        %v7556 = vpop.f32.mrf.mxu0
        %v7557 = vadd.f32 %v7374, %v7556
        %v7558 = vpop.f32.mrf.mxu0
        %v7559 = vadd.f32 %v7374, %v7558
        %7560 = vmatmul.bf16.gmra.mxu0 %v7326
        %v7561 = vpop.f32.mrf.mxu0
        %v7562 = vadd.f32 %v7374, %v7561
        %v7563 = vpop.f32.mrf.mxu0
        %v7564 = vadd.f32 %v7374, %v7563
        %7565 = vmatmul.bf16.gmra.mxu0 %v7327
        %v7566 = vpop.f32.mrf.mxu0
        %v7567 = vadd.f32 %v7374, %v7566
        %v7568 = vpop.f32.mrf.mxu0
        %v7569 = vadd.f32 %v7374, %v7568
        %7570 = vmatmul.bf16.gmra.mxu0 %v7328
        %v7571 = vpop.f32.mrf.mxu0
        %v7572 = vadd.f32 %v7374, %v7571
        %v7573 = vpop.f32.mrf.mxu0
        %v7574 = vadd.f32 %v7374, %v7573
        %7575 = vmatmul.bf16.gmra.mxu0 %v7329
        %v7576 = vpop.f32.mrf.mxu0
        %v7577 = vadd.f32 %v7374, %v7576
        %v7578 = vpop.f32.mrf.mxu0
        %v7579 = vadd.f32 %v7374, %v7578
        %7580 = vmatmul.bf16.gmra.mxu0 %v7330
        %v7581 = vpop.f32.mrf.mxu0
        %v7582 = vadd.f32 %v7374, %v7581
        %v7583 = vpop.f32.mrf.mxu0
        %v7584 = vadd.f32 %v7374, %v7583
        %7585 = vmatmul.bf16.gmra.mxu0 %v7331
        %v7586 = vpop.f32.mrf.mxu0
        %v7587 = vadd.f32 %v7374, %v7586
        %v7588 = vpop.f32.mrf.mxu0
        %v7589 = vadd.f32 %v7374, %v7588
        %7590 = vmatmul.bf16.gmra.mxu0 %v7332
        %v7591 = vpop.f32.mrf.mxu0
        %v7592 = vadd.f32 %v7374, %v7591
        %v7593 = vpop.f32.mrf.mxu0
        %v7594 = vadd.f32 %v7374, %v7593
        %7595 = vmatmul.bf16.gmra.mxu0 %v7333
        %v7596 = vpop.f32.mrf.mxu0
        %v7597 = vadd.f32 %v7374, %v7596
        %v7598 = vpop.f32.mrf.mxu0
        %v7599 = vadd.f32 %v7374, %v7598
        %7600 = vmatmul.bf16.gmra.mxu0 %v7334
        %v7601 = vpop.f32.mrf.mxu0
        %v7602 = vadd.f32 %v7374, %v7601
        %v7603 = vpop.f32.mrf.mxu0
        %v7604 = vadd.f32 %v7374, %v7603
        %7605 = vmatmul.bf16.gmra.mxu0 %v7335
        %v7606 = vpop.f32.mrf.mxu0
        %v7607 = vadd.f32 %v7374, %v7606
        %v7608 = vpop.f32.mrf.mxu0
        %v7609 = vadd.f32 %v7374, %v7608
        %7610 = vmatmul.bf16.gmra.mxu0 %v7336
        %v7611 = vpop.f32.mrf.mxu0
        %v7612 = vadd.f32 %v7374, %v7611
        %v7613 = vpop.f32.mrf.mxu0
        %v7614 = vadd.f32 %v7374, %v7613
        %7615 = vmatmul.bf16.gmra.mxu0 %v7337
        %v7616 = vpop.f32.mrf.mxu0
        %v7617 = vadd.f32 %v7374, %v7616
        %v7618 = vpop.f32.mrf.mxu0
        %v7619 = vadd.f32 %v7374, %v7618
        %7620 = vmatmul.bf16.gmra.mxu0 %v7338
        %v7621 = vpop.f32.mrf.mxu0
        %v7622 = vadd.f32 %v7374, %v7621
        %v7623 = vpop.f32.mrf.mxu0
        %v7624 = vadd.f32 %v7374, %v7623
        %7625 = vmatmul.bf16.gmra.mxu0 %v7339
        %v7626 = vpop.f32.mrf.mxu0
        %v7627 = vadd.f32 %v7374, %v7626
        %v7628 = vpop.f32.mrf.mxu0
        %v7629 = vadd.f32 %v7374, %v7628
        %7630 = vdwg.mxu0
        %7631 = vmatpush.bf16.msra.mxu0 %v7507
        %7632 = vmatpush.bf16.msra.mxu0 %v7503
        %7633 = vmatpush.bf16.msra.mxu0 %v7499
        %7634 = vmatpush.bf16.msra.mxu0 %v7495
        %7635 = vmatpush.bf16.msra.mxu0 %v7491
        %7636 = vmatpush.bf16.msra.mxu0 %v7487
        %7637 = vmatpush.bf16.msra.mxu0 %v7483
        %7638 = vmatpush.bf16.msra.mxu0 %v7479
        %7639 = vmatmul.bf16.gmra.mxu0 %v7324
        %v7640 = vpop.f32.mrf.mxu0
        %v7641 = vadd.f32 %v7375, %v7640
        %v7642 = vpop.f32.mrf.mxu0
        %v7643 = vadd.f32 %v7375, %v7642
        %7644 = vmatmul.bf16.gmra.mxu0 %v7325
        %v7645 = vpop.f32.mrf.mxu0
        %v7646 = vadd.f32 %v7375, %v7645
        %v7647 = vpop.f32.mrf.mxu0
        %v7648 = vadd.f32 %v7375, %v7647
        %7649 = vmatmul.bf16.gmra.mxu0 %v7326
        %v7650 = vpop.f32.mrf.mxu0
        %v7651 = vadd.f32 %v7375, %v7650
        %v7652 = vpop.f32.mrf.mxu0
        %v7653 = vadd.f32 %v7375, %v7652
        %7654 = vmatmul.bf16.gmra.mxu0 %v7327
        %v7655 = vpop.f32.mrf.mxu0
        %v7656 = vadd.f32 %v7375, %v7655
        %v7657 = vpop.f32.mrf.mxu0
        %v7658 = vadd.f32 %v7375, %v7657
        %7659 = vmatmul.bf16.gmra.mxu0 %v7328
        %v7660 = vpop.f32.mrf.mxu0
        %v7661 = vadd.f32 %v7375, %v7660
        %v7662 = vpop.f32.mrf.mxu0
        %v7663 = vadd.f32 %v7375, %v7662
        %7664 = vmatmul.bf16.gmra.mxu0 %v7329
        %v7665 = vpop.f32.mrf.mxu0
        %v7666 = vadd.f32 %v7375, %v7665
        %v7667 = vpop.f32.mrf.mxu0
        %v7668 = vadd.f32 %v7375, %v7667
        %7669 = vmatmul.bf16.gmra.mxu0 %v7330
        %v7670 = vpop.f32.mrf.mxu0
        %v7671 = vadd.f32 %v7375, %v7670
        %v7672 = vpop.f32.mrf.mxu0
        %v7673 = vadd.f32 %v7375, %v7672
        %7674 = vmatmul.bf16.gmra.mxu0 %v7331
        %v7675 = vpop.f32.mrf.mxu0
        %v7676 = vadd.f32 %v7375, %v7675
        %v7677 = vpop.f32.mrf.mxu0
        %v7678 = vadd.f32 %v7375, %v7677
        %7679 = vmatmul.bf16.gmra.mxu0 %v7332
        %v7680 = vpop.f32.mrf.mxu0
        %v7681 = vadd.f32 %v7375, %v7680
        %v7682 = vpop.f32.mrf.mxu0
        %v7683 = vadd.f32 %v7375, %v7682
        %7684 = vmatmul.bf16.gmra.mxu0 %v7333
        %v7685 = vpop.f32.mrf.mxu0
        %v7686 = vadd.f32 %v7375, %v7685
        %v7687 = vpop.f32.mrf.mxu0
        %v7688 = vadd.f32 %v7375, %v7687
        %7689 = vmatmul.bf16.gmra.mxu0 %v7334
        %v7690 = vpop.f32.mrf.mxu0
        %v7691 = vadd.f32 %v7375, %v7690
        %v7692 = vpop.f32.mrf.mxu0
        %v7693 = vadd.f32 %v7375, %v7692
        %7694 = vmatmul.bf16.gmra.mxu0 %v7335
        %v7695 = vpop.f32.mrf.mxu0
        %v7696 = vadd.f32 %v7375, %v7695
        %v7697 = vpop.f32.mrf.mxu0
        %v7698 = vadd.f32 %v7375, %v7697
        %7699 = vmatmul.bf16.gmra.mxu0 %v7336
        %v7700 = vpop.f32.mrf.mxu0
        %v7701 = vadd.f32 %v7375, %v7700
        %v7702 = vpop.f32.mrf.mxu0
        %v7703 = vadd.f32 %v7375, %v7702
        %7704 = vmatmul.bf16.gmra.mxu0 %v7337
        %v7705 = vpop.f32.mrf.mxu0
        %v7706 = vadd.f32 %v7375, %v7705
        %v7707 = vpop.f32.mrf.mxu0
        %v7708 = vadd.f32 %v7375, %v7707
        %7709 = vmatmul.bf16.gmra.mxu0 %v7338
        %v7710 = vpop.f32.mrf.mxu0
        %v7711 = vadd.f32 %v7375, %v7710
        %v7712 = vpop.f32.mrf.mxu0
        %v7713 = vadd.f32 %v7375, %v7712
        %7714 = vmatmul.bf16.gmra.mxu0 %v7339
        %v7715 = vpop.f32.mrf.mxu0
        %v7716 = vadd.f32 %v7375, %v7715
        %v7717 = vpop.f32.mrf.mxu0
        %v7718 = vadd.f32 %v7375, %v7717
        %7719 = vdwg.mxu0
        %7720 = vmatpush.bf16.msra.mxu0 %v7508
        %7721 = vmatpush.bf16.msra.mxu0 %v7504
        %7722 = vmatpush.bf16.msra.mxu0 %v7500
        %7723 = vmatpush.bf16.msra.mxu0 %v7496
        %7724 = vmatpush.bf16.msra.mxu0 %v7492
        %7725 = vmatpush.bf16.msra.mxu0 %v7488
        %7726 = vmatpush.bf16.msra.mxu0 %v7484
        %7727 = vmatpush.bf16.msra.mxu0 %v7480
        %7728 = vmatmul.bf16.gmra.mxu0 %v7324
        %v7729 = vpop.f32.mrf.mxu0
        %v7730 = vadd.f32 %v7376, %v7729
        %v7731 = vpop.f32.mrf.mxu0
        %v7732 = vadd.f32 %v7376, %v7731
        %7733 = vmatmul.bf16.gmra.mxu0 %v7325
        %v7734 = vpop.f32.mrf.mxu0
        %v7735 = vadd.f32 %v7376, %v7734
        %v7736 = vpop.f32.mrf.mxu0
        %v7737 = vadd.f32 %v7376, %v7736
        %7738 = vmatmul.bf16.gmra.mxu0 %v7326
        %v7739 = vpop.f32.mrf.mxu0
        %v7740 = vadd.f32 %v7376, %v7739
        %v7741 = vpop.f32.mrf.mxu0
        %v7742 = vadd.f32 %v7376, %v7741
        %7743 = vmatmul.bf16.gmra.mxu0 %v7327
        %v7744 = vpop.f32.mrf.mxu0
        %v7745 = vadd.f32 %v7376, %v7744
        %v7746 = vpop.f32.mrf.mxu0
        %v7747 = vadd.f32 %v7376, %v7746
        %7748 = vmatmul.bf16.gmra.mxu0 %v7328
        %v7749 = vpop.f32.mrf.mxu0
        %v7750 = vadd.f32 %v7376, %v7749
        %v7751 = vpop.f32.mrf.mxu0
        %v7752 = vadd.f32 %v7376, %v7751
        %7753 = vmatmul.bf16.gmra.mxu0 %v7329
        %v7754 = vpop.f32.mrf.mxu0
        %v7755 = vadd.f32 %v7376, %v7754
        %v7756 = vpop.f32.mrf.mxu0
        %v7757 = vadd.f32 %v7376, %v7756
        %7758 = vmatmul.bf16.gmra.mxu0 %v7330
        %v7759 = vpop.f32.mrf.mxu0
        %v7760 = vadd.f32 %v7376, %v7759
        %v7761 = vpop.f32.mrf.mxu0
        %v7762 = vadd.f32 %v7376, %v7761
        %7763 = vmatmul.bf16.gmra.mxu0 %v7331
        %v7764 = vpop.f32.mrf.mxu0
        %v7765 = vadd.f32 %v7376, %v7764
        %v7766 = vpop.f32.mrf.mxu0
        %v7767 = vadd.f32 %v7376, %v7766
        %7768 = vmatmul.bf16.gmra.mxu0 %v7332
        %v7769 = vpop.f32.mrf.mxu0
        %v7770 = vadd.f32 %v7376, %v7769
        %v7771 = vpop.f32.mrf.mxu0
        %v7772 = vadd.f32 %v7376, %v7771
        %7773 = vmatmul.bf16.gmra.mxu0 %v7333
        %v7774 = vpop.f32.mrf.mxu0
        %v7775 = vadd.f32 %v7376, %v7774
        %v7776 = vpop.f32.mrf.mxu0
        %v7777 = vadd.f32 %v7376, %v7776
        %7778 = vmatmul.bf16.gmra.mxu0 %v7334
        %v7779 = vpop.f32.mrf.mxu0
        %v7780 = vadd.f32 %v7376, %v7779
        %v7781 = vpop.f32.mrf.mxu0
        %v7782 = vadd.f32 %v7376, %v7781
        %7783 = vmatmul.bf16.gmra.mxu0 %v7335
        %v7784 = vpop.f32.mrf.mxu0
        %v7785 = vadd.f32 %v7376, %v7784
        %v7786 = vpop.f32.mrf.mxu0
        %v7787 = vadd.f32 %v7376, %v7786
        %7788 = vmatmul.bf16.gmra.mxu0 %v7336
        %v7789 = vpop.f32.mrf.mxu0
        %v7790 = vadd.f32 %v7376, %v7789
        %v7791 = vpop.f32.mrf.mxu0
        %v7792 = vadd.f32 %v7376, %v7791
        %7793 = vmatmul.bf16.gmra.mxu0 %v7337
        %v7794 = vpop.f32.mrf.mxu0
        %v7795 = vadd.f32 %v7376, %v7794
        %v7796 = vpop.f32.mrf.mxu0
        %v7797 = vadd.f32 %v7376, %v7796
        %7798 = vmatmul.bf16.gmra.mxu0 %v7338
        %v7799 = vpop.f32.mrf.mxu0
        %v7800 = vadd.f32 %v7376, %v7799
        %v7801 = vpop.f32.mrf.mxu0
        %v7802 = vadd.f32 %v7376, %v7801
        %7803 = vmatmul.bf16.gmra.mxu0 %v7339
        %v7804 = vpop.f32.mrf.mxu0
        %v7805 = vadd.f32 %v7376, %v7804
        %v7806 = vpop.f32.mrf.mxu0
        %v7807 = vadd.f32 %v7376, %v7806
        %7808 = vdwg.mxu0
        %7809 = vmatpush.bf16.msra.mxu0 %v7509
        %7810 = vmatpush.bf16.msra.mxu0 %v7505
        %7811 = vmatpush.bf16.msra.mxu0 %v7501
        %7812 = vmatpush.bf16.msra.mxu0 %v7497
        %7813 = vmatpush.bf16.msra.mxu0 %v7493
        %7814 = vmatpush.bf16.msra.mxu0 %v7489
        %7815 = vmatpush.bf16.msra.mxu0 %v7485
        %7816 = vmatpush.bf16.msra.mxu0 %v7481
        %7817 = vmatmul.bf16.gmra.mxu0 %v7324
        %v7818 = vpop.f32.mrf.mxu0
        %v7819 = vadd.f32 %v7377, %v7818
        %v7820 = vpop.f32.mrf.mxu0
        %v7821 = vadd.f32 %v7377, %v7820
        %7822 = vmatmul.bf16.gmra.mxu0 %v7325
        %v7823 = vpop.f32.mrf.mxu0
        %v7824 = vadd.f32 %v7377, %v7823
        %v7825 = vpop.f32.mrf.mxu0
        %v7826 = vadd.f32 %v7377, %v7825
        %7827 = vmatmul.bf16.gmra.mxu0 %v7326
        %v7828 = vpop.f32.mrf.mxu0
        %v7829 = vadd.f32 %v7377, %v7828
        %v7830 = vpop.f32.mrf.mxu0
        %v7831 = vadd.f32 %v7377, %v7830
        %7832 = vmatmul.bf16.gmra.mxu0 %v7327
        %v7833 = vpop.f32.mrf.mxu0
        %v7834 = vadd.f32 %v7377, %v7833
        %v7835 = vpop.f32.mrf.mxu0
        %v7836 = vadd.f32 %v7377, %v7835
        %7837 = vmatmul.bf16.gmra.mxu0 %v7328
        %v7838 = vpop.f32.mrf.mxu0
        %v7839 = vadd.f32 %v7377, %v7838
        %v7840 = vpop.f32.mrf.mxu0
        %v7841 = vadd.f32 %v7377, %v7840
        %7842 = vmatmul.bf16.gmra.mxu0 %v7329
        %v7843 = vpop.f32.mrf.mxu0
        %v7844 = vadd.f32 %v7377, %v7843
        %v7845 = vpop.f32.mrf.mxu0
        %v7846 = vadd.f32 %v7377, %v7845
        %7847 = vmatmul.bf16.gmra.mxu0 %v7330
        %v7848 = vpop.f32.mrf.mxu0
        %v7849 = vadd.f32 %v7377, %v7848
        %v7850 = vpop.f32.mrf.mxu0
        %v7851 = vadd.f32 %v7377, %v7850
        %7852 = vmatmul.bf16.gmra.mxu0 %v7331
        %v7853 = vpop.f32.mrf.mxu0
        %v7854 = vadd.f32 %v7377, %v7853
        %v7855 = vpop.f32.mrf.mxu0
        %v7856 = vadd.f32 %v7377, %v7855
        %7857 = vmatmul.bf16.gmra.mxu0 %v7332
        %v7858 = vpop.f32.mrf.mxu0
        %v7859 = vadd.f32 %v7377, %v7858
        %v7860 = vpop.f32.mrf.mxu0
        %v7861 = vadd.f32 %v7377, %v7860
        %7862 = vmatmul.bf16.gmra.mxu0 %v7333
        %v7863 = vpop.f32.mrf.mxu0
        %v7864 = vadd.f32 %v7377, %v7863
        %v7865 = vpop.f32.mrf.mxu0
        %v7866 = vadd.f32 %v7377, %v7865
        %7867 = vmatmul.bf16.gmra.mxu0 %v7334
        %v7868 = vpop.f32.mrf.mxu0
        %v7869 = vadd.f32 %v7377, %v7868
        %v7870 = vpop.f32.mrf.mxu0
        %v7871 = vadd.f32 %v7377, %v7870
        %7872 = vmatmul.bf16.gmra.mxu0 %v7335
        %v7873 = vpop.f32.mrf.mxu0
        %v7874 = vadd.f32 %v7377, %v7873
        %v7875 = vpop.f32.mrf.mxu0
        %v7876 = vadd.f32 %v7377, %v7875
        %7877 = vmatmul.bf16.gmra.mxu0 %v7336
        %v7878 = vpop.f32.mrf.mxu0
        %v7879 = vadd.f32 %v7377, %v7878
        %v7880 = vpop.f32.mrf.mxu0
        %v7881 = vadd.f32 %v7377, %v7880
        %7882 = vmatmul.bf16.gmra.mxu0 %v7337
        %v7883 = vpop.f32.mrf.mxu0
        %v7884 = vadd.f32 %v7377, %v7883
        %v7885 = vpop.f32.mrf.mxu0
        %v7886 = vadd.f32 %v7377, %v7885
        %7887 = vmatmul.bf16.gmra.mxu0 %v7338
        %v7888 = vpop.f32.mrf.mxu0
        %v7889 = vadd.f32 %v7377, %v7888
        %v7890 = vpop.f32.mrf.mxu0
        %v7891 = vadd.f32 %v7377, %v7890
        %7892 = vmatmul.bf16.gmra.mxu0 %v7339
        %v7893 = vpop.f32.mrf.mxu0
        %v7894 = vadd.f32 %v7377, %v7893
        %v7895 = vpop.f32.mrf.mxu0
        %v7896 = vadd.f32 %v7377, %v7895
        %7897 = vdwg.mxu0
        %v7898 = vmul.f32 %v7552, 0.5
        %v7899 = vmul.f32 %v7641, 0.5
        %v7900 = vmul.f32 %v7730, 0.5
        %v7901 = vmul.f32 %v7819, 0.5
        %v7902 = vmul.f32 %v7554, 0.5
        %v7903 = vmul.f32 %v7643, 0.5
        %v7904 = vmul.f32 %v7732, 0.5
        %v7905 = vmul.f32 %v7821, 0.5
        %v7906 = vmul.f32 %v7557, 0.5
        %v7907 = vmul.f32 %v7646, 0.5
        %v7908 = vmul.f32 %v7735, 0.5
        %v7909 = vmul.f32 %v7824, 0.5
        %v7910 = vmul.f32 %v7559, 0.5
        %v7911 = vmul.f32 %v7648, 0.5
        %v7912 = vmul.f32 %v7737, 0.5
        %v7913 = vmul.f32 %v7826, 0.5
        %v7914 = vmul.f32 %v7562, 0.5
        %v7915 = vmul.f32 %v7651, 0.5
        %v7916 = vmul.f32 %v7740, 0.5
        %v7917 = vmul.f32 %v7829, 0.5
        %v7918 = vmul.f32 %v7564, 0.5
        %v7919 = vmul.f32 %v7653, 0.5
        %v7920 = vmul.f32 %v7742, 0.5
        %v7921 = vmul.f32 %v7831, 0.5
        %v7922 = vmul.f32 %v7567, 0.5
        %v7923 = vmul.f32 %v7656, 0.5
        %v7924 = vmul.f32 %v7745, 0.5
        %v7925 = vmul.f32 %v7834, 0.5
        %v7926 = vmul.f32 %v7569, 0.5
        %v7927 = vmul.f32 %v7658, 0.5
        %v7928 = vmul.f32 %v7747, 0.5
        %v7929 = vmul.f32 %v7836, 0.5
        %v7930 = vmul.f32 %v7572, 0.5
        %v7931 = vmul.f32 %v7661, 0.5
        %v7932 = vmul.f32 %v7750, 0.5
        %v7933 = vmul.f32 %v7839, 0.5
        %v7934 = vmul.f32 %v7574, 0.5
        %v7935 = vmul.f32 %v7663, 0.5
        %v7936 = vmul.f32 %v7752, 0.5
        %v7937 = vmul.f32 %v7841, 0.5
        %v7938 = vmul.f32 %v7577, 0.5
        %v7939 = vmul.f32 %v7666, 0.5
        %v7940 = vmul.f32 %v7755, 0.5
        %v7941 = vmul.f32 %v7844, 0.5
        %v7942 = vmul.f32 %v7579, 0.5
        %v7943 = vmul.f32 %v7668, 0.5
        %v7944 = vmul.f32 %v7757, 0.5
        %v7945 = vmul.f32 %v7846, 0.5
        %v7946 = vmul.f32 %v7582, 0.5
        %v7947 = vmul.f32 %v7671, 0.5
        %v7948 = vmul.f32 %v7760, 0.5
        %v7949 = vmul.f32 %v7849, 0.5
        %v7950 = vmul.f32 %v7584, 0.5
        %v7951 = vmul.f32 %v7673, 0.5
        %v7952 = vmul.f32 %v7762, 0.5
        %v7953 = vmul.f32 %v7851, 0.5
        %v7954 = vmul.f32 %v7587, 0.5
        %v7955 = vmul.f32 %v7676, 0.5
        %v7956 = vmul.f32 %v7765, 0.5
        %v7957 = vmul.f32 %v7854, 0.5
        %v7958 = vmul.f32 %v7589, 0.5
        %v7959 = vmul.f32 %v7678, 0.5
        %v7960 = vmul.f32 %v7767, 0.5
        %v7961 = vmul.f32 %v7856, 0.5
        %v7962 = vmul.f32 %v7592, 0.5
        %v7963 = vmul.f32 %v7681, 0.5
        %v7964 = vmul.f32 %v7770, 0.5
        %v7965 = vmul.f32 %v7859, 0.5
        %v7966 = vmul.f32 %v7594, 0.5
        %v7967 = vmul.f32 %v7683, 0.5
        %v7968 = vmul.f32 %v7772, 0.5
        %v7969 = vmul.f32 %v7861, 0.5
        %v7970 = vmul.f32 %v7597, 0.5
        %v7971 = vmul.f32 %v7686, 0.5
        %v7972 = vmul.f32 %v7775, 0.5
        %v7973 = vmul.f32 %v7864, 0.5
        %v7974 = vmul.f32 %v7599, 0.5
        %v7975 = vmul.f32 %v7688, 0.5
        %v7976 = vmul.f32 %v7777, 0.5
        %v7977 = vmul.f32 %v7866, 0.5
        %v7978 = vmul.f32 %v7602, 0.5
        %v7979 = vmul.f32 %v7691, 0.5
        %v7980 = vmul.f32 %v7780, 0.5
        %v7981 = vmul.f32 %v7869, 0.5
        %v7982 = vmul.f32 %v7604, 0.5
        %v7983 = vmul.f32 %v7693, 0.5
        %v7984 = vmul.f32 %v7782, 0.5
        %v7985 = vmul.f32 %v7871, 0.5
        %v7986 = vmul.f32 %v7607, 0.5
        %v7987 = vmul.f32 %v7696, 0.5
        %v7988 = vmul.f32 %v7785, 0.5
        %v7989 = vmul.f32 %v7874, 0.5
        %v7990 = vmul.f32 %v7609, 0.5
        %v7991 = vmul.f32 %v7698, 0.5
        %v7992 = vmul.f32 %v7787, 0.5
        %v7993 = vmul.f32 %v7876, 0.5
        %v7994 = vmul.f32 %v7612, 0.5
        %v7995 = vmul.f32 %v7701, 0.5
        %v7996 = vmul.f32 %v7790, 0.5
        %v7997 = vmul.f32 %v7879, 0.5
        %v7998 = vmul.f32 %v7614, 0.5
        %v7999 = vmul.f32 %v7703, 0.5
        %v8000 = vmul.f32 %v7792, 0.5
        %v8001 = vmul.f32 %v7881, 0.5
        %v8002 = vmul.f32 %v7617, 0.5
        %v8003 = vmul.f32 %v7706, 0.5
        %v8004 = vmul.f32 %v7795, 0.5
        %v8005 = vmul.f32 %v7884, 0.5
        %v8006 = vmul.f32 %v7619, 0.5
        %v8007 = vmul.f32 %v7708, 0.5
        %v8008 = vmul.f32 %v7797, 0.5
        %v8009 = vmul.f32 %v7886, 0.5
        %v8010 = vmul.f32 %v7622, 0.5
        %v8011 = vmul.f32 %v7711, 0.5
        %v8012 = vmul.f32 %v7800, 0.5
        %v8013 = vmul.f32 %v7889, 0.5
        %v8014 = vmul.f32 %v7624, 0.5
        %v8015 = vmul.f32 %v7713, 0.5
        %v8016 = vmul.f32 %v7802, 0.5
        %v8017 = vmul.f32 %v7891, 0.5
        %v8018 = vmul.f32 %v7627, 0.5
        %v8019 = vmul.f32 %v7716, 0.5
        %v8020 = vmul.f32 %v7805, 0.5
        %v8021 = vmul.f32 %v7894, 0.5
        %v8022 = vmul.f32 %v7629, 0.5
        %v8023 = vmul.f32 %v7718, 0.5
        %v8024 = vmul.f32 %v7807, 0.5
        %v8025 = vmul.f32 %v7896, 0.5
        %v8026 = vmul.f32 %v7552, 0.044715
        %v8027 = vmul.f32 %v7641, 0.044715
        %v8028 = vmul.f32 %v7730, 0.044715
        %v8029 = vmul.f32 %v7819, 0.044715
        %v8030 = vmul.f32 %v7554, 0.044715
        %v8031 = vmul.f32 %v7643, 0.044715
        %v8032 = vmul.f32 %v7732, 0.044715
        %v8033 = vmul.f32 %v7821, 0.044715
        %v8034 = vmul.f32 %v7557, 0.044715
        %v8035 = vmul.f32 %v7646, 0.044715
        %v8036 = vmul.f32 %v7735, 0.044715
        %v8037 = vmul.f32 %v7824, 0.044715
        %v8038 = vmul.f32 %v7559, 0.044715
        %v8039 = vmul.f32 %v7648, 0.044715
        %v8040 = vmul.f32 %v7737, 0.044715
        %v8041 = vmul.f32 %v7826, 0.044715
        %v8042 = vmul.f32 %v7562, 0.044715
        %v8043 = vmul.f32 %v7651, 0.044715
        %v8044 = vmul.f32 %v7740, 0.044715
        %v8045 = vmul.f32 %v7829, 0.044715
        %v8046 = vmul.f32 %v7564, 0.044715
        %v8047 = vmul.f32 %v7653, 0.044715
        %v8048 = vmul.f32 %v7742, 0.044715
        %v8049 = vmul.f32 %v7831, 0.044715
        %v8050 = vmul.f32 %v7567, 0.044715
        %v8051 = vmul.f32 %v7656, 0.044715
        %v8052 = vmul.f32 %v7745, 0.044715
        %v8053 = vmul.f32 %v7834, 0.044715
        %v8054 = vmul.f32 %v7569, 0.044715
        %v8055 = vmul.f32 %v7658, 0.044715
        %v8056 = vmul.f32 %v7747, 0.044715
        %v8057 = vmul.f32 %v7836, 0.044715
        %v8058 = vmul.f32 %v7572, 0.044715
        %v8059 = vmul.f32 %v7661, 0.044715
        %v8060 = vmul.f32 %v7750, 0.044715
        %v8061 = vmul.f32 %v7839, 0.044715
        %v8062 = vmul.f32 %v7574, 0.044715
        %v8063 = vmul.f32 %v7663, 0.044715
        %v8064 = vmul.f32 %v7752, 0.044715
        %v8065 = vmul.f32 %v7841, 0.044715
        %v8066 = vmul.f32 %v7577, 0.044715
        %v8067 = vmul.f32 %v7666, 0.044715
        %v8068 = vmul.f32 %v7755, 0.044715
        %v8069 = vmul.f32 %v7844, 0.044715
        %v8070 = vmul.f32 %v7579, 0.044715
        %v8071 = vmul.f32 %v7668, 0.044715
        %v8072 = vmul.f32 %v7757, 0.044715
        %v8073 = vmul.f32 %v7846, 0.044715
        %v8074 = vmul.f32 %v7582, 0.044715
        %v8075 = vmul.f32 %v7671, 0.044715
        %v8076 = vmul.f32 %v7760, 0.044715
        %v8077 = vmul.f32 %v7849, 0.044715
        %v8078 = vmul.f32 %v7584, 0.044715
        %v8079 = vmul.f32 %v7673, 0.044715
        %v8080 = vmul.f32 %v7762, 0.044715
        %v8081 = vmul.f32 %v7851, 0.044715
        %v8082 = vmul.f32 %v7587, 0.044715
        %v8083 = vmul.f32 %v7676, 0.044715
        %v8084 = vmul.f32 %v7765, 0.044715
        %v8085 = vmul.f32 %v7854, 0.044715
        %v8086 = vmul.f32 %v7589, 0.044715
        %v8087 = vmul.f32 %v7678, 0.044715
        %v8088 = vmul.f32 %v7767, 0.044715
        %v8089 = vmul.f32 %v7856, 0.044715
        %v8090 = vmul.f32 %v7592, 0.044715
        %v8091 = vmul.f32 %v7681, 0.044715
        %v8092 = vmul.f32 %v7770, 0.044715
        %v8093 = vmul.f32 %v7859, 0.044715
        %v8094 = vmul.f32 %v7594, 0.044715
        %v8095 = vmul.f32 %v7683, 0.044715
        %v8096 = vmul.f32 %v7772, 0.044715
        %v8097 = vmul.f32 %v7861, 0.044715
        %v8098 = vmul.f32 %v7597, 0.044715
        %v8099 = vmul.f32 %v7686, 0.044715
        %v8100 = vmul.f32 %v7775, 0.044715
        %v8101 = vmul.f32 %v7864, 0.044715
        %v8102 = vmul.f32 %v7599, 0.044715
        %v8103 = vmul.f32 %v7688, 0.044715
        %v8104 = vmul.f32 %v7777, 0.044715
        %v8105 = vmul.f32 %v7866, 0.044715
        %v8106 = vmul.f32 %v7602, 0.044715
        %v8107 = vmul.f32 %v7691, 0.044715
        %v8108 = vmul.f32 %v7780, 0.044715
        %v8109 = vmul.f32 %v7869, 0.044715
        %v8110 = vmul.f32 %v7604, 0.044715
        %v8111 = vmul.f32 %v7693, 0.044715
        %v8112 = vmul.f32 %v7782, 0.044715
        %v8113 = vmul.f32 %v7871, 0.044715
        %v8114 = vmul.f32 %v7607, 0.044715
        %v8115 = vmul.f32 %v7696, 0.044715
        %v8116 = vmul.f32 %v7785, 0.044715
        %v8117 = vmul.f32 %v7874, 0.044715
        %v8118 = vmul.f32 %v7609, 0.044715
        %v8119 = vmul.f32 %v7698, 0.044715
        %v8120 = vmul.f32 %v7787, 0.044715
        %v8121 = vmul.f32 %v7876, 0.044715
        %v8122 = vmul.f32 %v7612, 0.044715
        %v8123 = vmul.f32 %v7701, 0.044715
        %v8124 = vmul.f32 %v7790, 0.044715
        %v8125 = vmul.f32 %v7879, 0.044715
        %v8126 = vmul.f32 %v7614, 0.044715
        %v8127 = vmul.f32 %v7703, 0.044715
        %v8128 = vmul.f32 %v7792, 0.044715
        %v8129 = vmul.f32 %v7881, 0.044715
        %v8130 = vmul.f32 %v7617, 0.044715
        %v8131 = vmul.f32 %v7706, 0.044715
        %v8132 = vmul.f32 %v7795, 0.044715
        %v8133 = vmul.f32 %v7884, 0.044715
        %v8134 = vmul.f32 %v7619, 0.044715
        %v8135 = vmul.f32 %v7708, 0.044715
        %v8136 = vmul.f32 %v7797, 0.044715
        %v8137 = vmul.f32 %v7886, 0.044715
        %v8138 = vmul.f32 %v7622, 0.044715
        %v8139 = vmul.f32 %v7711, 0.044715
        %v8140 = vmul.f32 %v7800, 0.044715
        %v8141 = vmul.f32 %v7889, 0.044715
        %v8142 = vmul.f32 %v7624, 0.044715
        %v8143 = vmul.f32 %v7713, 0.044715
        %v8144 = vmul.f32 %v7802, 0.044715
        %v8145 = vmul.f32 %v7891, 0.044715
        %v8146 = vmul.f32 %v7627, 0.044715
        %v8147 = vmul.f32 %v7716, 0.044715
        %v8148 = vmul.f32 %v7805, 0.044715
        %v8149 = vmul.f32 %v7894, 0.044715
        %v8150 = vmul.f32 %v7629, 0.044715
        %v8151 = vmul.f32 %v7718, 0.044715
        %v8152 = vmul.f32 %v7807, 0.044715
        %v8153 = vmul.f32 %v7896, 0.044715
        %v8154 = vmul.f32 %v8026, %v7552
        %v8155 = vmul.f32 %v8027, %v7641
        %v8156 = vmul.f32 %v8028, %v7730
        %v8157 = vmul.f32 %v8029, %v7819
        %v8158 = vmul.f32 %v8030, %v7554
        %v8159 = vmul.f32 %v8031, %v7643
        %v8160 = vmul.f32 %v8032, %v7732
        %v8161 = vmul.f32 %v8033, %v7821
        %v8162 = vmul.f32 %v8034, %v7557
        %v8163 = vmul.f32 %v8035, %v7646
        %v8164 = vmul.f32 %v8036, %v7735
        %v8165 = vmul.f32 %v8037, %v7824
        %v8166 = vmul.f32 %v8038, %v7559
        %v8167 = vmul.f32 %v8039, %v7648
        %v8168 = vmul.f32 %v8040, %v7737
        %v8169 = vmul.f32 %v8041, %v7826
        %v8170 = vmul.f32 %v8042, %v7562
        %v8171 = vmul.f32 %v8043, %v7651
        %v8172 = vmul.f32 %v8044, %v7740
        %v8173 = vmul.f32 %v8045, %v7829
        %v8174 = vmul.f32 %v8046, %v7564
        %v8175 = vmul.f32 %v8047, %v7653
        %v8176 = vmul.f32 %v8048, %v7742
        %v8177 = vmul.f32 %v8049, %v7831
        %v8178 = vmul.f32 %v8050, %v7567
        %v8179 = vmul.f32 %v8051, %v7656
        %v8180 = vmul.f32 %v8052, %v7745
        %v8181 = vmul.f32 %v8053, %v7834
        %v8182 = vmul.f32 %v8054, %v7569
        %v8183 = vmul.f32 %v8055, %v7658
        %v8184 = vmul.f32 %v8056, %v7747
        %v8185 = vmul.f32 %v8057, %v7836
        %v8186 = vmul.f32 %v8058, %v7572
        %v8187 = vmul.f32 %v8059, %v7661
        %v8188 = vmul.f32 %v8060, %v7750
        %v8189 = vmul.f32 %v8061, %v7839
        %v8190 = vmul.f32 %v8062, %v7574
        %v8191 = vmul.f32 %v8063, %v7663
        %v8192 = vmul.f32 %v8064, %v7752
        %v8193 = vmul.f32 %v8065, %v7841
        %v8194 = vmul.f32 %v8066, %v7577
        %v8195 = vmul.f32 %v8067, %v7666
        %v8196 = vmul.f32 %v8068, %v7755
        %v8197 = vmul.f32 %v8069, %v7844
        %v8198 = vmul.f32 %v8070, %v7579
        %v8199 = vmul.f32 %v8071, %v7668
        %v8200 = vmul.f32 %v8072, %v7757
        %v8201 = vmul.f32 %v8073, %v7846
        %v8202 = vmul.f32 %v8074, %v7582
        %v8203 = vmul.f32 %v8075, %v7671
        %v8204 = vmul.f32 %v8076, %v7760
        %v8205 = vmul.f32 %v8077, %v7849
        %v8206 = vmul.f32 %v8078, %v7584
        %v8207 = vmul.f32 %v8079, %v7673
        %v8208 = vmul.f32 %v8080, %v7762
        %v8209 = vmul.f32 %v8081, %v7851
        %v8210 = vmul.f32 %v8082, %v7587
        %v8211 = vmul.f32 %v8083, %v7676
        %v8212 = vmul.f32 %v8084, %v7765
        %v8213 = vmul.f32 %v8085, %v7854
        %v8214 = vmul.f32 %v8086, %v7589
        %v8215 = vmul.f32 %v8087, %v7678
        %v8216 = vmul.f32 %v8088, %v7767
        %v8217 = vmul.f32 %v8089, %v7856
        %v8218 = vmul.f32 %v8090, %v7592
        %v8219 = vmul.f32 %v8091, %v7681
        %v8220 = vmul.f32 %v8092, %v7770
        %v8221 = vmul.f32 %v8093, %v7859
        %v8222 = vmul.f32 %v8094, %v7594
        %v8223 = vmul.f32 %v8095, %v7683
        %v8224 = vmul.f32 %v8096, %v7772
        %v8225 = vmul.f32 %v8097, %v7861
        %v8226 = vmul.f32 %v8098, %v7597
        %v8227 = vmul.f32 %v8099, %v7686
        %v8228 = vmul.f32 %v8100, %v7775
        %v8229 = vmul.f32 %v8101, %v7864
        %v8230 = vmul.f32 %v8102, %v7599
        %v8231 = vmul.f32 %v8103, %v7688
        %v8232 = vmul.f32 %v8104, %v7777
        %v8233 = vmul.f32 %v8105, %v7866
        %v8234 = vmul.f32 %v8106, %v7602
        %v8235 = vmul.f32 %v8107, %v7691
        %v8236 = vmul.f32 %v8108, %v7780
        %v8237 = vmul.f32 %v8109, %v7869
        %v8238 = vmul.f32 %v8110, %v7604
        %v8239 = vmul.f32 %v8111, %v7693
        %v8240 = vmul.f32 %v8112, %v7782
        %v8241 = vmul.f32 %v8113, %v7871
        %v8242 = vmul.f32 %v8114, %v7607
        %v8243 = vmul.f32 %v8115, %v7696
        %v8244 = vmul.f32 %v8116, %v7785
        %v8245 = vmul.f32 %v8117, %v7874
        %v8246 = vmul.f32 %v8118, %v7609
        %v8247 = vmul.f32 %v8119, %v7698
        %v8248 = vmul.f32 %v8120, %v7787
        %v8249 = vmul.f32 %v8121, %v7876
        %v8250 = vmul.f32 %v8122, %v7612
        %v8251 = vmul.f32 %v8123, %v7701
        %v8252 = vmul.f32 %v8124, %v7790
        %v8253 = vmul.f32 %v8125, %v7879
        %v8254 = vmul.f32 %v8126, %v7614
        %v8255 = vmul.f32 %v8127, %v7703
        %v8256 = vmul.f32 %v8128, %v7792
        %v8257 = vmul.f32 %v8129, %v7881
        %v8258 = vmul.f32 %v8130, %v7617
        %v8259 = vmul.f32 %v8131, %v7706
        %v8260 = vmul.f32 %v8132, %v7795
        %v8261 = vmul.f32 %v8133, %v7884
        %v8262 = vmul.f32 %v8134, %v7619
        %v8263 = vmul.f32 %v8135, %v7708
        %v8264 = vmul.f32 %v8136, %v7797
        %v8265 = vmul.f32 %v8137, %v7886
        %v8266 = vmul.f32 %v8138, %v7622
        %v8267 = vmul.f32 %v8139, %v7711
        %v8268 = vmul.f32 %v8140, %v7800
        %v8269 = vmul.f32 %v8141, %v7889
        %v8270 = vmul.f32 %v8142, %v7624
        %v8271 = vmul.f32 %v8143, %v7713
        %v8272 = vmul.f32 %v8144, %v7802
        %v8273 = vmul.f32 %v8145, %v7891
        %v8274 = vmul.f32 %v8146, %v7627
        %v8275 = vmul.f32 %v8147, %v7716
        %v8276 = vmul.f32 %v8148, %v7805
        %v8277 = vmul.f32 %v8149, %v7894
        %v8278 = vmul.f32 %v8150, %v7629
        %v8279 = vmul.f32 %v8151, %v7718
        %v8280 = vmul.f32 %v8152, %v7807
        %v8281 = vmul.f32 %v8153, %v7896
        %v8282 = vmul.f32 %v8154, %v7552
        %v8283 = vmul.f32 %v8155, %v7641
        %v8284 = vmul.f32 %v8156, %v7730
        %v8285 = vmul.f32 %v8157, %v7819
        %v8286 = vmul.f32 %v8158, %v7554
        %v8287 = vmul.f32 %v8159, %v7643
        %v8288 = vmul.f32 %v8160, %v7732
        %v8289 = vmul.f32 %v8161, %v7821
        %v8290 = vmul.f32 %v8162, %v7557
        %v8291 = vmul.f32 %v8163, %v7646
        %v8292 = vmul.f32 %v8164, %v7735
        %v8293 = vmul.f32 %v8165, %v7824
        %v8294 = vmul.f32 %v8166, %v7559
        %v8295 = vmul.f32 %v8167, %v7648
        %v8296 = vmul.f32 %v8168, %v7737
        %v8297 = vmul.f32 %v8169, %v7826
        %v8298 = vmul.f32 %v8170, %v7562
        %v8299 = vmul.f32 %v8171, %v7651
        %v8300 = vmul.f32 %v8172, %v7740
        %v8301 = vmul.f32 %v8173, %v7829
        %v8302 = vmul.f32 %v8174, %v7564
        %v8303 = vmul.f32 %v8175, %v7653
        %v8304 = vmul.f32 %v8176, %v7742
        %v8305 = vmul.f32 %v8177, %v7831
        %v8306 = vmul.f32 %v8178, %v7567
        %v8307 = vmul.f32 %v8179, %v7656
        %v8308 = vmul.f32 %v8180, %v7745
        %v8309 = vmul.f32 %v8181, %v7834
        %v8310 = vmul.f32 %v8182, %v7569
        %v8311 = vmul.f32 %v8183, %v7658
        %v8312 = vmul.f32 %v8184, %v7747
        %v8313 = vmul.f32 %v8185, %v7836
        %v8314 = vmul.f32 %v8186, %v7572
        %v8315 = vmul.f32 %v8187, %v7661
        %v8316 = vmul.f32 %v8188, %v7750
        %v8317 = vmul.f32 %v8189, %v7839
        %v8318 = vmul.f32 %v8190, %v7574
        %v8319 = vmul.f32 %v8191, %v7663
        %v8320 = vmul.f32 %v8192, %v7752
        %v8321 = vmul.f32 %v8193, %v7841
        %v8322 = vmul.f32 %v8194, %v7577
        %v8323 = vmul.f32 %v8195, %v7666
        %v8324 = vmul.f32 %v8196, %v7755
        %v8325 = vmul.f32 %v8197, %v7844
        %v8326 = vmul.f32 %v8198, %v7579
        %v8327 = vmul.f32 %v8199, %v7668
        %v8328 = vmul.f32 %v8200, %v7757
        %v8329 = vmul.f32 %v8201, %v7846
        %v8330 = vmul.f32 %v8202, %v7582
        %v8331 = vmul.f32 %v8203, %v7671
        %v8332 = vmul.f32 %v8204, %v7760
        %v8333 = vmul.f32 %v8205, %v7849
        %v8334 = vmul.f32 %v8206, %v7584
        %v8335 = vmul.f32 %v8207, %v7673
        %v8336 = vmul.f32 %v8208, %v7762
        %v8337 = vmul.f32 %v8209, %v7851
        %v8338 = vmul.f32 %v8210, %v7587
        %v8339 = vmul.f32 %v8211, %v7676
        %v8340 = vmul.f32 %v8212, %v7765
        %v8341 = vmul.f32 %v8213, %v7854
        %v8342 = vmul.f32 %v8214, %v7589
        %v8343 = vmul.f32 %v8215, %v7678
        %v8344 = vmul.f32 %v8216, %v7767
        %v8345 = vmul.f32 %v8217, %v7856
        %v8346 = vmul.f32 %v8218, %v7592
        %v8347 = vmul.f32 %v8219, %v7681
        %v8348 = vmul.f32 %v8220, %v7770
        %v8349 = vmul.f32 %v8221, %v7859
        %v8350 = vmul.f32 %v8222, %v7594
        %v8351 = vmul.f32 %v8223, %v7683
        %v8352 = vmul.f32 %v8224, %v7772
        %v8353 = vmul.f32 %v8225, %v7861
        %v8354 = vmul.f32 %v8226, %v7597
        %v8355 = vmul.f32 %v8227, %v7686
        %v8356 = vmul.f32 %v8228, %v7775
        %v8357 = vmul.f32 %v8229, %v7864
        %v8358 = vmul.f32 %v8230, %v7599
        %v8359 = vmul.f32 %v8231, %v7688
        %v8360 = vmul.f32 %v8232, %v7777
        %v8361 = vmul.f32 %v8233, %v7866
        %v8362 = vmul.f32 %v8234, %v7602
        %v8363 = vmul.f32 %v8235, %v7691
        %v8364 = vmul.f32 %v8236, %v7780
        %v8365 = vmul.f32 %v8237, %v7869
        %v8366 = vmul.f32 %v8238, %v7604
        %v8367 = vmul.f32 %v8239, %v7693
        %v8368 = vmul.f32 %v8240, %v7782
        %v8369 = vmul.f32 %v8241, %v7871
        %v8370 = vmul.f32 %v8242, %v7607
        %v8371 = vmul.f32 %v8243, %v7696
        %v8372 = vmul.f32 %v8244, %v7785
        %v8373 = vmul.f32 %v8245, %v7874
        %v8374 = vmul.f32 %v8246, %v7609
        %v8375 = vmul.f32 %v8247, %v7698
        %v8376 = vmul.f32 %v8248, %v7787
        %v8377 = vmul.f32 %v8249, %v7876
        %v8378 = vmul.f32 %v8250, %v7612
        %v8379 = vmul.f32 %v8251, %v7701
        %v8380 = vmul.f32 %v8252, %v7790
        %v8381 = vmul.f32 %v8253, %v7879
        %v8382 = vmul.f32 %v8254, %v7614
        %v8383 = vmul.f32 %v8255, %v7703
        %v8384 = vmul.f32 %v8256, %v7792
        %v8385 = vmul.f32 %v8257, %v7881
        %v8386 = vmul.f32 %v8258, %v7617
        %v8387 = vmul.f32 %v8259, %v7706
        %v8388 = vmul.f32 %v8260, %v7795
        %v8389 = vmul.f32 %v8261, %v7884
        %v8390 = vmul.f32 %v8262, %v7619
        %v8391 = vmul.f32 %v8263, %v7708
        %v8392 = vmul.f32 %v8264, %v7797
        %v8393 = vmul.f32 %v8265, %v7886
        %v8394 = vmul.f32 %v8266, %v7622
        %v8395 = vmul.f32 %v8267, %v7711
        %v8396 = vmul.f32 %v8268, %v7800
        %v8397 = vmul.f32 %v8269, %v7889
        %v8398 = vmul.f32 %v8270, %v7624
        %v8399 = vmul.f32 %v8271, %v7713
        %v8400 = vmul.f32 %v8272, %v7802
        %v8401 = vmul.f32 %v8273, %v7891
        %v8402 = vmul.f32 %v8274, %v7627
        %v8403 = vmul.f32 %v8275, %v7716
        %v8404 = vmul.f32 %v8276, %v7805
        %v8405 = vmul.f32 %v8277, %v7894
        %v8406 = vmul.f32 %v8278, %v7629
        %v8407 = vmul.f32 %v8279, %v7718
        %v8408 = vmul.f32 %v8280, %v7807
        %v8409 = vmul.f32 %v8281, %v7896
        %v8410 = vadd.f32 %v7552, %v8282
        %v8411 = vadd.f32 %v7641, %v8283
        %v8412 = vadd.f32 %v7730, %v8284
        %v8413 = vadd.f32 %v7819, %v8285
        %v8414 = vadd.f32 %v7554, %v8286
        %v8415 = vadd.f32 %v7643, %v8287
        %v8416 = vadd.f32 %v7732, %v8288
        %v8417 = vadd.f32 %v7821, %v8289
        %v8418 = vadd.f32 %v7557, %v8290
        %v8419 = vadd.f32 %v7646, %v8291
        %v8420 = vadd.f32 %v7735, %v8292
        %v8421 = vadd.f32 %v7824, %v8293
        %v8422 = vadd.f32 %v7559, %v8294
        %v8423 = vadd.f32 %v7648, %v8295
        %v8424 = vadd.f32 %v7737, %v8296
        %v8425 = vadd.f32 %v7826, %v8297
        %v8426 = vadd.f32 %v7562, %v8298
        %v8427 = vadd.f32 %v7651, %v8299
        %v8428 = vadd.f32 %v7740, %v8300
        %v8429 = vadd.f32 %v7829, %v8301
        %v8430 = vadd.f32 %v7564, %v8302
        %v8431 = vadd.f32 %v7653, %v8303
        %v8432 = vadd.f32 %v7742, %v8304
        %v8433 = vadd.f32 %v7831, %v8305
        %v8434 = vadd.f32 %v7567, %v8306
        %v8435 = vadd.f32 %v7656, %v8307
        %v8436 = vadd.f32 %v7745, %v8308
        %v8437 = vadd.f32 %v7834, %v8309
        %v8438 = vadd.f32 %v7569, %v8310
        %v8439 = vadd.f32 %v7658, %v8311
        %v8440 = vadd.f32 %v7747, %v8312
        %v8441 = vadd.f32 %v7836, %v8313
        %v8442 = vadd.f32 %v7572, %v8314
        %v8443 = vadd.f32 %v7661, %v8315
        %v8444 = vadd.f32 %v7750, %v8316
        %v8445 = vadd.f32 %v7839, %v8317
        %v8446 = vadd.f32 %v7574, %v8318
        %v8447 = vadd.f32 %v7663, %v8319
        %v8448 = vadd.f32 %v7752, %v8320
        %v8449 = vadd.f32 %v7841, %v8321
        %v8450 = vadd.f32 %v7577, %v8322
        %v8451 = vadd.f32 %v7666, %v8323
        %v8452 = vadd.f32 %v7755, %v8324
        %v8453 = vadd.f32 %v7844, %v8325
        %v8454 = vadd.f32 %v7579, %v8326
        %v8455 = vadd.f32 %v7668, %v8327
        %v8456 = vadd.f32 %v7757, %v8328
        %v8457 = vadd.f32 %v7846, %v8329
        %v8458 = vadd.f32 %v7582, %v8330
        %v8459 = vadd.f32 %v7671, %v8331
        %v8460 = vadd.f32 %v7760, %v8332
        %v8461 = vadd.f32 %v7849, %v8333
        %v8462 = vadd.f32 %v7584, %v8334
        %v8463 = vadd.f32 %v7673, %v8335
        %v8464 = vadd.f32 %v7762, %v8336
        %v8465 = vadd.f32 %v7851, %v8337
        %v8466 = vadd.f32 %v7587, %v8338
        %v8467 = vadd.f32 %v7676, %v8339
        %v8468 = vadd.f32 %v7765, %v8340
        %v8469 = vadd.f32 %v7854, %v8341
        %v8470 = vadd.f32 %v7589, %v8342
        %v8471 = vadd.f32 %v7678, %v8343
        %v8472 = vadd.f32 %v7767, %v8344
        %v8473 = vadd.f32 %v7856, %v8345
        %v8474 = vadd.f32 %v7592, %v8346
        %v8475 = vadd.f32 %v7681, %v8347
        %v8476 = vadd.f32 %v7770, %v8348
        %v8477 = vadd.f32 %v7859, %v8349
        %v8478 = vadd.f32 %v7594, %v8350
        %v8479 = vadd.f32 %v7683, %v8351
        %v8480 = vadd.f32 %v7772, %v8352
        %v8481 = vadd.f32 %v7861, %v8353
        %v8482 = vadd.f32 %v7597, %v8354
        %v8483 = vadd.f32 %v7686, %v8355
        %v8484 = vadd.f32 %v7775, %v8356
        %v8485 = vadd.f32 %v7864, %v8357
        %v8486 = vadd.f32 %v7599, %v8358
        %v8487 = vadd.f32 %v7688, %v8359
        %v8488 = vadd.f32 %v7777, %v8360
        %v8489 = vadd.f32 %v7866, %v8361
        %v8490 = vadd.f32 %v7602, %v8362
        %v8491 = vadd.f32 %v7691, %v8363
        %v8492 = vadd.f32 %v7780, %v8364
        %v8493 = vadd.f32 %v7869, %v8365
        %v8494 = vadd.f32 %v7604, %v8366
        %v8495 = vadd.f32 %v7693, %v8367
        %v8496 = vadd.f32 %v7782, %v8368
        %v8497 = vadd.f32 %v7871, %v8369
        %v8498 = vadd.f32 %v7607, %v8370
        %v8499 = vadd.f32 %v7696, %v8371
        %v8500 = vadd.f32 %v7785, %v8372
        %v8501 = vadd.f32 %v7874, %v8373
        %v8502 = vadd.f32 %v7609, %v8374
        %v8503 = vadd.f32 %v7698, %v8375
        %v8504 = vadd.f32 %v7787, %v8376
        %v8505 = vadd.f32 %v7876, %v8377
        %v8506 = vadd.f32 %v7612, %v8378
        %v8507 = vadd.f32 %v7701, %v8379
        %v8508 = vadd.f32 %v7790, %v8380
        %v8509 = vadd.f32 %v7879, %v8381
        %v8510 = vadd.f32 %v7614, %v8382
        %v8511 = vadd.f32 %v7703, %v8383
        %v8512 = vadd.f32 %v7792, %v8384
        %v8513 = vadd.f32 %v7881, %v8385
        %v8514 = vadd.f32 %v7617, %v8386
        %v8515 = vadd.f32 %v7706, %v8387
        %v8516 = vadd.f32 %v7795, %v8388
        %v8517 = vadd.f32 %v7884, %v8389
        %v8518 = vadd.f32 %v7619, %v8390
        %v8519 = vadd.f32 %v7708, %v8391
        %v8520 = vadd.f32 %v7797, %v8392
        %v8521 = vadd.f32 %v7886, %v8393
        %v8522 = vadd.f32 %v7622, %v8394
        %v8523 = vadd.f32 %v7711, %v8395
        %v8524 = vadd.f32 %v7800, %v8396
        %v8525 = vadd.f32 %v7889, %v8397
        %v8526 = vadd.f32 %v7624, %v8398
        %v8527 = vadd.f32 %v7713, %v8399
        %v8528 = vadd.f32 %v7802, %v8400
        %v8529 = vadd.f32 %v7891, %v8401
        %v8530 = vadd.f32 %v7627, %v8402
        %v8531 = vadd.f32 %v7716, %v8403
        %v8532 = vadd.f32 %v7805, %v8404
        %v8533 = vadd.f32 %v7894, %v8405
        %v8534 = vadd.f32 %v7629, %v8406
        %v8535 = vadd.f32 %v7718, %v8407
        %v8536 = vadd.f32 %v7807, %v8408
        %v8537 = vadd.f32 %v7896, %v8409
        %v8538 = vmul.f32 %v8410, 0.7978846
        %v8539 = vmul.f32 %v8411, 0.7978846
        %v8540 = vmul.f32 %v8412, 0.7978846
        %v8541 = vmul.f32 %v8413, 0.7978846
        %v8542 = vmul.f32 %v8414, 0.7978846
        %v8543 = vmul.f32 %v8415, 0.7978846
        %v8544 = vmul.f32 %v8416, 0.7978846
        %v8545 = vmul.f32 %v8417, 0.7978846
        %v8546 = vmul.f32 %v8418, 0.7978846
        %v8547 = vmul.f32 %v8419, 0.7978846
        %v8548 = vmul.f32 %v8420, 0.7978846
        %v8549 = vmul.f32 %v8421, 0.7978846
        %v8550 = vmul.f32 %v8422, 0.7978846
        %v8551 = vmul.f32 %v8423, 0.7978846
        %v8552 = vmul.f32 %v8424, 0.7978846
        %v8553 = vmul.f32 %v8425, 0.7978846
        %v8554 = vmul.f32 %v8426, 0.7978846
        %v8555 = vmul.f32 %v8427, 0.7978846
        %v8556 = vmul.f32 %v8428, 0.7978846
        %v8557 = vmul.f32 %v8429, 0.7978846
        %v8558 = vmul.f32 %v8430, 0.7978846
        %v8559 = vmul.f32 %v8431, 0.7978846
        %v8560 = vmul.f32 %v8432, 0.7978846
        %v8561 = vmul.f32 %v8433, 0.7978846
        %v8562 = vmul.f32 %v8434, 0.7978846
        %v8563 = vmul.f32 %v8435, 0.7978846
        %v8564 = vmul.f32 %v8436, 0.7978846
        %v8565 = vmul.f32 %v8437, 0.7978846
        %v8566 = vmul.f32 %v8438, 0.7978846
        %v8567 = vmul.f32 %v8439, 0.7978846
        %v8568 = vmul.f32 %v8440, 0.7978846
        %v8569 = vmul.f32 %v8441, 0.7978846
        %v8570 = vmul.f32 %v8442, 0.7978846
        %v8571 = vmul.f32 %v8443, 0.7978846
        %v8572 = vmul.f32 %v8444, 0.7978846
        %v8573 = vmul.f32 %v8445, 0.7978846
        %v8574 = vmul.f32 %v8446, 0.7978846
        %v8575 = vmul.f32 %v8447, 0.7978846
        %v8576 = vmul.f32 %v8448, 0.7978846
        %v8577 = vmul.f32 %v8449, 0.7978846
        %v8578 = vmul.f32 %v8450, 0.7978846
        %v8579 = vmul.f32 %v8451, 0.7978846
        %v8580 = vmul.f32 %v8452, 0.7978846
        %v8581 = vmul.f32 %v8453, 0.7978846
        %v8582 = vmul.f32 %v8454, 0.7978846
        %v8583 = vmul.f32 %v8455, 0.7978846
        %v8584 = vmul.f32 %v8456, 0.7978846
        %v8585 = vmul.f32 %v8457, 0.7978846
        %v8586 = vmul.f32 %v8458, 0.7978846
        %v8587 = vmul.f32 %v8459, 0.7978846
        %v8588 = vmul.f32 %v8460, 0.7978846
        %v8589 = vmul.f32 %v8461, 0.7978846
        %v8590 = vmul.f32 %v8462, 0.7978846
        %v8591 = vmul.f32 %v8463, 0.7978846
        %v8592 = vmul.f32 %v8464, 0.7978846
        %v8593 = vmul.f32 %v8465, 0.7978846
        %v8594 = vmul.f32 %v8466, 0.7978846
        %v8595 = vmul.f32 %v8467, 0.7978846
        %v8596 = vmul.f32 %v8468, 0.7978846
        %v8597 = vmul.f32 %v8469, 0.7978846
        %v8598 = vmul.f32 %v8470, 0.7978846
        %v8599 = vmul.f32 %v8471, 0.7978846
        %v8600 = vmul.f32 %v8472, 0.7978846
        %v8601 = vmul.f32 %v8473, 0.7978846
        %v8602 = vmul.f32 %v8474, 0.7978846
        %v8603 = vmul.f32 %v8475, 0.7978846
        %v8604 = vmul.f32 %v8476, 0.7978846
        %v8605 = vmul.f32 %v8477, 0.7978846
        %v8606 = vmul.f32 %v8478, 0.7978846
        %v8607 = vmul.f32 %v8479, 0.7978846
        %v8608 = vmul.f32 %v8480, 0.7978846
        %v8609 = vmul.f32 %v8481, 0.7978846
        %v8610 = vmul.f32 %v8482, 0.7978846
        %v8611 = vmul.f32 %v8483, 0.7978846
        %v8612 = vmul.f32 %v8484, 0.7978846
        %v8613 = vmul.f32 %v8485, 0.7978846
        %v8614 = vmul.f32 %v8486, 0.7978846
        %v8615 = vmul.f32 %v8487, 0.7978846
        %v8616 = vmul.f32 %v8488, 0.7978846
        %v8617 = vmul.f32 %v8489, 0.7978846
        %v8618 = vmul.f32 %v8490, 0.7978846
        %v8619 = vmul.f32 %v8491, 0.7978846
        %v8620 = vmul.f32 %v8492, 0.7978846
        %v8621 = vmul.f32 %v8493, 0.7978846
        %v8622 = vmul.f32 %v8494, 0.7978846
        %v8623 = vmul.f32 %v8495, 0.7978846
        %v8624 = vmul.f32 %v8496, 0.7978846
        %v8625 = vmul.f32 %v8497, 0.7978846
        %v8626 = vmul.f32 %v8498, 0.7978846
        %v8627 = vmul.f32 %v8499, 0.7978846
        %v8628 = vmul.f32 %v8500, 0.7978846
        %v8629 = vmul.f32 %v8501, 0.7978846
        %v8630 = vmul.f32 %v8502, 0.7978846
        %v8631 = vmul.f32 %v8503, 0.7978846
        %v8632 = vmul.f32 %v8504, 0.7978846
        %v8633 = vmul.f32 %v8505, 0.7978846
        %v8634 = vmul.f32 %v8506, 0.7978846
        %v8635 = vmul.f32 %v8507, 0.7978846
        %v8636 = vmul.f32 %v8508, 0.7978846
        %v8637 = vmul.f32 %v8509, 0.7978846
        %v8638 = vmul.f32 %v8510, 0.7978846
        %v8639 = vmul.f32 %v8511, 0.7978846
        %v8640 = vmul.f32 %v8512, 0.7978846
        %v8641 = vmul.f32 %v8513, 0.7978846
        %v8642 = vmul.f32 %v8514, 0.7978846
        %v8643 = vmul.f32 %v8515, 0.7978846
        %v8644 = vmul.f32 %v8516, 0.7978846
        %v8645 = vmul.f32 %v8517, 0.7978846
        %v8646 = vmul.f32 %v8518, 0.7978846
        %v8647 = vmul.f32 %v8519, 0.7978846
        %v8648 = vmul.f32 %v8520, 0.7978846
        %v8649 = vmul.f32 %v8521, 0.7978846
        %v8650 = vmul.f32 %v8522, 0.7978846
        %v8651 = vmul.f32 %v8523, 0.7978846
        %v8652 = vmul.f32 %v8524, 0.7978846
        %v8653 = vmul.f32 %v8525, 0.7978846
        %v8654 = vmul.f32 %v8526, 0.7978846
        %v8655 = vmul.f32 %v8527, 0.7978846
        %v8656 = vmul.f32 %v8528, 0.7978846
        %v8657 = vmul.f32 %v8529, 0.7978846
        %v8658 = vmul.f32 %v8530, 0.7978846
        %v8659 = vmul.f32 %v8531, 0.7978846
        %v8660 = vmul.f32 %v8532, 0.7978846
        %v8661 = vmul.f32 %v8533, 0.7978846
        %v8662 = vmul.f32 %v8534, 0.7978846
        %v8663 = vmul.f32 %v8535, 0.7978846
        %v8664 = vmul.f32 %v8536, 0.7978846
        %v8665 = vmul.f32 %v8537, 0.7978846
        %v8666 = vtanh.pop %v8538
        %v8667 = vtanh.pop %v8539
        %v8668 = vtanh.pop %v8540
        %v8669 = vtanh.pop %v8541
        %v8670 = vtanh.pop %v8542
        %v8671 = vtanh.pop %v8543
        %v8672 = vtanh.pop %v8544
        %v8673 = vtanh.pop %v8545
        %v8674 = vtanh.pop %v8546
        %v8675 = vtanh.pop %v8547
        %v8676 = vtanh.pop %v8548
        %v8677 = vtanh.pop %v8549
        %v8678 = vtanh.pop %v8550
        %v8679 = vtanh.pop %v8551
        %v8680 = vtanh.pop %v8552
        %v8681 = vtanh.pop %v8553
        %v8682 = vtanh.pop %v8554
        %v8683 = vtanh.pop %v8555
        %v8684 = vtanh.pop %v8556
        %v8685 = vtanh.pop %v8557
        %v8686 = vtanh.pop %v8558
        %v8687 = vtanh.pop %v8559
        %v8688 = vtanh.pop %v8560
        %v8689 = vtanh.pop %v8561
        %v8690 = vtanh.pop %v8562
        %v8691 = vtanh.pop %v8563
        %v8692 = vtanh.pop %v8564
        %v8693 = vtanh.pop %v8565
        %v8694 = vtanh.pop %v8566
        %v8695 = vtanh.pop %v8567
        %v8696 = vtanh.pop %v8568
        %v8697 = vtanh.pop %v8569
        %v8698 = vtanh.pop %v8570
        %v8699 = vtanh.pop %v8571
        %v8700 = vtanh.pop %v8572
        %v8701 = vtanh.pop %v8573
        %v8702 = vtanh.pop %v8574
        %v8703 = vtanh.pop %v8575
        %v8704 = vtanh.pop %v8576
        %v8705 = vtanh.pop %v8577
        %v8706 = vtanh.pop %v8578
        %v8707 = vtanh.pop %v8579
        %v8708 = vtanh.pop %v8580
        %v8709 = vtanh.pop %v8581
        %v8710 = vtanh.pop %v8582
        %v8711 = vtanh.pop %v8583
        %v8712 = vtanh.pop %v8584
        %v8713 = vtanh.pop %v8585
        %v8714 = vtanh.pop %v8586
        %v8715 = vtanh.pop %v8587
        %v8716 = vtanh.pop %v8588
        %v8717 = vtanh.pop %v8589
        %v8718 = vtanh.pop %v8590
        %v8719 = vtanh.pop %v8591
        %v8720 = vtanh.pop %v8592
        %v8721 = vtanh.pop %v8593
        %v8722 = vtanh.pop %v8594
        %v8723 = vtanh.pop %v8595
        %v8724 = vtanh.pop %v8596
        %v8725 = vtanh.pop %v8597
        %v8726 = vtanh.pop %v8598
        %v8727 = vtanh.pop %v8599
        %v8728 = vtanh.pop %v8600
        %v8729 = vtanh.pop %v8601
        %v8730 = vtanh.pop %v8602
        %v8731 = vtanh.pop %v8603
        %v8732 = vtanh.pop %v8604
        %v8733 = vtanh.pop %v8605
        %v8734 = vtanh.pop %v8606
        %v8735 = vtanh.pop %v8607
        %v8736 = vtanh.pop %v8608
        %v8737 = vtanh.pop %v8609
        %v8738 = vtanh.pop %v8610
        %v8739 = vtanh.pop %v8611
        %v8740 = vtanh.pop %v8612
        %v8741 = vtanh.pop %v8613
        %v8742 = vtanh.pop %v8614
        %v8743 = vtanh.pop %v8615
        %v8744 = vtanh.pop %v8616
        %v8745 = vtanh.pop %v8617
        %v8746 = vtanh.pop %v8618
        %v8747 = vtanh.pop %v8619
        %v8748 = vtanh.pop %v8620
        %v8749 = vtanh.pop %v8621
        %v8750 = vtanh.pop %v8622
        %v8751 = vtanh.pop %v8623
        %v8752 = vtanh.pop %v8624
        %v8753 = vtanh.pop %v8625
        %v8754 = vtanh.pop %v8626
        %v8755 = vtanh.pop %v8627
        %v8756 = vtanh.pop %v8628
        %v8757 = vtanh.pop %v8629
        %v8758 = vtanh.pop %v8630
        %v8759 = vtanh.pop %v8631
        %v8760 = vtanh.pop %v8632
        %v8761 = vtanh.pop %v8633
        %v8762 = vtanh.pop %v8634
        %v8763 = vtanh.pop %v8635
        %v8764 = vtanh.pop %v8636
        %v8765 = vtanh.pop %v8637
        %v8766 = vtanh.pop %v8638
        %v8767 = vtanh.pop %v8639
        %v8768 = vtanh.pop %v8640
        %v8769 = vtanh.pop %v8641
        %v8770 = vtanh.pop %v8642
        %v8771 = vtanh.pop %v8643
        %v8772 = vtanh.pop %v8644
        %v8773 = vtanh.pop %v8645
        %v8774 = vtanh.pop %v8646
        %v8775 = vtanh.pop %v8647
        %v8776 = vtanh.pop %v8648
        %v8777 = vtanh.pop %v8649
        %v8778 = vtanh.pop %v8650
        %v8779 = vtanh.pop %v8651
        %v8780 = vtanh.pop %v8652
        %v8781 = vtanh.pop %v8653
        %v8782 = vtanh.pop %v8654
        %v8783 = vtanh.pop %v8655
        %v8784 = vtanh.pop %v8656
        %v8785 = vtanh.pop %v8657
        %v8786 = vtanh.pop %v8658
        %v8787 = vtanh.pop %v8659
        %v8788 = vtanh.pop %v8660
        %v8789 = vtanh.pop %v8661
        %v8790 = vtanh.pop %v8662
        %v8791 = vtanh.pop %v8663
        %v8792 = vtanh.pop %v8664
        %v8793 = vtanh.pop %v8665
        %v8794 = vadd.f32 %v8666, 1.0
        %v8795 = vadd.f32 %v8667, 1.0
        %v8796 = vadd.f32 %v8668, 1.0
        %v8797 = vadd.f32 %v8669, 1.0
        %v8798 = vadd.f32 %v8670, 1.0
        %v8799 = vadd.f32 %v8671, 1.0
        %v8800 = vadd.f32 %v8672, 1.0
        %v8801 = vadd.f32 %v8673, 1.0
        %v8802 = vadd.f32 %v8674, 1.0
        %v8803 = vadd.f32 %v8675, 1.0
        %v8804 = vadd.f32 %v8676, 1.0
        %v8805 = vadd.f32 %v8677, 1.0
        %v8806 = vadd.f32 %v8678, 1.0
        %v8807 = vadd.f32 %v8679, 1.0
        %v8808 = vadd.f32 %v8680, 1.0
        %v8809 = vadd.f32 %v8681, 1.0
        %v8810 = vadd.f32 %v8682, 1.0
        %v8811 = vadd.f32 %v8683, 1.0
        %v8812 = vadd.f32 %v8684, 1.0
        %v8813 = vadd.f32 %v8685, 1.0
        %v8814 = vadd.f32 %v8686, 1.0
        %v8815 = vadd.f32 %v8687, 1.0
        %v8816 = vadd.f32 %v8688, 1.0
        %v8817 = vadd.f32 %v8689, 1.0
        %v8818 = vadd.f32 %v8690, 1.0
        %v8819 = vadd.f32 %v8691, 1.0
        %v8820 = vadd.f32 %v8692, 1.0
        %v8821 = vadd.f32 %v8693, 1.0
        %v8822 = vadd.f32 %v8694, 1.0
        %v8823 = vadd.f32 %v8695, 1.0
        %v8824 = vadd.f32 %v8696, 1.0
        %v8825 = vadd.f32 %v8697, 1.0
        %v8826 = vadd.f32 %v8698, 1.0
        %v8827 = vadd.f32 %v8699, 1.0
        %v8828 = vadd.f32 %v8700, 1.0
        %v8829 = vadd.f32 %v8701, 1.0
        %v8830 = vadd.f32 %v8702, 1.0
        %v8831 = vadd.f32 %v8703, 1.0
        %v8832 = vadd.f32 %v8704, 1.0
        %v8833 = vadd.f32 %v8705, 1.0
        %v8834 = vadd.f32 %v8706, 1.0
        %v8835 = vadd.f32 %v8707, 1.0
        %v8836 = vadd.f32 %v8708, 1.0
        %v8837 = vadd.f32 %v8709, 1.0
        %v8838 = vadd.f32 %v8710, 1.0
        %v8839 = vadd.f32 %v8711, 1.0
        %v8840 = vadd.f32 %v8712, 1.0
        %v8841 = vadd.f32 %v8713, 1.0
        %v8842 = vadd.f32 %v8714, 1.0
        %v8843 = vadd.f32 %v8715, 1.0
        %v8844 = vadd.f32 %v8716, 1.0
        %v8845 = vadd.f32 %v8717, 1.0
        %v8846 = vadd.f32 %v8718, 1.0
        %v8847 = vadd.f32 %v8719, 1.0
        %v8848 = vadd.f32 %v8720, 1.0
        %v8849 = vadd.f32 %v8721, 1.0
        %v8850 = vadd.f32 %v8722, 1.0
        %v8851 = vadd.f32 %v8723, 1.0
        %v8852 = vadd.f32 %v8724, 1.0
        %v8853 = vadd.f32 %v8725, 1.0
        %v8854 = vadd.f32 %v8726, 1.0
        %v8855 = vadd.f32 %v8727, 1.0
        %v8856 = vadd.f32 %v8728, 1.0
        %v8857 = vadd.f32 %v8729, 1.0
        %v8858 = vadd.f32 %v8730, 1.0
        %v8859 = vadd.f32 %v8731, 1.0
        %v8860 = vadd.f32 %v8732, 1.0
        %v8861 = vadd.f32 %v8733, 1.0
        %v8862 = vadd.f32 %v8734, 1.0
        %v8863 = vadd.f32 %v8735, 1.0
        %v8864 = vadd.f32 %v8736, 1.0
        %v8865 = vadd.f32 %v8737, 1.0
        %v8866 = vadd.f32 %v8738, 1.0
        %v8867 = vadd.f32 %v8739, 1.0
        %v8868 = vadd.f32 %v8740, 1.0
        %v8869 = vadd.f32 %v8741, 1.0
        %v8870 = vadd.f32 %v8742, 1.0
        %v8871 = vadd.f32 %v8743, 1.0
        %v8872 = vadd.f32 %v8744, 1.0
        %v8873 = vadd.f32 %v8745, 1.0
        %v8874 = vadd.f32 %v8746, 1.0
        %v8875 = vadd.f32 %v8747, 1.0
        %v8876 = vadd.f32 %v8748, 1.0
        %v8877 = vadd.f32 %v8749, 1.0
        %v8878 = vadd.f32 %v8750, 1.0
        %v8879 = vadd.f32 %v8751, 1.0
        %v8880 = vadd.f32 %v8752, 1.0
        %v8881 = vadd.f32 %v8753, 1.0
        %v8882 = vadd.f32 %v8754, 1.0
        %v8883 = vadd.f32 %v8755, 1.0
        %v8884 = vadd.f32 %v8756, 1.0
        %v8885 = vadd.f32 %v8757, 1.0
        %v8886 = vadd.f32 %v8758, 1.0
        %v8887 = vadd.f32 %v8759, 1.0
        %v8888 = vadd.f32 %v8760, 1.0
        %v8889 = vadd.f32 %v8761, 1.0
        %v8890 = vadd.f32 %v8762, 1.0
        %v8891 = vadd.f32 %v8763, 1.0
        %v8892 = vadd.f32 %v8764, 1.0
        %v8893 = vadd.f32 %v8765, 1.0
        %v8894 = vadd.f32 %v8766, 1.0
        %v8895 = vadd.f32 %v8767, 1.0
        %v8896 = vadd.f32 %v8768, 1.0
        %v8897 = vadd.f32 %v8769, 1.0
        %v8898 = vadd.f32 %v8770, 1.0
        %v8899 = vadd.f32 %v8771, 1.0
        %v8900 = vadd.f32 %v8772, 1.0
        %v8901 = vadd.f32 %v8773, 1.0
        %v8902 = vadd.f32 %v8774, 1.0
        %v8903 = vadd.f32 %v8775, 1.0
        %v8904 = vadd.f32 %v8776, 1.0
        %v8905 = vadd.f32 %v8777, 1.0
        %v8906 = vadd.f32 %v8778, 1.0
        %v8907 = vadd.f32 %v8779, 1.0
        %v8908 = vadd.f32 %v8780, 1.0
        %v8909 = vadd.f32 %v8781, 1.0
        %v8910 = vadd.f32 %v8782, 1.0
        %v8911 = vadd.f32 %v8783, 1.0
        %v8912 = vadd.f32 %v8784, 1.0
        %v8913 = vadd.f32 %v8785, 1.0
        %v8914 = vadd.f32 %v8786, 1.0
        %v8915 = vadd.f32 %v8787, 1.0
        %v8916 = vadd.f32 %v8788, 1.0
        %v8917 = vadd.f32 %v8789, 1.0
        %v8918 = vadd.f32 %v8790, 1.0
        %v8919 = vadd.f32 %v8791, 1.0
        %v8920 = vadd.f32 %v8792, 1.0
        %v8921 = vadd.f32 %v8793, 1.0
        %v8922 = vmul.f32 %v7898, %v8794
        %v8923 = vmul.f32 %v7899, %v8795
        %v8924 = vmul.f32 %v7900, %v8796
        %v8925 = vmul.f32 %v7901, %v8797
        %v8926 = vmul.f32 %v7902, %v8798
        %v8927 = vmul.f32 %v7903, %v8799
        %v8928 = vmul.f32 %v7904, %v8800
        %v8929 = vmul.f32 %v7905, %v8801
        %v8930 = vmul.f32 %v7906, %v8802
        %v8931 = vmul.f32 %v7907, %v8803
        %v8932 = vmul.f32 %v7908, %v8804
        %v8933 = vmul.f32 %v7909, %v8805
        %v8934 = vmul.f32 %v7910, %v8806
        %v8935 = vmul.f32 %v7911, %v8807
        %v8936 = vmul.f32 %v7912, %v8808
        %v8937 = vmul.f32 %v7913, %v8809
        %v8938 = vmul.f32 %v7914, %v8810
        %v8939 = vmul.f32 %v7915, %v8811
        %v8940 = vmul.f32 %v7916, %v8812
        %v8941 = vmul.f32 %v7917, %v8813
        %v8942 = vmul.f32 %v7918, %v8814
        %v8943 = vmul.f32 %v7919, %v8815
        %v8944 = vmul.f32 %v7920, %v8816
        %v8945 = vmul.f32 %v7921, %v8817
        %v8946 = vmul.f32 %v7922, %v8818
        %v8947 = vmul.f32 %v7923, %v8819
        %v8948 = vmul.f32 %v7924, %v8820
        %v8949 = vmul.f32 %v7925, %v8821
        %v8950 = vmul.f32 %v7926, %v8822
        %v8951 = vmul.f32 %v7927, %v8823
        %v8952 = vmul.f32 %v7928, %v8824
        %v8953 = vmul.f32 %v7929, %v8825
        %v8954 = vmul.f32 %v7930, %v8826
        %v8955 = vmul.f32 %v7931, %v8827
        %v8956 = vmul.f32 %v7932, %v8828
        %v8957 = vmul.f32 %v7933, %v8829
        %v8958 = vmul.f32 %v7934, %v8830
        %v8959 = vmul.f32 %v7935, %v8831
        %v8960 = vmul.f32 %v7936, %v8832
        %v8961 = vmul.f32 %v7937, %v8833
        %v8962 = vmul.f32 %v7938, %v8834
        %v8963 = vmul.f32 %v7939, %v8835
        %v8964 = vmul.f32 %v7940, %v8836
        %v8965 = vmul.f32 %v7941, %v8837
        %v8966 = vmul.f32 %v7942, %v8838
        %v8967 = vmul.f32 %v7943, %v8839
        %v8968 = vmul.f32 %v7944, %v8840
        %v8969 = vmul.f32 %v7945, %v8841
        %v8970 = vmul.f32 %v7946, %v8842
        %v8971 = vmul.f32 %v7947, %v8843
        %v8972 = vmul.f32 %v7948, %v8844
        %v8973 = vmul.f32 %v7949, %v8845
        %v8974 = vmul.f32 %v7950, %v8846
        %v8975 = vmul.f32 %v7951, %v8847
        %v8976 = vmul.f32 %v7952, %v8848
        %v8977 = vmul.f32 %v7953, %v8849
        %v8978 = vmul.f32 %v7954, %v8850
        %v8979 = vmul.f32 %v7955, %v8851
        %v8980 = vmul.f32 %v7956, %v8852
        %v8981 = vmul.f32 %v7957, %v8853
        %v8982 = vmul.f32 %v7958, %v8854
        %v8983 = vmul.f32 %v7959, %v8855
        %v8984 = vmul.f32 %v7960, %v8856
        %v8985 = vmul.f32 %v7961, %v8857
        %v8986 = vmul.f32 %v7962, %v8858
        %v8987 = vmul.f32 %v7963, %v8859
        %v8988 = vmul.f32 %v7964, %v8860
        %v8989 = vmul.f32 %v7965, %v8861
        %v8990 = vmul.f32 %v7966, %v8862
        %v8991 = vmul.f32 %v7967, %v8863
        %v8992 = vmul.f32 %v7968, %v8864
        %v8993 = vmul.f32 %v7969, %v8865
        %v8994 = vmul.f32 %v7970, %v8866
        %v8995 = vmul.f32 %v7971, %v8867
        %v8996 = vmul.f32 %v7972, %v8868
        %v8997 = vmul.f32 %v7973, %v8869
        %v8998 = vmul.f32 %v7974, %v8870
        %v8999 = vmul.f32 %v7975, %v8871
        %v9000 = vmul.f32 %v7976, %v8872
        %v9001 = vmul.f32 %v7977, %v8873
        %v9002 = vmul.f32 %v7978, %v8874
        %v9003 = vmul.f32 %v7979, %v8875
        %v9004 = vmul.f32 %v7980, %v8876
        %v9005 = vmul.f32 %v7981, %v8877
        %v9006 = vmul.f32 %v7982, %v8878
        %v9007 = vmul.f32 %v7983, %v8879
        %v9008 = vmul.f32 %v7984, %v8880
        %v9009 = vmul.f32 %v7985, %v8881
        %v9010 = vmul.f32 %v7986, %v8882
        %v9011 = vmul.f32 %v7987, %v8883
        %v9012 = vmul.f32 %v7988, %v8884
        %v9013 = vmul.f32 %v7989, %v8885
        %v9014 = vmul.f32 %v7990, %v8886
        %v9015 = vmul.f32 %v7991, %v8887
        %v9016 = vmul.f32 %v7992, %v8888
        %v9017 = vmul.f32 %v7993, %v8889
        %v9018 = vmul.f32 %v7994, %v8890
        %v9019 = vmul.f32 %v7995, %v8891
        %v9020 = vmul.f32 %v7996, %v8892
        %v9021 = vmul.f32 %v7997, %v8893
        %v9022 = vmul.f32 %v7998, %v8894
        %v9023 = vmul.f32 %v7999, %v8895
        %v9024 = vmul.f32 %v8000, %v8896
        %v9025 = vmul.f32 %v8001, %v8897
        %v9026 = vmul.f32 %v8002, %v8898
        %v9027 = vmul.f32 %v8003, %v8899
        %v9028 = vmul.f32 %v8004, %v8900
        %v9029 = vmul.f32 %v8005, %v8901
        %v9030 = vmul.f32 %v8006, %v8902
        %v9031 = vmul.f32 %v8007, %v8903
        %v9032 = vmul.f32 %v8008, %v8904
        %v9033 = vmul.f32 %v8009, %v8905
        %v9034 = vmul.f32 %v8010, %v8906
        %v9035 = vmul.f32 %v8011, %v8907
        %v9036 = vmul.f32 %v8012, %v8908
        %v9037 = vmul.f32 %v8013, %v8909
        %v9038 = vmul.f32 %v8014, %v8910
        %v9039 = vmul.f32 %v8015, %v8911
        %v9040 = vmul.f32 %v8016, %v8912
        %v9041 = vmul.f32 %v8017, %v8913
        %v9042 = vmul.f32 %v8018, %v8914
        %v9043 = vmul.f32 %v8019, %v8915
        %v9044 = vmul.f32 %v8020, %v8916
        %v9045 = vmul.f32 %v8021, %v8917
        %v9046 = vmul.f32 %v8022, %v8918
        %v9047 = vmul.f32 %v8023, %v8919
        %v9048 = vmul.f32 %v8024, %v8920
        %v9049 = vmul.f32 %v8025, %v8921
        %v9050 = vpack.c.bf16 %v8926, %v8922
        %v9051 = vpack.c.bf16 %v8927, %v8923
        %v9052 = vpack.c.bf16 %v8928, %v8924
        %v9053 = vpack.c.bf16 %v8929, %v8925
        %v9054 = vpack.c.bf16 %v8934, %v8930
        %v9055 = vpack.c.bf16 %v8935, %v8931
        %v9056 = vpack.c.bf16 %v8936, %v8932
        %v9057 = vpack.c.bf16 %v8937, %v8933
        %v9058 = vpack.c.bf16 %v8942, %v8938
        %v9059 = vpack.c.bf16 %v8943, %v8939
        %v9060 = vpack.c.bf16 %v8944, %v8940
        %v9061 = vpack.c.bf16 %v8945, %v8941
        %v9062 = vpack.c.bf16 %v8950, %v8946
        %v9063 = vpack.c.bf16 %v8951, %v8947
        %v9064 = vpack.c.bf16 %v8952, %v8948
        %v9065 = vpack.c.bf16 %v8953, %v8949
        %v9066 = vpack.c.bf16 %v8958, %v8954
        %v9067 = vpack.c.bf16 %v8959, %v8955
        %v9068 = vpack.c.bf16 %v8960, %v8956
        %v9069 = vpack.c.bf16 %v8961, %v8957
        %v9070 = vpack.c.bf16 %v8966, %v8962
        %v9071 = vpack.c.bf16 %v8967, %v8963
        %v9072 = vpack.c.bf16 %v8968, %v8964
        %v9073 = vpack.c.bf16 %v8969, %v8965
        %v9074 = vpack.c.bf16 %v8974, %v8970
        %v9075 = vpack.c.bf16 %v8975, %v8971
        %v9076 = vpack.c.bf16 %v8976, %v8972
        %v9077 = vpack.c.bf16 %v8977, %v8973
        %v9078 = vpack.c.bf16 %v8982, %v8978
        %v9079 = vpack.c.bf16 %v8983, %v8979
        %v9080 = vpack.c.bf16 %v8984, %v8980
        %v9081 = vpack.c.bf16 %v8985, %v8981
        %v9082 = vpack.c.bf16 %v8990, %v8986
        %v9083 = vpack.c.bf16 %v8991, %v8987
        %v9084 = vpack.c.bf16 %v8992, %v8988
        %v9085 = vpack.c.bf16 %v8993, %v8989
        %v9086 = vpack.c.bf16 %v8998, %v8994
        %v9087 = vpack.c.bf16 %v8999, %v8995
        %v9088 = vpack.c.bf16 %v9000, %v8996
        %v9089 = vpack.c.bf16 %v9001, %v8997
        %v9090 = vpack.c.bf16 %v9006, %v9002
        %v9091 = vpack.c.bf16 %v9007, %v9003
        %v9092 = vpack.c.bf16 %v9008, %v9004
        %v9093 = vpack.c.bf16 %v9009, %v9005
        %v9094 = vpack.c.bf16 %v9014, %v9010
        %v9095 = vpack.c.bf16 %v9015, %v9011
        %v9096 = vpack.c.bf16 %v9016, %v9012
        %v9097 = vpack.c.bf16 %v9017, %v9013
        %v9098 = vpack.c.bf16 %v9022, %v9018
        %v9099 = vpack.c.bf16 %v9023, %v9019
        %v9100 = vpack.c.bf16 %v9024, %v9020
        %v9101 = vpack.c.bf16 %v9025, %v9021
        %v9102 = vpack.c.bf16 %v9030, %v9026
        %v9103 = vpack.c.bf16 %v9031, %v9027
        %v9104 = vpack.c.bf16 %v9032, %v9028
        %v9105 = vpack.c.bf16 %v9033, %v9029
        %v9106 = vpack.c.bf16 %v9038, %v9034
        %v9107 = vpack.c.bf16 %v9039, %v9035
        %v9108 = vpack.c.bf16 %v9040, %v9036
        %v9109 = vpack.c.bf16 %v9041, %v9037
        %v9110 = vpack.c.bf16 %v9046, %v9042
        %v9111 = vpack.c.bf16 %v9047, %v9043
        %v9112 = vpack.c.bf16 %v9048, %v9044
        %v9113 = vpack.c.bf16 %v9049, %v9045
        %v9114 = vld [vmem:[#allocation17] sm:$0xf]
        %v9115 = vld [vmem:[#allocation17 + $0x4] sm:$0xf]
        %v9116 = vld [vmem:[#allocation17 + $0x8] sm:$0xf]
        %v9117 = vld [vmem:[#allocation17 + $0xc] sm:$0xf]
        %v9118 = vld [vmem:[#allocation17 + $0x10] sm:$0xf]
        %v9119 = vld [vmem:[#allocation17 + $0x14] sm:$0xf]
        %v9120 = vld [vmem:[#allocation17 + $0x18] sm:$0xf]
        %v9121 = vld [vmem:[#allocation17 + $0x1c] sm:$0xf]
        %v9122 = vld [vmem:[#allocation17 + $0x20] sm:$0xf]
        %v9123 = vld [vmem:[#allocation17 + $0x24] sm:$0xf]
        %v9124 = vld [vmem:[#allocation17 + $0x28] sm:$0xf]
        %v9125 = vld [vmem:[#allocation17 + $0x2c] sm:$0xf]
        %v9126 = vld [vmem:[#allocation17 + $0x30] sm:$0xf]
        %v9127 = vld [vmem:[#allocation17 + $0x34] sm:$0xf]
        %v9128 = vld [vmem:[#allocation17 + $0x38] sm:$0xf]
        %v9129 = vld [vmem:[#allocation17 + $0x3c] sm:$0xf]
        %v9130 = vld [vmem:[#allocation17 + $0x40] sm:$0xf]
        %v9131 = vld [vmem:[#allocation17 + $0x44] sm:$0xf]
        %v9132 = vld [vmem:[#allocation17 + $0x48] sm:$0xf]
        %v9133 = vld [vmem:[#allocation17 + $0x4c] sm:$0xf]
        %v9134 = vld [vmem:[#allocation17 + $0x50] sm:$0xf]
        %v9135 = vld [vmem:[#allocation17 + $0x54] sm:$0xf]
        %v9136 = vld [vmem:[#allocation17 + $0x58] sm:$0xf]
        %v9137 = vld [vmem:[#allocation17 + $0x5c] sm:$0xf]
        %v9138 = vld [vmem:[#allocation17 + $0x60] sm:$0xf]
        %v9139 = vld [vmem:[#allocation17 + $0x64] sm:$0xf]
        %v9140 = vld [vmem:[#allocation17 + $0x68] sm:$0xf]
        %v9141 = vld [vmem:[#allocation17 + $0x6c] sm:$0xf]
        %v9142 = vld [vmem:[#allocation17 + $0x70] sm:$0xf]
        %v9143 = vld [vmem:[#allocation17 + $0x74] sm:$0xf]
        %v9144 = vld [vmem:[#allocation17 + $0x78] sm:$0xf]
        %v9145 = vld [vmem:[#allocation17 + $0x7c] sm:$0xf]
        %v9146 = vld [vmem:[#allocation17 + $0x80] sm:$0xf]
        %v9147 = vld [vmem:[#allocation17 + $0x84] sm:$0xf]
        %v9148 = vld [vmem:[#allocation17 + $0x88] sm:$0xf]
        %v9149 = vld [vmem:[#allocation17 + $0x8c] sm:$0xf]
        %v9150 = vld [vmem:[#allocation17 + $0x90] sm:$0xf]
        %v9151 = vld [vmem:[#allocation17 + $0x94] sm:$0xf]
        %v9152 = vld [vmem:[#allocation17 + $0x98] sm:$0xf]
        %v9153 = vld [vmem:[#allocation17 + $0x9c] sm:$0xf]
        %v9154 = vld [vmem:[#allocation17 + $0xa0] sm:$0xf]
        %v9155 = vld [vmem:[#allocation17 + $0xa4] sm:$0xf]
        %v9156 = vld [vmem:[#allocation17 + $0xa8] sm:$0xf]
        %v9157 = vld [vmem:[#allocation17 + $0xac] sm:$0xf]
        %v9158 = vld [vmem:[#allocation17 + $0xb0] sm:$0xf]
        %v9159 = vld [vmem:[#allocation17 + $0xb4] sm:$0xf]
        %v9160 = vld [vmem:[#allocation17 + $0xb8] sm:$0xf]
        %v9161 = vld [vmem:[#allocation17 + $0xbc] sm:$0xf]
        %v9162 = vld [vmem:[#allocation17 + $0xc0] sm:$0xf]
        %v9163 = vld [vmem:[#allocation17 + $0xc4] sm:$0xf]
        %v9164 = vld [vmem:[#allocation17 + $0xc8] sm:$0xf]
        %v9165 = vld [vmem:[#allocation17 + $0xcc] sm:$0xf]
        %v9166 = vld [vmem:[#allocation17 + $0xd0] sm:$0xf]
        %v9167 = vld [vmem:[#allocation17 + $0xd4] sm:$0xf]
        %v9168 = vld [vmem:[#allocation17 + $0xd8] sm:$0xf]
        %v9169 = vld [vmem:[#allocation17 + $0xdc] sm:$0xf]
        %v9170 = vld [vmem:[#allocation17 + $0xe0] sm:$0xf]
        %v9171 = vld [vmem:[#allocation17 + $0xe4] sm:$0xf]
        %v9172 = vld [vmem:[#allocation17 + $0xe8] sm:$0xf]
        %v9173 = vld [vmem:[#allocation17 + $0xec] sm:$0xf]
        %v9174 = vld [vmem:[#allocation17 + $0xf0] sm:$0xf]
        %v9175 = vld [vmem:[#allocation17 + $0xf4] sm:$0xf]
        %v9176 = vld [vmem:[#allocation17 + $0xf8] sm:$0xf]
        %v9177 = vld [vmem:[#allocation17 + $0xfc] sm:$0xf]
        %v9178 = vld [vmem:[%s12] sm:$0x1]
        %v9180 = vperm.slane %v9178, 0
        %v9246 = vunpack.c.l.b16 %v9114
        %v9247 = vunpack.c.l.b16 %v9115
        %v9248 = vunpack.c.l.b16 %v9116
        %v9249 = vunpack.c.l.b16 %v9117
        %v9250 = vunpack.c.l.b16 %v9118
        %v9251 = vunpack.c.l.b16 %v9119
        %v9252 = vunpack.c.l.b16 %v9120
        %v9253 = vunpack.c.l.b16 %v9121
        %v9254 = vunpack.c.l.b16 %v9122
        %v9255 = vunpack.c.l.b16 %v9123
        %v9256 = vunpack.c.l.b16 %v9124
        %v9257 = vunpack.c.l.b16 %v9125
        %v9258 = vunpack.c.l.b16 %v9126
        %v9259 = vunpack.c.l.b16 %v9127
        %v9260 = vunpack.c.l.b16 %v9128
        %v9261 = vunpack.c.l.b16 %v9129
        %v9262 = vunpack.c.l.b16 %v9130
        %v9263 = vunpack.c.l.b16 %v9131
        %v9264 = vunpack.c.l.b16 %v9132
        %v9265 = vunpack.c.l.b16 %v9133
        %v9266 = vunpack.c.l.b16 %v9134
        %v9267 = vunpack.c.l.b16 %v9135
        %v9268 = vunpack.c.l.b16 %v9136
        %v9269 = vunpack.c.l.b16 %v9137
        %v9270 = vunpack.c.l.b16 %v9138
        %v9271 = vunpack.c.l.b16 %v9139
        %v9272 = vunpack.c.l.b16 %v9140
        %v9273 = vunpack.c.l.b16 %v9141
        %v9274 = vunpack.c.l.b16 %v9142
        %v9275 = vunpack.c.l.b16 %v9143
        %v9276 = vunpack.c.l.b16 %v9144
        %v9277 = vunpack.c.l.b16 %v9145
        %v9278 = vunpack.c.l.b16 %v9146
        %v9279 = vunpack.c.l.b16 %v9147
        %v9280 = vunpack.c.l.b16 %v9148
        %v9281 = vunpack.c.l.b16 %v9149
        %v9282 = vunpack.c.l.b16 %v9150
        %v9283 = vunpack.c.l.b16 %v9151
        %v9284 = vunpack.c.l.b16 %v9152
        %v9285 = vunpack.c.l.b16 %v9153
        %v9286 = vunpack.c.l.b16 %v9154
        %v9287 = vunpack.c.l.b16 %v9155
        %v9288 = vunpack.c.l.b16 %v9156
        %v9289 = vunpack.c.l.b16 %v9157
        %v9290 = vunpack.c.l.b16 %v9158
        %v9291 = vunpack.c.l.b16 %v9159
        %v9292 = vunpack.c.l.b16 %v9160
        %v9293 = vunpack.c.l.b16 %v9161
        %v9294 = vunpack.c.l.b16 %v9162
        %v9295 = vunpack.c.l.b16 %v9163
        %v9296 = vunpack.c.l.b16 %v9164
        %v9297 = vunpack.c.l.b16 %v9165
        %v9298 = vunpack.c.l.b16 %v9166
        %v9299 = vunpack.c.l.b16 %v9167
        %v9300 = vunpack.c.l.b16 %v9168
        %v9301 = vunpack.c.l.b16 %v9169
        %v9302 = vunpack.c.l.b16 %v9170
        %v9303 = vunpack.c.l.b16 %v9171
        %v9304 = vunpack.c.l.b16 %v9172
        %v9305 = vunpack.c.l.b16 %v9173
        %v9306 = vunpack.c.l.b16 %v9174
        %v9307 = vunpack.c.l.b16 %v9175
        %v9308 = vunpack.c.l.b16 %v9176
        %v9309 = vunpack.c.l.b16 %v9177
        %v9310 = vpack.c.b16 %v9247, %v9246
        %v9311 = vpack.c.b16 %v9249, %v9248
        %v9312 = vpack.c.b16 %v9251, %v9250
        %v9313 = vpack.c.b16 %v9253, %v9252
        %v9314 = vpack.c.b16 %v9255, %v9254
        %v9315 = vpack.c.b16 %v9257, %v9256
        %v9316 = vpack.c.b16 %v9259, %v9258
        %v9317 = vpack.c.b16 %v9261, %v9260
        %v9318 = vpack.c.b16 %v9263, %v9262
        %v9319 = vpack.c.b16 %v9265, %v9264
        %v9320 = vpack.c.b16 %v9267, %v9266
        %v9321 = vpack.c.b16 %v9269, %v9268
        %v9322 = vpack.c.b16 %v9271, %v9270
        %v9323 = vpack.c.b16 %v9273, %v9272
        %v9324 = vpack.c.b16 %v9275, %v9274
        %v9325 = vpack.c.b16 %v9277, %v9276
        %v9326 = vpack.c.b16 %v9279, %v9278
        %v9327 = vpack.c.b16 %v9281, %v9280
        %v9328 = vpack.c.b16 %v9283, %v9282
        %v9329 = vpack.c.b16 %v9285, %v9284
        %v9330 = vpack.c.b16 %v9287, %v9286
        %v9331 = vpack.c.b16 %v9289, %v9288
        %v9332 = vpack.c.b16 %v9291, %v9290
        %v9333 = vpack.c.b16 %v9293, %v9292
        %v9334 = vpack.c.b16 %v9295, %v9294
        %v9335 = vpack.c.b16 %v9297, %v9296
        %v9336 = vpack.c.b16 %v9299, %v9298
        %v9337 = vpack.c.b16 %v9301, %v9300
        %v9338 = vpack.c.b16 %v9303, %v9302
        %v9339 = vpack.c.b16 %v9305, %v9304
        %v9340 = vpack.c.b16 %v9307, %v9306
        %v9341 = vpack.c.b16 %v9309, %v9308
        %9374 = vmatpush.bf16.msra.mxu0 %v9317
        %9375 = vmatpush.bf16.msra.mxu0 %v9316
        %9376 = vmatpush.bf16.msra.mxu0 %v9315
        %9377 = vmatpush.bf16.msra.mxu0 %v9314
        %9378 = vmatpush.bf16.msra.mxu0 %v9313
        %9379 = vmatpush.bf16.msra.mxu0 %v9312
        %9380 = vmatpush.bf16.msra.mxu0 %v9311
        %9381 = vmatpush.bf16.msra.mxu0 %v9310
        %9382 = vmatmul.bf16.gmra.mxu0 %v9050
        %v9383 = vpop.f32.mrf.mxu0
        %v9384 = vadd.f32 %v9180, %v9383
        %v9385 = vpop.f32.mrf.mxu0
        %v9386 = vadd.f32 %v9180, %v9385
        %9387 = vmatmul.bf16.gmra.mxu0 %v9054
        %v9388 = vpop.f32.mrf.mxu0
        %v9389 = vadd.f32 %v9180, %v9388
        %v9390 = vpop.f32.mrf.mxu0
        %v9391 = vadd.f32 %v9180, %v9390
        %9392 = vmatmul.bf16.gmra.mxu0 %v9058
        %v9393 = vpop.f32.mrf.mxu0
        %v9394 = vadd.f32 %v9180, %v9393
        %v9395 = vpop.f32.mrf.mxu0
        %v9396 = vadd.f32 %v9180, %v9395
        %9397 = vmatmul.bf16.gmra.mxu0 %v9062
        %v9398 = vpop.f32.mrf.mxu0
        %v9399 = vadd.f32 %v9180, %v9398
        %v9400 = vpop.f32.mrf.mxu0
        %v9401 = vadd.f32 %v9180, %v9400
        %9402 = vmatmul.bf16.gmra.mxu0 %v9066
        %v9403 = vpop.f32.mrf.mxu0
        %v9404 = vadd.f32 %v9180, %v9403
        %v9405 = vpop.f32.mrf.mxu0
        %v9406 = vadd.f32 %v9180, %v9405
        %9407 = vmatmul.bf16.gmra.mxu0 %v9070
        %v9408 = vpop.f32.mrf.mxu0
        %v9409 = vadd.f32 %v9180, %v9408
        %v9410 = vpop.f32.mrf.mxu0
        %v9411 = vadd.f32 %v9180, %v9410
        %9412 = vmatmul.bf16.gmra.mxu0 %v9074
        %v9413 = vpop.f32.mrf.mxu0
        %v9414 = vadd.f32 %v9180, %v9413
        %v9415 = vpop.f32.mrf.mxu0
        %v9416 = vadd.f32 %v9180, %v9415
        %9417 = vmatmul.bf16.gmra.mxu0 %v9078
        %v9418 = vpop.f32.mrf.mxu0
        %v9419 = vadd.f32 %v9180, %v9418
        %v9420 = vpop.f32.mrf.mxu0
        %v9421 = vadd.f32 %v9180, %v9420
        %9422 = vmatmul.bf16.gmra.mxu0 %v9082
        %v9423 = vpop.f32.mrf.mxu0
        %v9424 = vadd.f32 %v9180, %v9423
        %v9425 = vpop.f32.mrf.mxu0
        %v9426 = vadd.f32 %v9180, %v9425
        %9427 = vmatmul.bf16.gmra.mxu0 %v9086
        %v9428 = vpop.f32.mrf.mxu0
        %v9429 = vadd.f32 %v9180, %v9428
        %v9430 = vpop.f32.mrf.mxu0
        %v9431 = vadd.f32 %v9180, %v9430
        %9432 = vmatmul.bf16.gmra.mxu0 %v9090
        %v9433 = vpop.f32.mrf.mxu0
        %v9434 = vadd.f32 %v9180, %v9433
        %v9435 = vpop.f32.mrf.mxu0
        %v9436 = vadd.f32 %v9180, %v9435
        %9437 = vmatmul.bf16.gmra.mxu0 %v9094
        %v9438 = vpop.f32.mrf.mxu0
        %v9439 = vadd.f32 %v9180, %v9438
        %v9440 = vpop.f32.mrf.mxu0
        %v9441 = vadd.f32 %v9180, %v9440
        %9442 = vmatmul.bf16.gmra.mxu0 %v9098
        %v9443 = vpop.f32.mrf.mxu0
        %v9444 = vadd.f32 %v9180, %v9443
        %v9445 = vpop.f32.mrf.mxu0
        %v9446 = vadd.f32 %v9180, %v9445
        %9447 = vmatmul.bf16.gmra.mxu0 %v9102
        %v9448 = vpop.f32.mrf.mxu0
        %v9449 = vadd.f32 %v9180, %v9448
        %v9450 = vpop.f32.mrf.mxu0
        %v9451 = vadd.f32 %v9180, %v9450
        %9452 = vmatmul.bf16.gmra.mxu0 %v9106
        %v9453 = vpop.f32.mrf.mxu0
        %v9454 = vadd.f32 %v9180, %v9453
        %v9455 = vpop.f32.mrf.mxu0
        %v9456 = vadd.f32 %v9180, %v9455
        %9457 = vmatmul.bf16.gmra.mxu0 %v9110
        %v9458 = vpop.f32.mrf.mxu0
        %v9459 = vadd.f32 %v9180, %v9458
        %v9460 = vpop.f32.mrf.mxu0
        %v9461 = vadd.f32 %v9180, %v9460
        %9462 = vdwg.mxu0
        %9463 = vmatpush.bf16.msra.mxu0 %v9325
        %9464 = vmatpush.bf16.msra.mxu0 %v9324
        %9465 = vmatpush.bf16.msra.mxu0 %v9323
        %9466 = vmatpush.bf16.msra.mxu0 %v9322
        %9467 = vmatpush.bf16.msra.mxu0 %v9321
        %9468 = vmatpush.bf16.msra.mxu0 %v9320
        %9469 = vmatpush.bf16.msra.mxu0 %v9319
        %9470 = vmatpush.bf16.msra.mxu0 %v9318
        %9471 = vmatmul.bf16.gmra.mxu0 %v9051
        %v9472 = vpop.f32.mrf.mxu0
        %v9473 = vadd.f32 %v9384, %v9472
        %v9474 = vpop.f32.mrf.mxu0
        %v9475 = vadd.f32 %v9386, %v9474
        %9476 = vmatmul.bf16.gmra.mxu0 %v9055
        %v9477 = vpop.f32.mrf.mxu0
        %v9478 = vadd.f32 %v9389, %v9477
        %v9479 = vpop.f32.mrf.mxu0
        %v9480 = vadd.f32 %v9391, %v9479
        %9481 = vmatmul.bf16.gmra.mxu0 %v9059
        %v9482 = vpop.f32.mrf.mxu0
        %v9483 = vadd.f32 %v9394, %v9482
        %v9484 = vpop.f32.mrf.mxu0
        %v9485 = vadd.f32 %v9396, %v9484
        %9486 = vmatmul.bf16.gmra.mxu0 %v9063
        %v9487 = vpop.f32.mrf.mxu0
        %v9488 = vadd.f32 %v9399, %v9487
        %v9489 = vpop.f32.mrf.mxu0
        %v9490 = vadd.f32 %v9401, %v9489
        %9491 = vmatmul.bf16.gmra.mxu0 %v9067
        %v9492 = vpop.f32.mrf.mxu0
        %v9493 = vadd.f32 %v9404, %v9492
        %v9494 = vpop.f32.mrf.mxu0
        %v9495 = vadd.f32 %v9406, %v9494
        %9496 = vmatmul.bf16.gmra.mxu0 %v9071
        %v9497 = vpop.f32.mrf.mxu0
        %v9498 = vadd.f32 %v9409, %v9497
        %v9499 = vpop.f32.mrf.mxu0
        %v9500 = vadd.f32 %v9411, %v9499
        %9501 = vmatmul.bf16.gmra.mxu0 %v9075
        %v9502 = vpop.f32.mrf.mxu0
        %v9503 = vadd.f32 %v9414, %v9502
        %v9504 = vpop.f32.mrf.mxu0
        %v9505 = vadd.f32 %v9416, %v9504
        %9506 = vmatmul.bf16.gmra.mxu0 %v9079
        %v9507 = vpop.f32.mrf.mxu0
        %v9508 = vadd.f32 %v9419, %v9507
        %v9509 = vpop.f32.mrf.mxu0
        %v9510 = vadd.f32 %v9421, %v9509
        %9511 = vmatmul.bf16.gmra.mxu0 %v9083
        %v9512 = vpop.f32.mrf.mxu0
        %v9513 = vadd.f32 %v9424, %v9512
        %v9514 = vpop.f32.mrf.mxu0
        %v9515 = vadd.f32 %v9426, %v9514
        %9516 = vmatmul.bf16.gmra.mxu0 %v9087
        %v9517 = vpop.f32.mrf.mxu0
        %v9518 = vadd.f32 %v9429, %v9517
        %v9519 = vpop.f32.mrf.mxu0
        %v9520 = vadd.f32 %v9431, %v9519
        %9521 = vmatmul.bf16.gmra.mxu0 %v9091
        %v9522 = vpop.f32.mrf.mxu0
        %v9523 = vadd.f32 %v9434, %v9522
        %v9524 = vpop.f32.mrf.mxu0
        %v9525 = vadd.f32 %v9436, %v9524
        %9526 = vmatmul.bf16.gmra.mxu0 %v9095
        %v9527 = vpop.f32.mrf.mxu0
        %v9528 = vadd.f32 %v9439, %v9527
        %v9529 = vpop.f32.mrf.mxu0
        %v9530 = vadd.f32 %v9441, %v9529
        %9531 = vmatmul.bf16.gmra.mxu0 %v9099
        %v9532 = vpop.f32.mrf.mxu0
        %v9533 = vadd.f32 %v9444, %v9532
        %v9534 = vpop.f32.mrf.mxu0
        %v9535 = vadd.f32 %v9446, %v9534
        %9536 = vmatmul.bf16.gmra.mxu0 %v9103
        %v9537 = vpop.f32.mrf.mxu0
        %v9538 = vadd.f32 %v9449, %v9537
        %v9539 = vpop.f32.mrf.mxu0
        %v9540 = vadd.f32 %v9451, %v9539
        %9541 = vmatmul.bf16.gmra.mxu0 %v9107
        %v9542 = vpop.f32.mrf.mxu0
        %v9543 = vadd.f32 %v9454, %v9542
        %v9544 = vpop.f32.mrf.mxu0
        %v9545 = vadd.f32 %v9456, %v9544
        %9546 = vmatmul.bf16.gmra.mxu0 %v9111
        %v9547 = vpop.f32.mrf.mxu0
        %v9548 = vadd.f32 %v9459, %v9547
        %v9549 = vpop.f32.mrf.mxu0
        %v9550 = vadd.f32 %v9461, %v9549
        %9551 = vdwg.mxu0
        %9552 = vmatpush.bf16.msra.mxu0 %v9333
        %9553 = vmatpush.bf16.msra.mxu0 %v9332
        %9554 = vmatpush.bf16.msra.mxu0 %v9331
        %9555 = vmatpush.bf16.msra.mxu0 %v9330
        %9556 = vmatpush.bf16.msra.mxu0 %v9329
        %9557 = vmatpush.bf16.msra.mxu0 %v9328
        %9558 = vmatpush.bf16.msra.mxu0 %v9327
        %9559 = vmatpush.bf16.msra.mxu0 %v9326
        %9560 = vmatmul.bf16.gmra.mxu0 %v9052
        %v9561 = vpop.f32.mrf.mxu0
        %v9562 = vadd.f32 %v9473, %v9561
        %v9563 = vpop.f32.mrf.mxu0
        %v9564 = vadd.f32 %v9475, %v9563
        %9565 = vmatmul.bf16.gmra.mxu0 %v9056
        %v9566 = vpop.f32.mrf.mxu0
        %v9567 = vadd.f32 %v9478, %v9566
        %v9568 = vpop.f32.mrf.mxu0
        %v9569 = vadd.f32 %v9480, %v9568
        %9570 = vmatmul.bf16.gmra.mxu0 %v9060
        %v9571 = vpop.f32.mrf.mxu0
        %v9572 = vadd.f32 %v9483, %v9571
        %v9573 = vpop.f32.mrf.mxu0
        %v9574 = vadd.f32 %v9485, %v9573
        %9575 = vmatmul.bf16.gmra.mxu0 %v9064
        %v9576 = vpop.f32.mrf.mxu0
        %v9577 = vadd.f32 %v9488, %v9576
        %v9578 = vpop.f32.mrf.mxu0
        %v9579 = vadd.f32 %v9490, %v9578
        %9580 = vmatmul.bf16.gmra.mxu0 %v9068
        %v9581 = vpop.f32.mrf.mxu0
        %v9582 = vadd.f32 %v9493, %v9581
        %v9583 = vpop.f32.mrf.mxu0
        %v9584 = vadd.f32 %v9495, %v9583
        %9585 = vmatmul.bf16.gmra.mxu0 %v9072
        %v9586 = vpop.f32.mrf.mxu0
        %v9587 = vadd.f32 %v9498, %v9586
        %v9588 = vpop.f32.mrf.mxu0
        %v9589 = vadd.f32 %v9500, %v9588
        %9590 = vmatmul.bf16.gmra.mxu0 %v9076
        %v9591 = vpop.f32.mrf.mxu0
        %v9592 = vadd.f32 %v9503, %v9591
        %v9593 = vpop.f32.mrf.mxu0
        %v9594 = vadd.f32 %v9505, %v9593
        %9595 = vmatmul.bf16.gmra.mxu0 %v9080
        %v9596 = vpop.f32.mrf.mxu0
        %v9597 = vadd.f32 %v9508, %v9596
        %v9598 = vpop.f32.mrf.mxu0
        %v9599 = vadd.f32 %v9510, %v9598
        %9600 = vmatmul.bf16.gmra.mxu0 %v9084
        %v9601 = vpop.f32.mrf.mxu0
        %v9602 = vadd.f32 %v9513, %v9601
        %v9603 = vpop.f32.mrf.mxu0
        %v9604 = vadd.f32 %v9515, %v9603
        %9605 = vmatmul.bf16.gmra.mxu0 %v9088
        %v9606 = vpop.f32.mrf.mxu0
        %v9607 = vadd.f32 %v9518, %v9606
        %v9608 = vpop.f32.mrf.mxu0
        %v9609 = vadd.f32 %v9520, %v9608
        %9610 = vmatmul.bf16.gmra.mxu0 %v9092
        %v9611 = vpop.f32.mrf.mxu0
        %v9612 = vadd.f32 %v9523, %v9611
        %v9613 = vpop.f32.mrf.mxu0
        %v9614 = vadd.f32 %v9525, %v9613
        %9615 = vmatmul.bf16.gmra.mxu0 %v9096
        %v9616 = vpop.f32.mrf.mxu0
        %v9617 = vadd.f32 %v9528, %v9616
        %v9618 = vpop.f32.mrf.mxu0
        %v9619 = vadd.f32 %v9530, %v9618
        %9620 = vmatmul.bf16.gmra.mxu0 %v9100
        %v9621 = vpop.f32.mrf.mxu0
        %v9622 = vadd.f32 %v9533, %v9621
        %v9623 = vpop.f32.mrf.mxu0
        %v9624 = vadd.f32 %v9535, %v9623
        %9625 = vmatmul.bf16.gmra.mxu0 %v9104
        %v9626 = vpop.f32.mrf.mxu0
        %v9627 = vadd.f32 %v9538, %v9626
        %v9628 = vpop.f32.mrf.mxu0
        %v9629 = vadd.f32 %v9540, %v9628
        %9630 = vmatmul.bf16.gmra.mxu0 %v9108
        %v9631 = vpop.f32.mrf.mxu0
        %v9632 = vadd.f32 %v9543, %v9631
        %v9633 = vpop.f32.mrf.mxu0
        %v9634 = vadd.f32 %v9545, %v9633
        %9635 = vmatmul.bf16.gmra.mxu0 %v9112
        %v9636 = vpop.f32.mrf.mxu0
        %v9637 = vadd.f32 %v9548, %v9636
        %v9638 = vpop.f32.mrf.mxu0
        %v9639 = vadd.f32 %v9550, %v9638
        %9640 = vdwg.mxu0
        %9641 = vmatpush.bf16.msra.mxu0 %v9341
        %9642 = vmatpush.bf16.msra.mxu0 %v9340
        %9643 = vmatpush.bf16.msra.mxu0 %v9339
        %9644 = vmatpush.bf16.msra.mxu0 %v9338
        %9645 = vmatpush.bf16.msra.mxu0 %v9337
        %9646 = vmatpush.bf16.msra.mxu0 %v9336
        %9647 = vmatpush.bf16.msra.mxu0 %v9335
        %9648 = vmatpush.bf16.msra.mxu0 %v9334
        %9649 = vmatmul.bf16.gmra.mxu0 %v9053
        %v9650 = vpop.f32.mrf.mxu0
        %v9651 = vadd.f32 %v9562, %v9650
        %v9652 = vpop.f32.mrf.mxu0
        %v9653 = vadd.f32 %v9564, %v9652
        %9654 = vmatmul.bf16.gmra.mxu0 %v9057
        %v9655 = vpop.f32.mrf.mxu0
        %v9656 = vadd.f32 %v9567, %v9655
        %v9657 = vpop.f32.mrf.mxu0
        %v9658 = vadd.f32 %v9569, %v9657
        %9659 = vmatmul.bf16.gmra.mxu0 %v9061
        %v9660 = vpop.f32.mrf.mxu0
        %v9661 = vadd.f32 %v9572, %v9660
        %v9662 = vpop.f32.mrf.mxu0
        %v9663 = vadd.f32 %v9574, %v9662
        %9664 = vmatmul.bf16.gmra.mxu0 %v9065
        %v9665 = vpop.f32.mrf.mxu0
        %v9666 = vadd.f32 %v9577, %v9665
        %v9667 = vpop.f32.mrf.mxu0
        %v9668 = vadd.f32 %v9579, %v9667
        %9669 = vmatmul.bf16.gmra.mxu0 %v9069
        %v9670 = vpop.f32.mrf.mxu0
        %v9671 = vadd.f32 %v9582, %v9670
        %v9672 = vpop.f32.mrf.mxu0
        %v9673 = vadd.f32 %v9584, %v9672
        %9674 = vmatmul.bf16.gmra.mxu0 %v9073
        %v9675 = vpop.f32.mrf.mxu0
        %v9676 = vadd.f32 %v9587, %v9675
        %v9677 = vpop.f32.mrf.mxu0
        %v9678 = vadd.f32 %v9589, %v9677
        %9679 = vmatmul.bf16.gmra.mxu0 %v9077
        %v9680 = vpop.f32.mrf.mxu0
        %v9681 = vadd.f32 %v9592, %v9680
        %v9682 = vpop.f32.mrf.mxu0
        %v9683 = vadd.f32 %v9594, %v9682
        %9684 = vmatmul.bf16.gmra.mxu0 %v9081
        %v9685 = vpop.f32.mrf.mxu0
        %v9686 = vadd.f32 %v9597, %v9685
        %v9687 = vpop.f32.mrf.mxu0
        %v9688 = vadd.f32 %v9599, %v9687
        %9689 = vmatmul.bf16.gmra.mxu0 %v9085
        %v9690 = vpop.f32.mrf.mxu0
        %v9691 = vadd.f32 %v9602, %v9690
        %v9692 = vpop.f32.mrf.mxu0
        %v9693 = vadd.f32 %v9604, %v9692
        %9694 = vmatmul.bf16.gmra.mxu0 %v9089
        %v9695 = vpop.f32.mrf.mxu0
        %v9696 = vadd.f32 %v9607, %v9695
        %v9697 = vpop.f32.mrf.mxu0
        %v9698 = vadd.f32 %v9609, %v9697
        %9699 = vmatmul.bf16.gmra.mxu0 %v9093
        %v9700 = vpop.f32.mrf.mxu0
        %v9701 = vadd.f32 %v9612, %v9700
        %v9702 = vpop.f32.mrf.mxu0
        %v9703 = vadd.f32 %v9614, %v9702
        %9704 = vmatmul.bf16.gmra.mxu0 %v9097
        %v9705 = vpop.f32.mrf.mxu0
        %v9706 = vadd.f32 %v9617, %v9705
        %v9707 = vpop.f32.mrf.mxu0
        %v9708 = vadd.f32 %v9619, %v9707
        %9709 = vmatmul.bf16.gmra.mxu0 %v9101
        %v9710 = vpop.f32.mrf.mxu0
        %v9711 = vadd.f32 %v9622, %v9710
        %v9712 = vpop.f32.mrf.mxu0
        %v9713 = vadd.f32 %v9624, %v9712
        %9714 = vmatmul.bf16.gmra.mxu0 %v9105
        %v9715 = vpop.f32.mrf.mxu0
        %v9716 = vadd.f32 %v9627, %v9715
        %v9717 = vpop.f32.mrf.mxu0
        %v9718 = vadd.f32 %v9629, %v9717
        %9719 = vmatmul.bf16.gmra.mxu0 %v9109
        %v9720 = vpop.f32.mrf.mxu0
        %v9721 = vadd.f32 %v9632, %v9720
        %v9722 = vpop.f32.mrf.mxu0
        %v9723 = vadd.f32 %v9634, %v9722
        %9724 = vmatmul.bf16.gmra.mxu0 %v9113
        %v9725 = vpop.f32.mrf.mxu0
        %v9726 = vadd.f32 %v9637, %v9725
        %v9727 = vpop.f32.mrf.mxu0
        %v9728 = vadd.f32 %v9639, %v9727
        %9729 = vdwg.mxu0
        %v9730 = vadd.f32 %v6580, %v9651
        %v9731 = vadd.f32 %v6581, %v9653
        %v9732 = vadd.f32 %v6582, %v9656
        %v9733 = vadd.f32 %v6583, %v9658
        %v9734 = vadd.f32 %v6584, %v9661
        %v9735 = vadd.f32 %v6585, %v9663
        %v9736 = vadd.f32 %v6586, %v9666
        %v9737 = vadd.f32 %v6587, %v9668
        %v9738 = vadd.f32 %v6588, %v9671
        %v9739 = vadd.f32 %v6589, %v9673
        %v9740 = vadd.f32 %v6590, %v9676
        %v9741 = vadd.f32 %v6591, %v9678
        %v9742 = vadd.f32 %v6592, %v9681
        %v9743 = vadd.f32 %v6593, %v9683
        %v9744 = vadd.f32 %v6594, %v9686
        %v9745 = vadd.f32 %v6595, %v9688
        %v9746 = vadd.f32 %v6596, %v9691
        %v9747 = vadd.f32 %v6597, %v9693
        %v9748 = vadd.f32 %v6598, %v9696
        %v9749 = vadd.f32 %v6599, %v9698
        %v9750 = vadd.f32 %v6600, %v9701
        %v9751 = vadd.f32 %v6601, %v9703
        %v9752 = vadd.f32 %v6602, %v9706
        %v9753 = vadd.f32 %v6603, %v9708
        %v9754 = vadd.f32 %v6604, %v9711
        %v9755 = vadd.f32 %v6605, %v9713
        %v9756 = vadd.f32 %v6606, %v9716
        %v9757 = vadd.f32 %v6607, %v9718
        %v9758 = vadd.f32 %v6608, %v9721
        %v9759 = vadd.f32 %v6609, %v9723
        %v9760 = vadd.f32 %v6610, %v9726
        %v9761 = vadd.f32 %v6611, %v9728
        %9762 = vst [vmem:[%s599] sm:$0xff] %v9730
        %9763 = vst [vmem:[%s599 + $0x8] sm:$0xff] %v9731
        %9764 = vst [vmem:[%s599 + $0x10] sm:$0xff] %v9732
        %9765 = vst [vmem:[%s599 + $0x18] sm:$0xff] %v9733
        %9766 = vst [vmem:[%s599 + $0x20] sm:$0xff] %v9734
        %9767 = vst [vmem:[%s599 + $0x28] sm:$0xff] %v9735
        %9768 = vst [vmem:[%s599 + $0x30] sm:$0xff] %v9736
        %9769 = vst [vmem:[%s599 + $0x38] sm:$0xff] %v9737
        %9770 = vst [vmem:[%s599 + $0x40] sm:$0xff] %v9738
        %9771 = vst [vmem:[%s599 + $0x48] sm:$0xff] %v9739
        %9772 = vst [vmem:[%s599 + $0x50] sm:$0xff] %v9740
        %9773 = vst [vmem:[%s599 + $0x58] sm:$0xff] %v9741
        %9774 = vst [vmem:[%s599 + $0x60] sm:$0xff] %v9742
        %9775 = vst [vmem:[%s599 + $0x68] sm:$0xff] %v9743
        %9776 = vst [vmem:[%s599 + $0x70] sm:$0xff] %v9744
        %9777 = vst [vmem:[%s599 + $0x78] sm:$0xff] %v9745
        %9778 = vst [vmem:[%s599 + $0x80] sm:$0xff] %v9746
        %9779 = vst [vmem:[%s599 + $0x88] sm:$0xff] %v9747
        %9780 = vst [vmem:[%s599 + $0x90] sm:$0xff] %v9748
        %9781 = vst [vmem:[%s599 + $0x98] sm:$0xff] %v9749
        %9782 = vst [vmem:[%s599 + $0xa0] sm:$0xff] %v9750
        %9783 = vst [vmem:[%s599 + $0xa8] sm:$0xff] %v9751
        %9784 = vst [vmem:[%s599 + $0xb0] sm:$0xff] %v9752
        %9785 = vst [vmem:[%s599 + $0xb8] sm:$0xff] %v9753
        %9786 = vst [vmem:[%s599 + $0xc0] sm:$0xff] %v9754
        %9787 = vst [vmem:[%s599 + $0xc8] sm:$0xff] %v9755
        %9788 = vst [vmem:[%s599 + $0xd0] sm:$0xff] %v9756
        %9789 = vst [vmem:[%s599 + $0xd8] sm:$0xff] %v9757
        %9790 = vst [vmem:[%s599 + $0xe0] sm:$0xff] %v9758
        %9791 = vst [vmem:[%s599 + $0xe8] sm:$0xff] %v9759
        %9792 = vst [vmem:[%s599 + $0xf0] sm:$0xff] %v9760
        %9793 = vst [vmem:[%s599 + $0xf8] sm:$0xff] %v9761
        %s9794 = sand.u32 %s321, 1
        %s9795 = scalar_lea.sflag [#allocation4], %s9794
        %s9796 = sand.u32 %s321, 1
        %s9797 = smul.addr %s9796, 256
        %s9798 = scalar_lea.vmem [#allocation19], %s9797
        // Predicated region
        $region113: #{tpu_custom_call.1} parent=71 // pred_check
          %p9799 = pneg %p331
        $region114: #{tpu_custom_call.1} parent=71 // pred_check_branch
          %9801 = sbr.rel (%p9799) target = $region116
        $region115: #{tpu_custom_call.1} parent=71 // pred_region
          %9803 = vsyncadd %s9795, 0
          %s9804 = smul.addr %s35, 32
          %s9805 = smul.addr %s9804, 8
          %s9806 = scalar_lea.hbm %s13, %s9805
          %s9807 = sshll.u32 %s9798, 4
          %s9808 = int_to_ptr.vmem [resolvable:$true] %s9807
          %s9809 = sshll.u32 %s9806, 4
          %s9810 = int_to_ptr.hbm [resolvable:$true] %s9809
          %9815 = dma.vmem_to_hbm [thread:$0]  %s9808, 4096, %s9810, %s9795, 128, 128, 8
        $region116: #{tpu_custom_call.1} parent=71 // pred_fallthru
          _
      $region72: #{tpu_custom_call.1} parent=5 // pred_fallthru
        _
      %p9816 = scmp.le.s32.totalorder 2, %s30
      // Predicated region
      $region117: #{tpu_custom_call.1} parent=5 // pred_check
        %p9817 = pneg %p9816
      $region118: #{tpu_custom_call.1} parent=5 // pred_check_branch
        %9819 = sbr.rel (%p9817) target = $region120
      $region119: #{tpu_custom_call.1} parent=5 // pred_region
        %s9820 = ssub.s32 %s30, 2
        // Predicated region
        $region121: #{tpu_custom_call.1} parent=119 // pred_check
          %p9821 = pneg %p337
        $region122: #{tpu_custom_call.1} parent=119 // pred_check_branch
          %9823 = sbr.rel (%p9821) target = $region124
        $region123: #{tpu_custom_call.1} parent=119 // pred_region
          %s9824 = sand.u32 %s322, 1
          %s9825 = scalar_lea.sflag [#allocation4], %s9824
          %s9826 = sand.u32 %s322, 1
          %s9827 = smul.addr %s9826, 256
          %s9828 = scalar_lea.vmem [#allocation19], %s9827
          %9830 = dma.done %s9825, 4096
        $region124: #{tpu_custom_call.1} parent=119 // pred_fallthru
          _
      $region120: #{tpu_custom_call.1} parent=5 // pred_fallthru
        _
    $region6: #{tpu_custom_call.1} parent=1 // loop_footer
      %s34 = sadd.s32 1, %s30
    $region7: #{tpu_custom_call.1} parent=1 // loop_footer_branch
      %29 = sbr.rel target = $region3
    $region8: #{tpu_custom_call.1} parent=1 // loop_exit
      _
    %9831 = vsyncpa [#allocation3], 1
    %s9832 = scalar_lea.sflag [#allocation3], 1
    %9833 = vsyncpa %s9832, 1
    %9834 = vsyncpa [#allocation6], 1
    %9835 = vsyncpa [#allocation9], 1
    %9836 = vsyncpa [#allocation12], 1
    %9837 = vsyncpa [#allocation15], 1
    %9838 = vsyncpa [#allocation18], 1
    %9839 = vsyncpa [#allocation4], 1
    %s9840 = scalar_lea.sflag [#allocation4], 1
    %9841 = vsyncpa %s9840, 1

</llo_original>
